<compile_context>
chip_gen: v5e
topology: v5e:2x2
jax: 0.10.0
libtpu: 0.0.40
codegen_flags: <defaults>
</compile_context>

<pallas_src>
import functools

import jax
import jax.numpy as jnp
from jax.experimental import pallas as pl
from jax.experimental.pallas import tpu as pltpu

EPS = 1e-5


def _default_vmem_limit():
    # ~3/4 of physical VMEM per generation (v5e/v6e: ~96 MiB, v7x: ~48 MiB).
    try:
        cap = int(pltpu.get_tpu_info().vmem_capacity_bytes)
        return int(min(max(cap * 3 // 4, 32 * 1024 * 1024), 100 * 1024 * 1024))
    except Exception:
        return 48 * 1024 * 1024


VMEM_LIMIT = _default_vmem_limit()


def _cparams(*semantics):
    return pltpu.CompilerParams(dimension_semantics=semantics,
                                vmem_limit_bytes=VMEM_LIMIT)


# --------------------------- BatchNorm statistics ---------------------------

def _bn_stats_kernel(x_ref, sum_ref, sq_ref):
    """Per-batch-item partial channel sum / sum-of-squares (reduced in wrapper)."""
    x = x_ref[0].astype(jnp.float32)                       # (H, W, C)
    s = jnp.sum(jnp.sum(x, axis=0), axis=0, keepdims=True)         # (1, C)
    q = jnp.sum(jnp.sum(x * x, axis=0), axis=0, keepdims=True)     # (1, C)
    sum_ref[...] = s.reshape(1, 1, -1)
    sq_ref[...] = q.reshape(1, 1, -1)


def bn_scale_shift(x_nhwc, gamma, beta):
    """Training-mode BN (batch stats, biased var, eps=1e-5) folded into per-channel
    (scale, shift): y = x * scale + shift."""
    n, h, w, c = x_nhwc.shape
    psum, psq = pl.pallas_call(
        _bn_stats_kernel,
        out_shape=(jax.ShapeDtypeStruct((n, 1, c), jnp.float32),
                   jax.ShapeDtypeStruct((n, 1, c), jnp.float32)),
        grid=(n,),
        in_specs=[pl.BlockSpec((1, h, w, c), lambda i: (i, 0, 0, 0))],
        out_specs=(pl.BlockSpec((1, 1, c), lambda i: (i, 0, 0)),
                   pl.BlockSpec((1, 1, c), lambda i: (i, 0, 0))),
        compiler_params=_cparams("parallel"),
    )(x_nhwc)
    m = float(n * h * w)
    s = jnp.sum(psum, axis=0)[0]
    q = jnp.sum(psq, axis=0)[0]
    mean = s / m
    # TODO(synk): E[x^2]-E[x]^2 is cancellation-prone for very large activations.
    var = q / m - mean * mean                              # biased variance
    scale = gamma.astype(jnp.float32) * jax.lax.rsqrt(var + EPS)
    shift = beta.astype(jnp.float32) - mean * scale
    return scale.reshape(1, c), shift.reshape(1, c)


# ----------------------- fused BN+ReLU -> 3x3 conv (+res) -------------------

def _conv3x3_kernel(*refs, taps, ho, wo, cin, has_residual):
    if has_residual:
        src_ref, mask_ref, scale_ref, shift_ref, w_ref, r_ref, o_ref = refs
    else:
        src_ref, mask_ref, scale_ref, shift_ref, w_ref, o_ref = refs
    scale = scale_ref[...]                                  # (1, Cin) f32
    shift = shift_ref[...]
    acc = None
    for t, (p, dy, dx) in enumerate(taps):
        # contiguous tap window of the padded / parity-decomposed source
        xs = src_ref[0, p, dy:dy + ho, dx:dx + wo, :].astype(jnp.float32)
        msk = mask_ref[p, dy:dy + ho, dx:dx + wo, :]        # (ho, wo, 1) validity
        a = jnp.maximum(xs * scale + shift, 0.0) * msk      # fused BN + ReLU + pad mask
        a = a.reshape(ho * wo, cin).astype(jnp.bfloat16)
        part = jnp.dot(a, w_ref[t * cin:(t + 1) * cin, :],
                       preferred_element_type=jnp.float32)
        acc = part if acc is None else acc + part
    if has_residual:
        acc = acc + r_ref[0].astype(jnp.float32)            # fused residual epilogue
    o_ref[0] = acc.astype(o_ref.dtype)


def _split_parity(xp, hs, ws):
    planes = []
    for py in range(2):
        for px in range(2):
            plane = xp[:, py::2, px::2, :][:, :hs, :ws, :]
            ph, pw = plane.shape[1], plane.shape[2]
            if ph < hs or pw < ws:
                plane = jnp.pad(plane, ((0, 0), (0, hs - ph), (0, ws - pw), (0, 0)))
            planes.append(plane)
    return jnp.stack(planes, axis=1)                        # (N, 4, hs, ws, C)


def _conv_src(x_nhwc, stride):
    """Padded (stride 1) or parity-decomposed (stride 2) conv source + static taps."""
    n, h, w, c = x_nhwc.shape
    ho = (h - 1) // stride + 1
    wo = (w - 1) // stride + 1
    xp = jnp.pad(x_nhwc, ((0, 0), (1, 1), (1, 1), (0, 0)))
    if stride == 1:
        src = xp[:, None]                                   # (N, 1, H+2, W+2, C)
        taps = tuple((0, ky, kx) for ky in range(3) for kx in range(3))
    elif stride == 2:
        hs, ws = ho + 1, wo + 1
        src = _split_parity(xp, hs, ws)                     # (N, 4, hs, ws, C)
        taps = tuple((2 * (ky % 2) + (kx % 2), ky // 2, kx // 2)
                     for ky in range(3) for kx in range(3))
    else:
        raise NotImplementedError("only stride 1 or 2")
    return src, taps, ho, wo


def conv3x3_bn_relu(x_nhwc, scale, shift, wmat, stride, residual=None,
                    out_dtype=jnp.bfloat16):
    """conv3x3(relu(bn(x))) [+ residual], pad=1, no bias.  wmat: (9*Cin, Cout) bf16."""
    n, h, w, c = x_nhwc.shape
    cout = wmat.shape[1]
    src, taps, ho, wo = _conv_src(x_nhwc.astype(jnp.bfloat16), stride)
    # validity mask (zeros exactly where conv zero-padding lives, post-BN)
    mask = _conv_src(jnp.ones((1, h, w, 1), jnp.float32), stride)[0][0]
    p_, hs, ws, _ = mask.shape

    kernel = functools.partial(_conv3x3_kernel, taps=taps, ho=ho, wo=wo, cin=c,
                               has_residual=residual is not None)
    in_specs = [
        pl.BlockSpec((1, p_, hs, ws, c), lambda i: (i, 0, 0, 0, 0)),
        pl.BlockSpec((p_, hs, ws, 1), lambda i: (0, 0, 0, 0)),
        pl.BlockSpec((1, c), lambda i: (0, 0)),
        pl.BlockSpec((1, c), lambda i: (0, 0)),
        pl.BlockSpec((9 * c, cout), lambda i: (0, 0)),       # weight stays VMEM-resident
    ]
    args = [src, mask, scale, shift, wmat]
    if residual is not None:
        in_specs.append(pl.BlockSpec((1, ho * wo, cout), lambda i: (i, 0, 0)))
        args.append(residual.reshape(n, ho * wo, cout).astype(jnp.bfloat16))

    out = pl.pallas_call(
        kernel,
        out_shape=jax.ShapeDtypeStruct((n, ho * wo, cout), out_dtype),
        grid=(n,),                                          # batch-parallel (megacore)
        in_specs=in_specs,
        out_specs=pl.BlockSpec((1, ho * wo, cout), lambda i: (i, 0, 0)),
        compiler_params=_cparams("parallel"),
    )(*args)
    return out.reshape(n, ho, wo, cout)


# ----------------------- fused BN+ReLU -> 1x1 shortcut ----------------------

def _conv1x1_kernel(x_ref, scale_ref, shift_ref, w_ref, o_ref):
    x = x_ref[0].astype(jnp.float32)                        # (M, Cin)
    y = jnp.maximum(x * scale_ref[...] + shift_ref[...], 0.0).astype(jnp.bfloat16)
    o_ref[0] = jnp.dot(y, w_ref[...],
                       preferred_element_type=jnp.float32).astype(o_ref.dtype)


def conv1x1_bn_relu(x_nhwc, scale, shift, wmat, stride, out_dtype=jnp.bfloat16):
    """convShortcut(relu(bn(x))): 1x1, pad=0, no bias.  wmat: (Cin, Cout) bf16."""
    n, h, w, c = x_nhwc.shape
    cout = wmat.shape[1]
    # TODO(synk): move the stride into the kernel (strided ref load) instead of
    # this wrapper-side strided slice.
    xs = x_nhwc[:, ::stride, ::stride, :].astype(jnp.bfloat16)
    ho, wo = xs.shape[1], xs.shape[2]
    a = xs.reshape(n, ho * wo, c)
    out = pl.pallas_call(
        _conv1x1_kernel,
        out_shape=jax.ShapeDtypeStruct((n, ho * wo, cout), out_dtype),
        grid=(n,),
        in_specs=[pl.BlockSpec((1, ho * wo, c), lambda i: (i, 0, 0)),
                  pl.BlockSpec((1, c), lambda i: (0, 0)),
                  pl.BlockSpec((1, c), lambda i: (0, 0)),
                  pl.BlockSpec((c, cout), lambda i: (0, 0))],
        out_specs=pl.BlockSpec((1, ho * wo, cout), lambda i: (i, 0, 0)),
        compiler_params=_cparams("parallel"),
    )(a, scale, shift, wmat)
    return out                                              # (N, Ho*Wo, Cout)


# ----------------------------- module in JAX --------------------------------

def _conv_weight(key, cout, cin, k):
    # WideResNet init: N(0, sqrt(2 / (k*k*cout)))
    fan = k * k * cout
    return jax.random.normal(key, (cout, cin, k, k), jnp.float32) * jnp.sqrt(2.0 / fan)


def _to_matmul_weight(w_oihw):
    # (Cout, Cin, kh, kw) -> (kh*kw*Cin, Cout), bf16, done once at init.
    cout, cin, kh, kw = w_oihw.shape
    return (jnp.transpose(w_oihw, (2, 3, 1, 0)).reshape(kh * kw * cin, cout)
            .astype(jnp.bfloat16))


def init_basic_block(key, in_planes, out_planes, stride):
    ks = jax.random.split(key, 7)
    equal_in_out = (in_planes == out_planes)
    p = {
        "bn1_gamma": 1.0 + 0.1 * jax.random.normal(ks[0], (in_planes,), jnp.float32),
        "bn1_beta": 0.1 * jax.random.normal(ks[1], (in_planes,), jnp.float32),
        "conv1_w": _to_matmul_weight(_conv_weight(ks[2], out_planes, in_planes, 3)),
        "bn2_gamma": 1.0 + 0.1 * jax.random.normal(ks[3], (out_planes,), jnp.float32),
        "bn2_beta": 0.1 * jax.random.normal(ks[4], (out_planes,), jnp.float32),
        "conv2_w": _to_matmul_weight(_conv_weight(ks[5], out_planes, out_planes, 3)),
    }
    if not equal_in_out:
        p["convsc_w"] = _to_matmul_weight(_conv_weight(ks[6], out_planes, in_planes, 1))
    return p, stride, equal_in_out


def basic_block_forward(params, x, stride, equal_in_out):
    # BN1 batch stats -> folded scale/shift (BN+ReLU applied inside the convs)
    scale1, shift1 = bn_scale_shift(x, params["bn1_gamma"], params["bn1_beta"])
    h1 = conv3x3_bn_relu(x, scale1, shift1, params["conv1_w"], stride)
    if equal_in_out:
        shortcut = x                                        # identity (raw x)
    else:
        shortcut = conv1x1_bn_relu(x, scale1, shift1, params["convsc_w"], stride)
    scale2, shift2 = bn_scale_shift(h1, params["bn2_gamma"], params["bn2_beta"])
    # dropout: drop_rate == 0.0 -> identity
    # conv2 with BN+ReLU prologue and the residual add fused in the epilogue.
    return conv3x3_bn_relu(h1, scale2, shift2, params["conv2_w"], 1,
                           residual=shortcut)


def init_network_block(key, n_layers, in_features, out_features, stride):
    keys = jax.random.split(key, n_layers)
    layers = []
    for i in range(int(n_layers)):
        in_p = in_features if i == 0 else out_features
        st = stride if i == 0 else 1
        layers.append(init_basic_block(keys[i], in_p, out_features, st))
    return layers


def network_block_forward(layers, x_nchw):
    # PyTorch is NCHW; use NHWC + bf16 activations on TPU, convert back at the end.
    x = jnp.transpose(x_nchw, (0, 2, 3, 1)).astype(jnp.bfloat16)
    for params, st, eq in layers:
        x = basic_block_forward(params, x, st, eq)
    return jnp.transpose(x, (0, 3, 1, 2)).astype(jnp.float32)


# --------------------------------- main --------------------------------------

if __name__ == "__main__":
    key = jax.random.PRNGKey(0)
    k_x, k_p = jax.random.split(key)

    # NetworkBlock(n_layers=2, in_features=4, out_features=8, block=BasicBlock,
    #              stride=2, drop_rate=0.0)
    n_layers, in_features, out_features, stride = 2, 4, 8, 2
    x = jax.random.normal(k_x, (2, in_features, 16, 16), jnp.float32)   # NCHW

    layers = init_network_block(k_p, n_layers, in_features, out_features, stride)
    fwd = jax.jit(lambda xin: network_block_forward(layers, xin))
    y = jax.block_until_ready(fwd(x))

    assert y.shape == (2, out_features, 8, 8), y.shape
    assert bool(jnp.all(jnp.isfinite(y)))
    print("KERNEL_OK")
</pallas_src>

<mosaic_0001>
module attributes {stable_mosaic.version = 11 : i64} {
  func.func @_bn_stats_kernel(%arg0: i32, %arg1: memref<1x16x16x4xbf16, #tpu.memory_space<vmem>>, %arg2: memref<1x1x4xf32, #tpu.memory_space<vmem>>, %arg3: memref<1x1x4xf32, #tpu.memory_space<vmem>>) attributes {dimension_semantics = [#tpu.dimension_semantics<parallel>], iteration_bounds = array<i64: 2>, scalar_prefetch = 0 : i64, scratch_operands = 0 : i64, tpu.core_type = #tpu.core_type<tc>, window_params = [{transform_indices = @transform_0, window_bounds = array<i64: 1, 16, 16, 4>}, {transform_indices = @transform_1, window_bounds = array<i64: 1, 1, 4>}, {transform_indices = @transform_2, window_bounds = array<i64: 1, 1, 4>}]} {
    %c0 = arith.constant 0 : index
    %c0_0 = arith.constant 0 : index
    %c0_1 = arith.constant 0 : index
    %c0_2 = arith.constant 0 : index
    %0 = vector.load %arg1[%c0, %c0_0, %c0_1, %c0_2] : memref<1x16x16x4xbf16, #tpu.memory_space<vmem>>, vector<1x16x16x4xbf16>
    %1 = vector.shape_cast %0 : vector<1x16x16x4xbf16> to vector<16x16x4xbf16>
    %2 = arith.extf %1 : vector<16x16x4xbf16> to vector<16x16x4xf32>
    %cst = arith.constant dense<0.000000e+00> : vector<16x4xf32>
    %3 = vector.multi_reduction <add>, %2, %cst [0] : vector<16x16x4xf32> to vector<16x4xf32>
    %cst_3 = arith.constant dense<0.000000e+00> : vector<4xf32>
    %4 = vector.multi_reduction <add>, %3, %cst_3 [0] : vector<16x4xf32> to vector<4xf32>
    %5 = vector.shape_cast %4 : vector<4xf32> to vector<1x4xf32>
    %6 = arith.mulf %2, %2 : vector<16x16x4xf32>
    %cst_4 = arith.constant dense<0.000000e+00> : vector<16x4xf32>
    %7 = vector.multi_reduction <add>, %6, %cst_4 [0] : vector<16x16x4xf32> to vector<16x4xf32>
    %cst_5 = arith.constant dense<0.000000e+00> : vector<4xf32>
    %8 = vector.multi_reduction <add>, %7, %cst_5 [0] : vector<16x4xf32> to vector<4xf32>
    %9 = vector.shape_cast %8 : vector<4xf32> to vector<1x4xf32>
    %10 = vector.shape_cast %5 : vector<1x4xf32> to vector<1x1x4xf32>
    %c0_6 = arith.constant 0 : index
    %c0_7 = arith.constant 0 : index
    %c0_8 = arith.constant 0 : index
    %11 = vector.load %arg2[%c0_6, %c0_7, %c0_8] : memref<1x1x4xf32, #tpu.memory_space<vmem>>, vector<1x1x4xf32>
    tpu.vector_store %arg2[%c0_6, %c0_7, %c0_8], %10 {strides = array<i32>} : memref<1x1x4xf32, #tpu.memory_space<vmem>>, vector<1x1x4xf32>,
    %12 = vector.shape_cast %9 : vector<1x4xf32> to vector<1x1x4xf32>
    %c0_9 = arith.constant 0 : index
    %c0_10 = arith.constant 0 : index
    %c0_11 = arith.constant 0 : index
    %13 = vector.load %arg3[%c0_9, %c0_10, %c0_11] : memref<1x1x4xf32, #tpu.memory_space<vmem>>, vector<1x1x4xf32>
    tpu.vector_store %arg3[%c0_9, %c0_10, %c0_11], %12 {strides = array<i32>} : memref<1x1x4xf32, #tpu.memory_space<vmem>>, vector<1x1x4xf32>,
    return
  }
  func.func @transform_0(%arg0: i32) -> (i32, i32, i32, i32) {
    %c0_i32 = arith.constant 0 : i32
    %c0_i32_0 = arith.constant 0 : i32
    %c0_i32_1 = arith.constant 0 : i32
    %c0_i32_2 = arith.constant 0 : i32
    return %arg0, %c0_i32, %c0_i32_0, %c0_i32_1 : i32, i32, i32, i32
  }
  func.func @transform_1(%arg0: i32) -> (i32, i32, i32) {
    %c0_i32 = arith.constant 0 : i32
    %c0_i32_0 = arith.constant 0 : i32
    %c0_i32_1 = arith.constant 0 : i32
    return %arg0, %c0_i32, %c0_i32_0 : i32, i32, i32
  }
  func.func @transform_2(%arg0: i32) -> (i32, i32, i32) {
    %c0_i32 = arith.constant 0 : i32
    %c0_i32_0 = arith.constant 0 : i32
    %c0_i32_1 = arith.constant 0 : i32
    return %arg0, %c0_i32, %c0_i32_0 : i32, i32, i32
  }
}

module attributes {stable_mosaic.version = 11 : i64} {
  func.func @_conv1x1_kernel(%arg0: i32, %arg1: memref<1x64x4xbf16, #tpu.memory_space<vmem>>, %arg2: memref<1x4xf32, #tpu.memory_space<vmem>>, %arg3: memref<1x4xf32, #tpu.memory_space<vmem>>, %arg4: memref<4x8xbf16, #tpu.memory_space<vmem>>, %arg5: memref<1x64x8xbf16, #tpu.memory_space<vmem>>) attributes {dimension_semantics = [#tpu.dimension_semantics<parallel>], iteration_bounds = array<i64: 2>, scalar_prefetch = 0 : i64, scratch_operands = 0 : i64, tpu.core_type = #tpu.core_type<tc>, window_params = [{transform_indices = @transform_0, window_bounds = array<i64: 1, 64, 4>}, {pipeline_mode = #tpu.pipeline_mode<synchronous>, transform_indices = @transform_1, window_bounds = array<i64: 1, 4>}, {pipeline_mode = #tpu.pipeline_mode<synchronous>, transform_indices = @transform_2, window_bounds = array<i64: 1, 4>}, {pipeline_mode = #tpu.pipeline_mode<synchronous>, transform_indices = @transform_3, window_bounds = array<i64: 4, 8>}, {transform_indices = @transform_4, window_bounds = array<i64: 1, 64, 8>}]} {
    %c0 = arith.constant 0 : index
    %c0_0 = arith.constant 0 : index
    %c0_1 = arith.constant 0 : index
    %0 = vector.load %arg1[%c0, %c0_0, %c0_1] : memref<1x64x4xbf16, #tpu.memory_space<vmem>>, vector<1x64x4xbf16>
    %1 = vector.shape_cast %0 : vector<1x64x4xbf16> to vector<64x4xbf16>
    %2 = arith.extf %1 : vector<64x4xbf16> to vector<64x4xf32>
    %c0_2 = arith.constant 0 : index
    %c0_3 = arith.constant 0 : index
    %3 = vector.load %arg2[%c0_2, %c0_3] : memref<1x4xf32, #tpu.memory_space<vmem>>, vector<1x4xf32>
    %4 = vector.broadcast %3 : vector<1x4xf32> to vector<64x4xf32>
    %5 = arith.mulf %2, %4 : vector<64x4xf32>
    %c0_4 = arith.constant 0 : index
    %c0_5 = arith.constant 0 : index
    %6 = vector.load %arg3[%c0_4, %c0_5] : memref<1x4xf32, #tpu.memory_space<vmem>>, vector<1x4xf32>
    %7 = vector.broadcast %6 : vector<1x4xf32> to vector<64x4xf32>
    %8 = arith.addf %5, %7 : vector<64x4xf32>
    %cst = arith.constant 0.000000e+00 : f32
    %9 = vector.broadcast %cst : f32 to vector<64x4xf32>
    %10 = arith.maximumf %8, %9 : vector<64x4xf32>
    %11 = arith.truncf %10 : vector<64x4xf32> to vector<64x4xbf16>
    %c0_6 = arith.constant 0 : index
    %c0_7 = arith.constant 0 : index
    %12 = vector.load %arg4[%c0_6, %c0_7] : memref<4x8xbf16, #tpu.memory_space<vmem>>, vector<4x8xbf16>
    %cst_8 = arith.constant dense<0.000000e+00> : vector<64x8xf32>
    %13 = tpu.matmul %11, %12, %cst_8 {dimension_numbers = #tpu.dot_dimension_numbers<[1], [0], [0], [1], [0, 0, 1, 1], [], []>} : vector<64x4xbf16>, vector<4x8xbf16>, vector<64x8xf32> -> vector<64x8xf32>
    %14 = arith.truncf %13 : vector<64x8xf32> to vector<64x8xbf16>
    %c0_9 = arith.constant 0 : index
    %c0_10 = arith.constant 0 : index
    %c0_11 = arith.constant 0 : index
    %15 = vector.load %arg5[%c0_9, %c0_10, %c0_11] : memref<1x64x8xbf16, #tpu.memory_space<vmem>>, vector<1x64x8xbf16>
    %16 = vector.shape_cast %15 : vector<1x64x8xbf16> to vector<64x8xbf16>
    %17 = vector.shape_cast %14 : vector<64x8xbf16> to vector<1x64x8xbf16>
    tpu.vector_store %arg5[%c0_9, %c0_10, %c0_11], %17 {strides = array<i32>} : memref<1x64x8xbf16, #tpu.memory_space<vmem>>, vector<1x64x8xbf16>,
    return
  }
  func.func @transform_0(%arg0: i32) -> (i32, i32, i32) {
    %c0_i32 = arith.constant 0 : i32
    %c0_i32_0 = arith.constant 0 : i32
    %c0_i32_1 = arith.constant 0 : i32
    return %arg0, %c0_i32, %c0_i32_0 : i32, i32, i32
  }
  func.func @transform_1(%arg0: i32) -> (i32, i32) {
    %c0_i32 = arith.constant 0 : i32
    %c0_i32_0 = arith.constant 0 : i32
    %c0_i32_1 = arith.constant 0 : i32
    return %c0_i32, %c0_i32_0 : i32, i32
  }
  func.func @transform_2(%arg0: i32) -> (i32, i32) {
    %c0_i32 = arith.constant 0 : i32
    %c0_i32_0 = arith.constant 0 : i32
    %c0_i32_1 = arith.constant 0 : i32
    return %c0_i32, %c0_i32_0 : i32, i32
  }
  func.func @transform_3(%arg0: i32) -> (i32, i32) {
    %c0_i32 = arith.constant 0 : i32
    %c0_i32_0 = arith.constant 0 : i32
    %c0_i32_1 = arith.constant 0 : i32
    return %c0_i32, %c0_i32_0 : i32, i32
  }
  func.func @transform_4(%arg0: i32) -> (i32, i32, i32) {
    %c0_i32 = arith.constant 0 : i32
    %c0_i32_0 = arith.constant 0 : i32
    %c0_i32_1 = arith.constant 0 : i32
    return %arg0, %c0_i32, %c0_i32_0 : i32, i32, i32
  }
}

module attributes {stable_mosaic.version = 11 : i64} {
  func.func @_conv3x3_kernel(%arg0: i32, %arg1: memref<1x4x9x9x4xbf16, #tpu.memory_space<vmem>>, %arg2: memref<4x9x9x1xf32, #tpu.memory_space<vmem>>, %arg3: memref<1x4xf32, #tpu.memory_space<vmem>>, %arg4: memref<1x4xf32, #tpu.memory_space<vmem>>, %arg5: memref<36x8xbf16, #tpu.memory_space<vmem>>, %arg6: memref<1x64x8xbf16, #tpu.memory_space<vmem>>) attributes {dimension_semantics = [#tpu.dimension_semantics<parallel>], iteration_bounds = array<i64: 2>, scalar_prefetch = 0 : i64, scratch_operands = 0 : i64, tpu.core_type = #tpu.core_type<tc>, window_params = [{transform_indices = @transform_0, window_bounds = array<i64: 1, 4, 9, 9, 4>}, {pipeline_mode = #tpu.pipeline_mode<synchronous>, transform_indices = @transform_1, window_bounds = array<i64: 4, 9, 9, 1>}, {pipeline_mode = #tpu.pipeline_mode<synchronous>, transform_indices = @transform_2, window_bounds = array<i64: 1, 4>}, {pipeline_mode = #tpu.pipeline_mode<synchronous>, transform_indices = @transform_3, window_bounds = array<i64: 1, 4>}, {pipeline_mode = #tpu.pipeline_mode<synchronous>, transform_indices = @transform_4, window_bounds = array<i64: 36, 8>}, {transform_indices = @transform_5, window_bounds = array<i64: 1, 64, 8>}]} {
    %c0 = arith.constant 0 : index
    %c0_0 = arith.constant 0 : index
    %0 = vector.load %arg3[%c0, %c0_0] : memref<1x4xf32, #tpu.memory_space<vmem>>, vector<1x4xf32>
    %c0_1 = arith.constant 0 : index
    %c0_2 = arith.constant 0 : index
    %1 = vector.load %arg4[%c0_1, %c0_2] : memref<1x4xf32, #tpu.memory_space<vmem>>, vector<1x4xf32>
    %c0_3 = arith.constant 0 : index
    %c0_4 = arith.constant 0 : index
    %c0_5 = arith.constant 0 : index
    %c0_6 = arith.constant 0 : index
    %c0_7 = arith.constant 0 : index
    %2 = vector.load %arg1[%c0_3, %c0_4, %c0_5, %c0_6, %c0_7] : memref<1x4x9x9x4xbf16, #tpu.memory_space<vmem>>, vector<1x1x8x8x4xbf16>
    %3 = vector.shape_cast %2 : vector<1x1x8x8x4xbf16> to vector<8x8x4xbf16>
    %4 = arith.extf %3 : vector<8x8x4xbf16> to vector<8x8x4xf32>
    %c0_8 = arith.constant 0 : index
    %c0_9 = arith.constant 0 : index
    %c0_10 = arith.constant 0 : index
    %c0_11 = arith.constant 0 : index
    %5 = vector.load %arg2[%c0_8, %c0_9, %c0_10, %c0_11] : memref<4x9x9x1xf32, #tpu.memory_space<vmem>>, vector<1x8x8x1xf32>
    %6 = vector.shape_cast %5 : vector<1x8x8x1xf32> to vector<8x8x1xf32>
    %7 = vector.shape_cast %0 : vector<1x4xf32> to vector<1x1x4xf32>
    %8 = vector.broadcast %7 : vector<1x1x4xf32> to vector<8x8x4xf32>
    %9 = arith.mulf %4, %8 : vector<8x8x4xf32>
    %10 = vector.shape_cast %1 : vector<1x4xf32> to vector<1x1x4xf32>
    %11 = vector.broadcast %10 : vector<1x1x4xf32> to vector<8x8x4xf32>
    %12 = arith.addf %9, %11 : vector<8x8x4xf32>
    %cst = arith.constant 0.000000e+00 : f32
    %13 = vector.broadcast %cst : f32 to vector<8x8x4xf32>
    %14 = arith.maximumf %12, %13 : vector<8x8x4xf32>
    %15 = vector.broadcast %6 : vector<8x8x1xf32> to vector<8x8x4xf32>
    %16 = arith.mulf %14, %15 : vector<8x8x4xf32>
    %17 = vector.shape_cast %16 : vector<8x8x4xf32> to vector<64x4xf32>
    %18 = arith.truncf %17 : vector<64x4xf32> to vector<64x4xbf16>
    %c0_12 = arith.constant 0 : index
    %c0_13 = arith.constant 0 : index
    %19 = vector.load %arg5[%c0_12, %c0_13] : memref<36x8xbf16, #tpu.memory_space<vmem>>, vector<4x8xbf16>
    %cst_14 = arith.constant dense<0.000000e+00> : vector<64x8xf32>
    %20 = tpu.matmul %18, %19, %cst_14 {dimension_numbers = #tpu.dot_dimension_numbers<[1], [0], [0], [1], [0, 0, 1, 1], [], []>} : vector<64x4xbf16>, vector<4x8xbf16>, vector<64x8xf32> -> vector<64x8xf32>
    %c0_15 = arith.constant 0 : index
    %c1 = arith.constant 1 : index
    %c0_16 = arith.constant 0 : index
    %c0_17 = arith.constant 0 : index
    %c0_18 = arith.constant 0 : index
    %21 = vector.load %arg1[%c0_15, %c1, %c0_16, %c0_17, %c0_18] : memref<1x4x9x9x4xbf16, #tpu.memory_space<vmem>>, vector<1x1x8x8x4xbf16>
    %22 = vector.shape_cast %21 : vector<1x1x8x8x4xbf16> to vector<8x8x4xbf16>
    %23 = arith.extf %22 : vector<8x8x4xbf16> to vector<8x8x4xf32>
    %c1_19 = arith.constant 1 : index
    %c0_20 = arith.constant 0 : index
    %c0_21 = arith.constant 0 : index
    %c0_22 = arith.constant 0 : index
    %24 = vector.load %arg2[%c1_19, %c0_20, %c0_21, %c0_22] : memref<4x9x9x1xf32, #tpu.memory_space<vmem>>, vector<1x8x8x1xf32>
    %25 = vector.shape_cast %24 : vector<1x8x8x1xf32> to vector<8x8x1xf32>
    %26 = vector.shape_cast %0 : vector<1x4xf32> to vector<1x1x4xf32>
    %27 = vector.broadcast %26 : vector<1x1x4xf32> to vector<8x8x4xf32>
    %28 = arith.mulf %23, %27 : vector<8x8x4xf32>
    %29 = vector.shape_cast %1 : vector<1x4xf32> to vector<1x1x4xf32>
    %30 = vector.broadcast %29 : vector<1x1x4xf32> to vector<8x8x4xf32>
    %31 = arith.addf %28, %30 : vector<8x8x4xf32>
    %cst_23 = arith.constant 0.000000e+00 : f32
    %32 = vector.broadcast %cst_23 : f32 to vector<8x8x4xf32>
    %33 = arith.maximumf %31, %32 : vector<8x8x4xf32>
    %34 = vector.broadcast %25 : vector<8x8x1xf32> to vector<8x8x4xf32>
    %35 = arith.mulf %33, %34 : vector<8x8x4xf32>
    %36 = vector.shape_cast %35 : vector<8x8x4xf32> to vector<64x4xf32>
    %37 = arith.truncf %36 : vector<64x4xf32> to vector<64x4xbf16>
    %c4 = arith.constant 4 : index
    %c0_24 = arith.constant 0 : index
    %38 = vector.load %arg5[%c4, %c0_24] : memref<36x8xbf16, #tpu.memory_space<vmem>>, vector<4x8xbf16>
    %cst_25 = arith.constant dense<0.000000e+00> : vector<64x8xf32>
    %39 = tpu.matmul %37, %38, %cst_25 {dimension_numbers = #tpu.dot_dimension_numbers<[1], [0], [0], [1], [0, 0, 1, 1], [], []>} : vector<64x4xbf16>, vector<4x8xbf16>, vector<64x8xf32> -> vector<64x8xf32>
    %40 = arith.addf %20, %39 : vector<64x8xf32>
    %c0_26 = arith.constant 0 : index
    %c0_27 = arith.constant 0 : index
    %c0_28 = arith.constant 0 : index
    %c1_29 = arith.constant 1 : index
    %c0_30 = arith.constant 0 : index
    %41 = vector.load %arg1[%c0_26, %c0_27, %c0_28, %c1_29, %c0_30] : memref<1x4x9x9x4xbf16, #tpu.memory_space<vmem>>, vector<1x1x8x8x4xbf16>
    %42 = vector.shape_cast %41 : vector<1x1x8x8x4xbf16> to vector<8x8x4xbf16>
    %43 = arith.extf %42 : vector<8x8x4xbf16> to vector<8x8x4xf32>
    %c0_31 = arith.constant 0 : index
    %c0_32 = arith.constant 0 : index
    %c1_33 = arith.constant 1 : index
    %c0_34 = arith.constant 0 : index
    %44 = vector.load %arg2[%c0_31, %c0_32, %c1_33, %c0_34] : memref<4x9x9x1xf32, #tpu.memory_space<vmem>>, vector<1x8x8x1xf32>
    %45 = vector.shape_cast %44 : vector<1x8x8x1xf32> to vector<8x8x1xf32>
    %46 = vector.shape_cast %0 : vector<1x4xf32> to vector<1x1x4xf32>
    %47 = vector.broadcast %46 : vector<1x1x4xf32> to vector<8x8x4xf32>
    %48 = arith.mulf %43, %47 : vector<8x8x4xf32>
    %49 = vector.shape_cast %1 : vector<1x4xf32> to vector<1x1x4xf32>
    %50 = vector.broadcast %49 : vector<1x1x4xf32> to vector<8x8x4xf32>
    %51 = arith.addf %48, %50 : vector<8x8x4xf32>
    %cst_35 = arith.constant 0.000000e+00 : f32
    %52 = vector.broadcast %cst_35 : f32 to vector<8x8x4xf32>
    %53 = arith.maximumf %51, %52 : vector<8x8x4xf32>
    %54 = vector.broadcast %45 : vector<8x8x1xf32> to vector<8x8x4xf32>
    %55 = arith.mulf %53, %54 : vector<8x8x4xf32>
    %56 = vector.shape_cast %55 : vector<8x8x4xf32> to vector<64x4xf32>
    %57 = arith.truncf %56 : vector<64x4xf32> to vector<64x4xbf16>
    %c8 = arith.constant 8 : index
    %c0_36 = arith.constant 0 : index
    %58 = vector.load %arg5[%c8, %c0_36] : memref<36x8xbf16, #tpu.memory_space<vmem>>, vector<4x8xbf16>
    %cst_37 = arith.constant dense<0.000000e+00> : vector<64x8xf32>
    %59 = tpu.matmul %57, %58, %cst_37 {dimension_numbers = #tpu.dot_dimension_numbers<[1], [0], [0], [1], [0, 0, 1, 1], [], []>} : vector<64x4xbf16>, vector<4x8xbf16>, vector<64x8xf32> -> vector<64x8xf32>
    %60 = arith.addf %40, %59 : vector<64x8xf32>
    %c0_38 = arith.constant 0 : index
    %c2 = arith.constant 2 : index
    %c0_39 = arith.constant 0 : index
    %c0_40 = arith.constant 0 : index
    %c0_41 = arith.constant 0 : index
    %61 = vector.load %arg1[%c0_38, %c2, %c0_39, %c0_40, %c0_41] : memref<1x4x9x9x4xbf16, #tpu.memory_space<vmem>>, vector<1x1x8x8x4xbf16>
    %62 = vector.shape_cast %61 : vector<1x1x8x8x4xbf16> to vector<8x8x4xbf16>
    %63 = arith.extf %62 : vector<8x8x4xbf16> to vector<8x8x4xf32>
    %c2_42 = arith.constant 2 : index
    %c0_43 = arith.constant 0 : index
    %c0_44 = arith.constant 0 : index
    %c0_45 = arith.constant 0 : index
    %64 = vector.load %arg2[%c2_42, %c0_43, %c0_44, %c0_45] : memref<4x9x9x1xf32, #tpu.memory_space<vmem>>, vector<1x8x8x1xf32>
    %65 = vector.shape_cast %64 : vector<1x8x8x1xf32> to vector<8x8x1xf32>
    %66 = vector.shape_cast %0 : vector<1x4xf32> to vector<1x1x4xf32>
    %67 = vector.broadcast %66 : vector<1x1x4xf32> to vector<8x8x4xf32>
    %68 = arith.mulf %63, %67 : vector<8x8x4xf32>
    %69 = vector.shape_cast %1 : vector<1x4xf32> to vector<1x1x4xf32>
    %70 = vector.broadcast %69 : vector<1x1x4xf32> to vector<8x8x4xf32>
    %71 = arith.addf %68, %70 : vector<8x8x4xf32>
    %cst_46 = arith.constant 0.000000e+00 : f32
    %72 = vector.broadcast %cst_46 : f32 to vector<8x8x4xf32>
    %73 = arith.maximumf %71, %72 : vector<8x8x4xf32>
    %74 = vector.broadcast %65 : vector<8x8x1xf32> to vector<8x8x4xf32>
    %75 = arith.mulf %73, %74 : vector<8x8x4xf32>
    %76 = vector.shape_cast %75 : vector<8x8x4xf32> to vector<64x4xf32>
    %77 = arith.truncf %76 : vector<64x4xf32> to vector<64x4xbf16>
    %c12 = arith.constant 12 : index
    %c0_47 = arith.constant 0 : index
    %78 = vector.load %arg5[%c12, %c0_47] : memref<36x8xbf16, #tpu.memory_space<vmem>>, vector<4x8xbf16>
    %cst_48 = arith.constant dense<0.000000e+00> : vector<64x8xf32>
    %79 = tpu.matmul %77, %78, %cst_48 {dimension_numbers = #tpu.dot_dimension_numbers<[1], [0], [0], [1], [0, 0, 1, 1], [], []>} : vector<64x4xbf16>, vector<4x8xbf16>, vector<64x8xf32> -> vector<64x8xf32>
    %80 = arith.addf %60, %79 : vector<64x8xf32>
    %c0_49 = arith.constant 0 : index
    %c3 = arith.constant 3 : index
    %c0_50 = arith.constant 0 : index
    %c0_51 = arith.constant 0 : index
    %c0_52 = arith.constant 0 : index
    %81 = vector.load %arg1[%c0_49, %c3, %c0_50, %c0_51, %c0_52] : memref<1x4x9x9x4xbf16, #tpu.memory_space<vmem>>, vector<1x1x8x8x4xbf16>
    %82 = vector.shape_cast %81 : vector<1x1x8x8x4xbf16> to vector<8x8x4xbf16>
    %83 = arith.extf %82 : vector<8x8x4xbf16> to vector<8x8x4xf32>
    %c3_53 = arith.constant 3 : index
    %c0_54 = arith.constant 0 : index
    %c0_55 = arith.constant 0 : index
    %c0_56 = arith.constant 0 : index
    %84 = vector.load %arg2[%c3_53, %c0_54, %c0_55, %c0_56] : memref<4x9x9x1xf32, #tpu.memory_space<vmem>>, vector<1x8x8x1xf32>
    %85 = vector.shape_cast %84 : vector<1x8x8x1xf32> to vector<8x8x1xf32>
    %86 = vector.shape_cast %0 : vector<1x4xf32> to vector<1x1x4xf32>
    %87 = vector.broadcast %86 : vector<1x1x4xf32> to vector<8x8x4xf32>
    %88 = arith.mulf %83, %87 : vector<8x8x4xf32>
    %89 = vector.shape_cast %1 : vector<1x4xf32> to vector<1x1x4xf32>
    %90 = vector.broadcast %89 : vector<1x1x4xf32> to vector<8x8x4xf32>
    %91 = arith.addf %88, %90 : vector<8x8x4xf32>
    %cst_57 = arith.constant 0.000000e+00 : f32
    %92 = vector.broadcast %cst_57 : f32 to vector<8x8x4xf32>
    %93 = arith.maximumf %91, %92 : vector<8x8x4xf32>
    %94 = vector.broadcast %85 : vector<8x8x1xf32> to vector<8x8x4xf32>
    %95 = arith.mulf %93, %94 : vector<8x8x4xf32>
    %96 = vector.shape_cast %95 : vector<8x8x4xf32> to vector<64x4xf32>
    %97 = arith.truncf %96 : vector<64x4xf32> to vector<64x4xbf16>
    %c16 = arith.constant 16 : index
    %c0_58 = arith.constant 0 : index
    %98 = vector.load %arg5[%c16, %c0_58] : memref<36x8xbf16, #tpu.memory_space<vmem>>, vector<4x8xbf16>
    %cst_59 = arith.constant dense<0.000000e+00> : vector<64x8xf32>
    %99 = tpu.matmul %97, %98, %cst_59 {dimension_numbers = #tpu.dot_dimension_numbers<[1], [0], [0], [1], [0, 0, 1, 1], [], []>} : vector<64x4xbf16>, vector<4x8xbf16>, vector<64x8xf32> -> vector<64x8xf32>
    %100 = arith.addf %80, %99 : vector<64x8xf32>
    %c0_60 = arith.constant 0 : index
    %c2_61 = arith.constant 2 : index
    %c0_62 = arith.constant 0 : index
    %c1_63 = arith.constant 1 : index
    %c0_64 = arith.constant 0 : index
    %101 = vector.load %arg1[%c0_60, %c2_61, %c0_62, %c1_63, %c0_64] : memref<1x4x9x9x4xbf16, #tpu.memory_space<vmem>>, vector<1x1x8x8x4xbf16>
    %102 = vector.shape_cast %101 : vector<1x1x8x8x4xbf16> to vector<8x8x4xbf16>
    %103 = arith.extf %102 : vector<8x8x4xbf16> to vector<8x8x4xf32>
    %c2_65 = arith.constant 2 : index
    %c0_66 = arith.constant 0 : index
    %c1_67 = arith.constant 1 : index
    %c0_68 = arith.constant 0 : index
    %104 = vector.load %arg2[%c2_65, %c0_66, %c1_67, %c0_68] : memref<4x9x9x1xf32, #tpu.memory_space<vmem>>, vector<1x8x8x1xf32>
    %105 = vector.shape_cast %104 : vector<1x8x8x1xf32> to vector<8x8x1xf32>
    %106 = vector.shape_cast %0 : vector<1x4xf32> to vector<1x1x4xf32>
    %107 = vector.broadcast %106 : vector<1x1x4xf32> to vector<8x8x4xf32>
    %108 = arith.mulf %103, %107 : vector<8x8x4xf32>
    %109 = vector.shape_cast %1 : vector<1x4xf32> to vector<1x1x4xf32>
    %110 = vector.broadcast %109 : vector<1x1x4xf32> to vector<8x8x4xf32>
    %111 = arith.addf %108, %110 : vector<8x8x4xf32>
    %cst_69 = arith.constant 0.000000e+00 : f32
    %112 = vector.broadcast %cst_69 : f32 to vector<8x8x4xf32>
    %113 = arith.maximumf %111, %112 : vector<8x8x4xf32>
    %114 = vector.broadcast %105 : vector<8x8x1xf32> to vector<8x8x4xf32>
    %115 = arith.mulf %113, %114 : vector<8x8x4xf32>
    %116 = vector.shape_cast %115 : vector<8x8x4xf32> to vector<64x4xf32>
    %117 = arith.truncf %116 : vector<64x4xf32> to vector<64x4xbf16>
    %c20 = arith.constant 20 : index
    %c0_70 = arith.constant 0 : index
    %118 = vector.load %arg5[%c20, %c0_70] : memref<36x8xbf16, #tpu.memory_space<vmem>>, vector<4x8xbf16>
    %cst_71 = arith.constant dense<0.000000e+00> : vector<64x8xf32>
    %119 = tpu.matmul %117, %118, %cst_71 {dimension_numbers = #tpu.dot_dimension_numbers<[1], [0], [0], [1], [0, 0, 1, 1], [], []>} : vector<64x4xbf16>, vector<4x8xbf16>, vector<64x8xf32> -> vector<64x8xf32>
    %120 = arith.addf %100, %119 : vector<64x8xf32>
    %c0_72 = arith.constant 0 : index
    %c0_73 = arith.constant 0 : index
    %c1_74 = arith.constant 1 : index
    %c0_75 = arith.constant 0 : index
    %c0_76 = arith.constant 0 : index
    %121 = vector.load %arg1[%c0_72, %c0_73, %c1_74, %c0_75, %c0_76] : memref<1x4x9x9x4xbf16, #tpu.memory_space<vmem>>, vector<1x1x8x8x4xbf16>
    %122 = vector.shape_cast %121 : vector<1x1x8x8x4xbf16> to vector<8x8x4xbf16>
    %123 = arith.extf %122 : vector<8x8x4xbf16> to vector<8x8x4xf32>
    %c0_77 = arith.constant 0 : index
    %c1_78 = arith.constant 1 : index
    %c0_79 = arith.constant 0 : index
    %c0_80 = arith.constant 0 : index
    %124 = vector.load %arg2[%c0_77, %c1_78, %c0_79, %c0_80] : memref<4x9x9x1xf32, #tpu.memory_space<vmem>>, vector<1x8x8x1xf32>
    %125 = vector.shape_cast %124 : vector<1x8x8x1xf32> to vector<8x8x1xf32>
    %126 = vector.shape_cast %0 : vector<1x4xf32> to vector<1x1x4xf32>
    %127 = vector.broadcast %126 : vector<1x1x4xf32> to vector<8x8x4xf32>
    %128 = arith.mulf %123, %127 : vector<8x8x4xf32>
    %129 = vector.shape_cast %1 : vector<1x4xf32> to vector<1x1x4xf32>
    %130 = vector.broadcast %129 : vector<1x1x4xf32> to vector<8x8x4xf32>
    %131 = arith.addf %128, %130 : vector<8x8x4xf32>
    %cst_81 = arith.constant 0.000000e+00 : f32
    %132 = vector.broadcast %cst_81 : f32 to vector<8x8x4xf32>
    %133 = arith.maximumf %131, %132 : vector<8x8x4xf32>
    %134 = vector.broadcast %125 : vector<8x8x1xf32> to vector<8x8x4xf32>
    %135 = arith.mulf %133, %134 : vector<8x8x4xf32>
    %136 = vector.shape_cast %135 : vector<8x8x4xf32> to vector<64x4xf32>
    %137 = arith.truncf %136 : vector<64x4xf32> to vector<64x4xbf16>
    %c24 = arith.constant 24 : index
    %c0_82 = arith.constant 0 : index
    %138 = vector.load %arg5[%c24, %c0_82] : memref<36x8xbf16, #tpu.memory_space<vmem>>, vector<4x8xbf16>
    %cst_83 = arith.constant dense<0.000000e+00> : vector<64x8xf32>
    %139 = tpu.matmul %137, %138, %cst_83 {dimension_numbers = #tpu.dot_dimension_numbers<[1], [0], [0], [1], [0, 0, 1, 1], [], []>} : vector<64x4xbf16>, vector<4x8xbf16>, vector<64x8xf32> -> vector<64x8xf32>
    %140 = arith.addf %120, %139 : vector<64x8xf32>
    %c0_84 = arith.constant 0 : index
    %c1_85 = arith.constant 1 : index
    %c1_86 = arith.constant 1 : index
    %c0_87 = arith.constant 0 : index
    %c0_88 = arith.constant 0 : index
    %141 = vector.load %arg1[%c0_84, %c1_85, %c1_86, %c0_87, %c0_88] : memref<1x4x9x9x4xbf16, #tpu.memory_space<vmem>>, vector<1x1x8x8x4xbf16>
    %142 = vector.shape_cast %141 : vector<1x1x8x8x4xbf16> to vector<8x8x4xbf16>
    %143 = arith.extf %142 : vector<8x8x4xbf16> to vector<8x8x4xf32>
    %c1_89 = arith.constant 1 : index
    %c1_90 = arith.constant 1 : index
    %c0_91 = arith.constant 0 : index
    %c0_92 = arith.constant 0 : index
    %144 = vector.load %arg2[%c1_89, %c1_90, %c0_91, %c0_92] : memref<4x9x9x1xf32, #tpu.memory_space<vmem>>, vector<1x8x8x1xf32>
    %145 = vector.shape_cast %144 : vector<1x8x8x1xf32> to vector<8x8x1xf32>
    %146 = vector.shape_cast %0 : vector<1x4xf32> to vector<1x1x4xf32>
    %147 = vector.broadcast %146 : vector<1x1x4xf32> to vector<8x8x4xf32>
    %148 = arith.mulf %143, %147 : vector<8x8x4xf32>
    %149 = vector.shape_cast %1 : vector<1x4xf32> to vector<1x1x4xf32>
    %150 = vector.broadcast %149 : vector<1x1x4xf32> to vector<8x8x4xf32>
    %151 = arith.addf %148, %150 : vector<8x8x4xf32>
    %cst_93 = arith.constant 0.000000e+00 : f32
    %152 = vector.broadcast %cst_93 : f32 to vector<8x8x4xf32>
    %153 = arith.maximumf %151, %152 : vector<8x8x4xf32>
    %154 = vector.broadcast %145 : vector<8x8x1xf32> to vector<8x8x4xf32>
    %155 = arith.mulf %153, %154 : vector<8x8x4xf32>
    %156 = vector.shape_cast %155 : vector<8x8x4xf32> to vector<64x4xf32>
    %157 = arith.truncf %156 : vector<64x4xf32> to vector<64x4xbf16>
    %c28 = arith.constant 28 : index
    %c0_94 = arith.constant 0 : index
    %158 = vector.load %arg5[%c28, %c0_94] : memref<36x8xbf16, #tpu.memory_space<vmem>>, vector<4x8xbf16>
    %cst_95 = arith.constant dense<0.000000e+00> : vector<64x8xf32>
    %159 = tpu.matmul %157, %158, %cst_95 {dimension_numbers = #tpu.dot_dimension_numbers<[1], [0], [0], [1], [0, 0, 1, 1], [], []>} : vector<64x4xbf16>, vector<4x8xbf16>, vector<64x8xf32> -> vector<64x8xf32>
    %160 = arith.addf %140, %159 : vector<64x8xf32>
    %c0_96 = arith.constant 0 : index
    %c0_97 = arith.constant 0 : index
    %c1_98 = arith.constant 1 : index
    %c1_99 = arith.constant 1 : index
    %c0_100 = arith.constant 0 : index
    %161 = vector.load %arg1[%c0_96, %c0_97, %c1_98, %c1_99, %c0_100] : memref<1x4x9x9x4xbf16, #tpu.memory_space<vmem>>, vector<1x1x8x8x4xbf16>
    %162 = vector.shape_cast %161 : vector<1x1x8x8x4xbf16> to vector<8x8x4xbf16>
    %163 = arith.extf %162 : vector<8x8x4xbf16> to vector<8x8x4xf32>
    %c0_101 = arith.constant 0 : index
    %c1_102 = arith.constant 1 : index
    %c1_103 = arith.constant 1 : index
    %c0_104 = arith.constant 0 : index
    %164 = vector.load %arg2[%c0_101, %c1_102, %c1_103, %c0_104] : memref<4x9x9x1xf32, #tpu.memory_space<vmem>>, vector<1x8x8x1xf32>
    %165 = vector.shape_cast %164 : vector<1x8x8x1xf32> to vector<8x8x1xf32>
    %166 = vector.shape_cast %0 : vector<1x4xf32> to vector<1x1x4xf32>
    %167 = vector.broadcast %166 : vector<1x1x4xf32> to vector<8x8x4xf32>
    %168 = arith.mulf %163, %167 : vector<8x8x4xf32>
    %169 = vector.shape_cast %1 : vector<1x4xf32> to vector<1x1x4xf32>
    %170 = vector.broadcast %169 : vector<1x1x4xf32> to vector<8x8x4xf32>
    %171 = arith.addf %168, %170 : vector<8x8x4xf32>
    %cst_105 = arith.constant 0.000000e+00 : f32
    %172 = vector.broadcast %cst_105 : f32 to vector<8x8x4xf32>
    %173 = arith.maximumf %171, %172 : vector<8x8x4xf32>
    %174 = vector.broadcast %165 : vector<8x8x1xf32> to vector<8x8x4xf32>
    %175 = arith.mulf %173, %174 : vector<8x8x4xf32>
    %176 = vector.shape_cast %175 : vector<8x8x4xf32> to vector<64x4xf32>
    %177 = arith.truncf %176 : vector<64x4xf32> to vector<64x4xbf16>
    %c32 = arith.constant 32 : index
    %c0_106 = arith.constant 0 : index
    %178 = vector.load %arg5[%c32, %c0_106] : memref<36x8xbf16, #tpu.memory_space<vmem>>, vector<4x8xbf16>
    %cst_107 = arith.constant dense<0.000000e+00> : vector<64x8xf32>
    %179 = tpu.matmul %177, %178, %cst_107 {dimension_numbers = #tpu.dot_dimension_numbers<[1], [0], [0], [1], [0, 0, 1, 1], [], []>} : vector<64x4xbf16>, vector<4x8xbf16>, vector<64x8xf32> -> vector<64x8xf32>
    %180 = arith.addf %160, %179 : vector<64x8xf32>
    %181 = arith.truncf %180 : vector<64x8xf32> to vector<64x8xbf16>
    %c0_108 = arith.constant 0 : index
    %c0_109 = arith.constant 0 : index
    %c0_110 = arith.constant 0 : index
    %182 = vector.load %arg6[%c0_108, %c0_109, %c0_110] : memref<1x64x8xbf16, #tpu.memory_space<vmem>>, vector<1x64x8xbf16>
    %183 = vector.shape_cast %182 : vector<1x64x8xbf16> to vector<64x8xbf16>
    %184 = vector.shape_cast %181 : vector<64x8xbf16> to vector<1x64x8xbf16>
    tpu.vector_store %arg6[%c0_108, %c0_109, %c0_110], %184 {strides = array<i32>} : memref<1x64x8xbf16, #tpu.memory_space<vmem>>, vector<1x64x8xbf16>,
    return
  }
  func.func @transform_0(%arg0: i32) -> (i32, i32, i32, i32, i32) {
    %c0_i32 = arith.constant 0 : i32
    %c0_i32_0 = arith.constant 0 : i32
    %c0_i32_1 = arith.constant 0 : i32
    %c0_i32_2 = arith.constant 0 : i32
    %c0_i32_3 = arith.constant 0 : i32
    return %arg0, %c0_i32, %c0_i32_0, %c0_i32_1, %c0_i32_2 : i32, i32, i32, i32, i32
  }
  func.func @transform_1(%arg0: i32) -> (i32, i32, i32, i32) {
    %c0_i32 = arith.constant 0 : i32
    %c0_i32_0 = arith.constant 0 : i32
    %c0_i32_1 = arith.constant 0 : i32
    %c0_i32_2 = arith.constant 0 : i32
    %c0_i32_3 = arith.constant 0 : i32
    return %c0_i32, %c0_i32_0, %c0_i32_1, %c0_i32_2 : i32, i32, i32, i32
  }
  func.func @transform_2(%arg0: i32) -> (i32, i32) {
    %c0_i32 = arith.constant 0 : i32
    %c0_i32_0 = arith.constant 0 : i32
    %c0_i32_1 = arith.constant 0 : i32
    return %c0_i32, %c0_i32_0 : i32, i32
  }
  func.func @transform_3(%arg0: i32) -> (i32, i32) {
    %c0_i32 = arith.constant 0 : i32
    %c0_i32_0 = arith.constant 0 : i32
    %c0_i32_1 = arith.constant 0 : i32
    return %c0_i32, %c0_i32_0 : i32, i32
  }
  func.func @transform_4(%arg0: i32) -> (i32, i32) {
    %c0_i32 = arith.constant 0 : i32
    %c0_i32_0 = arith.constant 0 : i32
    %c0_i32_1 = arith.constant 0 : i32
    return %c0_i32, %c0_i32_0 : i32, i32
  }
  func.func @transform_5(%arg0: i32) -> (i32, i32, i32) {
    %c0_i32 = arith.constant 0 : i32
    %c0_i32_0 = arith.constant 0 : i32
    %c0_i32_1 = arith.constant 0 : i32
    return %arg0, %c0_i32, %c0_i32_0 : i32, i32, i32
  }
}

module attributes {stable_mosaic.version = 11 : i64} {
  func.func @_bn_stats_kernel(%arg0: i32, %arg1: memref<1x8x8x8xbf16, #tpu.memory_space<vmem>>, %arg2: memref<1x1x8xf32, #tpu.memory_space<vmem>>, %arg3: memref<1x1x8xf32, #tpu.memory_space<vmem>>) attributes {dimension_semantics = [#tpu.dimension_semantics<parallel>], iteration_bounds = array<i64: 2>, scalar_prefetch = 0 : i64, scratch_operands = 0 : i64, tpu.core_type = #tpu.core_type<tc>, window_params = [{transform_indices = @transform_0, window_bounds = array<i64: 1, 8, 8, 8>}, {transform_indices = @transform_1, window_bounds = array<i64: 1, 1, 8>}, {transform_indices = @transform_2, window_bounds = array<i64: 1, 1, 8>}]} {
    %c0 = arith.constant 0 : index
    %c0_0 = arith.constant 0 : index
    %c0_1 = arith.constant 0 : index
    %c0_2 = arith.constant 0 : index
    %0 = vector.load %arg1[%c0, %c0_0, %c0_1, %c0_2] : memref<1x8x8x8xbf16, #tpu.memory_space<vmem>>, vector<1x8x8x8xbf16>
    %1 = vector.shape_cast %0 : vector<1x8x8x8xbf16> to vector<8x8x8xbf16>
    %2 = arith.extf %1 : vector<8x8x8xbf16> to vector<8x8x8xf32>
    %cst = arith.constant dense<0.000000e+00> : vector<8x8xf32>
    %3 = vector.multi_reduction <add>, %2, %cst [0] : vector<8x8x8xf32> to vector<8x8xf32>
    %cst_3 = arith.constant dense<0.000000e+00> : vector<8xf32>
    %4 = vector.multi_reduction <add>, %3, %cst_3 [0] : vector<8x8xf32> to vector<8xf32>
    %5 = vector.shape_cast %4 : vector<8xf32> to vector<1x8xf32>
    %6 = arith.mulf %2, %2 : vector<8x8x8xf32>
    %cst_4 = arith.constant dense<0.000000e+00> : vector<8x8xf32>
    %7 = vector.multi_reduction <add>, %6, %cst_4 [0] : vector<8x8x8xf32> to vector<8x8xf32>
    %cst_5 = arith.constant dense<0.000000e+00> : vector<8xf32>
    %8 = vector.multi_reduction <add>, %7, %cst_5 [0] : vector<8x8xf32> to vector<8xf32>
    %9 = vector.shape_cast %8 : vector<8xf32> to vector<1x8xf32>
    %10 = vector.shape_cast %5 : vector<1x8xf32> to vector<1x1x8xf32>
    %c0_6 = arith.constant 0 : index
    %c0_7 = arith.constant 0 : index
    %c0_8 = arith.constant 0 : index
    %11 = vector.load %arg2[%c0_6, %c0_7, %c0_8] : memref<1x1x8xf32, #tpu.memory_space<vmem>>, vector<1x1x8xf32>
    tpu.vector_store %arg2[%c0_6, %c0_7, %c0_8], %10 {strides = array<i32>} : memref<1x1x8xf32, #tpu.memory_space<vmem>>, vector<1x1x8xf32>,
    %12 = vector.shape_cast %9 : vector<1x8xf32> to vector<1x1x8xf32>
    %c0_9 = arith.constant 0 : index
    %c0_10 = arith.constant 0 : index
    %c0_11 = arith.constant 0 : index
    %13 = vector.load %arg3[%c0_9, %c0_10, %c0_11] : memref<1x1x8xf32, #tpu.memory_space<vmem>>, vector<1x1x8xf32>
    tpu.vector_store %arg3[%c0_9, %c0_10, %c0_11], %12 {strides = array<i32>} : memref<1x1x8xf32, #tpu.memory_space<vmem>>, vector<1x1x8xf32>,
    return
  }
  func.func @transform_0(%arg0: i32) -> (i32, i32, i32, i32) {
    %c0_i32 = arith.constant 0 : i32
    %c0_i32_0 = arith.constant 0 : i32
    %c0_i32_1 = arith.constant 0 : i32
    %c0_i32_2 = arith.constant 0 : i32
    return %arg0, %c0_i32, %c0_i32_0, %c0_i32_1 : i32, i32, i32, i32
  }
  func.func @transform_1(%arg0: i32) -> (i32, i32, i32) {
    %c0_i32 = arith.constant 0 : i32
    %c0_i32_0 = arith.constant 0 : i32
    %c0_i32_1 = arith.constant 0 : i32
    return %arg0, %c0_i32, %c0_i32_0 : i32, i32, i32
  }
  func.func @transform_2(%arg0: i32) -> (i32, i32, i32) {
    %c0_i32 = arith.constant 0 : i32
    %c0_i32_0 = arith.constant 0 : i32
    %c0_i32_1 = arith.constant 0 : i32
    return %arg0, %c0_i32, %c0_i32_0 : i32, i32, i32
  }
}

module attributes {stable_mosaic.version = 11 : i64} {
  func.func @_conv3x3_kernel(%arg0: i32, %arg1: memref<1x1x10x10x8xbf16, #tpu.memory_space<vmem>>, %arg2: memref<1x10x10x1xf32, #tpu.memory_space<vmem>>, %arg3: memref<1x8xf32, #tpu.memory_space<vmem>>, %arg4: memref<1x8xf32, #tpu.memory_space<vmem>>, %arg5: memref<72x8xbf16, #tpu.memory_space<vmem>>, %arg6: memref<1x64x8xbf16, #tpu.memory_space<vmem>>, %arg7: memref<1x64x8xbf16, #tpu.memory_space<vmem>>) attributes {dimension_semantics = [#tpu.dimension_semantics<parallel>], iteration_bounds = array<i64: 2>, scalar_prefetch = 0 : i64, scratch_operands = 0 : i64, tpu.core_type = #tpu.core_type<tc>, window_params = [{transform_indices = @transform_0, window_bounds = array<i64: 1, 1, 10, 10, 8>}, {pipeline_mode = #tpu.pipeline_mode<synchronous>, transform_indices = @transform_1, window_bounds = array<i64: 1, 10, 10, 1>}, {pipeline_mode = #tpu.pipeline_mode<synchronous>, transform_indices = @transform_2, window_bounds = array<i64: 1, 8>}, {pipeline_mode = #tpu.pipeline_mode<synchronous>, transform_indices = @transform_3, window_bounds = array<i64: 1, 8>}, {pipeline_mode = #tpu.pipeline_mode<synchronous>, transform_indices = @transform_4, window_bounds = array<i64: 72, 8>}, {transform_indices = @transform_5, window_bounds = array<i64: 1, 64, 8>}, {transform_indices = @transform_6, window_bounds = array<i64: 1, 64, 8>}]} {
    %c0 = arith.constant 0 : index
    %c0_0 = arith.constant 0 : index
    %0 = vector.load %arg3[%c0, %c0_0] : memref<1x8xf32, #tpu.memory_space<vmem>>, vector<1x8xf32>
    %c0_1 = arith.constant 0 : index
    %c0_2 = arith.constant 0 : index
    %1 = vector.load %arg4[%c0_1, %c0_2] : memref<1x8xf32, #tpu.memory_space<vmem>>, vector<1x8xf32>
    %c0_3 = arith.constant 0 : index
    %c0_4 = arith.constant 0 : index
    %c0_5 = arith.constant 0 : index
    %c0_6 = arith.constant 0 : index
    %c0_7 = arith.constant 0 : index
    %2 = vector.load %arg1[%c0_3, %c0_4, %c0_5, %c0_6, %c0_7] : memref<1x1x10x10x8xbf16, #tpu.memory_space<vmem>>, vector<1x1x8x8x8xbf16>
    %3 = vector.shape_cast %2 : vector<1x1x8x8x8xbf16> to vector<8x8x8xbf16>
    %4 = arith.extf %3 : vector<8x8x8xbf16> to vector<8x8x8xf32>
    %c0_8 = arith.constant 0 : index
    %c0_9 = arith.constant 0 : index
    %c0_10 = arith.constant 0 : index
    %c0_11 = arith.constant 0 : index
    %5 = vector.load %arg2[%c0_8, %c0_9, %c0_10, %c0_11] : memref<1x10x10x1xf32, #tpu.memory_space<vmem>>, vector<1x8x8x1xf32>
    %6 = vector.shape_cast %5 : vector<1x8x8x1xf32> to vector<8x8x1xf32>
    %7 = vector.shape_cast %0 : vector<1x8xf32> to vector<1x1x8xf32>
    %8 = vector.broadcast %7 : vector<1x1x8xf32> to vector<8x8x8xf32>
    %9 = arith.mulf %4, %8 : vector<8x8x8xf32>
    %10 = vector.shape_cast %1 : vector<1x8xf32> to vector<1x1x8xf32>
    %11 = vector.broadcast %10 : vector<1x1x8xf32> to vector<8x8x8xf32>
    %12 = arith.addf %9, %11 : vector<8x8x8xf32>
    %cst = arith.constant 0.000000e+00 : f32
    %13 = vector.broadcast %cst : f32 to vector<8x8x8xf32>
    %14 = arith.maximumf %12, %13 : vector<8x8x8xf32>
    %15 = vector.broadcast %6 : vector<8x8x1xf32> to vector<8x8x8xf32>
    %16 = arith.mulf %14, %15 : vector<8x8x8xf32>
    %17 = vector.shape_cast %16 : vector<8x8x8xf32> to vector<64x8xf32>
    %18 = arith.truncf %17 : vector<64x8xf32> to vector<64x8xbf16>
    %c0_12 = arith.constant 0 : index
    %c0_13 = arith.constant 0 : index
    %19 = vector.load %arg5[%c0_12, %c0_13] : memref<72x8xbf16, #tpu.memory_space<vmem>>, vector<8x8xbf16>
    %cst_14 = arith.constant dense<0.000000e+00> : vector<64x8xf32>
    %20 = tpu.matmul %18, %19, %cst_14 {dimension_numbers = #tpu.dot_dimension_numbers<[1], [0], [0], [1], [0, 0, 1, 1], [], []>} : vector<64x8xbf16>, vector<8x8xbf16>, vector<64x8xf32> -> vector<64x8xf32>
    %c0_15 = arith.constant 0 : index
    %c0_16 = arith.constant 0 : index
    %c0_17 = arith.constant 0 : index
    %c1 = arith.constant 1 : index
    %c0_18 = arith.constant 0 : index
    %21 = vector.load %arg1[%c0_15, %c0_16, %c0_17, %c1, %c0_18] : memref<1x1x10x10x8xbf16, #tpu.memory_space<vmem>>, vector<1x1x8x8x8xbf16>
    %22 = vector.shape_cast %21 : vector<1x1x8x8x8xbf16> to vector<8x8x8xbf16>
    %23 = arith.extf %22 : vector<8x8x8xbf16> to vector<8x8x8xf32>
    %c0_19 = arith.constant 0 : index
    %c0_20 = arith.constant 0 : index
    %c1_21 = arith.constant 1 : index
    %c0_22 = arith.constant 0 : index
    %24 = vector.load %arg2[%c0_19, %c0_20, %c1_21, %c0_22] : memref<1x10x10x1xf32, #tpu.memory_space<vmem>>, vector<1x8x8x1xf32>
    %25 = vector.shape_cast %24 : vector<1x8x8x1xf32> to vector<8x8x1xf32>
    %26 = vector.shape_cast %0 : vector<1x8xf32> to vector<1x1x8xf32>
    %27 = vector.broadcast %26 : vector<1x1x8xf32> to vector<8x8x8xf32>
    %28 = arith.mulf %23, %27 : vector<8x8x8xf32>
    %29 = vector.shape_cast %1 : vector<1x8xf32> to vector<1x1x8xf32>
    %30 = vector.broadcast %29 : vector<1x1x8xf32> to vector<8x8x8xf32>
    %31 = arith.addf %28, %30 : vector<8x8x8xf32>
    %cst_23 = arith.constant 0.000000e+00 : f32
    %32 = vector.broadcast %cst_23 : f32 to vector<8x8x8xf32>
    %33 = arith.maximumf %31, %32 : vector<8x8x8xf32>
    %34 = vector.broadcast %25 : vector<8x8x1xf32> to vector<8x8x8xf32>
    %35 = arith.mulf %33, %34 : vector<8x8x8xf32>
    %36 = vector.shape_cast %35 : vector<8x8x8xf32> to vector<64x8xf32>
    %37 = arith.truncf %36 : vector<64x8xf32> to vector<64x8xbf16>
    %c8 = arith.constant 8 : index
    %c0_24 = arith.constant 0 : index
    %38 = vector.load %arg5[%c8, %c0_24] : memref<72x8xbf16, #tpu.memory_space<vmem>>, vector<8x8xbf16>
    %cst_25 = arith.constant dense<0.000000e+00> : vector<64x8xf32>
    %39 = tpu.matmul %37, %38, %cst_25 {dimension_numbers = #tpu.dot_dimension_numbers<[1], [0], [0], [1], [0, 0, 1, 1], [], []>} : vector<64x8xbf16>, vector<8x8xbf16>, vector<64x8xf32> -> vector<64x8xf32>
    %40 = arith.addf %20, %39 : vector<64x8xf32>
    %c0_26 = arith.constant 0 : index
    %c0_27 = arith.constant 0 : index
    %c0_28 = arith.constant 0 : index
    %c2 = arith.constant 2 : index
    %c0_29 = arith.constant 0 : index
    %41 = vector.load %arg1[%c0_26, %c0_27, %c0_28, %c2, %c0_29] : memref<1x1x10x10x8xbf16, #tpu.memory_space<vmem>>, vector<1x1x8x8x8xbf16>
    %42 = vector.shape_cast %41 : vector<1x1x8x8x8xbf16> to vector<8x8x8xbf16>
    %43 = arith.extf %42 : vector<8x8x8xbf16> to vector<8x8x8xf32>
    %c0_30 = arith.constant 0 : index
    %c0_31 = arith.constant 0 : index
    %c2_32 = arith.constant 2 : index
    %c0_33 = arith.constant 0 : index
    %44 = vector.load %arg2[%c0_30, %c0_31, %c2_32, %c0_33] : memref<1x10x10x1xf32, #tpu.memory_space<vmem>>, vector<1x8x8x1xf32>
    %45 = vector.shape_cast %44 : vector<1x8x8x1xf32> to vector<8x8x1xf32>
    %46 = vector.shape_cast %0 : vector<1x8xf32> to vector<1x1x8xf32>
    %47 = vector.broadcast %46 : vector<1x1x8xf32> to vector<8x8x8xf32>
    %48 = arith.mulf %43, %47 : vector<8x8x8xf32>
    %49 = vector.shape_cast %1 : vector<1x8xf32> to vector<1x1x8xf32>
    %50 = vector.broadcast %49 : vector<1x1x8xf32> to vector<8x8x8xf32>
    %51 = arith.addf %48, %50 : vector<8x8x8xf32>
    %cst_34 = arith.constant 0.000000e+00 : f32
    %52 = vector.broadcast %cst_34 : f32 to vector<8x8x8xf32>
    %53 = arith.maximumf %51, %52 : vector<8x8x8xf32>
    %54 = vector.broadcast %45 : vector<8x8x1xf32> to vector<8x8x8xf32>
    %55 = arith.mulf %53, %54 : vector<8x8x8xf32>
    %56 = vector.shape_cast %55 : vector<8x8x8xf32> to vector<64x8xf32>
    %57 = arith.truncf %56 : vector<64x8xf32> to vector<64x8xbf16>
    %c16 = arith.constant 16 : index
    %c0_35 = arith.constant 0 : index
    %58 = vector.load %arg5[%c16, %c0_35] : memref<72x8xbf16, #tpu.memory_space<vmem>>, vector<8x8xbf16>
    %cst_36 = arith.constant dense<0.000000e+00> : vector<64x8xf32>
    %59 = tpu.matmul %57, %58, %cst_36 {dimension_numbers = #tpu.dot_dimension_numbers<[1], [0], [0], [1], [0, 0, 1, 1], [], []>} : vector<64x8xbf16>, vector<8x8xbf16>, vector<64x8xf32> -> vector<64x8xf32>
    %60 = arith.addf %40, %59 : vector<64x8xf32>
    %c0_37 = arith.constant 0 : index
    %c0_38 = arith.constant 0 : index
    %c1_39 = arith.constant 1 : index
    %c0_40 = arith.constant 0 : index
    %c0_41 = arith.constant 0 : index
    %61 = vector.load %arg1[%c0_37, %c0_38, %c1_39, %c0_40, %c0_41] : memref<1x1x10x10x8xbf16, #tpu.memory_space<vmem>>, vector<1x1x8x8x8xbf16>
    %62 = vector.shape_cast %61 : vector<1x1x8x8x8xbf16> to vector<8x8x8xbf16>
    %63 = arith.extf %62 : vector<8x8x8xbf16> to vector<8x8x8xf32>
    %c0_42 = arith.constant 0 : index
    %c1_43 = arith.constant 1 : index
    %c0_44 = arith.constant 0 : index
    %c0_45 = arith.constant 0 : index
    %64 = vector.load %arg2[%c0_42, %c1_43, %c0_44, %c0_45] : memref<1x10x10x1xf32, #tpu.memory_space<vmem>>, vector<1x8x8x1xf32>
    %65 = vector.shape_cast %64 : vector<1x8x8x1xf32> to vector<8x8x1xf32>
    %66 = vector.shape_cast %0 : vector<1x8xf32> to vector<1x1x8xf32>
    %67 = vector.broadcast %66 : vector<1x1x8xf32> to vector<8x8x8xf32>
    %68 = arith.mulf %63, %67 : vector<8x8x8xf32>
    %69 = vector.shape_cast %1 : vector<1x8xf32> to vector<1x1x8xf32>
    %70 = vector.broadcast %69 : vector<1x1x8xf32> to vector<8x8x8xf32>
    %71 = arith.addf %68, %70 : vector<8x8x8xf32>
    %cst_46 = arith.constant 0.000000e+00 : f32
    %72 = vector.broadcast %cst_46 : f32 to vector<8x8x8xf32>
    %73 = arith.maximumf %71, %72 : vector<8x8x8xf32>
    %74 = vector.broadcast %65 : vector<8x8x1xf32> to vector<8x8x8xf32>
    %75 = arith.mulf %73, %74 : vector<8x8x8xf32>
    %76 = vector.shape_cast %75 : vector<8x8x8xf32> to vector<64x8xf32>
    %77 = arith.truncf %76 : vector<64x8xf32> to vector<64x8xbf16>
    %c24 = arith.constant 24 : index
    %c0_47 = arith.constant 0 : index
    %78 = vector.load %arg5[%c24, %c0_47] : memref<72x8xbf16, #tpu.memory_space<vmem>>, vector<8x8xbf16>
    %cst_48 = arith.constant dense<0.000000e+00> : vector<64x8xf32>
    %79 = tpu.matmul %77, %78, %cst_48 {dimension_numbers = #tpu.dot_dimension_numbers<[1], [0], [0], [1], [0, 0, 1, 1], [], []>} : vector<64x8xbf16>, vector<8x8xbf16>, vector<64x8xf32> -> vector<64x8xf32>
    %80 = arith.addf %60, %79 : vector<64x8xf32>
    %c0_49 = arith.constant 0 : index
    %c0_50 = arith.constant 0 : index
    %c1_51 = arith.constant 1 : index
    %c1_52 = arith.constant 1 : index
    %c0_53 = arith.constant 0 : index
    %81 = vector.load %arg1[%c0_49, %c0_50, %c1_51, %c1_52, %c0_53] : memref<1x1x10x10x8xbf16, #tpu.memory_space<vmem>>, vector<1x1x8x8x8xbf16>
    %82 = vector.shape_cast %81 : vector<1x1x8x8x8xbf16> to vector<8x8x8xbf16>
    %83 = arith.extf %82 : vector<8x8x8xbf16> to vector<8x8x8xf32>
    %c0_54 = arith.constant 0 : index
    %c1_55 = arith.constant 1 : index
    %c1_56 = arith.constant 1 : index
    %c0_57 = arith.constant 0 : index
    %84 = vector.load %arg2[%c0_54, %c1_55, %c1_56, %c0_57] : memref<1x10x10x1xf32, #tpu.memory_space<vmem>>, vector<1x8x8x1xf32>
    %85 = vector.shape_cast %84 : vector<1x8x8x1xf32> to vector<8x8x1xf32>
    %86 = vector.shape_cast %0 : vector<1x8xf32> to vector<1x1x8xf32>
    %87 = vector.broadcast %86 : vector<1x1x8xf32> to vector<8x8x8xf32>
    %88 = arith.mulf %83, %87 : vector<8x8x8xf32>
    %89 = vector.shape_cast %1 : vector<1x8xf32> to vector<1x1x8xf32>
    %90 = vector.broadcast %89 : vector<1x1x8xf32> to vector<8x8x8xf32>
    %91 = arith.addf %88, %90 : vector<8x8x8xf32>
    %cst_58 = arith.constant 0.000000e+00 : f32
    %92 = vector.broadcast %cst_58 : f32 to vector<8x8x8xf32>
    %93 = arith.maximumf %91, %92 : vector<8x8x8xf32>
    %94 = vector.broadcast %85 : vector<8x8x1xf32> to vector<8x8x8xf32>
    %95 = arith.mulf %93, %94 : vector<8x8x8xf32>
    %96 = vector.shape_cast %95 : vector<8x8x8xf32> to vector<64x8xf32>
    %97 = arith.truncf %96 : vector<64x8xf32> to vector<64x8xbf16>
    %c32 = arith.constant 32 : index
    %c0_59 = arith.constant 0 : index
    %98 = vector.load %arg5[%c32, %c0_59] : memref<72x8xbf16, #tpu.memory_space<vmem>>, vector<8x8xbf16>
    %cst_60 = arith.constant dense<0.000000e+00> : vector<64x8xf32>
    %99 = tpu.matmul %97, %98, %cst_60 {dimension_numbers = #tpu.dot_dimension_numbers<[1], [0], [0], [1], [0, 0, 1, 1], [], []>} : vector<64x8xbf16>, vector<8x8xbf16>, vector<64x8xf32> -> vector<64x8xf32>
    %100 = arith.addf %80, %99 : vector<64x8xf32>
    %c0_61 = arith.constant 0 : index
    %c0_62 = arith.constant 0 : index
    %c1_63 = arith.constant 1 : index
    %c2_64 = arith.constant 2 : index
    %c0_65 = arith.constant 0 : index
    %101 = vector.load %arg1[%c0_61, %c0_62, %c1_63, %c2_64, %c0_65] : memref<1x1x10x10x8xbf16, #tpu.memory_space<vmem>>, vector<1x1x8x8x8xbf16>
    %102 = vector.shape_cast %101 : vector<1x1x8x8x8xbf16> to vector<8x8x8xbf16>
    %103 = arith.extf %102 : vector<8x8x8xbf16> to vector<8x8x8xf32>
    %c0_66 = arith.constant 0 : index
    %c1_67 = arith.constant 1 : index
    %c2_68 = arith.constant 2 : index
    %c0_69 = arith.constant 0 : index
    %104 = vector.load %arg2[%c0_66, %c1_67, %c2_68, %c0_69] : memref<1x10x10x1xf32, #tpu.memory_space<vmem>>, vector<1x8x8x1xf32>
    %105 = vector.shape_cast %104 : vector<1x8x8x1xf32> to vector<8x8x1xf32>
    %106 = vector.shape_cast %0 : vector<1x8xf32> to vector<1x1x8xf32>
    %107 = vector.broadcast %106 : vector<1x1x8xf32> to vector<8x8x8xf32>
    %108 = arith.mulf %103, %107 : vector<8x8x8xf32>
    %109 = vector.shape_cast %1 : vector<1x8xf32> to vector<1x1x8xf32>
    %110 = vector.broadcast %109 : vector<1x1x8xf32> to vector<8x8x8xf32>
    %111 = arith.addf %108, %110 : vector<8x8x8xf32>
    %cst_70 = arith.constant 0.000000e+00 : f32
    %112 = vector.broadcast %cst_70 : f32 to vector<8x8x8xf32>
    %113 = arith.maximumf %111, %112 : vector<8x8x8xf32>
    %114 = vector.broadcast %105 : vector<8x8x1xf32> to vector<8x8x8xf32>
    %115 = arith.mulf %113, %114 : vector<8x8x8xf32>
    %116 = vector.shape_cast %115 : vector<8x8x8xf32> to vector<64x8xf32>
    %117 = arith.truncf %116 : vector<64x8xf32> to vector<64x8xbf16>
    %c40 = arith.constant 40 : index
    %c0_71 = arith.constant 0 : index
    %118 = vector.load %arg5[%c40, %c0_71] : memref<72x8xbf16, #tpu.memory_space<vmem>>, vector<8x8xbf16>
    %cst_72 = arith.constant dense<0.000000e+00> : vector<64x8xf32>
    %119 = tpu.matmul %117, %118, %cst_72 {dimension_numbers = #tpu.dot_dimension_numbers<[1], [0], [0], [1], [0, 0, 1, 1], [], []>} : vector<64x8xbf16>, vector<8x8xbf16>, vector<64x8xf32> -> vector<64x8xf32>
    %120 = arith.addf %100, %119 : vector<64x8xf32>
    %c0_73 = arith.constant 0 : index
    %c0_74 = arith.constant 0 : index
    %c2_75 = arith.constant 2 : index
    %c0_76 = arith.constant 0 : index
    %c0_77 = arith.constant 0 : index
    %121 = vector.load %arg1[%c0_73, %c0_74, %c2_75, %c0_76, %c0_77] : memref<1x1x10x10x8xbf16, #tpu.memory_space<vmem>>, vector<1x1x8x8x8xbf16>
    %122 = vector.shape_cast %121 : vector<1x1x8x8x8xbf16> to vector<8x8x8xbf16>
    %123 = arith.extf %122 : vector<8x8x8xbf16> to vector<8x8x8xf32>
    %c0_78 = arith.constant 0 : index
    %c2_79 = arith.constant 2 : index
    %c0_80 = arith.constant 0 : index
    %c0_81 = arith.constant 0 : index
    %124 = vector.load %arg2[%c0_78, %c2_79, %c0_80, %c0_81] : memref<1x10x10x1xf32, #tpu.memory_space<vmem>>, vector<1x8x8x1xf32>
    %125 = vector.shape_cast %124 : vector<1x8x8x1xf32> to vector<8x8x1xf32>
    %126 = vector.shape_cast %0 : vector<1x8xf32> to vector<1x1x8xf32>
    %127 = vector.broadcast %126 : vector<1x1x8xf32> to vector<8x8x8xf32>
    %128 = arith.mulf %123, %127 : vector<8x8x8xf32>
    %129 = vector.shape_cast %1 : vector<1x8xf32> to vector<1x1x8xf32>
    %130 = vector.broadcast %129 : vector<1x1x8xf32> to vector<8x8x8xf32>
    %131 = arith.addf %128, %130 : vector<8x8x8xf32>
    %cst_82 = arith.constant 0.000000e+00 : f32
    %132 = vector.broadcast %cst_82 : f32 to vector<8x8x8xf32>
    %133 = arith.maximumf %131, %132 : vector<8x8x8xf32>
    %134 = vector.broadcast %125 : vector<8x8x1xf32> to vector<8x8x8xf32>
    %135 = arith.mulf %133, %134 : vector<8x8x8xf32>
    %136 = vector.shape_cast %135 : vector<8x8x8xf32> to vector<64x8xf32>
    %137 = arith.truncf %136 : vector<64x8xf32> to vector<64x8xbf16>
    %c48 = arith.constant 48 : index
    %c0_83 = arith.constant 0 : index
    %138 = vector.load %arg5[%c48, %c0_83] : memref<72x8xbf16, #tpu.memory_space<vmem>>, vector<8x8xbf16>
    %cst_84 = arith.constant dense<0.000000e+00> : vector<64x8xf32>
    %139 = tpu.matmul %137, %138, %cst_84 {dimension_numbers = #tpu.dot_dimension_numbers<[1], [0], [0], [1], [0, 0, 1, 1], [], []>} : vector<64x8xbf16>, vector<8x8xbf16>, vector<64x8xf32> -> vector<64x8xf32>
    %140 = arith.addf %120, %139 : vector<64x8xf32>
    %c0_85 = arith.constant 0 : index
    %c0_86 = arith.constant 0 : index
    %c2_87 = arith.constant 2 : index
    %c1_88 = arith.constant 1 : index
    %c0_89 = arith.constant 0 : index
    %141 = vector.load %arg1[%c0_85, %c0_86, %c2_87, %c1_88, %c0_89] : memref<1x1x10x10x8xbf16, #tpu.memory_space<vmem>>, vector<1x1x8x8x8xbf16>
    %142 = vector.shape_cast %141 : vector<1x1x8x8x8xbf16> to vector<8x8x8xbf16>
    %143 = arith.extf %142 : vector<8x8x8xbf16> to vector<8x8x8xf32>
    %c0_90 = arith.constant 0 : index
    %c2_91 = arith.constant 2 : index
    %c1_92 = arith.constant 1 : index
    %c0_93 = arith.constant 0 : index
    %144 = vector.load %arg2[%c0_90, %c2_91, %c1_92, %c0_93] : memref<1x10x10x1xf32, #tpu.memory_space<vmem>>, vector<1x8x8x1xf32>
    %145 = vector.shape_cast %144 : vector<1x8x8x1xf32> to vector<8x8x1xf32>
    %146 = vector.shape_cast %0 : vector<1x8xf32> to vector<1x1x8xf32>
    %147 = vector.broadcast %146 : vector<1x1x8xf32> to vector<8x8x8xf32>
    %148 = arith.mulf %143, %147 : vector<8x8x8xf32>
    %149 = vector.shape_cast %1 : vector<1x8xf32> to vector<1x1x8xf32>
    %150 = vector.broadcast %149 : vector<1x1x8xf32> to vector<8x8x8xf32>
    %151 = arith.addf %148, %150 : vector<8x8x8xf32>
    %cst_94 = arith.constant 0.000000e+00 : f32
    %152 = vector.broadcast %cst_94 : f32 to vector<8x8x8xf32>
    %153 = arith.maximumf %151, %152 : vector<8x8x8xf32>
    %154 = vector.broadcast %145 : vector<8x8x1xf32> to vector<8x8x8xf32>
    %155 = arith.mulf %153, %154 : vector<8x8x8xf32>
    %156 = vector.shape_cast %155 : vector<8x8x8xf32> to vector<64x8xf32>
    %157 = arith.truncf %156 : vector<64x8xf32> to vector<64x8xbf16>
    %c56 = arith.constant 56 : index
    %c0_95 = arith.constant 0 : index
    %158 = vector.load %arg5[%c56, %c0_95] : memref<72x8xbf16, #tpu.memory_space<vmem>>, vector<8x8xbf16>
    %cst_96 = arith.constant dense<0.000000e+00> : vector<64x8xf32>
    %159 = tpu.matmul %157, %158, %cst_96 {dimension_numbers = #tpu.dot_dimension_numbers<[1], [0], [0], [1], [0, 0, 1, 1], [], []>} : vector<64x8xbf16>, vector<8x8xbf16>, vector<64x8xf32> -> vector<64x8xf32>
    %160 = arith.addf %140, %159 : vector<64x8xf32>
    %c0_97 = arith.constant 0 : index
    %c0_98 = arith.constant 0 : index
    %c2_99 = arith.constant 2 : index
    %c2_100 = arith.constant 2 : index
    %c0_101 = arith.constant 0 : index
    %161 = vector.load %arg1[%c0_97, %c0_98, %c2_99, %c2_100, %c0_101] : memref<1x1x10x10x8xbf16, #tpu.memory_space<vmem>>, vector<1x1x8x8x8xbf16>
    %162 = vector.shape_cast %161 : vector<1x1x8x8x8xbf16> to vector<8x8x8xbf16>
    %163 = arith.extf %162 : vector<8x8x8xbf16> to vector<8x8x8xf32>
    %c0_102 = arith.constant 0 : index
    %c2_103 = arith.constant 2 : index
    %c2_104 = arith.constant 2 : index
    %c0_105 = arith.constant 0 : index
    %164 = vector.load %arg2[%c0_102, %c2_103, %c2_104, %c0_105] : memref<1x10x10x1xf32, #tpu.memory_space<vmem>>, vector<1x8x8x1xf32>
    %165 = vector.shape_cast %164 : vector<1x8x8x1xf32> to vector<8x8x1xf32>
    %166 = vector.shape_cast %0 : vector<1x8xf32> to vector<1x1x8xf32>
    %167 = vector.broadcast %166 : vector<1x1x8xf32> to vector<8x8x8xf32>
    %168 = arith.mulf %163, %167 : vector<8x8x8xf32>
    %169 = vector.shape_cast %1 : vector<1x8xf32> to vector<1x1x8xf32>
    %170 = vector.broadcast %169 : vector<1x1x8xf32> to vector<8x8x8xf32>
    %171 = arith.addf %168, %170 : vector<8x8x8xf32>
    %cst_106 = arith.constant 0.000000e+00 : f32
    %172 = vector.broadcast %cst_106 : f32 to vector<8x8x8xf32>
    %173 = arith.maximumf %171, %172 : vector<8x8x8xf32>
    %174 = vector.broadcast %165 : vector<8x8x1xf32> to vector<8x8x8xf32>
    %175 = arith.mulf %173, %174 : vector<8x8x8xf32>
    %176 = vector.shape_cast %175 : vector<8x8x8xf32> to vector<64x8xf32>
    %177 = arith.truncf %176 : vector<64x8xf32> to vector<64x8xbf16>
    %c64 = arith.constant 64 : index
    %c0_107 = arith.constant 0 : index
    %178 = vector.load %arg5[%c64, %c0_107] : memref<72x8xbf16, #tpu.memory_space<vmem>>, vector<8x8xbf16>
    %cst_108 = arith.constant dense<0.000000e+00> : vector<64x8xf32>
    %179 = tpu.matmul %177, %178, %cst_108 {dimension_numbers = #tpu.dot_dimension_numbers<[1], [0], [0], [1], [0, 0, 1, 1], [], []>} : vector<64x8xbf16>, vector<8x8xbf16>, vector<64x8xf32> -> vector<64x8xf32>
    %180 = arith.addf %160, %179 : vector<64x8xf32>
    %c0_109 = arith.constant 0 : index
    %c0_110 = arith.constant 0 : index
    %c0_111 = arith.constant 0 : index
    %181 = vector.load %arg6[%c0_109, %c0_110, %c0_111] : memref<1x64x8xbf16, #tpu.memory_space<vmem>>, vector<1x64x8xbf16>
    %182 = vector.shape_cast %181 : vector<1x64x8xbf16> to vector<64x8xbf16>
    %183 = arith.extf %182 : vector<64x8xbf16> to vector<64x8xf32>
    %184 = arith.addf %180, %183 : vector<64x8xf32>
    %185 = arith.truncf %184 : vector<64x8xf32> to vector<64x8xbf16>
    %c0_112 = arith.constant 0 : index
    %c0_113 = arith.constant 0 : index
    %c0_114 = arith.constant 0 : index
    %186 = vector.load %arg7[%c0_112, %c0_113, %c0_114] : memref<1x64x8xbf16, #tpu.memory_space<vmem>>, vector<1x64x8xbf16>
    %187 = vector.shape_cast %186 : vector<1x64x8xbf16> to vector<64x8xbf16>
    %188 = vector.shape_cast %185 : vector<64x8xbf16> to vector<1x64x8xbf16>
    tpu.vector_store %arg7[%c0_112, %c0_113, %c0_114], %188 {strides = array<i32>} : memref<1x64x8xbf16, #tpu.memory_space<vmem>>, vector<1x64x8xbf16>,
    return
  }
  func.func @transform_0(%arg0: i32) -> (i32, i32, i32, i32, i32) {
    %c0_i32 = arith.constant 0 : i32
    %c0_i32_0 = arith.constant 0 : i32
    %c0_i32_1 = arith.constant 0 : i32
    %c0_i32_2 = arith.constant 0 : i32
    %c0_i32_3 = arith.constant 0 : i32
    return %arg0, %c0_i32, %c0_i32_0, %c0_i32_1, %c0_i32_2 : i32, i32, i32, i32, i32
  }
  func.func @transform_1(%arg0: i32) -> (i32, i32, i32, i32) {
    %c0_i32 = arith.constant 0 : i32
    %c0_i32_0 = arith.constant 0 : i32
    %c0_i32_1 = arith.constant 0 : i32
    %c0_i32_2 = arith.constant 0 : i32
    %c0_i32_3 = arith.constant 0 : i32
    return %c0_i32, %c0_i32_0, %c0_i32_1, %c0_i32_2 : i32, i32, i32, i32
  }
  func.func @transform_2(%arg0: i32) -> (i32, i32) {
    %c0_i32 = arith.constant 0 : i32
    %c0_i32_0 = arith.constant 0 : i32
    %c0_i32_1 = arith.constant 0 : i32
    return %c0_i32, %c0_i32_0 : i32, i32
  }
  func.func @transform_3(%arg0: i32) -> (i32, i32) {
    %c0_i32 = arith.constant 0 : i32
    %c0_i32_0 = arith.constant 0 : i32
    %c0_i32_1 = arith.constant 0 : i32
    return %c0_i32, %c0_i32_0 : i32, i32
  }
  func.func @transform_4(%arg0: i32) -> (i32, i32) {
    %c0_i32 = arith.constant 0 : i32
    %c0_i32_0 = arith.constant 0 : i32
    %c0_i32_1 = arith.constant 0 : i32
    return %c0_i32, %c0_i32_0 : i32, i32
  }
  func.func @transform_5(%arg0: i32) -> (i32, i32, i32) {
    %c0_i32 = arith.constant 0 : i32
    %c0_i32_0 = arith.constant 0 : i32
    %c0_i32_1 = arith.constant 0 : i32
    return %arg0, %c0_i32, %c0_i32_0 : i32, i32, i32
  }
  func.func @transform_6(%arg0: i32) -> (i32, i32, i32) {
    %c0_i32 = arith.constant 0 : i32
    %c0_i32_0 = arith.constant 0 : i32
    %c0_i32_1 = arith.constant 0 : i32
    return %arg0, %c0_i32, %c0_i32_0 : i32, i32, i32
  }
}

module attributes {stable_mosaic.version = 11 : i64} {
  func.func @_conv3x3_kernel(%arg0: i32, %arg1: memref<1x1x10x10x8xbf16, #tpu.memory_space<vmem>>, %arg2: memref<1x10x10x1xf32, #tpu.memory_space<vmem>>, %arg3: memref<1x8xf32, #tpu.memory_space<vmem>>, %arg4: memref<1x8xf32, #tpu.memory_space<vmem>>, %arg5: memref<72x8xbf16, #tpu.memory_space<vmem>>, %arg6: memref<1x64x8xbf16, #tpu.memory_space<vmem>>) attributes {dimension_semantics = [#tpu.dimension_semantics<parallel>], iteration_bounds = array<i64: 2>, scalar_prefetch = 0 : i64, scratch_operands = 0 : i64, tpu.core_type = #tpu.core_type<tc>, window_params = [{transform_indices = @transform_0, window_bounds = array<i64: 1, 1, 10, 10, 8>}, {pipeline_mode = #tpu.pipeline_mode<synchronous>, transform_indices = @transform_1, window_bounds = array<i64: 1, 10, 10, 1>}, {pipeline_mode = #tpu.pipeline_mode<synchronous>, transform_indices = @transform_2, window_bounds = array<i64: 1, 8>}, {pipeline_mode = #tpu.pipeline_mode<synchronous>, transform_indices = @transform_3, window_bounds = array<i64: 1, 8>}, {pipeline_mode = #tpu.pipeline_mode<synchronous>, transform_indices = @transform_4, window_bounds = array<i64: 72, 8>}, {transform_indices = @transform_5, window_bounds = array<i64: 1, 64, 8>}]} {
    %c0 = arith.constant 0 : index
    %c0_0 = arith.constant 0 : index
    %0 = vector.load %arg3[%c0, %c0_0] : memref<1x8xf32, #tpu.memory_space<vmem>>, vector<1x8xf32>
    %c0_1 = arith.constant 0 : index
    %c0_2 = arith.constant 0 : index
    %1 = vector.load %arg4[%c0_1, %c0_2] : memref<1x8xf32, #tpu.memory_space<vmem>>, vector<1x8xf32>
    %c0_3 = arith.constant 0 : index
    %c0_4 = arith.constant 0 : index
    %c0_5 = arith.constant 0 : index
    %c0_6 = arith.constant 0 : index
    %c0_7 = arith.constant 0 : index
    %2 = vector.load %arg1[%c0_3, %c0_4, %c0_5, %c0_6, %c0_7] : memref<1x1x10x10x8xbf16, #tpu.memory_space<vmem>>, vector<1x1x8x8x8xbf16>
    %3 = vector.shape_cast %2 : vector<1x1x8x8x8xbf16> to vector<8x8x8xbf16>
    %4 = arith.extf %3 : vector<8x8x8xbf16> to vector<8x8x8xf32>
    %c0_8 = arith.constant 0 : index
    %c0_9 = arith.constant 0 : index
    %c0_10 = arith.constant 0 : index
    %c0_11 = arith.constant 0 : index
    %5 = vector.load %arg2[%c0_8, %c0_9, %c0_10, %c0_11] : memref<1x10x10x1xf32, #tpu.memory_space<vmem>>, vector<1x8x8x1xf32>
    %6 = vector.shape_cast %5 : vector<1x8x8x1xf32> to vector<8x8x1xf32>
    %7 = vector.shape_cast %0 : vector<1x8xf32> to vector<1x1x8xf32>
    %8 = vector.broadcast %7 : vector<1x1x8xf32> to vector<8x8x8xf32>
    %9 = arith.mulf %4, %8 : vector<8x8x8xf32>
    %10 = vector.shape_cast %1 : vector<1x8xf32> to vector<1x1x8xf32>
    %11 = vector.broadcast %10 : vector<1x1x8xf32> to vector<8x8x8xf32>
    %12 = arith.addf %9, %11 : vector<8x8x8xf32>
    %cst = arith.constant 0.000000e+00 : f32
    %13 = vector.broadcast %cst : f32 to vector<8x8x8xf32>
    %14 = arith.maximumf %12, %13 : vector<8x8x8xf32>
    %15 = vector.broadcast %6 : vector<8x8x1xf32> to vector<8x8x8xf32>
    %16 = arith.mulf %14, %15 : vector<8x8x8xf32>
    %17 = vector.shape_cast %16 : vector<8x8x8xf32> to vector<64x8xf32>
    %18 = arith.truncf %17 : vector<64x8xf32> to vector<64x8xbf16>
    %c0_12 = arith.constant 0 : index
    %c0_13 = arith.constant 0 : index
    %19 = vector.load %arg5[%c0_12, %c0_13] : memref<72x8xbf16, #tpu.memory_space<vmem>>, vector<8x8xbf16>
    %cst_14 = arith.constant dense<0.000000e+00> : vector<64x8xf32>
    %20 = tpu.matmul %18, %19, %cst_14 {dimension_numbers = #tpu.dot_dimension_numbers<[1], [0], [0], [1], [0, 0, 1, 1], [], []>} : vector<64x8xbf16>, vector<8x8xbf16>, vector<64x8xf32> -> vector<64x8xf32>
    %c0_15 = arith.constant 0 : index
    %c0_16 = arith.constant 0 : index
    %c0_17 = arith.constant 0 : index
    %c1 = arith.constant 1 : index
    %c0_18 = arith.constant 0 : index
    %21 = vector.load %arg1[%c0_15, %c0_16, %c0_17, %c1, %c0_18] : memref<1x1x10x10x8xbf16, #tpu.memory_space<vmem>>, vector<1x1x8x8x8xbf16>
    %22 = vector.shape_cast %21 : vector<1x1x8x8x8xbf16> to vector<8x8x8xbf16>
    %23 = arith.extf %22 : vector<8x8x8xbf16> to vector<8x8x8xf32>
    %c0_19 = arith.constant 0 : index
    %c0_20 = arith.constant 0 : index
    %c1_21 = arith.constant 1 : index
    %c0_22 = arith.constant 0 : index
    %24 = vector.load %arg2[%c0_19, %c0_20, %c1_21, %c0_22] : memref<1x10x10x1xf32, #tpu.memory_space<vmem>>, vector<1x8x8x1xf32>
    %25 = vector.shape_cast %24 : vector<1x8x8x1xf32> to vector<8x8x1xf32>
    %26 = vector.shape_cast %0 : vector<1x8xf32> to vector<1x1x8xf32>
    %27 = vector.broadcast %26 : vector<1x1x8xf32> to vector<8x8x8xf32>
    %28 = arith.mulf %23, %27 : vector<8x8x8xf32>
    %29 = vector.shape_cast %1 : vector<1x8xf32> to vector<1x1x8xf32>
    %30 = vector.broadcast %29 : vector<1x1x8xf32> to vector<8x8x8xf32>
    %31 = arith.addf %28, %30 : vector<8x8x8xf32>
    %cst_23 = arith.constant 0.000000e+00 : f32
    %32 = vector.broadcast %cst_23 : f32 to vector<8x8x8xf32>
    %33 = arith.maximumf %31, %32 : vector<8x8x8xf32>
    %34 = vector.broadcast %25 : vector<8x8x1xf32> to vector<8x8x8xf32>
    %35 = arith.mulf %33, %34 : vector<8x8x8xf32>
    %36 = vector.shape_cast %35 : vector<8x8x8xf32> to vector<64x8xf32>
    %37 = arith.truncf %36 : vector<64x8xf32> to vector<64x8xbf16>
    %c8 = arith.constant 8 : index
    %c0_24 = arith.constant 0 : index
    %38 = vector.load %arg5[%c8, %c0_24] : memref<72x8xbf16, #tpu.memory_space<vmem>>, vector<8x8xbf16>
    %cst_25 = arith.constant dense<0.000000e+00> : vector<64x8xf32>
    %39 = tpu.matmul %37, %38, %cst_25 {dimension_numbers = #tpu.dot_dimension_numbers<[1], [0], [0], [1], [0, 0, 1, 1], [], []>} : vector<64x8xbf16>, vector<8x8xbf16>, vector<64x8xf32> -> vector<64x8xf32>
    %40 = arith.addf %20, %39 : vector<64x8xf32>
    %c0_26 = arith.constant 0 : index
    %c0_27 = arith.constant 0 : index
    %c0_28 = arith.constant 0 : index
    %c2 = arith.constant 2 : index
    %c0_29 = arith.constant 0 : index
    %41 = vector.load %arg1[%c0_26, %c0_27, %c0_28, %c2, %c0_29] : memref<1x1x10x10x8xbf16, #tpu.memory_space<vmem>>, vector<1x1x8x8x8xbf16>
    %42 = vector.shape_cast %41 : vector<1x1x8x8x8xbf16> to vector<8x8x8xbf16>
    %43 = arith.extf %42 : vector<8x8x8xbf16> to vector<8x8x8xf32>
    %c0_30 = arith.constant 0 : index
    %c0_31 = arith.constant 0 : index
    %c2_32 = arith.constant 2 : index
    %c0_33 = arith.constant 0 : index
    %44 = vector.load %arg2[%c0_30, %c0_31, %c2_32, %c0_33] : memref<1x10x10x1xf32, #tpu.memory_space<vmem>>, vector<1x8x8x1xf32>
    %45 = vector.shape_cast %44 : vector<1x8x8x1xf32> to vector<8x8x1xf32>
    %46 = vector.shape_cast %0 : vector<1x8xf32> to vector<1x1x8xf32>
    %47 = vector.broadcast %46 : vector<1x1x8xf32> to vector<8x8x8xf32>
    %48 = arith.mulf %43, %47 : vector<8x8x8xf32>
    %49 = vector.shape_cast %1 : vector<1x8xf32> to vector<1x1x8xf32>
    %50 = vector.broadcast %49 : vector<1x1x8xf32> to vector<8x8x8xf32>
    %51 = arith.addf %48, %50 : vector<8x8x8xf32>
    %cst_34 = arith.constant 0.000000e+00 : f32
    %52 = vector.broadcast %cst_34 : f32 to vector<8x8x8xf32>
    %53 = arith.maximumf %51, %52 : vector<8x8x8xf32>
    %54 = vector.broadcast %45 : vector<8x8x1xf32> to vector<8x8x8xf32>
    %55 = arith.mulf %53, %54 : vector<8x8x8xf32>
    %56 = vector.shape_cast %55 : vector<8x8x8xf32> to vector<64x8xf32>
    %57 = arith.truncf %56 : vector<64x8xf32> to vector<64x8xbf16>
    %c16 = arith.constant 16 : index
    %c0_35 = arith.constant 0 : index
    %58 = vector.load %arg5[%c16, %c0_35] : memref<72x8xbf16, #tpu.memory_space<vmem>>, vector<8x8xbf16>
    %cst_36 = arith.constant dense<0.000000e+00> : vector<64x8xf32>
    %59 = tpu.matmul %57, %58, %cst_36 {dimension_numbers = #tpu.dot_dimension_numbers<[1], [0], [0], [1], [0, 0, 1, 1], [], []>} : vector<64x8xbf16>, vector<8x8xbf16>, vector<64x8xf32> -> vector<64x8xf32>
    %60 = arith.addf %40, %59 : vector<64x8xf32>
    %c0_37 = arith.constant 0 : index
    %c0_38 = arith.constant 0 : index
    %c1_39 = arith.constant 1 : index
    %c0_40 = arith.constant 0 : index
    %c0_41 = arith.constant 0 : index
    %61 = vector.load %arg1[%c0_37, %c0_38, %c1_39, %c0_40, %c0_41] : memref<1x1x10x10x8xbf16, #tpu.memory_space<vmem>>, vector<1x1x8x8x8xbf16>
    %62 = vector.shape_cast %61 : vector<1x1x8x8x8xbf16> to vector<8x8x8xbf16>
    %63 = arith.extf %62 : vector<8x8x8xbf16> to vector<8x8x8xf32>
    %c0_42 = arith.constant 0 : index
    %c1_43 = arith.constant 1 : index
    %c0_44 = arith.constant 0 : index
    %c0_45 = arith.constant 0 : index
    %64 = vector.load %arg2[%c0_42, %c1_43, %c0_44, %c0_45] : memref<1x10x10x1xf32, #tpu.memory_space<vmem>>, vector<1x8x8x1xf32>
    %65 = vector.shape_cast %64 : vector<1x8x8x1xf32> to vector<8x8x1xf32>
    %66 = vector.shape_cast %0 : vector<1x8xf32> to vector<1x1x8xf32>
    %67 = vector.broadcast %66 : vector<1x1x8xf32> to vector<8x8x8xf32>
    %68 = arith.mulf %63, %67 : vector<8x8x8xf32>
    %69 = vector.shape_cast %1 : vector<1x8xf32> to vector<1x1x8xf32>
    %70 = vector.broadcast %69 : vector<1x1x8xf32> to vector<8x8x8xf32>
    %71 = arith.addf %68, %70 : vector<8x8x8xf32>
    %cst_46 = arith.constant 0.000000e+00 : f32
    %72 = vector.broadcast %cst_46 : f32 to vector<8x8x8xf32>
    %73 = arith.maximumf %71, %72 : vector<8x8x8xf32>
    %74 = vector.broadcast %65 : vector<8x8x1xf32> to vector<8x8x8xf32>
    %75 = arith.mulf %73, %74 : vector<8x8x8xf32>
    %76 = vector.shape_cast %75 : vector<8x8x8xf32> to vector<64x8xf32>
    %77 = arith.truncf %76 : vector<64x8xf32> to vector<64x8xbf16>
    %c24 = arith.constant 24 : index
    %c0_47 = arith.constant 0 : index
    %78 = vector.load %arg5[%c24, %c0_47] : memref<72x8xbf16, #tpu.memory_space<vmem>>, vector<8x8xbf16>
    %cst_48 = arith.constant dense<0.000000e+00> : vector<64x8xf32>
    %79 = tpu.matmul %77, %78, %cst_48 {dimension_numbers = #tpu.dot_dimension_numbers<[1], [0], [0], [1], [0, 0, 1, 1], [], []>} : vector<64x8xbf16>, vector<8x8xbf16>, vector<64x8xf32> -> vector<64x8xf32>
    %80 = arith.addf %60, %79 : vector<64x8xf32>
    %c0_49 = arith.constant 0 : index
    %c0_50 = arith.constant 0 : index
    %c1_51 = arith.constant 1 : index
    %c1_52 = arith.constant 1 : index
    %c0_53 = arith.constant 0 : index
    %81 = vector.load %arg1[%c0_49, %c0_50, %c1_51, %c1_52, %c0_53] : memref<1x1x10x10x8xbf16, #tpu.memory_space<vmem>>, vector<1x1x8x8x8xbf16>
    %82 = vector.shape_cast %81 : vector<1x1x8x8x8xbf16> to vector<8x8x8xbf16>
    %83 = arith.extf %82 : vector<8x8x8xbf16> to vector<8x8x8xf32>
    %c0_54 = arith.constant 0 : index
    %c1_55 = arith.constant 1 : index
    %c1_56 = arith.constant 1 : index
    %c0_57 = arith.constant 0 : index
    %84 = vector.load %arg2[%c0_54, %c1_55, %c1_56, %c0_57] : memref<1x10x10x1xf32, #tpu.memory_space<vmem>>, vector<1x8x8x1xf32>
    %85 = vector.shape_cast %84 : vector<1x8x8x1xf32> to vector<8x8x1xf32>
    %86 = vector.shape_cast %0 : vector<1x8xf32> to vector<1x1x8xf32>
    %87 = vector.broadcast %86 : vector<1x1x8xf32> to vector<8x8x8xf32>
    %88 = arith.mulf %83, %87 : vector<8x8x8xf32>
    %89 = vector.shape_cast %1 : vector<1x8xf32> to vector<1x1x8xf32>
    %90 = vector.broadcast %89 : vector<1x1x8xf32> to vector<8x8x8xf32>
    %91 = arith.addf %88, %90 : vector<8x8x8xf32>
    %cst_58 = arith.constant 0.000000e+00 : f32
    %92 = vector.broadcast %cst_58 : f32 to vector<8x8x8xf32>
    %93 = arith.maximumf %91, %92 : vector<8x8x8xf32>
    %94 = vector.broadcast %85 : vector<8x8x1xf32> to vector<8x8x8xf32>
    %95 = arith.mulf %93, %94 : vector<8x8x8xf32>
    %96 = vector.shape_cast %95 : vector<8x8x8xf32> to vector<64x8xf32>
    %97 = arith.truncf %96 : vector<64x8xf32> to vector<64x8xbf16>
    %c32 = arith.constant 32 : index
    %c0_59 = arith.constant 0 : index
    %98 = vector.load %arg5[%c32, %c0_59] : memref<72x8xbf16, #tpu.memory_space<vmem>>, vector<8x8xbf16>
    %cst_60 = arith.constant dense<0.000000e+00> : vector<64x8xf32>
    %99 = tpu.matmul %97, %98, %cst_60 {dimension_numbers = #tpu.dot_dimension_numbers<[1], [0], [0], [1], [0, 0, 1, 1], [], []>} : vector<64x8xbf16>, vector<8x8xbf16>, vector<64x8xf32> -> vector<64x8xf32>
    %100 = arith.addf %80, %99 : vector<64x8xf32>
    %c0_61 = arith.constant 0 : index
    %c0_62 = arith.constant 0 : index
    %c1_63 = arith.constant 1 : index
    %c2_64 = arith.constant 2 : index
    %c0_65 = arith.constant 0 : index
    %101 = vector.load %arg1[%c0_61, %c0_62, %c1_63, %c2_64, %c0_65] : memref<1x1x10x10x8xbf16, #tpu.memory_space<vmem>>, vector<1x1x8x8x8xbf16>
    %102 = vector.shape_cast %101 : vector<1x1x8x8x8xbf16> to vector<8x8x8xbf16>
    %103 = arith.extf %102 : vector<8x8x8xbf16> to vector<8x8x8xf32>
    %c0_66 = arith.constant 0 : index
    %c1_67 = arith.constant 1 : index
    %c2_68 = arith.constant 2 : index
    %c0_69 = arith.constant 0 : index
    %104 = vector.load %arg2[%c0_66, %c1_67, %c2_68, %c0_69] : memref<1x10x10x1xf32, #tpu.memory_space<vmem>>, vector<1x8x8x1xf32>
    %105 = vector.shape_cast %104 : vector<1x8x8x1xf32> to vector<8x8x1xf32>
    %106 = vector.shape_cast %0 : vector<1x8xf32> to vector<1x1x8xf32>
    %107 = vector.broadcast %106 : vector<1x1x8xf32> to vector<8x8x8xf32>
    %108 = arith.mulf %103, %107 : vector<8x8x8xf32>
    %109 = vector.shape_cast %1 : vector<1x8xf32> to vector<1x1x8xf32>
    %110 = vector.broadcast %109 : vector<1x1x8xf32> to vector<8x8x8xf32>
    %111 = arith.addf %108, %110 : vector<8x8x8xf32>
    %cst_70 = arith.constant 0.000000e+00 : f32
    %112 = vector.broadcast %cst_70 : f32 to vector<8x8x8xf32>
    %113 = arith.maximumf %111, %112 : vector<8x8x8xf32>
    %114 = vector.broadcast %105 : vector<8x8x1xf32> to vector<8x8x8xf32>
    %115 = arith.mulf %113, %114 : vector<8x8x8xf32>
    %116 = vector.shape_cast %115 : vector<8x8x8xf32> to vector<64x8xf32>
    %117 = arith.truncf %116 : vector<64x8xf32> to vector<64x8xbf16>
    %c40 = arith.constant 40 : index
    %c0_71 = arith.constant 0 : index
    %118 = vector.load %arg5[%c40, %c0_71] : memref<72x8xbf16, #tpu.memory_space<vmem>>, vector<8x8xbf16>
    %cst_72 = arith.constant dense<0.000000e+00> : vector<64x8xf32>
    %119 = tpu.matmul %117, %118, %cst_72 {dimension_numbers = #tpu.dot_dimension_numbers<[1], [0], [0], [1], [0, 0, 1, 1], [], []>} : vector<64x8xbf16>, vector<8x8xbf16>, vector<64x8xf32> -> vector<64x8xf32>
    %120 = arith.addf %100, %119 : vector<64x8xf32>
    %c0_73 = arith.constant 0 : index
    %c0_74 = arith.constant 0 : index
    %c2_75 = arith.constant 2 : index
    %c0_76 = arith.constant 0 : index
    %c0_77 = arith.constant 0 : index
    %121 = vector.load %arg1[%c0_73, %c0_74, %c2_75, %c0_76, %c0_77] : memref<1x1x10x10x8xbf16, #tpu.memory_space<vmem>>, vector<1x1x8x8x8xbf16>
    %122 = vector.shape_cast %121 : vector<1x1x8x8x8xbf16> to vector<8x8x8xbf16>
    %123 = arith.extf %122 : vector<8x8x8xbf16> to vector<8x8x8xf32>
    %c0_78 = arith.constant 0 : index
    %c2_79 = arith.constant 2 : index
    %c0_80 = arith.constant 0 : index
    %c0_81 = arith.constant 0 : index
    %124 = vector.load %arg2[%c0_78, %c2_79, %c0_80, %c0_81] : memref<1x10x10x1xf32, #tpu.memory_space<vmem>>, vector<1x8x8x1xf32>
    %125 = vector.shape_cast %124 : vector<1x8x8x1xf32> to vector<8x8x1xf32>
    %126 = vector.shape_cast %0 : vector<1x8xf32> to vector<1x1x8xf32>
    %127 = vector.broadcast %126 : vector<1x1x8xf32> to vector<8x8x8xf32>
    %128 = arith.mulf %123, %127 : vector<8x8x8xf32>
    %129 = vector.shape_cast %1 : vector<1x8xf32> to vector<1x1x8xf32>
    %130 = vector.broadcast %129 : vector<1x1x8xf32> to vector<8x8x8xf32>
    %131 = arith.addf %128, %130 : vector<8x8x8xf32>
    %cst_82 = arith.constant 0.000000e+00 : f32
    %132 = vector.broadcast %cst_82 : f32 to vector<8x8x8xf32>
    %133 = arith.maximumf %131, %132 : vector<8x8x8xf32>
    %134 = vector.broadcast %125 : vector<8x8x1xf32> to vector<8x8x8xf32>
    %135 = arith.mulf %133, %134 : vector<8x8x8xf32>
    %136 = vector.shape_cast %135 : vector<8x8x8xf32> to vector<64x8xf32>
    %137 = arith.truncf %136 : vector<64x8xf32> to vector<64x8xbf16>
    %c48 = arith.constant 48 : index
    %c0_83 = arith.constant 0 : index
    %138 = vector.load %arg5[%c48, %c0_83] : memref<72x8xbf16, #tpu.memory_space<vmem>>, vector<8x8xbf16>
    %cst_84 = arith.constant dense<0.000000e+00> : vector<64x8xf32>
    %139 = tpu.matmul %137, %138, %cst_84 {dimension_numbers = #tpu.dot_dimension_numbers<[1], [0], [0], [1], [0, 0, 1, 1], [], []>} : vector<64x8xbf16>, vector<8x8xbf16>, vector<64x8xf32> -> vector<64x8xf32>
    %140 = arith.addf %120, %139 : vector<64x8xf32>
    %c0_85 = arith.constant 0 : index
    %c0_86 = arith.constant 0 : index
    %c2_87 = arith.constant 2 : index
    %c1_88 = arith.constant 1 : index
    %c0_89 = arith.constant 0 : index
    %141 = vector.load %arg1[%c0_85, %c0_86, %c2_87, %c1_88, %c0_89] : memref<1x1x10x10x8xbf16, #tpu.memory_space<vmem>>, vector<1x1x8x8x8xbf16>
    %142 = vector.shape_cast %141 : vector<1x1x8x8x8xbf16> to vector<8x8x8xbf16>
    %143 = arith.extf %142 : vector<8x8x8xbf16> to vector<8x8x8xf32>
    %c0_90 = arith.constant 0 : index
    %c2_91 = arith.constant 2 : index
    %c1_92 = arith.constant 1 : index
    %c0_93 = arith.constant 0 : index
    %144 = vector.load %arg2[%c0_90, %c2_91, %c1_92, %c0_93] : memref<1x10x10x1xf32, #tpu.memory_space<vmem>>, vector<1x8x8x1xf32>
    %145 = vector.shape_cast %144 : vector<1x8x8x1xf32> to vector<8x8x1xf32>
    %146 = vector.shape_cast %0 : vector<1x8xf32> to vector<1x1x8xf32>
    %147 = vector.broadcast %146 : vector<1x1x8xf32> to vector<8x8x8xf32>
    %148 = arith.mulf %143, %147 : vector<8x8x8xf32>
    %149 = vector.shape_cast %1 : vector<1x8xf32> to vector<1x1x8xf32>
    %150 = vector.broadcast %149 : vector<1x1x8xf32> to vector<8x8x8xf32>
    %151 = arith.addf %148, %150 : vector<8x8x8xf32>
    %cst_94 = arith.constant 0.000000e+00 : f32
    %152 = vector.broadcast %cst_94 : f32 to vector<8x8x8xf32>
    %153 = arith.maximumf %151, %152 : vector<8x8x8xf32>
    %154 = vector.broadcast %145 : vector<8x8x1xf32> to vector<8x8x8xf32>
    %155 = arith.mulf %153, %154 : vector<8x8x8xf32>
    %156 = vector.shape_cast %155 : vector<8x8x8xf32> to vector<64x8xf32>
    %157 = arith.truncf %156 : vector<64x8xf32> to vector<64x8xbf16>
    %c56 = arith.constant 56 : index
    %c0_95 = arith.constant 0 : index
    %158 = vector.load %arg5[%c56, %c0_95] : memref<72x8xbf16, #tpu.memory_space<vmem>>, vector<8x8xbf16>
    %cst_96 = arith.constant dense<0.000000e+00> : vector<64x8xf32>
    %159 = tpu.matmul %157, %158, %cst_96 {dimension_numbers = #tpu.dot_dimension_numbers<[1], [0], [0], [1], [0, 0, 1, 1], [], []>} : vector<64x8xbf16>, vector<8x8xbf16>, vector<64x8xf32> -> vector<64x8xf32>
    %160 = arith.addf %140, %159 : vector<64x8xf32>
    %c0_97 = arith.constant 0 : index
    %c0_98 = arith.constant 0 : index
    %c2_99 = arith.constant 2 : index
    %c2_100 = arith.constant 2 : index
    %c0_101 = arith.constant 0 : index
    %161 = vector.load %arg1[%c0_97, %c0_98, %c2_99, %c2_100, %c0_101] : memref<1x1x10x10x8xbf16, #tpu.memory_space<vmem>>, vector<1x1x8x8x8xbf16>
    %162 = vector.shape_cast %161 : vector<1x1x8x8x8xbf16> to vector<8x8x8xbf16>
    %163 = arith.extf %162 : vector<8x8x8xbf16> to vector<8x8x8xf32>
    %c0_102 = arith.constant 0 : index
    %c2_103 = arith.constant 2 : index
    %c2_104 = arith.constant 2 : index
    %c0_105 = arith.constant 0 : index
    %164 = vector.load %arg2[%c0_102, %c2_103, %c2_104, %c0_105] : memref<1x10x10x1xf32, #tpu.memory_space<vmem>>, vector<1x8x8x1xf32>
    %165 = vector.shape_cast %164 : vector<1x8x8x1xf32> to vector<8x8x1xf32>
    %166 = vector.shape_cast %0 : vector<1x8xf32> to vector<1x1x8xf32>
    %167 = vector.broadcast %166 : vector<1x1x8xf32> to vector<8x8x8xf32>
    %168 = arith.mulf %163, %167 : vector<8x8x8xf32>
    %169 = vector.shape_cast %1 : vector<1x8xf32> to vector<1x1x8xf32>
    %170 = vector.broadcast %169 : vector<1x1x8xf32> to vector<8x8x8xf32>
    %171 = arith.addf %168, %170 : vector<8x8x8xf32>
    %cst_106 = arith.constant 0.000000e+00 : f32
    %172 = vector.broadcast %cst_106 : f32 to vector<8x8x8xf32>
    %173 = arith.maximumf %171, %172 : vector<8x8x8xf32>
    %174 = vector.broadcast %165 : vector<8x8x1xf32> to vector<8x8x8xf32>
    %175 = arith.mulf %173, %174 : vector<8x8x8xf32>
    %176 = vector.shape_cast %175 : vector<8x8x8xf32> to vector<64x8xf32>
    %177 = arith.truncf %176 : vector<64x8xf32> to vector<64x8xbf16>
    %c64 = arith.constant 64 : index
    %c0_107 = arith.constant 0 : index
    %178 = vector.load %arg5[%c64, %c0_107] : memref<72x8xbf16, #tpu.memory_space<vmem>>, vector<8x8xbf16>
    %cst_108 = arith.constant dense<0.000000e+00> : vector<64x8xf32>
    %179 = tpu.matmul %177, %178, %cst_108 {dimension_numbers = #tpu.dot_dimension_numbers<[1], [0], [0], [1], [0, 0, 1, 1], [], []>} : vector<64x8xbf16>, vector<8x8xbf16>, vector<64x8xf32> -> vector<64x8xf32>
    %180 = arith.addf %160, %179 : vector<64x8xf32>
    %181 = arith.truncf %180 : vector<64x8xf32> to vector<64x8xbf16>
    %c0_109 = arith.constant 0 : index
    %c0_110 = arith.constant 0 : index
    %c0_111 = arith.constant 0 : index
    %182 = vector.load %arg6[%c0_109, %c0_110, %c0_111] : memref<1x64x8xbf16, #tpu.memory_space<vmem>>, vector<1x64x8xbf16>
    %183 = vector.shape_cast %182 : vector<1x64x8xbf16> to vector<64x8xbf16>
    %184 = vector.shape_cast %181 : vector<64x8xbf16> to vector<1x64x8xbf16>
    tpu.vector_store %arg6[%c0_109, %c0_110, %c0_111], %184 {strides = array<i32>} : memref<1x64x8xbf16, #tpu.memory_space<vmem>>, vector<1x64x8xbf16>,
    return
  }
  func.func @transform_0(%arg0: i32) -> (i32, i32, i32, i32, i32) {
    %c0_i32 = arith.constant 0 : i32
    %c0_i32_0 = arith.constant 0 : i32
    %c0_i32_1 = arith.constant 0 : i32
    %c0_i32_2 = arith.constant 0 : i32
    %c0_i32_3 = arith.constant 0 : i32
    return %arg0, %c0_i32, %c0_i32_0, %c0_i32_1, %c0_i32_2 : i32, i32, i32, i32, i32
  }
  func.func @transform_1(%arg0: i32) -> (i32, i32, i32, i32) {
    %c0_i32 = arith.constant 0 : i32
    %c0_i32_0 = arith.constant 0 : i32
    %c0_i32_1 = arith.constant 0 : i32
    %c0_i32_2 = arith.constant 0 : i32
    %c0_i32_3 = arith.constant 0 : i32
    return %c0_i32, %c0_i32_0, %c0_i32_1, %c0_i32_2 : i32, i32, i32, i32
  }
  func.func @transform_2(%arg0: i32) -> (i32, i32) {
    %c0_i32 = arith.constant 0 : i32
    %c0_i32_0 = arith.constant 0 : i32
    %c0_i32_1 = arith.constant 0 : i32
    return %c0_i32, %c0_i32_0 : i32, i32
  }
  func.func @transform_3(%arg0: i32) -> (i32, i32) {
    %c0_i32 = arith.constant 0 : i32
    %c0_i32_0 = arith.constant 0 : i32
    %c0_i32_1 = arith.constant 0 : i32
    return %c0_i32, %c0_i32_0 : i32, i32
  }
  func.func @transform_4(%arg0: i32) -> (i32, i32) {
    %c0_i32 = arith.constant 0 : i32
    %c0_i32_0 = arith.constant 0 : i32
    %c0_i32_1 = arith.constant 0 : i32
    return %c0_i32, %c0_i32_0 : i32, i32
  }
  func.func @transform_5(%arg0: i32) -> (i32, i32, i32) {
    %c0_i32 = arith.constant 0 : i32
    %c0_i32_0 = arith.constant 0 : i32
    %c0_i32_1 = arith.constant 0 : i32
    return %arg0, %c0_i32, %c0_i32_0 : i32, i32, i32
  }
}

</mosaic_0001>

<llo_original>
// kernel: _lambda_.9
$region0: #{_lambda_.9}
  #allocation0 [shape = 'u32[]', space=smem, size = 0x4, offset = 0x4, fixed_abs, tag = 'smem constant byte address 0x4 - core index']
  #allocation1 [shape = 'u32[72,128]{1,0:T(1,128)}', space=vmem, size = 0x9000, scoped, tag = 'internal scratch']
  %s0 = inlined_call_operand.vmem [shape: bf16[2,16,16,4], index: 0, kind: input, shape index: {}]
  %s1 = inlined_call_operand.vmem [shape: f32[2,1,4], index: 1, kind: output, shape index: {0}]
  %s2 = inlined_call_operand.vmem [shape: f32[2,1,4], index: 2, kind: output, shape index: {1}]
  %3 = xla_tuple %s1, %s2
  %s4 = sld [smem:[#allocation0]]
  $region45: #{_lambda_.9} parent=0
    _
  %s6 = ssub.s32 1, %s4
  %s7 = scalar_select 0, %s6, %s4
  loop: start=0, step=1, limit=4
  $region2: #{_lambda_.9} parent=0 // loop_pre_header
    _
  $region3: #{_lambda_.9} parent=0 // loop_header
    %s9 = sphi 0, %s13
    %p10 = scmp.ge.s32.totalorder %s9, 4
    %s19 = sphi 0, %s21
    %s22 = sphi 0, %s19
    %s23 = sphi 0, %s22
    %s39 = sphi 0, %s23
    %s45 = sphi 0, %s47
    %s48 = sphi 0, %s45
    %s49 = sphi 0, %s48
    %s65 = sphi 0, %s49
    %s71 = sphi 0, %s73
    %s74 = sphi 0, %s71
    %s75 = sphi 0, %s74
    %s91 = sphi 0, %s75
  $region4: #{_lambda_.9} parent=0 // loop_header_branch
    %12 = sbr.rel (%p10) target = $region8
  $region5: #{_lambda_.9} parent=0 // loop_body
    %s14 = ssub.s32 %s9, 1
    %s15 = ssub.s32 %s9, 2
    %s16 = sadd.s32 %s9, 1
    %s17 = ssub.s32 %s9, %s16
    %p18 = scmp.eq.s32.totalorder %s17, 0
    %s20 = sadd.s32 %s19, 1
    %s21 = scalar_select %p18, %s19, %s20
    %p24 = pneg %p18
    %p25 = scmp.eq.s32.totalorder %s9, 1
    %p26 = por %p24, %p25
    %p27 = scmp.ne.s32.totalorder %s19, %s22
    %p28 = scmp.eq.s32.totalorder %s9, 0
    %p29 = por %p27, %p28
    %p30 = scmp.ne.s32.totalorder %s19, %s22
    %p31 = scmp.eq.s32.totalorder %s14, 1
    %p32 = por %p30, %p31
    %p33 = scmp.ne.s32.totalorder %s22, %s23
    %p34 = scmp.eq.s32.totalorder %s14, 0
    %p35 = por %p33, %p34
    %p36 = scmp.ne.s32.totalorder %s22, %s23
    %p37 = scmp.eq.s32.totalorder %s15, 1
    %p38 = por %p36, %p37
    %p40 = scmp.ne.s32.totalorder %s23, %s39
    %p41 = scmp.eq.s32.totalorder %s15, 0
    %p42 = por %p40, %p41
    %s43 = ssub.s32 %s9, %s16
    %p44 = scmp.eq.s32.totalorder %s43, 0
    %s46 = sadd.s32 %s45, 1
    %s47 = scalar_select %p44, %s45, %s46
    %p50 = pneg %p44
    %p51 = scmp.eq.s32.totalorder %s9, 1
    %p52 = por %p50, %p51
    %p53 = scmp.ne.s32.totalorder %s45, %s48
    %p54 = scmp.eq.s32.totalorder %s9, 0
    %p55 = por %p53, %p54
    %p56 = scmp.ne.s32.totalorder %s45, %s48
    %p57 = scmp.eq.s32.totalorder %s14, 1
    %p58 = por %p56, %p57
    %p59 = scmp.ne.s32.totalorder %s48, %s49
    %p60 = scmp.eq.s32.totalorder %s14, 0
    %p61 = por %p59, %p60
    %p62 = scmp.ne.s32.totalorder %s48, %s49
    %p63 = scmp.eq.s32.totalorder %s15, 1
    %p64 = por %p62, %p63
    %p66 = scmp.ne.s32.totalorder %s49, %s65
    %p67 = scmp.eq.s32.totalorder %s15, 0
    %p68 = por %p66, %p67
    %s69 = ssub.s32 %s9, %s16
    %p70 = scmp.eq.s32.totalorder %s69, 0
    %s72 = sadd.s32 %s71, 1
    %s73 = scalar_select %p70, %s71, %s72
    %p76 = pneg %p70
    %p77 = scmp.eq.s32.totalorder %s9, 1
    %p78 = por %p76, %p77
    %p79 = scmp.ne.s32.totalorder %s71, %s74
    %p80 = scmp.eq.s32.totalorder %s9, 0
    %p81 = por %p79, %p80
    %p82 = scmp.ne.s32.totalorder %s71, %s74
    %p83 = scmp.eq.s32.totalorder %s14, 1
    %p84 = por %p82, %p83
    %p85 = scmp.ne.s32.totalorder %s74, %s75
    %p86 = scmp.eq.s32.totalorder %s14, 0
    %p87 = por %p85, %p86
    %p88 = scmp.ne.s32.totalorder %s74, %s75
    %p89 = scmp.eq.s32.totalorder %s15, 1
    %p90 = por %p88, %p89
    %p92 = scmp.ne.s32.totalorder %s75, %s91
    %p93 = scmp.eq.s32.totalorder %s15, 0
    %p94 = por %p92, %p93
    %p95 = scmp.le.s32.totalorder 1, %s9
    %p96 = scmp.lt.s32.totalorder %s9, 3
    %p97 = pnand %p95, %p96
    %p98 = pneg %p97
    // Predicated region
    $region9: #{_lambda_.9} parent=5 // pred_check
      _
    $region10: #{_lambda_.9} parent=5 // pred_check_branch
      %100 = sbr.rel (%p97) target = $region12
    $region11: #{_lambda_.9} parent=5 // pred_region
      %s101 = ssub.s32 %s9, 1
    $region12: #{_lambda_.9} parent=5 // pred_fallthru
      _
    %p102 = scmp.lt.s32.totalorder %s9, 2
    // Predicated region
    $region13: #{_lambda_.9} parent=5 // pred_check
      %p103 = pneg %p102
    $region14: #{_lambda_.9} parent=5 // pred_check_branch
      %105 = sbr.rel (%p103) target = $region16
    $region15: #{_lambda_.9} parent=5 // pred_region
      // Predicated region
      $region17: #{_lambda_.9} parent=15 // pred_check
        %p106 = pneg %p29
      $region18: #{_lambda_.9} parent=15 // pred_check_branch
        %108 = sbr.rel (%p106) target = $region20
      $region19: #{_lambda_.9} parent=15 // pred_region
        %p109 = scmp.lt.s32.totalorder %s9, 1
        %s110 = scalar_select %p109, %s9, 1
        %s111 = smul.addr %s110, 32
        %s112 = smul.addr %s111, 4
        %s113 = scalar_lea.vmem %s0, %s112
      $region20: #{_lambda_.9} parent=15 // pred_fallthru
        _
    $region16: #{_lambda_.9} parent=5 // pred_fallthru
      _
    %p114 = scmp.le.s32.totalorder 1, %s9
    %p115 = scmp.lt.s32.totalorder %s9, 3
    %p116 = pnand %p114, %p115
    %p117 = pneg %p116
    // Predicated region
    $region21: #{_lambda_.9} parent=5 // pred_check
      _
    $region22: #{_lambda_.9} parent=5 // pred_check_branch
      %119 = sbr.rel (%p116) target = $region24
    $region23: #{_lambda_.9} parent=5 // pred_region
      %s120 = ssub.s32 %s9, 1
      %p121 = scmp.lt.s32.totalorder %s14, 1
      %s122 = scalar_select %p121, %s14, 1
      %s123 = smul.addr %s122, 32
      %s124 = smul.addr %s123, 4
      %s125 = scalar_lea.vmem %s0, %s124
      %p126 = pneg %p35
      %p127 = pneg %p32
      %p128 = pneg %p61
      %p129 = pneg %p58
      %p130 = scmp.lt.s32.totalorder %s14, 1
      %s131 = scalar_select %p130, %s14, 1
      %s132 = scalar_lea.vmem %s1, %s131
      %p133 = pneg %p87
      %p134 = pneg %p84
      %p135 = scmp.lt.s32.totalorder %s14, 1
      %s136 = scalar_select %p135, %s14, 1
      %s137 = scalar_lea.vmem %s2, %s136
      %p138 = scmp.lt.s32.totalorder %s14, 1
      %s139 = scalar_select %p138, %s14, 1
      %s140 = smul.addr %s139, 32
      %s141 = smul.addr %s140, 4
      %s142 = scalar_lea.vmem %s0, %s141
      %p143 = scmp.lt.s32.totalorder %s14, 1
      %s144 = scalar_select %p143, %s14, 1
      %s145 = scalar_lea.vmem %s1, %s144
      %p146 = scmp.lt.s32.totalorder %s14, 1
      %s147 = scalar_select %p146, %s14, 1
      %s148 = scalar_lea.vmem %s2, %s147
      %v149 = vld [vmem:[%s142] sm:$0xf]
      %v150 = vld [vmem:[%s142 + $0x4] sm:$0xf]
      %v151 = vld [vmem:[%s142 + $0x8] sm:$0xf]
      %v152 = vld [vmem:[%s142 + $0xc] sm:$0xf]
      %v153 = vld [vmem:[%s142 + $0x10] sm:$0xf]
      %v154 = vld [vmem:[%s142 + $0x14] sm:$0xf]
      %v155 = vld [vmem:[%s142 + $0x18] sm:$0xf]
      %v156 = vld [vmem:[%s142 + $0x1c] sm:$0xf]
      %v157 = vld [vmem:[%s142 + $0x20] sm:$0xf]
      %v158 = vld [vmem:[%s142 + $0x24] sm:$0xf]
      %v159 = vld [vmem:[%s142 + $0x28] sm:$0xf]
      %v160 = vld [vmem:[%s142 + $0x2c] sm:$0xf]
      %v161 = vld [vmem:[%s142 + $0x30] sm:$0xf]
      %v162 = vld [vmem:[%s142 + $0x34] sm:$0xf]
      %v163 = vld [vmem:[%s142 + $0x38] sm:$0xf]
      %v164 = vld [vmem:[%s142 + $0x3c] sm:$0xf]
      %v165 = vld [vmem:[%s142 + $0x40] sm:$0xf]
      %v166 = vld [vmem:[%s142 + $0x44] sm:$0xf]
      %v167 = vld [vmem:[%s142 + $0x48] sm:$0xf]
      %v168 = vld [vmem:[%s142 + $0x4c] sm:$0xf]
      %v169 = vld [vmem:[%s142 + $0x50] sm:$0xf]
      %v170 = vld [vmem:[%s142 + $0x54] sm:$0xf]
      %v171 = vld [vmem:[%s142 + $0x58] sm:$0xf]
      %v172 = vld [vmem:[%s142 + $0x5c] sm:$0xf]
      %v173 = vld [vmem:[%s142 + $0x60] sm:$0xf]
      %v174 = vld [vmem:[%s142 + $0x64] sm:$0xf]
      %v175 = vld [vmem:[%s142 + $0x68] sm:$0xf]
      %v176 = vld [vmem:[%s142 + $0x6c] sm:$0xf]
      %v177 = vld [vmem:[%s142 + $0x70] sm:$0xf]
      %v178 = vld [vmem:[%s142 + $0x74] sm:$0xf]
      %v179 = vld [vmem:[%s142 + $0x78] sm:$0xf]
      %v180 = vld [vmem:[%s142 + $0x7c] sm:$0xf]
      %v181 = vunpack.c.l.bf16 %v149
      %v182 = vunpack.c.l.bf16 %v150
      %v183 = vunpack.c.l.bf16 %v151
      %v184 = vunpack.c.l.bf16 %v152
      %v185 = vunpack.c.l.bf16 %v153
      %v186 = vunpack.c.l.bf16 %v154
      %v187 = vunpack.c.l.bf16 %v155
      %v188 = vunpack.c.l.bf16 %v156
      %v189 = vunpack.c.l.bf16 %v157
      %v190 = vunpack.c.l.bf16 %v158
      %v191 = vunpack.c.l.bf16 %v159
      %v192 = vunpack.c.l.bf16 %v160
      %v193 = vunpack.c.l.bf16 %v161
      %v194 = vunpack.c.l.bf16 %v162
      %v195 = vunpack.c.l.bf16 %v163
      %v196 = vunpack.c.l.bf16 %v164
      %v197 = vunpack.c.l.bf16 %v165
      %v198 = vunpack.c.l.bf16 %v166
      %v199 = vunpack.c.l.bf16 %v167
      %v200 = vunpack.c.l.bf16 %v168
      %v201 = vunpack.c.l.bf16 %v169
      %v202 = vunpack.c.l.bf16 %v170
      %v203 = vunpack.c.l.bf16 %v171
      %v204 = vunpack.c.l.bf16 %v172
      %v205 = vunpack.c.l.bf16 %v173
      %v206 = vunpack.c.l.bf16 %v174
      %v207 = vunpack.c.l.bf16 %v175
      %v208 = vunpack.c.l.bf16 %v176
      %v209 = vunpack.c.l.bf16 %v177
      %v210 = vunpack.c.l.bf16 %v178
      %v211 = vunpack.c.l.bf16 %v179
      %v212 = vunpack.c.l.bf16 %v180
      %vm213 = vcmask 31744
      %v214 = vsel %vm213, %v181, 0.0
      %v215 = vsel %vm213, %v183, 0.0
      %v216 = vadd.f32 %v214, %v215
      %v217 = vsel %vm213, %v185, 0.0
      %v218 = vadd.f32 %v216, %v217
      %v219 = vsel %vm213, %v187, 0.0
      %v220 = vadd.f32 %v218, %v219
      %v221 = vsel %vm213, %v189, 0.0
      %v222 = vadd.f32 %v220, %v221
      %v223 = vsel %vm213, %v191, 0.0
      %v224 = vadd.f32 %v222, %v223
      %v225 = vsel %vm213, %v193, 0.0
      %v226 = vadd.f32 %v224, %v225
      %v227 = vsel %vm213, %v195, 0.0
      %v228 = vadd.f32 %v226, %v227
      %v229 = vsel %vm213, %v197, 0.0
      %v230 = vadd.f32 %v228, %v229
      %v231 = vsel %vm213, %v199, 0.0
      %v232 = vadd.f32 %v230, %v231
      %v233 = vsel %vm213, %v201, 0.0
      %v234 = vadd.f32 %v232, %v233
      %v235 = vsel %vm213, %v203, 0.0
      %v236 = vadd.f32 %v234, %v235
      %v237 = vsel %vm213, %v205, 0.0
      %v238 = vadd.f32 %v236, %v237
      %v239 = vsel %vm213, %v207, 0.0
      %v240 = vadd.f32 %v238, %v239
      %v241 = vsel %vm213, %v209, 0.0
      %v242 = vadd.f32 %v240, %v241
      %v243 = vsel %vm213, %v211, 0.0
      %v244 = vadd.f32 %v242, %v243
      %v245 = vsel %vm213, %v182, 0.0
      %v246 = vsel %vm213, %v184, 0.0
      %v247 = vadd.f32 %v245, %v246
      %v248 = vsel %vm213, %v186, 0.0
      %v249 = vadd.f32 %v247, %v248
      %v250 = vsel %vm213, %v188, 0.0
      %v251 = vadd.f32 %v249, %v250
      %v252 = vsel %vm213, %v190, 0.0
      %v253 = vadd.f32 %v251, %v252
      %v254 = vsel %vm213, %v192, 0.0
      %v255 = vadd.f32 %v253, %v254
      %v256 = vsel %vm213, %v194, 0.0
      %v257 = vadd.f32 %v255, %v256
      %v258 = vsel %vm213, %v196, 0.0
      %v259 = vadd.f32 %v257, %v258
      %v260 = vsel %vm213, %v198, 0.0
      %v261 = vadd.f32 %v259, %v260
      %v262 = vsel %vm213, %v200, 0.0
      %v263 = vadd.f32 %v261, %v262
      %v264 = vsel %vm213, %v202, 0.0
      %v265 = vadd.f32 %v263, %v264
      %v266 = vsel %vm213, %v204, 0.0
      %v267 = vadd.f32 %v265, %v266
      %v268 = vsel %vm213, %v206, 0.0
      %v269 = vadd.f32 %v267, %v268
      %v270 = vsel %vm213, %v208, 0.0
      %v271 = vadd.f32 %v269, %v270
      %v272 = vsel %vm213, %v210, 0.0
      %v273 = vadd.f32 %v271, %v272
      %v274 = vsel %vm213, %v212, 0.0
      %v275 = vadd.f32 %v273, %v274
      %v276 = vsel %vm213, %v244, 0.0
      %v277 = vsel %vm213, %v275, 0.0
      %v278 = vadd.f32 %v276, %v277
      %v279 = vrot.slane %v278, 4
      %v280 = vadd.f32 %v278, %v279
      %v281 = vrot.slane %v280, 2
      %v282 = vadd.f32 %v280, %v281
      %v283 = vrot.slane %v282, 1
      %v284 = vadd.f32 %v282, %v283
      %v285 = vmul.f32 %v181, %v181
      %v286 = vmul.f32 %v182, %v182
      %v287 = vmul.f32 %v183, %v183
      %v288 = vmul.f32 %v184, %v184
      %v289 = vmul.f32 %v185, %v185
      %v290 = vmul.f32 %v186, %v186
      %v291 = vmul.f32 %v187, %v187
      %v292 = vmul.f32 %v188, %v188
      %v293 = vmul.f32 %v189, %v189
      %v294 = vmul.f32 %v190, %v190
      %v295 = vmul.f32 %v191, %v191
      %v296 = vmul.f32 %v192, %v192
      %v297 = vmul.f32 %v193, %v193
      %v298 = vmul.f32 %v194, %v194
      %v299 = vmul.f32 %v195, %v195
      %v300 = vmul.f32 %v196, %v196
      %v301 = vmul.f32 %v197, %v197
      %v302 = vmul.f32 %v198, %v198
      %v303 = vmul.f32 %v199, %v199
      %v304 = vmul.f32 %v200, %v200
      %v305 = vmul.f32 %v201, %v201
      %v306 = vmul.f32 %v202, %v202
      %v307 = vmul.f32 %v203, %v203
      %v308 = vmul.f32 %v204, %v204
      %v309 = vmul.f32 %v205, %v205
      %v310 = vmul.f32 %v206, %v206
      %v311 = vmul.f32 %v207, %v207
      %v312 = vmul.f32 %v208, %v208
      %v313 = vmul.f32 %v209, %v209
      %v314 = vmul.f32 %v210, %v210
      %v315 = vmul.f32 %v211, %v211
      %v316 = vmul.f32 %v212, %v212
      %v317 = vsel %vm213, %v285, 0.0
      %v318 = vsel %vm213, %v287, 0.0
      %v319 = vadd.f32 %v317, %v318
      %v320 = vsel %vm213, %v289, 0.0
      %v321 = vadd.f32 %v319, %v320
      %v322 = vsel %vm213, %v291, 0.0
      %v323 = vadd.f32 %v321, %v322
      %v324 = vsel %vm213, %v293, 0.0
      %v325 = vadd.f32 %v323, %v324
      %v326 = vsel %vm213, %v295, 0.0
      %v327 = vadd.f32 %v325, %v326
      %v328 = vsel %vm213, %v297, 0.0
      %v329 = vadd.f32 %v327, %v328
      %v330 = vsel %vm213, %v299, 0.0
      %v331 = vadd.f32 %v329, %v330
      %v332 = vsel %vm213, %v301, 0.0
      %v333 = vadd.f32 %v331, %v332
      %v334 = vsel %vm213, %v303, 0.0
      %v335 = vadd.f32 %v333, %v334
      %v336 = vsel %vm213, %v305, 0.0
      %v337 = vadd.f32 %v335, %v336
      %v338 = vsel %vm213, %v307, 0.0
      %v339 = vadd.f32 %v337, %v338
      %v340 = vsel %vm213, %v309, 0.0
      %v341 = vadd.f32 %v339, %v340
      %v342 = vsel %vm213, %v311, 0.0
      %v343 = vadd.f32 %v341, %v342
      %v344 = vsel %vm213, %v313, 0.0
      %v345 = vadd.f32 %v343, %v344
      %v346 = vsel %vm213, %v315, 0.0
      %v347 = vadd.f32 %v345, %v346
      %v348 = vsel %vm213, %v286, 0.0
      %v349 = vsel %vm213, %v288, 0.0
      %v350 = vadd.f32 %v348, %v349
      %v351 = vsel %vm213, %v290, 0.0
      %v352 = vadd.f32 %v350, %v351
      %v353 = vsel %vm213, %v292, 0.0
      %v354 = vadd.f32 %v352, %v353
      %v355 = vsel %vm213, %v294, 0.0
      %v356 = vadd.f32 %v354, %v355
      %v357 = vsel %vm213, %v296, 0.0
      %v358 = vadd.f32 %v356, %v357
      %v359 = vsel %vm213, %v298, 0.0
      %v360 = vadd.f32 %v358, %v359
      %v361 = vsel %vm213, %v300, 0.0
      %v362 = vadd.f32 %v360, %v361
      %v363 = vsel %vm213, %v302, 0.0
      %v364 = vadd.f32 %v362, %v363
      %v365 = vsel %vm213, %v304, 0.0
      %v366 = vadd.f32 %v364, %v365
      %v367 = vsel %vm213, %v306, 0.0
      %v368 = vadd.f32 %v366, %v367
      %v369 = vsel %vm213, %v308, 0.0
      %v370 = vadd.f32 %v368, %v369
      %v371 = vsel %vm213, %v310, 0.0
      %v372 = vadd.f32 %v370, %v371
      %v373 = vsel %vm213, %v312, 0.0
      %v374 = vadd.f32 %v372, %v373
      %v375 = vsel %vm213, %v314, 0.0
      %v376 = vadd.f32 %v374, %v375
      %v377 = vsel %vm213, %v316, 0.0
      %v378 = vadd.f32 %v376, %v377
      %v379 = vsel %vm213, %v347, 0.0
      %v380 = vsel %vm213, %v378, 0.0
      %v381 = vadd.f32 %v379, %v380
      %v382 = vrot.slane %v381, 4
      %v383 = vadd.f32 %v381, %v382
      %v384 = vrot.slane %v383, 2
      %v385 = vadd.f32 %v383, %v384
      %v386 = vrot.slane %v385, 1
      %v387 = vadd.f32 %v385, %v386
      %vm388 = vcmask 24576
      %389 = vst.msk [vmem:[%s145] sm:$0x1] %vm388, %v284
      %390 = vst.msk [vmem:[%s148] sm:$0x1] %vm388, %v387
      %p391 = scmp.lt.s32.totalorder %s14, 1
      %s392 = scalar_select %p391, %s14, 1
      %s393 = scalar_lea.vmem %s1, %s392
      %p394 = scmp.lt.s32.totalorder %s14, 1
      %s395 = scalar_select %p394, %s14, 1
      %s396 = scalar_lea.vmem %s2, %s395
      // Predicated region
      $region25: #{_lambda_.9} parent=23 // pred_check
        %p397 = pneg %p58
      $region26: #{_lambda_.9} parent=23 // pred_check_branch
        %399 = sbr.rel (%p397) target = $region28
      $region27: #{_lambda_.9} parent=23 // pred_region
        _
      $region28: #{_lambda_.9} parent=23 // pred_fallthru
        _
      // Predicated region
      $region29: #{_lambda_.9} parent=23 // pred_check
        %p400 = pneg %p84
      $region30: #{_lambda_.9} parent=23 // pred_check_branch
        %402 = sbr.rel (%p400) target = $region32
      $region31: #{_lambda_.9} parent=23 // pred_region
        _
      $region32: #{_lambda_.9} parent=23 // pred_fallthru
        _
    $region24: #{_lambda_.9} parent=5 // pred_fallthru
      _
    %p403 = scmp.le.s32.totalorder 2, %s9
    // Predicated region
    $region33: #{_lambda_.9} parent=5 // pred_check
      %p404 = pneg %p403
    $region34: #{_lambda_.9} parent=5 // pred_check_branch
      %406 = sbr.rel (%p404) target = $region36
    $region35: #{_lambda_.9} parent=5 // pred_region
      %s407 = ssub.s32 %s9, 2
      // Predicated region
      $region37: #{_lambda_.9} parent=35 // pred_check
        %p408 = pneg %p64
      $region38: #{_lambda_.9} parent=35 // pred_check_branch
        %410 = sbr.rel (%p408) target = $region40
      $region39: #{_lambda_.9} parent=35 // pred_region
        %p411 = scmp.lt.s32.totalorder %s15, 1
        %s412 = scalar_select %p411, %s15, 1
        %s413 = scalar_lea.vmem %s1, %s412
      $region40: #{_lambda_.9} parent=35 // pred_fallthru
        _
      // Predicated region
      $region41: #{_lambda_.9} parent=35 // pred_check
        %p414 = pneg %p90
      $region42: #{_lambda_.9} parent=35 // pred_check_branch
        %416 = sbr.rel (%p414) target = $region44
      $region43: #{_lambda_.9} parent=35 // pred_region
        %p417 = scmp.lt.s32.totalorder %s15, 1
        %s418 = scalar_select %p417, %s15, 1
        %s419 = scalar_lea.vmem %s2, %s418
      $region44: #{_lambda_.9} parent=35 // pred_fallthru
        _
    $region36: #{_lambda_.9} parent=5 // pred_fallthru
      _
  $region6: #{_lambda_.9} parent=0 // loop_footer
    %s13 = sadd.s32 1, %s9
  $region7: #{_lambda_.9} parent=0 // loop_footer_branch
    %8 = sbr.rel target = $region3
  $region8: #{_lambda_.9} parent=0 // loop_exit
    _

// kernel: _lambda_.11
$region0: #{_lambda_.11}
  #allocation0 [shape = 'u32[]', space=smem, size = 0x4, offset = 0x4, fixed_abs, tag = 'smem constant byte address 0x4 - core index']
  #allocation1 [shape = 'u32[72,128]{1,0:T(1,128)}', space=vmem, size = 0x9000, scoped, tag = 'internal scratch']
  %s0 = inlined_call_operand.vmem [shape: bf16[2,64,4], index: 0, kind: input, shape index: {}]
  %s1 = inlined_call_operand.vmem [shape: f32[1,4], index: 1, kind: input, shape index: {}]
  %s2 = inlined_call_operand.vmem [shape: f32[1,4], index: 2, kind: input, shape index: {}]
  %s3 = inlined_call_operand.vmem [shape: bf16[4,8], index: 3, kind: input, shape index: {}]
  %s4 = inlined_call_operand.vmem [shape: bf16[2,64,8], index: 4, kind: output, shape index: {}]
  %s5 = sld [smem:[#allocation0]]
  $region49: #{_lambda_.11} parent=0
    _
  %s7 = ssub.s32 1, %s5
  %s8 = scalar_select 0, %s7, %s5
  loop: start=0, step=1, limit=4
  $region2: #{_lambda_.11} parent=0 // loop_pre_header
    _
  $region3: #{_lambda_.11} parent=0 // loop_header
    %s10 = sphi 0, %s14
    %p11 = scmp.ge.s32.totalorder %s10, 4
    %s20 = sphi 0, %s22
    %s23 = sphi 0, %s20
    %s24 = sphi 0, %s23
    %s40 = sphi 0, %s24
    %s44 = sphi 0, %s44
    %s46 = sphi 0, %s44
    %s47 = sphi 0, %s46
    %s61 = sphi 0, %s47
    %s65 = sphi 0, %s65
    %s67 = sphi 0, %s65
    %s68 = sphi 0, %s67
    %s82 = sphi 0, %s68
    %s86 = sphi 0, %s86
    %s88 = sphi 0, %s86
    %s89 = sphi 0, %s88
    %s103 = sphi 0, %s89
    %s109 = sphi 0, %s111
    %s112 = sphi 0, %s109
    %s113 = sphi 0, %s112
    %s129 = sphi 0, %s113
  $region4: #{_lambda_.11} parent=0 // loop_header_branch
    %13 = sbr.rel (%p11) target = $region8
  $region5: #{_lambda_.11} parent=0 // loop_body
    %s15 = ssub.s32 %s10, 1
    %s16 = ssub.s32 %s10, 2
    %s17 = sadd.s32 %s10, 1
    %s18 = ssub.s32 %s10, %s17
    %p19 = scmp.eq.s32.totalorder %s18, 0
    %s21 = sadd.s32 %s20, 1
    %s22 = scalar_select %p19, %s20, %s21
    %p25 = pneg %p19
    %p26 = scmp.eq.s32.totalorder %s10, 1
    %p27 = por %p25, %p26
    %p28 = scmp.ne.s32.totalorder %s20, %s23
    %p29 = scmp.eq.s32.totalorder %s10, 0
    %p30 = por %p28, %p29
    %p31 = scmp.ne.s32.totalorder %s20, %s23
    %p32 = scmp.eq.s32.totalorder %s15, 1
    %p33 = por %p31, %p32
    %p34 = scmp.ne.s32.totalorder %s23, %s24
    %p35 = scmp.eq.s32.totalorder %s15, 0
    %p36 = por %p34, %p35
    %p37 = scmp.ne.s32.totalorder %s23, %s24
    %p38 = scmp.eq.s32.totalorder %s16, 1
    %p39 = por %p37, %p38
    %p41 = scmp.ne.s32.totalorder %s24, %s40
    %p42 = scmp.eq.s32.totalorder %s16, 0
    %p43 = por %p41, %p42
    %s45 = sadd.s32 %s44, 1
    %p48 = scmp.eq.s32.totalorder %s10, 1
    %p49 = scmp.ne.s32.totalorder %s44, %s46
    %p50 = scmp.eq.s32.totalorder %s10, 0
    %p51 = por %p49, %p50
    %p52 = scmp.ne.s32.totalorder %s44, %s46
    %p53 = scmp.eq.s32.totalorder %s15, 1
    %p54 = por %p52, %p53
    %p55 = scmp.ne.s32.totalorder %s46, %s47
    %p56 = scmp.eq.s32.totalorder %s15, 0
    %p57 = por %p55, %p56
    %p58 = scmp.ne.s32.totalorder %s46, %s47
    %p59 = scmp.eq.s32.totalorder %s16, 1
    %p60 = por %p58, %p59
    %p62 = scmp.ne.s32.totalorder %s47, %s61
    %p63 = scmp.eq.s32.totalorder %s16, 0
    %p64 = por %p62, %p63
    %s66 = sadd.s32 %s65, 1
    %p69 = scmp.eq.s32.totalorder %s10, 1
    %p70 = scmp.ne.s32.totalorder %s65, %s67
    %p71 = scmp.eq.s32.totalorder %s10, 0
    %p72 = por %p70, %p71
    %p73 = scmp.ne.s32.totalorder %s65, %s67
    %p74 = scmp.eq.s32.totalorder %s15, 1
    %p75 = por %p73, %p74
    %p76 = scmp.ne.s32.totalorder %s67, %s68
    %p77 = scmp.eq.s32.totalorder %s15, 0
    %p78 = por %p76, %p77
    %p79 = scmp.ne.s32.totalorder %s67, %s68
    %p80 = scmp.eq.s32.totalorder %s16, 1
    %p81 = por %p79, %p80
    %p83 = scmp.ne.s32.totalorder %s68, %s82
    %p84 = scmp.eq.s32.totalorder %s16, 0
    %p85 = por %p83, %p84
    %s87 = sadd.s32 %s86, 1
    %p90 = scmp.eq.s32.totalorder %s10, 1
    %p91 = scmp.ne.s32.totalorder %s86, %s88
    %p92 = scmp.eq.s32.totalorder %s10, 0
    %p93 = por %p91, %p92
    %p94 = scmp.ne.s32.totalorder %s86, %s88
    %p95 = scmp.eq.s32.totalorder %s15, 1
    %p96 = por %p94, %p95
    %p97 = scmp.ne.s32.totalorder %s88, %s89
    %p98 = scmp.eq.s32.totalorder %s15, 0
    %p99 = por %p97, %p98
    %p100 = scmp.ne.s32.totalorder %s88, %s89
    %p101 = scmp.eq.s32.totalorder %s16, 1
    %p102 = por %p100, %p101
    %p104 = scmp.ne.s32.totalorder %s89, %s103
    %p105 = scmp.eq.s32.totalorder %s16, 0
    %p106 = por %p104, %p105
    %s107 = ssub.s32 %s10, %s17
    %p108 = scmp.eq.s32.totalorder %s107, 0
    %s110 = sadd.s32 %s109, 1
    %s111 = scalar_select %p108, %s109, %s110
    %p114 = pneg %p108
    %p115 = scmp.eq.s32.totalorder %s10, 1
    %p116 = por %p114, %p115
    %p117 = scmp.ne.s32.totalorder %s109, %s112
    %p118 = scmp.eq.s32.totalorder %s10, 0
    %p119 = por %p117, %p118
    %p120 = scmp.ne.s32.totalorder %s109, %s112
    %p121 = scmp.eq.s32.totalorder %s15, 1
    %p122 = por %p120, %p121
    %p123 = scmp.ne.s32.totalorder %s112, %s113
    %p124 = scmp.eq.s32.totalorder %s15, 0
    %p125 = por %p123, %p124
    %p126 = scmp.ne.s32.totalorder %s112, %s113
    %p127 = scmp.eq.s32.totalorder %s16, 1
    %p128 = por %p126, %p127
    %p130 = scmp.ne.s32.totalorder %s113, %s129
    %p131 = scmp.eq.s32.totalorder %s16, 0
    %p132 = por %p130, %p131
    %p133 = scmp.le.s32.totalorder 1, %s10
    %p134 = scmp.lt.s32.totalorder %s10, 3
    %p135 = pnand %p133, %p134
    %p136 = pneg %p135
    // Predicated region
    $region9: #{_lambda_.11} parent=5 // pred_check
      _
    $region10: #{_lambda_.11} parent=5 // pred_check_branch
      %138 = sbr.rel (%p135) target = $region12
    $region11: #{_lambda_.11} parent=5 // pred_region
      %s139 = ssub.s32 %s10, 1
      // Predicated region
      $region13: #{_lambda_.11} parent=11 // pred_check
        %p140 = pneg %p57
      $region14: #{_lambda_.11} parent=11 // pred_check_branch
        %142 = sbr.rel (%p140) target = $region16
      $region15: #{_lambda_.11} parent=11 // pred_region
        _
      $region16: #{_lambda_.11} parent=11 // pred_fallthru
        _
      // Predicated region
      $region17: #{_lambda_.11} parent=11 // pred_check
        %p143 = pneg %p78
      $region18: #{_lambda_.11} parent=11 // pred_check_branch
        %145 = sbr.rel (%p143) target = $region20
      $region19: #{_lambda_.11} parent=11 // pred_region
        _
      $region20: #{_lambda_.11} parent=11 // pred_fallthru
        _
      // Predicated region
      $region21: #{_lambda_.11} parent=11 // pred_check
        %p146 = pneg %p99
      $region22: #{_lambda_.11} parent=11 // pred_check_branch
        %148 = sbr.rel (%p146) target = $region24
      $region23: #{_lambda_.11} parent=11 // pred_region
        _
      $region24: #{_lambda_.11} parent=11 // pred_fallthru
        _
    $region12: #{_lambda_.11} parent=5 // pred_fallthru
      _
    %p149 = scmp.lt.s32.totalorder %s10, 2
    // Predicated region
    $region25: #{_lambda_.11} parent=5 // pred_check
      %p150 = pneg %p149
    $region26: #{_lambda_.11} parent=5 // pred_check_branch
      %152 = sbr.rel (%p150) target = $region28
    $region27: #{_lambda_.11} parent=5 // pred_region
      // Predicated region
      $region29: #{_lambda_.11} parent=27 // pred_check
        %p153 = pneg %p30
      $region30: #{_lambda_.11} parent=27 // pred_check_branch
        %155 = sbr.rel (%p153) target = $region32
      $region31: #{_lambda_.11} parent=27 // pred_region
        %p156 = scmp.lt.s32.totalorder %s10, 1
        %s157 = scalar_select %p156, %s10, 1
        %s158 = smul.addr %s157, 8
        %s159 = smul.addr %s158, 4
        %s160 = scalar_lea.vmem %s0, %s159
      $region32: #{_lambda_.11} parent=27 // pred_fallthru
        _
    $region28: #{_lambda_.11} parent=5 // pred_fallthru
      _
    %p161 = scmp.le.s32.totalorder 1, %s10
    %p162 = scmp.lt.s32.totalorder %s10, 3
    %p163 = pnand %p161, %p162
    %p164 = pneg %p163
    // Predicated region
    $region33: #{_lambda_.11} parent=5 // pred_check
      _
    $region34: #{_lambda_.11} parent=5 // pred_check_branch
      %166 = sbr.rel (%p163) target = $region36
    $region35: #{_lambda_.11} parent=5 // pred_region
      %s167 = ssub.s32 %s10, 1
      %p168 = scmp.lt.s32.totalorder %s15, 1
      %s169 = scalar_select %p168, %s15, 1
      %s170 = smul.addr %s169, 8
      %s171 = smul.addr %s170, 4
      %s172 = scalar_lea.vmem %s0, %s171
      %p173 = pneg %p36
      %p174 = pneg %p33
      %p175 = pneg %p57
      %p176 = pneg %p54
      %p177 = pneg %p78
      %p178 = pneg %p75
      %p179 = pneg %p99
      %p180 = pneg %p96
      %p181 = pneg %p125
      %p182 = pneg %p122
      %p183 = scmp.lt.s32.totalorder %s15, 1
      %s184 = scalar_select %p183, %s15, 1
      %s185 = smul.addr %s184, 8
      %s186 = smul.addr %s185, 4
      %s187 = scalar_lea.vmem %s4, %s186
      %p188 = scmp.lt.s32.totalorder %s15, 1
      %s189 = scalar_select %p188, %s15, 1
      %s190 = smul.addr %s189, 8
      %s191 = smul.addr %s190, 4
      %s192 = scalar_lea.vmem %s0, %s191
      %p193 = scmp.lt.s32.totalorder %s15, 1
      %s194 = scalar_select %p193, %s15, 1
      %s195 = smul.addr %s194, 8
      %s196 = smul.addr %s195, 4
      %s197 = scalar_lea.vmem %s4, %s196
      %v199 = vld [vmem:[%s192] sm:$0xf]
      %v200 = vld [vmem:[%s192 + $0x4] sm:$0xf]
      %v201 = vld [vmem:[%s192 + $0x8] sm:$0xf]
      %v202 = vld [vmem:[%s192 + $0xc] sm:$0xf]
      %v203 = vld [vmem:[%s192 + $0x10] sm:$0xf]
      %v204 = vld [vmem:[%s192 + $0x14] sm:$0xf]
      %v205 = vld [vmem:[%s192 + $0x18] sm:$0xf]
      %v206 = vld [vmem:[%s192 + $0x1c] sm:$0xf]
      %v207 = vunpack.c.l.bf16 %v199
      %v208 = vunpack.c.l.bf16 %v200
      %v209 = vunpack.c.l.bf16 %v201
      %v210 = vunpack.c.l.bf16 %v202
      %v211 = vunpack.c.l.bf16 %v203
      %v212 = vunpack.c.l.bf16 %v204
      %v213 = vunpack.c.l.bf16 %v205
      %v214 = vunpack.c.l.bf16 %v206
      %v215 = vld [vmem:[%s1] sm:$0x1]
      %v217 = vperm.slane %v215, 0
      %v219 = vmul.f32 %v207, %v217
      %v220 = vmul.f32 %v208, %v217
      %v221 = vmul.f32 %v209, %v217
      %v222 = vmul.f32 %v210, %v217
      %v223 = vmul.f32 %v211, %v217
      %v224 = vmul.f32 %v212, %v217
      %v225 = vmul.f32 %v213, %v217
      %v226 = vmul.f32 %v214, %v217
      %v227 = vld [vmem:[%s2] sm:$0x1]
      %v229 = vperm.slane %v227, 0
      %v231 = vadd.f32 %v219, %v229
      %v232 = vadd.f32 %v220, %v229
      %v233 = vadd.f32 %v221, %v229
      %v234 = vadd.f32 %v222, %v229
      %v235 = vadd.f32 %v223, %v229
      %v236 = vadd.f32 %v224, %v229
      %v237 = vadd.f32 %v225, %v229
      %v238 = vadd.f32 %v226, %v229
      %v239 = vmax.f32 %v231, 0.0
      %v240 = vmax.f32 %v232, 0.0
      %v241 = vmax.f32 %v233, 0.0
      %v242 = vmax.f32 %v234, 0.0
      %v243 = vmax.f32 %v235, 0.0
      %v244 = vmax.f32 %v236, 0.0
      %v245 = vmax.f32 %v237, 0.0
      %v246 = vmax.f32 %v238, 0.0
      %v247 = vpack.c.bf16 %v240, %v239
      %v248 = vpack.c.bf16 %v242, %v241
      %v249 = vpack.c.bf16 %v244, %v243
      %v250 = vpack.c.bf16 %v246, %v245
      %v251 = vld [vmem:[%s3] sm:$0x3]
      %vm252 = vcmask 31744
      %v254 = vsel %vm252, %v247, 0
      %v257 = vsel %vm252, %v248, 0
      %v260 = vsel %vm252, %v249, 0
      %v263 = vsel %vm252, %v250, 0
      %vm265 = vcmask 1041408
      %v267 = vsel %vm265, %v251, 0
      %269 = vmatpush.bf16.msra.mxu0 0
      %270 = vmatpush.bf16.msra.mxu0 0
      %271 = vmatpush.bf16.msra.mxu0 0
      %272 = vmatpush.bf16.msra.mxu0 0
      %273 = vmatpush.bf16.msra.mxu0 0
      %274 = vmatpush.bf16.msra.mxu0 0
      %275 = vmatpush.bf16.msra.mxu0 0
      %276 = vmatpush.bf16.msra.mxu0 %v267
      %277 = vmatmul.bf16.gmra.mxu0 %v254
      %v278 = vpop.f32.mrf.mxu0
      %v279 = vadd.f32 0.0, %v278
      %v280 = vpop.f32.mrf.mxu0
      %v281 = vadd.f32 0.0, %v280
      %282 = vmatmul.bf16.gmra.mxu0 %v257
      %v283 = vpop.f32.mrf.mxu0
      %v284 = vadd.f32 0.0, %v283
      %v285 = vpop.f32.mrf.mxu0
      %v286 = vadd.f32 0.0, %v285
      %287 = vmatmul.bf16.gmra.mxu0 %v260
      %v288 = vpop.f32.mrf.mxu0
      %v289 = vadd.f32 0.0, %v288
      %v290 = vpop.f32.mrf.mxu0
      %v291 = vadd.f32 0.0, %v290
      %292 = vmatmul.bf16.gmra.mxu0 %v263
      %v293 = vpop.f32.mrf.mxu0
      %v294 = vadd.f32 0.0, %v293
      %v295 = vpop.f32.mrf.mxu0
      %v296 = vadd.f32 0.0, %v295
      %297 = vdwg.mxu0
      %v298 = vpack.c.bf16 %v279, %v279
      %v299 = vpack.c.bf16 %v281, %v281
      %v300 = vpack.c.bf16 %v284, %v284
      %v301 = vpack.c.bf16 %v286, %v286
      %v302 = vpack.c.bf16 %v289, %v289
      %v303 = vpack.c.bf16 %v291, %v291
      %v304 = vpack.c.bf16 %v294, %v294
      %v305 = vpack.c.bf16 %v296, %v296
      %vm306 = vcmask 60416
      %307 = vst.msk [vmem:[%s197] sm:$0xf] %vm306, %v298
      %308 = vst.msk [vmem:[%s197 + $0x4] sm:$0xf] %vm306, %v299
      %309 = vst.msk [vmem:[%s197 + $0x8] sm:$0xf] %vm306, %v300
      %310 = vst.msk [vmem:[%s197 + $0xc] sm:$0xf] %vm306, %v301
      %311 = vst.msk [vmem:[%s197 + $0x10] sm:$0xf] %vm306, %v302
      %312 = vst.msk [vmem:[%s197 + $0x14] sm:$0xf] %vm306, %v303
      %313 = vst.msk [vmem:[%s197 + $0x18] sm:$0xf] %vm306, %v304
      %314 = vst.msk [vmem:[%s197 + $0x1c] sm:$0xf] %vm306, %v305
      %p315 = scmp.lt.s32.totalorder %s15, 1
      %s316 = scalar_select %p315, %s15, 1
      %s317 = smul.addr %s316, 8
      %s318 = smul.addr %s317, 4
      %s319 = scalar_lea.vmem %s4, %s318
      // Predicated region
      $region37: #{_lambda_.11} parent=35 // pred_check
        %p320 = pneg %p122
      $region38: #{_lambda_.11} parent=35 // pred_check_branch
        %322 = sbr.rel (%p320) target = $region40
      $region39: #{_lambda_.11} parent=35 // pred_region
        _
      $region40: #{_lambda_.11} parent=35 // pred_fallthru
        _
    $region36: #{_lambda_.11} parent=5 // pred_fallthru
      _
    %p323 = scmp.le.s32.totalorder 2, %s10
    // Predicated region
    $region41: #{_lambda_.11} parent=5 // pred_check
      %p324 = pneg %p323
    $region42: #{_lambda_.11} parent=5 // pred_check_branch
      %326 = sbr.rel (%p324) target = $region44
    $region43: #{_lambda_.11} parent=5 // pred_region
      %s327 = ssub.s32 %s10, 2
      // Predicated region
      $region45: #{_lambda_.11} parent=43 // pred_check
        %p328 = pneg %p128
      $region46: #{_lambda_.11} parent=43 // pred_check_branch
        %330 = sbr.rel (%p328) target = $region48
      $region47: #{_lambda_.11} parent=43 // pred_region
        %p331 = scmp.lt.s32.totalorder %s16, 1
        %s332 = scalar_select %p331, %s16, 1
        %s333 = smul.addr %s332, 8
        %s334 = smul.addr %s333, 4
        %s335 = scalar_lea.vmem %s4, %s334
      $region48: #{_lambda_.11} parent=43 // pred_fallthru
        _
    $region44: #{_lambda_.11} parent=5 // pred_fallthru
      _
  $region6: #{_lambda_.11} parent=0 // loop_footer
    %s14 = sadd.s32 1, %s10
  $region7: #{_lambda_.11} parent=0 // loop_footer_branch
    %9 = sbr.rel target = $region3
  $region8: #{_lambda_.11} parent=0 // loop_exit
    _

// kernel: _lambda_.12
$region0: #{_lambda_.12}
  #allocation0 [shape = 'u32[]', space=smem, size = 0x4, offset = 0x4, fixed_abs, tag = 'smem constant byte address 0x4 - core index']
  #allocation1 [shape = 'u32[72,128]{1,0:T(1,128)}', space=vmem, size = 0x9000, scoped, tag = 'internal scratch']
  %s0 = inlined_call_operand.vmem [shape: bf16[2,8,8,8], index: 0, kind: input, shape index: {}]
  %s1 = inlined_call_operand.vmem [shape: f32[2,1,8], index: 1, kind: output, shape index: {0}]
  %s2 = inlined_call_operand.vmem [shape: f32[2,1,8], index: 2, kind: output, shape index: {1}]
  %3 = xla_tuple %s1, %s2
  %s4 = sld [smem:[#allocation0]]
  $region45: #{_lambda_.12} parent=0
    _
  %s6 = ssub.s32 1, %s4
  %s7 = scalar_select 0, %s6, %s4
  loop: start=0, step=1, limit=4
  $region2: #{_lambda_.12} parent=0 // loop_pre_header
    _
  $region3: #{_lambda_.12} parent=0 // loop_header
    %s9 = sphi 0, %s13
    %p10 = scmp.ge.s32.totalorder %s9, 4
    %s19 = sphi 0, %s21
    %s22 = sphi 0, %s19
    %s23 = sphi 0, %s22
    %s39 = sphi 0, %s23
    %s45 = sphi 0, %s47
    %s48 = sphi 0, %s45
    %s49 = sphi 0, %s48
    %s65 = sphi 0, %s49
    %s71 = sphi 0, %s73
    %s74 = sphi 0, %s71
    %s75 = sphi 0, %s74
    %s91 = sphi 0, %s75
  $region4: #{_lambda_.12} parent=0 // loop_header_branch
    %12 = sbr.rel (%p10) target = $region8
  $region5: #{_lambda_.12} parent=0 // loop_body
    %s14 = ssub.s32 %s9, 1
    %s15 = ssub.s32 %s9, 2
    %s16 = sadd.s32 %s9, 1
    %s17 = ssub.s32 %s9, %s16
    %p18 = scmp.eq.s32.totalorder %s17, 0
    %s20 = sadd.s32 %s19, 1
    %s21 = scalar_select %p18, %s19, %s20
    %p24 = pneg %p18
    %p25 = scmp.eq.s32.totalorder %s9, 1
    %p26 = por %p24, %p25
    %p27 = scmp.ne.s32.totalorder %s19, %s22
    %p28 = scmp.eq.s32.totalorder %s9, 0
    %p29 = por %p27, %p28
    %p30 = scmp.ne.s32.totalorder %s19, %s22
    %p31 = scmp.eq.s32.totalorder %s14, 1
    %p32 = por %p30, %p31
    %p33 = scmp.ne.s32.totalorder %s22, %s23
    %p34 = scmp.eq.s32.totalorder %s14, 0
    %p35 = por %p33, %p34
    %p36 = scmp.ne.s32.totalorder %s22, %s23
    %p37 = scmp.eq.s32.totalorder %s15, 1
    %p38 = por %p36, %p37
    %p40 = scmp.ne.s32.totalorder %s23, %s39
    %p41 = scmp.eq.s32.totalorder %s15, 0
    %p42 = por %p40, %p41
    %s43 = ssub.s32 %s9, %s16
    %p44 = scmp.eq.s32.totalorder %s43, 0
    %s46 = sadd.s32 %s45, 1
    %s47 = scalar_select %p44, %s45, %s46
    %p50 = pneg %p44
    %p51 = scmp.eq.s32.totalorder %s9, 1
    %p52 = por %p50, %p51
    %p53 = scmp.ne.s32.totalorder %s45, %s48
    %p54 = scmp.eq.s32.totalorder %s9, 0
    %p55 = por %p53, %p54
    %p56 = scmp.ne.s32.totalorder %s45, %s48
    %p57 = scmp.eq.s32.totalorder %s14, 1
    %p58 = por %p56, %p57
    %p59 = scmp.ne.s32.totalorder %s48, %s49
    %p60 = scmp.eq.s32.totalorder %s14, 0
    %p61 = por %p59, %p60
    %p62 = scmp.ne.s32.totalorder %s48, %s49
    %p63 = scmp.eq.s32.totalorder %s15, 1
    %p64 = por %p62, %p63
    %p66 = scmp.ne.s32.totalorder %s49, %s65
    %p67 = scmp.eq.s32.totalorder %s15, 0
    %p68 = por %p66, %p67
    %s69 = ssub.s32 %s9, %s16
    %p70 = scmp.eq.s32.totalorder %s69, 0
    %s72 = sadd.s32 %s71, 1
    %s73 = scalar_select %p70, %s71, %s72
    %p76 = pneg %p70
    %p77 = scmp.eq.s32.totalorder %s9, 1
    %p78 = por %p76, %p77
    %p79 = scmp.ne.s32.totalorder %s71, %s74
    %p80 = scmp.eq.s32.totalorder %s9, 0
    %p81 = por %p79, %p80
    %p82 = scmp.ne.s32.totalorder %s71, %s74
    %p83 = scmp.eq.s32.totalorder %s14, 1
    %p84 = por %p82, %p83
    %p85 = scmp.ne.s32.totalorder %s74, %s75
    %p86 = scmp.eq.s32.totalorder %s14, 0
    %p87 = por %p85, %p86
    %p88 = scmp.ne.s32.totalorder %s74, %s75
    %p89 = scmp.eq.s32.totalorder %s15, 1
    %p90 = por %p88, %p89
    %p92 = scmp.ne.s32.totalorder %s75, %s91
    %p93 = scmp.eq.s32.totalorder %s15, 0
    %p94 = por %p92, %p93
    %p95 = scmp.le.s32.totalorder 1, %s9
    %p96 = scmp.lt.s32.totalorder %s9, 3
    %p97 = pnand %p95, %p96
    %p98 = pneg %p97
    // Predicated region
    $region9: #{_lambda_.12} parent=5 // pred_check
      _
    $region10: #{_lambda_.12} parent=5 // pred_check_branch
      %100 = sbr.rel (%p97) target = $region12
    $region11: #{_lambda_.12} parent=5 // pred_region
      %s101 = ssub.s32 %s9, 1
    $region12: #{_lambda_.12} parent=5 // pred_fallthru
      _
    %p102 = scmp.lt.s32.totalorder %s9, 2
    // Predicated region
    $region13: #{_lambda_.12} parent=5 // pred_check
      %p103 = pneg %p102
    $region14: #{_lambda_.12} parent=5 // pred_check_branch
      %105 = sbr.rel (%p103) target = $region16
    $region15: #{_lambda_.12} parent=5 // pred_region
      // Predicated region
      $region17: #{_lambda_.12} parent=15 // pred_check
        %p106 = pneg %p29
      $region18: #{_lambda_.12} parent=15 // pred_check_branch
        %108 = sbr.rel (%p106) target = $region20
      $region19: #{_lambda_.12} parent=15 // pred_region
        %p109 = scmp.lt.s32.totalorder %s9, 1
        %s110 = scalar_select %p109, %s9, 1
        %s111 = smul.addr %s110, 8
        %s112 = smul.addr %s111, 4
        %s113 = scalar_lea.vmem %s0, %s112
      $region20: #{_lambda_.12} parent=15 // pred_fallthru
        _
    $region16: #{_lambda_.12} parent=5 // pred_fallthru
      _
    %p114 = scmp.le.s32.totalorder 1, %s9
    %p115 = scmp.lt.s32.totalorder %s9, 3
    %p116 = pnand %p114, %p115
    %p117 = pneg %p116
    // Predicated region
    $region21: #{_lambda_.12} parent=5 // pred_check
      _
    $region22: #{_lambda_.12} parent=5 // pred_check_branch
      %119 = sbr.rel (%p116) target = $region24
    $region23: #{_lambda_.12} parent=5 // pred_region
      %s120 = ssub.s32 %s9, 1
      %p121 = scmp.lt.s32.totalorder %s14, 1
      %s122 = scalar_select %p121, %s14, 1
      %s123 = smul.addr %s122, 8
      %s124 = smul.addr %s123, 4
      %s125 = scalar_lea.vmem %s0, %s124
      %p126 = pneg %p35
      %p127 = pneg %p32
      %p128 = pneg %p61
      %p129 = pneg %p58
      %p130 = scmp.lt.s32.totalorder %s14, 1
      %s131 = scalar_select %p130, %s14, 1
      %s132 = scalar_lea.vmem %s1, %s131
      %p133 = pneg %p87
      %p134 = pneg %p84
      %p135 = scmp.lt.s32.totalorder %s14, 1
      %s136 = scalar_select %p135, %s14, 1
      %s137 = scalar_lea.vmem %s2, %s136
      %p138 = scmp.lt.s32.totalorder %s14, 1
      %s139 = scalar_select %p138, %s14, 1
      %s140 = smul.addr %s139, 8
      %s141 = smul.addr %s140, 4
      %s142 = scalar_lea.vmem %s0, %s141
      %p143 = scmp.lt.s32.totalorder %s14, 1
      %s144 = scalar_select %p143, %s14, 1
      %s145 = scalar_lea.vmem %s1, %s144
      %p146 = scmp.lt.s32.totalorder %s14, 1
      %s147 = scalar_select %p146, %s14, 1
      %s148 = scalar_lea.vmem %s2, %s147
      %v149 = vld [vmem:[%s142] sm:$0xf]
      %v150 = vld [vmem:[%s142 + $0x4] sm:$0xf]
      %v151 = vld [vmem:[%s142 + $0x8] sm:$0xf]
      %v152 = vld [vmem:[%s142 + $0xc] sm:$0xf]
      %v153 = vld [vmem:[%s142 + $0x10] sm:$0xf]
      %v154 = vld [vmem:[%s142 + $0x14] sm:$0xf]
      %v155 = vld [vmem:[%s142 + $0x18] sm:$0xf]
      %v156 = vld [vmem:[%s142 + $0x1c] sm:$0xf]
      %v157 = vunpack.c.l.bf16 %v149
      %v158 = vunpack.c.l.bf16 %v150
      %v159 = vunpack.c.l.bf16 %v151
      %v160 = vunpack.c.l.bf16 %v152
      %v161 = vunpack.c.l.bf16 %v153
      %v162 = vunpack.c.l.bf16 %v154
      %v163 = vunpack.c.l.bf16 %v155
      %v164 = vunpack.c.l.bf16 %v156
      %vm165 = vcmask 64512
      %v166 = vsel %vm165, %v157, 0.0
      %v167 = vsel %vm165, %v158, 0.0
      %v168 = vadd.f32 %v166, %v167
      %v169 = vsel %vm165, %v159, 0.0
      %v170 = vadd.f32 %v168, %v169
      %v171 = vsel %vm165, %v160, 0.0
      %v172 = vadd.f32 %v170, %v171
      %v173 = vsel %vm165, %v161, 0.0
      %v174 = vadd.f32 %v172, %v173
      %v175 = vsel %vm165, %v162, 0.0
      %v176 = vadd.f32 %v174, %v175
      %v177 = vsel %vm165, %v163, 0.0
      %v178 = vadd.f32 %v176, %v177
      %v179 = vsel %vm165, %v164, 0.0
      %v180 = vadd.f32 %v178, %v179
      %v181 = vsel %vm165, %v180, 0.0
      %v182 = vrot.slane %v181, 4
      %v183 = vadd.f32 %v181, %v182
      %v184 = vrot.slane %v183, 2
      %v185 = vadd.f32 %v183, %v184
      %v186 = vrot.slane %v185, 1
      %v187 = vadd.f32 %v185, %v186
      %v188 = vmul.f32 %v157, %v157
      %v189 = vmul.f32 %v158, %v158
      %v190 = vmul.f32 %v159, %v159
      %v191 = vmul.f32 %v160, %v160
      %v192 = vmul.f32 %v161, %v161
      %v193 = vmul.f32 %v162, %v162
      %v194 = vmul.f32 %v163, %v163
      %v195 = vmul.f32 %v164, %v164
      %v196 = vsel %vm165, %v188, 0.0
      %v197 = vsel %vm165, %v189, 0.0
      %v198 = vadd.f32 %v196, %v197
      %v199 = vsel %vm165, %v190, 0.0
      %v200 = vadd.f32 %v198, %v199
      %v201 = vsel %vm165, %v191, 0.0
      %v202 = vadd.f32 %v200, %v201
      %v203 = vsel %vm165, %v192, 0.0
      %v204 = vadd.f32 %v202, %v203
      %v205 = vsel %vm165, %v193, 0.0
      %v206 = vadd.f32 %v204, %v205
      %v207 = vsel %vm165, %v194, 0.0
      %v208 = vadd.f32 %v206, %v207
      %v209 = vsel %vm165, %v195, 0.0
      %v210 = vadd.f32 %v208, %v209
      %v211 = vsel %vm165, %v210, 0.0
      %v212 = vrot.slane %v211, 4
      %v213 = vadd.f32 %v211, %v212
      %v214 = vrot.slane %v213, 2
      %v215 = vadd.f32 %v213, %v214
      %v216 = vrot.slane %v215, 1
      %v217 = vadd.f32 %v215, %v216
      %vm218 = vcmask 57344
      %219 = vst.msk [vmem:[%s145] sm:$0x1] %vm218, %v187
      %220 = vst.msk [vmem:[%s148] sm:$0x1] %vm218, %v217
      %p221 = scmp.lt.s32.totalorder %s14, 1
      %s222 = scalar_select %p221, %s14, 1
      %s223 = scalar_lea.vmem %s1, %s222
      %p224 = scmp.lt.s32.totalorder %s14, 1
      %s225 = scalar_select %p224, %s14, 1
      %s226 = scalar_lea.vmem %s2, %s225
      // Predicated region
      $region25: #{_lambda_.12} parent=23 // pred_check
        %p227 = pneg %p58
      $region26: #{_lambda_.12} parent=23 // pred_check_branch
        %229 = sbr.rel (%p227) target = $region28
      $region27: #{_lambda_.12} parent=23 // pred_region
        _
      $region28: #{_lambda_.12} parent=23 // pred_fallthru
        _
      // Predicated region
      $region29: #{_lambda_.12} parent=23 // pred_check
        %p230 = pneg %p84
      $region30: #{_lambda_.12} parent=23 // pred_check_branch
        %232 = sbr.rel (%p230) target = $region32
      $region31: #{_lambda_.12} parent=23 // pred_region
        _
      $region32: #{_lambda_.12} parent=23 // pred_fallthru
        _
    $region24: #{_lambda_.12} parent=5 // pred_fallthru
      _
    %p233 = scmp.le.s32.totalorder 2, %s9
    // Predicated region
    $region33: #{_lambda_.12} parent=5 // pred_check
      %p234 = pneg %p233
    $region34: #{_lambda_.12} parent=5 // pred_check_branch
      %236 = sbr.rel (%p234) target = $region36
    $region35: #{_lambda_.12} parent=5 // pred_region
      %s237 = ssub.s32 %s9, 2
      // Predicated region
      $region37: #{_lambda_.12} parent=35 // pred_check
        %p238 = pneg %p64
      $region38: #{_lambda_.12} parent=35 // pred_check_branch
        %240 = sbr.rel (%p238) target = $region40
      $region39: #{_lambda_.12} parent=35 // pred_region
        %p241 = scmp.lt.s32.totalorder %s15, 1
        %s242 = scalar_select %p241, %s15, 1
        %s243 = scalar_lea.vmem %s1, %s242
      $region40: #{_lambda_.12} parent=35 // pred_fallthru
        _
      // Predicated region
      $region41: #{_lambda_.12} parent=35 // pred_check
        %p244 = pneg %p90
      $region42: #{_lambda_.12} parent=35 // pred_check_branch
        %246 = sbr.rel (%p244) target = $region44
      $region43: #{_lambda_.12} parent=35 // pred_region
        %p247 = scmp.lt.s32.totalorder %s15, 1
        %s248 = scalar_select %p247, %s15, 1
        %s249 = scalar_lea.vmem %s2, %s248
      $region44: #{_lambda_.12} parent=35 // pred_fallthru
        _
    $region36: #{_lambda_.12} parent=5 // pred_fallthru
      _
  $region6: #{_lambda_.12} parent=0 // loop_footer
    %s13 = sadd.s32 1, %s9
  $region7: #{_lambda_.12} parent=0 // loop_footer_branch
    %8 = sbr.rel target = $region3
  $region8: #{_lambda_.12} parent=0 // loop_exit
    _

// kernel: _lambda_.10
$region0: #{_lambda_.10}
  #allocation0 [shape = 'u32[]', space=smem, size = 0x4, offset = 0x4, fixed_abs, tag = 'smem constant byte address 0x4 - core index']
  #allocation1 [shape = 'u32[72,128]{1,0:T(1,128)}', space=vmem, size = 0x9000, scoped, tag = 'internal scratch']
  %s0 = inlined_call_operand.vmem [shape: bf16[2,4,9,9,4], index: 0, kind: input, shape index: {}]
  %s1 = inlined_call_operand.vmem [shape: f32[4,9,9,1], index: 1, kind: input, shape index: {}]
  %s2 = inlined_call_operand.vmem [shape: f32[1,4], index: 2, kind: input, shape index: {}]
  %s3 = inlined_call_operand.vmem [shape: f32[1,4], index: 3, kind: input, shape index: {}]
  %s4 = inlined_call_operand.vmem [shape: bf16[36,8], index: 4, kind: input, shape index: {}]
  %s5 = inlined_call_operand.vmem [shape: bf16[2,64,8], index: 5, kind: output, shape index: {}]
  %s6 = sld [smem:[#allocation0]]
  $region53: #{_lambda_.10} parent=0
    _
  %s8 = ssub.s32 1, %s6
  %s9 = scalar_select 0, %s8, %s6
  loop: start=0, step=1, limit=4
  $region2: #{_lambda_.10} parent=0 // loop_pre_header
    _
  $region3: #{_lambda_.10} parent=0 // loop_header
    %s11 = sphi 0, %s15
    %p12 = scmp.ge.s32.totalorder %s11, 4
    %s21 = sphi 0, %s23
    %s24 = sphi 0, %s21
    %s25 = sphi 0, %s24
    %s41 = sphi 0, %s25
    %s45 = sphi 0, %s45
    %s47 = sphi 0, %s45
    %s48 = sphi 0, %s47
    %s62 = sphi 0, %s48
    %s66 = sphi 0, %s66
    %s68 = sphi 0, %s66
    %s69 = sphi 0, %s68
    %s83 = sphi 0, %s69
    %s87 = sphi 0, %s87
    %s89 = sphi 0, %s87
    %s90 = sphi 0, %s89
    %s104 = sphi 0, %s90
    %s108 = sphi 0, %s108
    %s110 = sphi 0, %s108
    %s111 = sphi 0, %s110
    %s125 = sphi 0, %s111
    %s131 = sphi 0, %s133
    %s134 = sphi 0, %s131
    %s135 = sphi 0, %s134
    %s151 = sphi 0, %s135
  $region4: #{_lambda_.10} parent=0 // loop_header_branch
    %14 = sbr.rel (%p12) target = $region8
  $region5: #{_lambda_.10} parent=0 // loop_body
    %s16 = ssub.s32 %s11, 1
    %s17 = ssub.s32 %s11, 2
    %s18 = sadd.s32 %s11, 1
    %s19 = ssub.s32 %s11, %s18
    %p20 = scmp.eq.s32.totalorder %s19, 0
    %s22 = sadd.s32 %s21, 1
    %s23 = scalar_select %p20, %s21, %s22
    %p26 = pneg %p20
    %p27 = scmp.eq.s32.totalorder %s11, 1
    %p28 = por %p26, %p27
    %p29 = scmp.ne.s32.totalorder %s21, %s24
    %p30 = scmp.eq.s32.totalorder %s11, 0
    %p31 = por %p29, %p30
    %p32 = scmp.ne.s32.totalorder %s21, %s24
    %p33 = scmp.eq.s32.totalorder %s16, 1
    %p34 = por %p32, %p33
    %p35 = scmp.ne.s32.totalorder %s24, %s25
    %p36 = scmp.eq.s32.totalorder %s16, 0
    %p37 = por %p35, %p36
    %p38 = scmp.ne.s32.totalorder %s24, %s25
    %p39 = scmp.eq.s32.totalorder %s17, 1
    %p40 = por %p38, %p39
    %p42 = scmp.ne.s32.totalorder %s25, %s41
    %p43 = scmp.eq.s32.totalorder %s17, 0
    %p44 = por %p42, %p43
    %s46 = sadd.s32 %s45, 1
    %p49 = scmp.eq.s32.totalorder %s11, 1
    %p50 = scmp.ne.s32.totalorder %s45, %s47
    %p51 = scmp.eq.s32.totalorder %s11, 0
    %p52 = por %p50, %p51
    %p53 = scmp.ne.s32.totalorder %s45, %s47
    %p54 = scmp.eq.s32.totalorder %s16, 1
    %p55 = por %p53, %p54
    %p56 = scmp.ne.s32.totalorder %s47, %s48
    %p57 = scmp.eq.s32.totalorder %s16, 0
    %p58 = por %p56, %p57
    %p59 = scmp.ne.s32.totalorder %s47, %s48
    %p60 = scmp.eq.s32.totalorder %s17, 1
    %p61 = por %p59, %p60
    %p63 = scmp.ne.s32.totalorder %s48, %s62
    %p64 = scmp.eq.s32.totalorder %s17, 0
    %p65 = por %p63, %p64
    %s67 = sadd.s32 %s66, 1
    %p70 = scmp.eq.s32.totalorder %s11, 1
    %p71 = scmp.ne.s32.totalorder %s66, %s68
    %p72 = scmp.eq.s32.totalorder %s11, 0
    %p73 = por %p71, %p72
    %p74 = scmp.ne.s32.totalorder %s66, %s68
    %p75 = scmp.eq.s32.totalorder %s16, 1
    %p76 = por %p74, %p75
    %p77 = scmp.ne.s32.totalorder %s68, %s69
    %p78 = scmp.eq.s32.totalorder %s16, 0
    %p79 = por %p77, %p78
    %p80 = scmp.ne.s32.totalorder %s68, %s69
    %p81 = scmp.eq.s32.totalorder %s17, 1
    %p82 = por %p80, %p81
    %p84 = scmp.ne.s32.totalorder %s69, %s83
    %p85 = scmp.eq.s32.totalorder %s17, 0
    %p86 = por %p84, %p85
    %s88 = sadd.s32 %s87, 1
    %p91 = scmp.eq.s32.totalorder %s11, 1
    %p92 = scmp.ne.s32.totalorder %s87, %s89
    %p93 = scmp.eq.s32.totalorder %s11, 0
    %p94 = por %p92, %p93
    %p95 = scmp.ne.s32.totalorder %s87, %s89
    %p96 = scmp.eq.s32.totalorder %s16, 1
    %p97 = por %p95, %p96
    %p98 = scmp.ne.s32.totalorder %s89, %s90
    %p99 = scmp.eq.s32.totalorder %s16, 0
    %p100 = por %p98, %p99
    %p101 = scmp.ne.s32.totalorder %s89, %s90
    %p102 = scmp.eq.s32.totalorder %s17, 1
    %p103 = por %p101, %p102
    %p105 = scmp.ne.s32.totalorder %s90, %s104
    %p106 = scmp.eq.s32.totalorder %s17, 0
    %p107 = por %p105, %p106
    %s109 = sadd.s32 %s108, 1
    %p112 = scmp.eq.s32.totalorder %s11, 1
    %p113 = scmp.ne.s32.totalorder %s108, %s110
    %p114 = scmp.eq.s32.totalorder %s11, 0
    %p115 = por %p113, %p114
    %p116 = scmp.ne.s32.totalorder %s108, %s110
    %p117 = scmp.eq.s32.totalorder %s16, 1
    %p118 = por %p116, %p117
    %p119 = scmp.ne.s32.totalorder %s110, %s111
    %p120 = scmp.eq.s32.totalorder %s16, 0
    %p121 = por %p119, %p120
    %p122 = scmp.ne.s32.totalorder %s110, %s111
    %p123 = scmp.eq.s32.totalorder %s17, 1
    %p124 = por %p122, %p123
    %p126 = scmp.ne.s32.totalorder %s111, %s125
    %p127 = scmp.eq.s32.totalorder %s17, 0
    %p128 = por %p126, %p127
    %s129 = ssub.s32 %s11, %s18
    %p130 = scmp.eq.s32.totalorder %s129, 0
    %s132 = sadd.s32 %s131, 1
    %s133 = scalar_select %p130, %s131, %s132
    %p136 = pneg %p130
    %p137 = scmp.eq.s32.totalorder %s11, 1
    %p138 = por %p136, %p137
    %p139 = scmp.ne.s32.totalorder %s131, %s134
    %p140 = scmp.eq.s32.totalorder %s11, 0
    %p141 = por %p139, %p140
    %p142 = scmp.ne.s32.totalorder %s131, %s134
    %p143 = scmp.eq.s32.totalorder %s16, 1
    %p144 = por %p142, %p143
    %p145 = scmp.ne.s32.totalorder %s134, %s135
    %p146 = scmp.eq.s32.totalorder %s16, 0
    %p147 = por %p145, %p146
    %p148 = scmp.ne.s32.totalorder %s134, %s135
    %p149 = scmp.eq.s32.totalorder %s17, 1
    %p150 = por %p148, %p149
    %p152 = scmp.ne.s32.totalorder %s135, %s151
    %p153 = scmp.eq.s32.totalorder %s17, 0
    %p154 = por %p152, %p153
    %p155 = scmp.le.s32.totalorder 1, %s11
    %p156 = scmp.lt.s32.totalorder %s11, 3
    %p157 = pnand %p155, %p156
    %p158 = pneg %p157
    // Predicated region
    $region9: #{_lambda_.10} parent=5 // pred_check
      _
    $region10: #{_lambda_.10} parent=5 // pred_check_branch
      %160 = sbr.rel (%p157) target = $region12
    $region11: #{_lambda_.10} parent=5 // pred_region
      %s161 = ssub.s32 %s11, 1
      // Predicated region
      $region13: #{_lambda_.10} parent=11 // pred_check
        %p162 = pneg %p58
      $region14: #{_lambda_.10} parent=11 // pred_check_branch
        %164 = sbr.rel (%p162) target = $region16
      $region15: #{_lambda_.10} parent=11 // pred_region
        _
      $region16: #{_lambda_.10} parent=11 // pred_fallthru
        _
      // Predicated region
      $region17: #{_lambda_.10} parent=11 // pred_check
        %p165 = pneg %p79
      $region18: #{_lambda_.10} parent=11 // pred_check_branch
        %167 = sbr.rel (%p165) target = $region20
      $region19: #{_lambda_.10} parent=11 // pred_region
        _
      $region20: #{_lambda_.10} parent=11 // pred_fallthru
        _
      // Predicated region
      $region21: #{_lambda_.10} parent=11 // pred_check
        %p168 = pneg %p100
      $region22: #{_lambda_.10} parent=11 // pred_check_branch
        %170 = sbr.rel (%p168) target = $region24
      $region23: #{_lambda_.10} parent=11 // pred_region
        _
      $region24: #{_lambda_.10} parent=11 // pred_fallthru
        _
      // Predicated region
      $region25: #{_lambda_.10} parent=11 // pred_check
        %p171 = pneg %p121
      $region26: #{_lambda_.10} parent=11 // pred_check_branch
        %173 = sbr.rel (%p171) target = $region28
      $region27: #{_lambda_.10} parent=11 // pred_region
        _
      $region28: #{_lambda_.10} parent=11 // pred_fallthru
        _
    $region12: #{_lambda_.10} parent=5 // pred_fallthru
      _
    %p174 = scmp.lt.s32.totalorder %s11, 2
    // Predicated region
    $region29: #{_lambda_.10} parent=5 // pred_check
      %p175 = pneg %p174
    $region30: #{_lambda_.10} parent=5 // pred_check_branch
      %177 = sbr.rel (%p175) target = $region32
    $region31: #{_lambda_.10} parent=5 // pred_region
      // Predicated region
      $region33: #{_lambda_.10} parent=31 // pred_check
        %p178 = pneg %p31
      $region34: #{_lambda_.10} parent=31 // pred_check_branch
        %180 = sbr.rel (%p178) target = $region36
      $region35: #{_lambda_.10} parent=31 // pred_region
        %p181 = scmp.lt.s32.totalorder %s11, 1
        %s182 = scalar_select %p181, %s11, 1
        %s183 = smul.addr %s182, 72
        %s184 = smul.addr %s183, 4
        %s185 = scalar_lea.vmem %s0, %s184
      $region36: #{_lambda_.10} parent=31 // pred_fallthru
        _
    $region32: #{_lambda_.10} parent=5 // pred_fallthru
      _
    %p186 = scmp.le.s32.totalorder 1, %s11
    %p187 = scmp.lt.s32.totalorder %s11, 3
    %p188 = pnand %p186, %p187
    %p189 = pneg %p188
    // Predicated region
    $region37: #{_lambda_.10} parent=5 // pred_check
      _
    $region38: #{_lambda_.10} parent=5 // pred_check_branch
      %191 = sbr.rel (%p188) target = $region40
    $region39: #{_lambda_.10} parent=5 // pred_region
      %s192 = ssub.s32 %s11, 1
      %p193 = scmp.lt.s32.totalorder %s16, 1
      %s194 = scalar_select %p193, %s16, 1
      %s195 = smul.addr %s194, 72
      %s196 = smul.addr %s195, 4
      %s197 = scalar_lea.vmem %s0, %s196
      %p198 = pneg %p37
      %p199 = pneg %p34
      %p200 = pneg %p58
      %p201 = pneg %p55
      %p202 = pneg %p79
      %p203 = pneg %p76
      %p204 = pneg %p100
      %p205 = pneg %p97
      %p206 = pneg %p121
      %p207 = pneg %p118
      %p208 = pneg %p147
      %p209 = pneg %p144
      %p210 = scmp.lt.s32.totalorder %s16, 1
      %s211 = scalar_select %p210, %s16, 1
      %s212 = smul.addr %s211, 8
      %s213 = smul.addr %s212, 4
      %s214 = scalar_lea.vmem %s5, %s213
      %p215 = scmp.lt.s32.totalorder %s16, 1
      %s216 = scalar_select %p215, %s16, 1
      %s217 = smul.addr %s216, 72
      %s218 = smul.addr %s217, 4
      %s219 = scalar_lea.vmem %s0, %s218
      %p220 = scmp.lt.s32.totalorder %s16, 1
      %s221 = scalar_select %p220, %s16, 1
      %s222 = smul.addr %s221, 8
      %s223 = smul.addr %s222, 4
      %s224 = scalar_lea.vmem %s5, %s223
      %v226 = vld [vmem:[%s2] sm:$0x1]
      %v227 = vld [vmem:[%s3] sm:$0x1]
      %v228 = vld [vmem:[%s219] sm:$0xf]
      %v229 = vld [vmem:[%s219 + $0x8] sm:$0xf]
      %v230 = vld [vmem:[%s219 + $0x10] sm:$0xf]
      %v231 = vld [vmem:[%s219 + $0x18] sm:$0xf]
      %v232 = vld [vmem:[%s219 + $0x20] sm:$0xf]
      %v233 = vld [vmem:[%s219 + $0x28] sm:$0xf]
      %v234 = vld [vmem:[%s219 + $0x30] sm:$0xf]
      %v235 = vld [vmem:[%s219 + $0x38] sm:$0xf]
      %v236 = vunpack.c.l.bf16 %v228
      %v237 = vunpack.c.l.bf16 %v229
      %v238 = vunpack.c.l.bf16 %v230
      %v239 = vunpack.c.l.bf16 %v231
      %v240 = vunpack.c.l.bf16 %v232
      %v241 = vunpack.c.l.bf16 %v233
      %v242 = vunpack.c.l.bf16 %v234
      %v243 = vunpack.c.l.bf16 %v235
      %v244 = vld [vmem:[%s1] sm:$0xff]
      %v245 = vld [vmem:[%s1 + $0x10] sm:$0xff]
      %v246 = vld [vmem:[%s1 + $0x20] sm:$0xff]
      %v247 = vld [vmem:[%s1 + $0x30] sm:$0xff]
      %v248 = vld [vmem:[%s1 + $0x40] sm:$0xff]
      %v249 = vld [vmem:[%s1 + $0x50] sm:$0xff]
      %v250 = vld [vmem:[%s1 + $0x60] sm:$0xff]
      %v251 = vld [vmem:[%s1 + $0x70] sm:$0xff]
      %v253 = vperm.slane %v226, 0
      %v255 = vmul.f32 %v236, %v253
      %v256 = vmul.f32 %v237, %v253
      %v257 = vmul.f32 %v238, %v253
      %v258 = vmul.f32 %v239, %v253
      %v259 = vmul.f32 %v240, %v253
      %v260 = vmul.f32 %v241, %v253
      %v261 = vmul.f32 %v242, %v253
      %v262 = vmul.f32 %v243, %v253
      %v264 = vperm.slane %v227, 0
      %v266 = vadd.f32 %v255, %v264
      %v267 = vadd.f32 %v256, %v264
      %v268 = vadd.f32 %v257, %v264
      %v269 = vadd.f32 %v258, %v264
      %v270 = vadd.f32 %v259, %v264
      %v271 = vadd.f32 %v260, %v264
      %v272 = vadd.f32 %v261, %v264
      %v273 = vadd.f32 %v262, %v264
      %v274 = vmax.f32 %v266, 0.0
      %v275 = vmax.f32 %v267, 0.0
      %v276 = vmax.f32 %v268, 0.0
      %v277 = vmax.f32 %v269, 0.0
      %v278 = vmax.f32 %v270, 0.0
      %v279 = vmax.f32 %v271, 0.0
      %v280 = vmax.f32 %v272, 0.0
      %v281 = vmax.f32 %v273, 0.0
      %283 = vset.pattern.permute.xlu0 0
      %284 = vperm.xlu0 %283, %v244
      %v285 = vpop.permute.xlu0 %284
      %288 = vset.pattern.permute.xlu0 0
      %289 = vperm.xlu0 %288, %v245
      %v290 = vpop.permute.xlu0 %289
      %293 = vset.pattern.permute.xlu0 0
      %294 = vperm.xlu0 %293, %v246
      %v295 = vpop.permute.xlu0 %294
      %298 = vset.pattern.permute.xlu0 0
      %299 = vperm.xlu0 %298, %v247
      %v300 = vpop.permute.xlu0 %299
      %303 = vset.pattern.permute.xlu0 0
      %304 = vperm.xlu0 %303, %v248
      %v305 = vpop.permute.xlu0 %304
      %308 = vset.pattern.permute.xlu0 0
      %309 = vperm.xlu0 %308, %v249
      %v310 = vpop.permute.xlu0 %309
      %313 = vset.pattern.permute.xlu0 0
      %314 = vperm.xlu0 %313, %v250
      %v315 = vpop.permute.xlu0 %314
      %318 = vset.pattern.permute.xlu0 0
      %319 = vperm.xlu0 %318, %v251
      %v320 = vpop.permute.xlu0 %319
      %v322 = vmul.f32 %v274, %v285
      %v323 = vmul.f32 %v275, %v290
      %v324 = vmul.f32 %v276, %v295
      %v325 = vmul.f32 %v277, %v300
      %v326 = vmul.f32 %v278, %v305
      %v327 = vmul.f32 %v279, %v310
      %v328 = vmul.f32 %v280, %v315
      %v329 = vmul.f32 %v281, %v320
      %v330 = vpack.c.bf16 %v323, %v322
      %v331 = vpack.c.bf16 %v325, %v324
      %v332 = vpack.c.bf16 %v327, %v326
      %v333 = vpack.c.bf16 %v329, %v328
      %v334 = vld [vmem:[%s4] sm:$0x3]
      %s335 = scalar_lea.vmem %s219, 72
      %v336 = vld [vmem:[%s335] sm:$0xf]
      %v337 = vld [vmem:[%s335 + $0x8] sm:$0xf]
      %v338 = vld [vmem:[%s335 + $0x10] sm:$0xf]
      %v339 = vld [vmem:[%s335 + $0x18] sm:$0xf]
      %v340 = vld [vmem:[%s335 + $0x20] sm:$0xf]
      %v341 = vld [vmem:[%s335 + $0x28] sm:$0xf]
      %v342 = vld [vmem:[%s335 + $0x30] sm:$0xf]
      %v343 = vld [vmem:[%s335 + $0x38] sm:$0xf]
      %v344 = vunpack.c.l.bf16 %v336
      %v345 = vunpack.c.l.bf16 %v337
      %v346 = vunpack.c.l.bf16 %v338
      %v347 = vunpack.c.l.bf16 %v339
      %v348 = vunpack.c.l.bf16 %v340
      %v349 = vunpack.c.l.bf16 %v341
      %v350 = vunpack.c.l.bf16 %v342
      %v351 = vunpack.c.l.bf16 %v343
      %s352 = scalar_lea.vmem %s1, 144
      %v353 = vld [vmem:[%s352] sm:$0xff]
      %v354 = vld [vmem:[%s352 + $0x10] sm:$0xff]
      %v355 = vld [vmem:[%s352 + $0x20] sm:$0xff]
      %v356 = vld [vmem:[%s352 + $0x30] sm:$0xff]
      %v357 = vld [vmem:[%s352 + $0x40] sm:$0xff]
      %v358 = vld [vmem:[%s352 + $0x50] sm:$0xff]
      %v359 = vld [vmem:[%s352 + $0x60] sm:$0xff]
      %v360 = vld [vmem:[%s352 + $0x70] sm:$0xff]
      %v361 = vmul.f32 %v344, %v253
      %v362 = vmul.f32 %v345, %v253
      %v363 = vmul.f32 %v346, %v253
      %v364 = vmul.f32 %v347, %v253
      %v365 = vmul.f32 %v348, %v253
      %v366 = vmul.f32 %v349, %v253
      %v367 = vmul.f32 %v350, %v253
      %v368 = vmul.f32 %v351, %v253
      %v369 = vadd.f32 %v361, %v264
      %v370 = vadd.f32 %v362, %v264
      %v371 = vadd.f32 %v363, %v264
      %v372 = vadd.f32 %v364, %v264
      %v373 = vadd.f32 %v365, %v264
      %v374 = vadd.f32 %v366, %v264
      %v375 = vadd.f32 %v367, %v264
      %v376 = vadd.f32 %v368, %v264
      %v377 = vmax.f32 %v369, 0.0
      %v378 = vmax.f32 %v370, 0.0
      %v379 = vmax.f32 %v371, 0.0
      %v380 = vmax.f32 %v372, 0.0
      %v381 = vmax.f32 %v373, 0.0
      %v382 = vmax.f32 %v374, 0.0
      %v383 = vmax.f32 %v375, 0.0
      %v384 = vmax.f32 %v376, 0.0
      %386 = vset.pattern.permute.xlu0 0
      %387 = vperm.xlu0 %386, %v353
      %v388 = vpop.permute.xlu0 %387
      %391 = vset.pattern.permute.xlu0 0
      %392 = vperm.xlu0 %391, %v354
      %v393 = vpop.permute.xlu0 %392
      %396 = vset.pattern.permute.xlu0 0
      %397 = vperm.xlu0 %396, %v355
      %v398 = vpop.permute.xlu0 %397
      %401 = vset.pattern.permute.xlu0 0
      %402 = vperm.xlu0 %401, %v356
      %v403 = vpop.permute.xlu0 %402
      %406 = vset.pattern.permute.xlu0 0
      %407 = vperm.xlu0 %406, %v357
      %v408 = vpop.permute.xlu0 %407
      %411 = vset.pattern.permute.xlu0 0
      %412 = vperm.xlu0 %411, %v358
      %v413 = vpop.permute.xlu0 %412
      %416 = vset.pattern.permute.xlu0 0
      %417 = vperm.xlu0 %416, %v359
      %v418 = vpop.permute.xlu0 %417
      %421 = vset.pattern.permute.xlu0 0
      %422 = vperm.xlu0 %421, %v360
      %v423 = vpop.permute.xlu0 %422
      %v425 = vmul.f32 %v377, %v388
      %v426 = vmul.f32 %v378, %v393
      %v427 = vmul.f32 %v379, %v398
      %v428 = vmul.f32 %v380, %v403
      %v429 = vmul.f32 %v381, %v408
      %v430 = vmul.f32 %v382, %v413
      %v431 = vmul.f32 %v383, %v418
      %v432 = vmul.f32 %v384, %v423
      %v433 = vpack.c.bf16 %v426, %v425
      %v434 = vpack.c.bf16 %v428, %v427
      %v435 = vpack.c.bf16 %v430, %v429
      %v436 = vpack.c.bf16 %v432, %v431
      %v437 = vld [vmem:[%s4] sm:$0xc]
      %v439 = vunpack.c.l.b16 %v437
      %v440 = vpack.c.b16 %v439, %v439
      %v441 = vrot.slane %v440, 2
      %vm442 = vcmask 31744
      %v444 = vsel %vm442, %v433, 0
      %v447 = vsel %vm442, %v434, 0
      %v450 = vsel %vm442, %v435, 0
      %v453 = vsel %vm442, %v436, 0
      %vm455 = vcmask 1041408
      %v457 = vsel %vm455, %v441, 0
      %459 = vmatpush.bf16.msra.mxu0 0
      %460 = vmatpush.bf16.msra.mxu0 0
      %461 = vmatpush.bf16.msra.mxu0 0
      %462 = vmatpush.bf16.msra.mxu0 0
      %463 = vmatpush.bf16.msra.mxu0 0
      %464 = vmatpush.bf16.msra.mxu0 0
      %465 = vmatpush.bf16.msra.mxu0 0
      %466 = vmatpush.bf16.msra.mxu0 %v457
      %467 = vmatmul.bf16.gmra.mxu0 %v444
      %v468 = vpop.f32.mrf.mxu0
      %v469 = vadd.f32 0.0, %v468
      %v470 = vpop.f32.mrf.mxu0
      %v471 = vadd.f32 0.0, %v470
      %472 = vmatmul.bf16.gmra.mxu0 %v447
      %v473 = vpop.f32.mrf.mxu0
      %v474 = vadd.f32 0.0, %v473
      %v475 = vpop.f32.mrf.mxu0
      %v476 = vadd.f32 0.0, %v475
      %477 = vmatmul.bf16.gmra.mxu0 %v450
      %v478 = vpop.f32.mrf.mxu0
      %v479 = vadd.f32 0.0, %v478
      %v480 = vpop.f32.mrf.mxu0
      %v481 = vadd.f32 0.0, %v480
      %482 = vmatmul.bf16.gmra.mxu0 %v453
      %v483 = vpop.f32.mrf.mxu0
      %v484 = vadd.f32 0.0, %v483
      %v485 = vpop.f32.mrf.mxu0
      %v486 = vadd.f32 0.0, %v485
      %487 = vdwg.mxu0
      %v489 = vsel %vm442, %v330, 0
      %v492 = vsel %vm442, %v331, 0
      %v495 = vsel %vm442, %v332, 0
      %v498 = vsel %vm442, %v333, 0
      %v501 = vsel %vm455, %v334, 0
      %503 = vmatpush.bf16.msra.mxu0 0
      %504 = vmatpush.bf16.msra.mxu0 0
      %505 = vmatpush.bf16.msra.mxu0 0
      %506 = vmatpush.bf16.msra.mxu0 0
      %507 = vmatpush.bf16.msra.mxu0 0
      %508 = vmatpush.bf16.msra.mxu0 0
      %509 = vmatpush.bf16.msra.mxu0 0
      %510 = vmatpush.bf16.msra.mxu0 %v501
      %511 = vmatmul.bf16.gmra.mxu0 %v489
      %v512 = vpop.f32.mrf.mxu0
      %v513 = vadd.f32 %v469, %v512
      %v514 = vpop.f32.mrf.mxu0
      %v515 = vadd.f32 %v471, %v514
      %516 = vmatmul.bf16.gmra.mxu0 %v492
      %v517 = vpop.f32.mrf.mxu0
      %v518 = vadd.f32 %v474, %v517
      %v519 = vpop.f32.mrf.mxu0
      %v520 = vadd.f32 %v476, %v519
      %521 = vmatmul.bf16.gmra.mxu0 %v495
      %v522 = vpop.f32.mrf.mxu0
      %v523 = vadd.f32 %v479, %v522
      %v524 = vpop.f32.mrf.mxu0
      %v525 = vadd.f32 %v481, %v524
      %526 = vmatmul.bf16.gmra.mxu0 %v498
      %v527 = vpop.f32.mrf.mxu0
      %v528 = vadd.f32 %v484, %v527
      %v529 = vpop.f32.mrf.mxu0
      %v530 = vadd.f32 %v486, %v529
      %531 = vdwg.mxu0
      %v532 = vld [vmem:[%s219] sm:$0xf]
      %v533 = vld [vmem:[%s219 + $0x4] sm:$0x1]
      %v534 = vld [vmem:[%s219 + $0x8] sm:$0xf]
      %v535 = vld [vmem:[%s219 + $0xc] sm:$0x1]
      %v536 = vld [vmem:[%s219 + $0x10] sm:$0xf]
      %v537 = vld [vmem:[%s219 + $0x14] sm:$0x1]
      %v538 = vld [vmem:[%s219 + $0x18] sm:$0xf]
      %v539 = vld [vmem:[%s219 + $0x1c] sm:$0x1]
      %v540 = vld [vmem:[%s219 + $0x20] sm:$0xf]
      %v541 = vld [vmem:[%s219 + $0x24] sm:$0x1]
      %v542 = vld [vmem:[%s219 + $0x28] sm:$0xf]
      %v543 = vld [vmem:[%s219 + $0x2c] sm:$0x1]
      %v544 = vld [vmem:[%s219 + $0x30] sm:$0xf]
      %v545 = vld [vmem:[%s219 + $0x34] sm:$0x1]
      %v546 = vld [vmem:[%s219 + $0x38] sm:$0xf]
      %v547 = vld [vmem:[%s219 + $0x3c] sm:$0x1]
      %v548 = vunpack.c.l.bf16 %v532
      %v549 = vunpack.c.l.bf16 %v533
      %v550 = vunpack.c.l.bf16 %v534
      %v551 = vunpack.c.l.bf16 %v535
      %v552 = vunpack.c.l.bf16 %v536
      %v553 = vunpack.c.l.bf16 %v537
      %v554 = vunpack.c.l.bf16 %v538
      %v555 = vunpack.c.l.bf16 %v539
      %v556 = vunpack.c.l.bf16 %v540
      %v557 = vunpack.c.l.bf16 %v541
      %v558 = vunpack.c.l.bf16 %v542
      %v559 = vunpack.c.l.bf16 %v543
      %v560 = vunpack.c.l.bf16 %v544
      %v561 = vunpack.c.l.bf16 %v545
      %v562 = vunpack.c.l.bf16 %v546
      %v563 = vunpack.c.l.bf16 %v547
      %v564 = vld [vmem:[%s1 + $0x1] sm:$0xff]
      %v565 = vld [vmem:[%s1 + $0x11] sm:$0xff]
      %v566 = vld [vmem:[%s1 + $0x21] sm:$0xff]
      %v567 = vld [vmem:[%s1 + $0x31] sm:$0xff]
      %v568 = vld [vmem:[%s1 + $0x41] sm:$0xff]
      %v569 = vld [vmem:[%s1 + $0x51] sm:$0xff]
      %v570 = vld [vmem:[%s1 + $0x61] sm:$0xff]
      %v571 = vld [vmem:[%s1 + $0x71] sm:$0xff]
      %v572 = vmul.f32 %v548, %v253
      %v573 = vmul.f32 %v549, %v253
      %v574 = vmul.f32 %v550, %v253
      %v575 = vmul.f32 %v551, %v253
      %v576 = vmul.f32 %v552, %v253
      %v577 = vmul.f32 %v553, %v253
      %v578 = vmul.f32 %v554, %v253
      %v579 = vmul.f32 %v555, %v253
      %v580 = vmul.f32 %v556, %v253
      %v581 = vmul.f32 %v557, %v253
      %v582 = vmul.f32 %v558, %v253
      %v583 = vmul.f32 %v559, %v253
      %v584 = vmul.f32 %v560, %v253
      %v585 = vmul.f32 %v561, %v253
      %v586 = vmul.f32 %v562, %v253
      %v587 = vmul.f32 %v563, %v253
      %v588 = vadd.f32 %v572, %v264
      %v589 = vadd.f32 %v573, %v264
      %v590 = vadd.f32 %v574, %v264
      %v591 = vadd.f32 %v575, %v264
      %v592 = vadd.f32 %v576, %v264
      %v593 = vadd.f32 %v577, %v264
      %v594 = vadd.f32 %v578, %v264
      %v595 = vadd.f32 %v579, %v264
      %v596 = vadd.f32 %v580, %v264
      %v597 = vadd.f32 %v581, %v264
      %v598 = vadd.f32 %v582, %v264
      %v599 = vadd.f32 %v583, %v264
      %v600 = vadd.f32 %v584, %v264
      %v601 = vadd.f32 %v585, %v264
      %v602 = vadd.f32 %v586, %v264
      %v603 = vadd.f32 %v587, %v264
      %v604 = vmax.f32 %v588, 0.0
      %v605 = vmax.f32 %v589, 0.0
      %v606 = vmax.f32 %v590, 0.0
      %v607 = vmax.f32 %v591, 0.0
      %v608 = vmax.f32 %v592, 0.0
      %v609 = vmax.f32 %v593, 0.0
      %v610 = vmax.f32 %v594, 0.0
      %v611 = vmax.f32 %v595, 0.0
      %v612 = vmax.f32 %v596, 0.0
      %v613 = vmax.f32 %v597, 0.0
      %v614 = vmax.f32 %v598, 0.0
      %v615 = vmax.f32 %v599, 0.0
      %v616 = vmax.f32 %v600, 0.0
      %v617 = vmax.f32 %v601, 0.0
      %v618 = vmax.f32 %v602, 0.0
      %v619 = vmax.f32 %v603, 0.0
      %621 = vset.pattern.permute.xlu0 0
      %622 = vperm.xlu0 %621, %v564
      %v623 = vpop.permute.xlu0 %622
      %625 = vset.pattern.permute.xlu0 0
      %626 = vperm.xlu0 %625, %v565
      %v627 = vpop.permute.xlu0 %626
      %629 = vset.pattern.permute.xlu0 0
      %630 = vperm.xlu0 %629, %v566
      %v631 = vpop.permute.xlu0 %630
      %633 = vset.pattern.permute.xlu0 0
      %634 = vperm.xlu0 %633, %v567
      %v635 = vpop.permute.xlu0 %634
      %637 = vset.pattern.permute.xlu0 0
      %638 = vperm.xlu0 %637, %v568
      %v639 = vpop.permute.xlu0 %638
      %641 = vset.pattern.permute.xlu0 0
      %642 = vperm.xlu0 %641, %v569
      %v643 = vpop.permute.xlu0 %642
      %645 = vset.pattern.permute.xlu0 0
      %646 = vperm.xlu0 %645, %v570
      %v647 = vpop.permute.xlu0 %646
      %649 = vset.pattern.permute.xlu0 0
      %650 = vperm.xlu0 %649, %v571
      %v651 = vpop.permute.xlu0 %650
      %v652 = vrot.slane %v623, 7
      %v653 = vrot.slane %v627, 7
      %v654 = vrot.slane %v631, 7
      %v655 = vrot.slane %v635, 7
      %v656 = vrot.slane %v639, 7
      %v657 = vrot.slane %v643, 7
      %v658 = vrot.slane %v647, 7
      %v659 = vrot.slane %v651, 7
      %v668 = vmul.f32 %v604, %v652
      %v669 = vmul.f32 %v605, %v652
      %v670 = vmul.f32 %v606, %v653
      %v671 = vmul.f32 %v607, %v653
      %v672 = vmul.f32 %v608, %v654
      %v673 = vmul.f32 %v609, %v654
      %v674 = vmul.f32 %v610, %v655
      %v675 = vmul.f32 %v611, %v655
      %v676 = vmul.f32 %v612, %v656
      %v677 = vmul.f32 %v613, %v656
      %v678 = vmul.f32 %v614, %v657
      %v679 = vmul.f32 %v615, %v657
      %v680 = vmul.f32 %v616, %v658
      %v681 = vmul.f32 %v617, %v658
      %v682 = vmul.f32 %v618, %v659
      %v683 = vmul.f32 %v619, %v659
      %vm700 = vcmask 1046528
      %v701 = vrot.slane %v668, 1
      %v702 = vrot.slane %v669, 1
      %v703 = vsel %vm700, %v701, %v702
      %v704 = vrot.slane %v670, 1
      %v705 = vrot.slane %v671, 1
      %v706 = vsel %vm700, %v704, %v705
      %v707 = vrot.slane %v672, 1
      %v708 = vrot.slane %v673, 1
      %v709 = vsel %vm700, %v707, %v708
      %v710 = vrot.slane %v674, 1
      %v711 = vrot.slane %v675, 1
      %v712 = vsel %vm700, %v710, %v711
      %v713 = vrot.slane %v676, 1
      %v714 = vrot.slane %v677, 1
      %v715 = vsel %vm700, %v713, %v714
      %v716 = vrot.slane %v678, 1
      %v717 = vrot.slane %v679, 1
      %v718 = vsel %vm700, %v716, %v717
      %v719 = vrot.slane %v680, 1
      %v720 = vrot.slane %v681, 1
      %v721 = vsel %vm700, %v719, %v720
      %v722 = vrot.slane %v682, 1
      %v723 = vrot.slane %v683, 1
      %v724 = vsel %vm700, %v722, %v723
      %v733 = vpack.c.bf16 %v706, %v703
      %v734 = vpack.c.bf16 %v712, %v709
      %v735 = vpack.c.bf16 %v718, %v715
      %v736 = vpack.c.bf16 %v724, %v721
      %v737 = vld [vmem:[%s4 + $0x4] sm:$0x3]
      %v739 = vsel %vm442, %v733, 0
      %v742 = vsel %vm442, %v734, 0
      %v745 = vsel %vm442, %v735, 0
      %v748 = vsel %vm442, %v736, 0
      %v751 = vsel %vm455, %v737, 0
      %753 = vmatpush.bf16.msra.mxu0 0
      %754 = vmatpush.bf16.msra.mxu0 0
      %755 = vmatpush.bf16.msra.mxu0 0
      %756 = vmatpush.bf16.msra.mxu0 0
      %757 = vmatpush.bf16.msra.mxu0 0
      %758 = vmatpush.bf16.msra.mxu0 0
      %759 = vmatpush.bf16.msra.mxu0 0
      %760 = vmatpush.bf16.msra.mxu0 %v751
      %761 = vmatmul.bf16.gmra.mxu0 %v739
      %v762 = vpop.f32.mrf.mxu0
      %v763 = vadd.f32 0.0, %v762
      %v764 = vpop.f32.mrf.mxu0
      %v765 = vadd.f32 0.0, %v764
      %766 = vmatmul.bf16.gmra.mxu0 %v742
      %v767 = vpop.f32.mrf.mxu0
      %v768 = vadd.f32 0.0, %v767
      %v769 = vpop.f32.mrf.mxu0
      %v770 = vadd.f32 0.0, %v769
      %771 = vmatmul.bf16.gmra.mxu0 %v745
      %v772 = vpop.f32.mrf.mxu0
      %v773 = vadd.f32 0.0, %v772
      %v774 = vpop.f32.mrf.mxu0
      %v775 = vadd.f32 0.0, %v774
      %776 = vmatmul.bf16.gmra.mxu0 %v748
      %v777 = vpop.f32.mrf.mxu0
      %v778 = vadd.f32 0.0, %v777
      %v779 = vpop.f32.mrf.mxu0
      %v780 = vadd.f32 0.0, %v779
      %781 = vdwg.mxu0
      %v782 = vadd.f32 %v513, %v763
      %v783 = vadd.f32 %v515, %v765
      %v784 = vadd.f32 %v518, %v768
      %v785 = vadd.f32 %v520, %v770
      %v786 = vadd.f32 %v523, %v773
      %v787 = vadd.f32 %v525, %v775
      %v788 = vadd.f32 %v528, %v778
      %v789 = vadd.f32 %v530, %v780
      %s790 = scalar_lea.vmem %s219, 144
      %v791 = vld [vmem:[%s790] sm:$0xf]
      %v792 = vld [vmem:[%s790 + $0x8] sm:$0xf]
      %v793 = vld [vmem:[%s790 + $0x10] sm:$0xf]
      %v794 = vld [vmem:[%s790 + $0x18] sm:$0xf]
      %v795 = vld [vmem:[%s790 + $0x20] sm:$0xf]
      %v796 = vld [vmem:[%s790 + $0x28] sm:$0xf]
      %v797 = vld [vmem:[%s790 + $0x30] sm:$0xf]
      %v798 = vld [vmem:[%s790 + $0x38] sm:$0xf]
      %v799 = vunpack.c.l.bf16 %v791
      %v800 = vunpack.c.l.bf16 %v792
      %v801 = vunpack.c.l.bf16 %v793
      %v802 = vunpack.c.l.bf16 %v794
      %v803 = vunpack.c.l.bf16 %v795
      %v804 = vunpack.c.l.bf16 %v796
      %v805 = vunpack.c.l.bf16 %v797
      %v806 = vunpack.c.l.bf16 %v798
      %s807 = scalar_lea.vmem %s1, 288
      %v808 = vld [vmem:[%s807] sm:$0xff]
      %v809 = vld [vmem:[%s807 + $0x10] sm:$0xff]
      %v810 = vld [vmem:[%s807 + $0x20] sm:$0xff]
      %v811 = vld [vmem:[%s807 + $0x30] sm:$0xff]
      %v812 = vld [vmem:[%s807 + $0x40] sm:$0xff]
      %v813 = vld [vmem:[%s807 + $0x50] sm:$0xff]
      %v814 = vld [vmem:[%s807 + $0x60] sm:$0xff]
      %v815 = vld [vmem:[%s807 + $0x70] sm:$0xff]
      %v816 = vmul.f32 %v799, %v253
      %v817 = vmul.f32 %v800, %v253
      %v818 = vmul.f32 %v801, %v253
      %v819 = vmul.f32 %v802, %v253
      %v820 = vmul.f32 %v803, %v253
      %v821 = vmul.f32 %v804, %v253
      %v822 = vmul.f32 %v805, %v253
      %v823 = vmul.f32 %v806, %v253
      %v824 = vadd.f32 %v816, %v264
      %v825 = vadd.f32 %v817, %v264
      %v826 = vadd.f32 %v818, %v264
      %v827 = vadd.f32 %v819, %v264
      %v828 = vadd.f32 %v820, %v264
      %v829 = vadd.f32 %v821, %v264
      %v830 = vadd.f32 %v822, %v264
      %v831 = vadd.f32 %v823, %v264
      %v832 = vmax.f32 %v824, 0.0
      %v833 = vmax.f32 %v825, 0.0
      %v834 = vmax.f32 %v826, 0.0
      %v835 = vmax.f32 %v827, 0.0
      %v836 = vmax.f32 %v828, 0.0
      %v837 = vmax.f32 %v829, 0.0
      %v838 = vmax.f32 %v830, 0.0
      %v839 = vmax.f32 %v831, 0.0
      %841 = vset.pattern.permute.xlu0 0
      %842 = vperm.xlu0 %841, %v808
      %v843 = vpop.permute.xlu0 %842
      %846 = vset.pattern.permute.xlu0 0
      %847 = vperm.xlu0 %846, %v809
      %v848 = vpop.permute.xlu0 %847
      %851 = vset.pattern.permute.xlu0 0
      %852 = vperm.xlu0 %851, %v810
      %v853 = vpop.permute.xlu0 %852
      %856 = vset.pattern.permute.xlu0 0
      %857 = vperm.xlu0 %856, %v811
      %v858 = vpop.permute.xlu0 %857
      %861 = vset.pattern.permute.xlu0 0
      %862 = vperm.xlu0 %861, %v812
      %v863 = vpop.permute.xlu0 %862
      %866 = vset.pattern.permute.xlu0 0
      %867 = vperm.xlu0 %866, %v813
      %v868 = vpop.permute.xlu0 %867
      %871 = vset.pattern.permute.xlu0 0
      %872 = vperm.xlu0 %871, %v814
      %v873 = vpop.permute.xlu0 %872
      %876 = vset.pattern.permute.xlu0 0
      %877 = vperm.xlu0 %876, %v815
      %v878 = vpop.permute.xlu0 %877
      %v880 = vmul.f32 %v832, %v843
      %v881 = vmul.f32 %v833, %v848
      %v882 = vmul.f32 %v834, %v853
      %v883 = vmul.f32 %v835, %v858
      %v884 = vmul.f32 %v836, %v863
      %v885 = vmul.f32 %v837, %v868
      %v886 = vmul.f32 %v838, %v873
      %v887 = vmul.f32 %v839, %v878
      %v888 = vpack.c.bf16 %v881, %v880
      %v889 = vpack.c.bf16 %v883, %v882
      %v890 = vpack.c.bf16 %v885, %v884
      %v891 = vpack.c.bf16 %v887, %v886
      %v892 = vld [vmem:[%s4 + $0x4] sm:$0xc]
      %v894 = vunpack.c.l.b16 %v892
      %v895 = vpack.c.b16 %v894, %v894
      %v896 = vrot.slane %v895, 2
      %v898 = vsel %vm442, %v888, 0
      %v901 = vsel %vm442, %v889, 0
      %v904 = vsel %vm442, %v890, 0
      %v907 = vsel %vm442, %v891, 0
      %v910 = vsel %vm455, %v896, 0
      %912 = vmatpush.bf16.msra.mxu0 0
      %913 = vmatpush.bf16.msra.mxu0 0
      %914 = vmatpush.bf16.msra.mxu0 0
      %915 = vmatpush.bf16.msra.mxu0 0
      %916 = vmatpush.bf16.msra.mxu0 0
      %917 = vmatpush.bf16.msra.mxu0 0
      %918 = vmatpush.bf16.msra.mxu0 0
      %919 = vmatpush.bf16.msra.mxu0 %v910
      %920 = vmatmul.bf16.gmra.mxu0 %v898
      %v921 = vpop.f32.mrf.mxu0
      %v922 = vadd.f32 0.0, %v921
      %v923 = vpop.f32.mrf.mxu0
      %v924 = vadd.f32 0.0, %v923
      %925 = vmatmul.bf16.gmra.mxu0 %v901
      %v926 = vpop.f32.mrf.mxu0
      %v927 = vadd.f32 0.0, %v926
      %v928 = vpop.f32.mrf.mxu0
      %v929 = vadd.f32 0.0, %v928
      %930 = vmatmul.bf16.gmra.mxu0 %v904
      %v931 = vpop.f32.mrf.mxu0
      %v932 = vadd.f32 0.0, %v931
      %v933 = vpop.f32.mrf.mxu0
      %v934 = vadd.f32 0.0, %v933
      %935 = vmatmul.bf16.gmra.mxu0 %v907
      %v936 = vpop.f32.mrf.mxu0
      %v937 = vadd.f32 0.0, %v936
      %v938 = vpop.f32.mrf.mxu0
      %v939 = vadd.f32 0.0, %v938
      %940 = vdwg.mxu0
      %v941 = vadd.f32 %v782, %v922
      %v942 = vadd.f32 %v783, %v924
      %v943 = vadd.f32 %v784, %v927
      %v944 = vadd.f32 %v785, %v929
      %v945 = vadd.f32 %v786, %v932
      %v946 = vadd.f32 %v787, %v934
      %v947 = vadd.f32 %v788, %v937
      %v948 = vadd.f32 %v789, %v939
      %s949 = scalar_lea.vmem %s219, 216
      %v950 = vld [vmem:[%s949] sm:$0xf]
      %v951 = vld [vmem:[%s949 + $0x8] sm:$0xf]
      %v952 = vld [vmem:[%s949 + $0x10] sm:$0xf]
      %v953 = vld [vmem:[%s949 + $0x18] sm:$0xf]
      %v954 = vld [vmem:[%s949 + $0x20] sm:$0xf]
      %v955 = vld [vmem:[%s949 + $0x28] sm:$0xf]
      %v956 = vld [vmem:[%s949 + $0x30] sm:$0xf]
      %v957 = vld [vmem:[%s949 + $0x38] sm:$0xf]
      %v958 = vunpack.c.l.bf16 %v950
      %v959 = vunpack.c.l.bf16 %v951
      %v960 = vunpack.c.l.bf16 %v952
      %v961 = vunpack.c.l.bf16 %v953
      %v962 = vunpack.c.l.bf16 %v954
      %v963 = vunpack.c.l.bf16 %v955
      %v964 = vunpack.c.l.bf16 %v956
      %v965 = vunpack.c.l.bf16 %v957
      %s966 = scalar_lea.vmem %s1, 432
      %v967 = vld [vmem:[%s966] sm:$0xff]
      %v968 = vld [vmem:[%s966 + $0x10] sm:$0xff]
      %v969 = vld [vmem:[%s966 + $0x20] sm:$0xff]
      %v970 = vld [vmem:[%s966 + $0x30] sm:$0xff]
      %v971 = vld [vmem:[%s966 + $0x40] sm:$0xff]
      %v972 = vld [vmem:[%s966 + $0x50] sm:$0xff]
      %v973 = vld [vmem:[%s966 + $0x60] sm:$0xff]
      %v974 = vld [vmem:[%s966 + $0x70] sm:$0xff]
      %v975 = vmul.f32 %v958, %v253
      %v976 = vmul.f32 %v959, %v253
      %v977 = vmul.f32 %v960, %v253
      %v978 = vmul.f32 %v961, %v253
      %v979 = vmul.f32 %v962, %v253
      %v980 = vmul.f32 %v963, %v253
      %v981 = vmul.f32 %v964, %v253
      %v982 = vmul.f32 %v965, %v253
      %v983 = vadd.f32 %v975, %v264
      %v984 = vadd.f32 %v976, %v264
      %v985 = vadd.f32 %v977, %v264
      %v986 = vadd.f32 %v978, %v264
      %v987 = vadd.f32 %v979, %v264
      %v988 = vadd.f32 %v980, %v264
      %v989 = vadd.f32 %v981, %v264
      %v990 = vadd.f32 %v982, %v264
      %v991 = vmax.f32 %v983, 0.0
      %v992 = vmax.f32 %v984, 0.0
      %v993 = vmax.f32 %v985, 0.0
      %v994 = vmax.f32 %v986, 0.0
      %v995 = vmax.f32 %v987, 0.0
      %v996 = vmax.f32 %v988, 0.0
      %v997 = vmax.f32 %v989, 0.0
      %v998 = vmax.f32 %v990, 0.0
      %1000 = vset.pattern.permute.xlu0 0
      %1001 = vperm.xlu0 %1000, %v967
      %v1002 = vpop.permute.xlu0 %1001
      %1005 = vset.pattern.permute.xlu0 0
      %1006 = vperm.xlu0 %1005, %v968
      %v1007 = vpop.permute.xlu0 %1006
      %1010 = vset.pattern.permute.xlu0 0
      %1011 = vperm.xlu0 %1010, %v969
      %v1012 = vpop.permute.xlu0 %1011
      %1015 = vset.pattern.permute.xlu0 0
      %1016 = vperm.xlu0 %1015, %v970
      %v1017 = vpop.permute.xlu0 %1016
      %1020 = vset.pattern.permute.xlu0 0
      %1021 = vperm.xlu0 %1020, %v971
      %v1022 = vpop.permute.xlu0 %1021
      %1025 = vset.pattern.permute.xlu0 0
      %1026 = vperm.xlu0 %1025, %v972
      %v1027 = vpop.permute.xlu0 %1026
      %1030 = vset.pattern.permute.xlu0 0
      %1031 = vperm.xlu0 %1030, %v973
      %v1032 = vpop.permute.xlu0 %1031
      %1035 = vset.pattern.permute.xlu0 0
      %1036 = vperm.xlu0 %1035, %v974
      %v1037 = vpop.permute.xlu0 %1036
      %v1039 = vmul.f32 %v991, %v1002
      %v1040 = vmul.f32 %v992, %v1007
      %v1041 = vmul.f32 %v993, %v1012
      %v1042 = vmul.f32 %v994, %v1017
      %v1043 = vmul.f32 %v995, %v1022
      %v1044 = vmul.f32 %v996, %v1027
      %v1045 = vmul.f32 %v997, %v1032
      %v1046 = vmul.f32 %v998, %v1037
      %v1047 = vpack.c.bf16 %v1040, %v1039
      %v1048 = vpack.c.bf16 %v1042, %v1041
      %v1049 = vpack.c.bf16 %v1044, %v1043
      %v1050 = vpack.c.bf16 %v1046, %v1045
      %v1051 = vld [vmem:[%s4 + $0x8] sm:$0x3]
      %v1053 = vsel %vm442, %v1047, 0
      %v1056 = vsel %vm442, %v1048, 0
      %v1059 = vsel %vm442, %v1049, 0
      %v1062 = vsel %vm442, %v1050, 0
      %v1065 = vsel %vm455, %v1051, 0
      %1067 = vmatpush.bf16.msra.mxu0 0
      %1068 = vmatpush.bf16.msra.mxu0 0
      %1069 = vmatpush.bf16.msra.mxu0 0
      %1070 = vmatpush.bf16.msra.mxu0 0
      %1071 = vmatpush.bf16.msra.mxu0 0
      %1072 = vmatpush.bf16.msra.mxu0 0
      %1073 = vmatpush.bf16.msra.mxu0 0
      %1074 = vmatpush.bf16.msra.mxu0 %v1065
      %1075 = vmatmul.bf16.gmra.mxu0 %v1053
      %v1076 = vpop.f32.mrf.mxu0
      %v1077 = vadd.f32 0.0, %v1076
      %v1078 = vpop.f32.mrf.mxu0
      %v1079 = vadd.f32 0.0, %v1078
      %1080 = vmatmul.bf16.gmra.mxu0 %v1056
      %v1081 = vpop.f32.mrf.mxu0
      %v1082 = vadd.f32 0.0, %v1081
      %v1083 = vpop.f32.mrf.mxu0
      %v1084 = vadd.f32 0.0, %v1083
      %1085 = vmatmul.bf16.gmra.mxu0 %v1059
      %v1086 = vpop.f32.mrf.mxu0
      %v1087 = vadd.f32 0.0, %v1086
      %v1088 = vpop.f32.mrf.mxu0
      %v1089 = vadd.f32 0.0, %v1088
      %1090 = vmatmul.bf16.gmra.mxu0 %v1062
      %v1091 = vpop.f32.mrf.mxu0
      %v1092 = vadd.f32 0.0, %v1091
      %v1093 = vpop.f32.mrf.mxu0
      %v1094 = vadd.f32 0.0, %v1093
      %1095 = vdwg.mxu0
      %v1096 = vadd.f32 %v941, %v1077
      %v1097 = vadd.f32 %v942, %v1079
      %v1098 = vadd.f32 %v943, %v1082
      %v1099 = vadd.f32 %v944, %v1084
      %v1100 = vadd.f32 %v945, %v1087
      %v1101 = vadd.f32 %v946, %v1089
      %v1102 = vadd.f32 %v947, %v1092
      %v1103 = vadd.f32 %v948, %v1094
      %v1104 = vld [vmem:[%s790] sm:$0xf]
      %v1105 = vld [vmem:[%s790 + $0x4] sm:$0x1]
      %v1106 = vld [vmem:[%s790 + $0x8] sm:$0xf]
      %v1107 = vld [vmem:[%s790 + $0xc] sm:$0x1]
      %v1108 = vld [vmem:[%s790 + $0x10] sm:$0xf]
      %v1109 = vld [vmem:[%s790 + $0x14] sm:$0x1]
      %v1110 = vld [vmem:[%s790 + $0x18] sm:$0xf]
      %v1111 = vld [vmem:[%s790 + $0x1c] sm:$0x1]
      %v1112 = vld [vmem:[%s790 + $0x20] sm:$0xf]
      %v1113 = vld [vmem:[%s790 + $0x24] sm:$0x1]
      %v1114 = vld [vmem:[%s790 + $0x28] sm:$0xf]
      %v1115 = vld [vmem:[%s790 + $0x2c] sm:$0x1]
      %v1116 = vld [vmem:[%s790 + $0x30] sm:$0xf]
      %v1117 = vld [vmem:[%s790 + $0x34] sm:$0x1]
      %v1118 = vld [vmem:[%s790 + $0x38] sm:$0xf]
      %v1119 = vld [vmem:[%s790 + $0x3c] sm:$0x1]
      %v1120 = vunpack.c.l.bf16 %v1104
      %v1121 = vunpack.c.l.bf16 %v1105
      %v1122 = vunpack.c.l.bf16 %v1106
      %v1123 = vunpack.c.l.bf16 %v1107
      %v1124 = vunpack.c.l.bf16 %v1108
      %v1125 = vunpack.c.l.bf16 %v1109
      %v1126 = vunpack.c.l.bf16 %v1110
      %v1127 = vunpack.c.l.bf16 %v1111
      %v1128 = vunpack.c.l.bf16 %v1112
      %v1129 = vunpack.c.l.bf16 %v1113
      %v1130 = vunpack.c.l.bf16 %v1114
      %v1131 = vunpack.c.l.bf16 %v1115
      %v1132 = vunpack.c.l.bf16 %v1116
      %v1133 = vunpack.c.l.bf16 %v1117
      %v1134 = vunpack.c.l.bf16 %v1118
      %v1135 = vunpack.c.l.bf16 %v1119
      %v1136 = vld [vmem:[%s807 + $0x1] sm:$0xff]
      %v1137 = vld [vmem:[%s807 + $0x11] sm:$0xff]
      %v1138 = vld [vmem:[%s807 + $0x21] sm:$0xff]
      %v1139 = vld [vmem:[%s807 + $0x31] sm:$0xff]
      %v1140 = vld [vmem:[%s807 + $0x41] sm:$0xff]
      %v1141 = vld [vmem:[%s807 + $0x51] sm:$0xff]
      %v1142 = vld [vmem:[%s807 + $0x61] sm:$0xff]
      %v1143 = vld [vmem:[%s807 + $0x71] sm:$0xff]
      %v1144 = vmul.f32 %v1120, %v253
      %v1145 = vmul.f32 %v1121, %v253
      %v1146 = vmul.f32 %v1122, %v253
      %v1147 = vmul.f32 %v1123, %v253
      %v1148 = vmul.f32 %v1124, %v253
      %v1149 = vmul.f32 %v1125, %v253
      %v1150 = vmul.f32 %v1126, %v253
      %v1151 = vmul.f32 %v1127, %v253
      %v1152 = vmul.f32 %v1128, %v253
      %v1153 = vmul.f32 %v1129, %v253
      %v1154 = vmul.f32 %v1130, %v253
      %v1155 = vmul.f32 %v1131, %v253
      %v1156 = vmul.f32 %v1132, %v253
      %v1157 = vmul.f32 %v1133, %v253
      %v1158 = vmul.f32 %v1134, %v253
      %v1159 = vmul.f32 %v1135, %v253
      %v1160 = vadd.f32 %v1144, %v264
      %v1161 = vadd.f32 %v1145, %v264
      %v1162 = vadd.f32 %v1146, %v264
      %v1163 = vadd.f32 %v1147, %v264
      %v1164 = vadd.f32 %v1148, %v264
      %v1165 = vadd.f32 %v1149, %v264
      %v1166 = vadd.f32 %v1150, %v264
      %v1167 = vadd.f32 %v1151, %v264
      %v1168 = vadd.f32 %v1152, %v264
      %v1169 = vadd.f32 %v1153, %v264
      %v1170 = vadd.f32 %v1154, %v264
      %v1171 = vadd.f32 %v1155, %v264
      %v1172 = vadd.f32 %v1156, %v264
      %v1173 = vadd.f32 %v1157, %v264
      %v1174 = vadd.f32 %v1158, %v264
      %v1175 = vadd.f32 %v1159, %v264
      %v1176 = vmax.f32 %v1160, 0.0
      %v1177 = vmax.f32 %v1161, 0.0
      %v1178 = vmax.f32 %v1162, 0.0
      %v1179 = vmax.f32 %v1163, 0.0
      %v1180 = vmax.f32 %v1164, 0.0
      %v1181 = vmax.f32 %v1165, 0.0
      %v1182 = vmax.f32 %v1166, 0.0
      %v1183 = vmax.f32 %v1167, 0.0
      %v1184 = vmax.f32 %v1168, 0.0
      %v1185 = vmax.f32 %v1169, 0.0
      %v1186 = vmax.f32 %v1170, 0.0
      %v1187 = vmax.f32 %v1171, 0.0
      %v1188 = vmax.f32 %v1172, 0.0
      %v1189 = vmax.f32 %v1173, 0.0
      %v1190 = vmax.f32 %v1174, 0.0
      %v1191 = vmax.f32 %v1175, 0.0
      %1193 = vset.pattern.permute.xlu0 0
      %1194 = vperm.xlu0 %1193, %v1136
      %v1195 = vpop.permute.xlu0 %1194
      %1197 = vset.pattern.permute.xlu0 0
      %1198 = vperm.xlu0 %1197, %v1137
      %v1199 = vpop.permute.xlu0 %1198
      %1201 = vset.pattern.permute.xlu0 0
      %1202 = vperm.xlu0 %1201, %v1138
      %v1203 = vpop.permute.xlu0 %1202
      %1205 = vset.pattern.permute.xlu0 0
      %1206 = vperm.xlu0 %1205, %v1139
      %v1207 = vpop.permute.xlu0 %1206
      %1209 = vset.pattern.permute.xlu0 0
      %1210 = vperm.xlu0 %1209, %v1140
      %v1211 = vpop.permute.xlu0 %1210
      %1213 = vset.pattern.permute.xlu0 0
      %1214 = vperm.xlu0 %1213, %v1141
      %v1215 = vpop.permute.xlu0 %1214
      %1217 = vset.pattern.permute.xlu0 0
      %1218 = vperm.xlu0 %1217, %v1142
      %v1219 = vpop.permute.xlu0 %1218
      %1221 = vset.pattern.permute.xlu0 0
      %1222 = vperm.xlu0 %1221, %v1143
      %v1223 = vpop.permute.xlu0 %1222
      %v1224 = vrot.slane %v1195, 7
      %v1225 = vrot.slane %v1199, 7
      %v1226 = vrot.slane %v1203, 7
      %v1227 = vrot.slane %v1207, 7
      %v1228 = vrot.slane %v1211, 7
      %v1229 = vrot.slane %v1215, 7
      %v1230 = vrot.slane %v1219, 7
      %v1231 = vrot.slane %v1223, 7
      %v1240 = vmul.f32 %v1176, %v1224
      %v1241 = vmul.f32 %v1177, %v1224
      %v1242 = vmul.f32 %v1178, %v1225
      %v1243 = vmul.f32 %v1179, %v1225
      %v1244 = vmul.f32 %v1180, %v1226
      %v1245 = vmul.f32 %v1181, %v1226
      %v1246 = vmul.f32 %v1182, %v1227
      %v1247 = vmul.f32 %v1183, %v1227
      %v1248 = vmul.f32 %v1184, %v1228
      %v1249 = vmul.f32 %v1185, %v1228
      %v1250 = vmul.f32 %v1186, %v1229
      %v1251 = vmul.f32 %v1187, %v1229
      %v1252 = vmul.f32 %v1188, %v1230
      %v1253 = vmul.f32 %v1189, %v1230
      %v1254 = vmul.f32 %v1190, %v1231
      %v1255 = vmul.f32 %v1191, %v1231
      %v1272 = vrot.slane %v1240, 1
      %v1273 = vrot.slane %v1241, 1
      %v1274 = vsel %vm700, %v1272, %v1273
      %v1275 = vrot.slane %v1242, 1
      %v1276 = vrot.slane %v1243, 1
      %v1277 = vsel %vm700, %v1275, %v1276
      %v1278 = vrot.slane %v1244, 1
      %v1279 = vrot.slane %v1245, 1
      %v1280 = vsel %vm700, %v1278, %v1279
      %v1281 = vrot.slane %v1246, 1
      %v1282 = vrot.slane %v1247, 1
      %v1283 = vsel %vm700, %v1281, %v1282
      %v1284 = vrot.slane %v1248, 1
      %v1285 = vrot.slane %v1249, 1
      %v1286 = vsel %vm700, %v1284, %v1285
      %v1287 = vrot.slane %v1250, 1
      %v1288 = vrot.slane %v1251, 1
      %v1289 = vsel %vm700, %v1287, %v1288
      %v1290 = vrot.slane %v1252, 1
      %v1291 = vrot.slane %v1253, 1
      %v1292 = vsel %vm700, %v1290, %v1291
      %v1293 = vrot.slane %v1254, 1
      %v1294 = vrot.slane %v1255, 1
      %v1295 = vsel %vm700, %v1293, %v1294
      %v1304 = vpack.c.bf16 %v1277, %v1274
      %v1305 = vpack.c.bf16 %v1283, %v1280
      %v1306 = vpack.c.bf16 %v1289, %v1286
      %v1307 = vpack.c.bf16 %v1295, %v1292
      %v1308 = vld [vmem:[%s4 + $0x8] sm:$0xc]
      %v1310 = vunpack.c.l.b16 %v1308
      %v1311 = vpack.c.b16 %v1310, %v1310
      %v1312 = vrot.slane %v1311, 2
      %v1314 = vsel %vm442, %v1304, 0
      %v1317 = vsel %vm442, %v1305, 0
      %v1320 = vsel %vm442, %v1306, 0
      %v1323 = vsel %vm442, %v1307, 0
      %v1326 = vsel %vm455, %v1312, 0
      %1328 = vmatpush.bf16.msra.mxu0 0
      %1329 = vmatpush.bf16.msra.mxu0 0
      %1330 = vmatpush.bf16.msra.mxu0 0
      %1331 = vmatpush.bf16.msra.mxu0 0
      %1332 = vmatpush.bf16.msra.mxu0 0
      %1333 = vmatpush.bf16.msra.mxu0 0
      %1334 = vmatpush.bf16.msra.mxu0 0
      %1335 = vmatpush.bf16.msra.mxu0 %v1326
      %1336 = vmatmul.bf16.gmra.mxu0 %v1314
      %v1337 = vpop.f32.mrf.mxu0
      %v1338 = vadd.f32 0.0, %v1337
      %v1339 = vpop.f32.mrf.mxu0
      %v1340 = vadd.f32 0.0, %v1339
      %1341 = vmatmul.bf16.gmra.mxu0 %v1317
      %v1342 = vpop.f32.mrf.mxu0
      %v1343 = vadd.f32 0.0, %v1342
      %v1344 = vpop.f32.mrf.mxu0
      %v1345 = vadd.f32 0.0, %v1344
      %1346 = vmatmul.bf16.gmra.mxu0 %v1320
      %v1347 = vpop.f32.mrf.mxu0
      %v1348 = vadd.f32 0.0, %v1347
      %v1349 = vpop.f32.mrf.mxu0
      %v1350 = vadd.f32 0.0, %v1349
      %1351 = vmatmul.bf16.gmra.mxu0 %v1323
      %v1352 = vpop.f32.mrf.mxu0
      %v1353 = vadd.f32 0.0, %v1352
      %v1354 = vpop.f32.mrf.mxu0
      %v1355 = vadd.f32 0.0, %v1354
      %1356 = vdwg.mxu0
      %v1357 = vadd.f32 %v1096, %v1338
      %v1358 = vadd.f32 %v1097, %v1340
      %v1359 = vadd.f32 %v1098, %v1343
      %v1360 = vadd.f32 %v1099, %v1345
      %v1361 = vadd.f32 %v1100, %v1348
      %v1362 = vadd.f32 %v1101, %v1350
      %v1363 = vadd.f32 %v1102, %v1353
      %v1364 = vadd.f32 %v1103, %v1355
      %s1365 = scalar_lea.vmem %s219, 8
      %v1366 = vld [vmem:[%s1365] sm:$0xf]
      %v1367 = vld [vmem:[%s1365 + $0x8] sm:$0xf]
      %v1368 = vld [vmem:[%s1365 + $0x10] sm:$0xf]
      %v1369 = vld [vmem:[%s1365 + $0x18] sm:$0xf]
      %v1370 = vld [vmem:[%s1365 + $0x20] sm:$0xf]
      %v1371 = vld [vmem:[%s1365 + $0x28] sm:$0xf]
      %v1372 = vld [vmem:[%s1365 + $0x30] sm:$0xf]
      %v1373 = vld [vmem:[%s1365 + $0x38] sm:$0xf]
      %v1374 = vunpack.c.l.bf16 %v1366
      %v1375 = vunpack.c.l.bf16 %v1367
      %v1376 = vunpack.c.l.bf16 %v1368
      %v1377 = vunpack.c.l.bf16 %v1369
      %v1378 = vunpack.c.l.bf16 %v1370
      %v1379 = vunpack.c.l.bf16 %v1371
      %v1380 = vunpack.c.l.bf16 %v1372
      %v1381 = vunpack.c.l.bf16 %v1373
      %s1382 = scalar_lea.vmem %s1, 16
      %v1383 = vld [vmem:[%s1382] sm:$0xff]
      %v1384 = vld [vmem:[%s1382 + $0x10] sm:$0xff]
      %v1385 = vld [vmem:[%s1382 + $0x20] sm:$0xff]
      %v1386 = vld [vmem:[%s1382 + $0x30] sm:$0xff]
      %v1387 = vld [vmem:[%s1382 + $0x40] sm:$0xff]
      %v1388 = vld [vmem:[%s1382 + $0x50] sm:$0xff]
      %v1389 = vld [vmem:[%s1382 + $0x60] sm:$0xff]
      %v1390 = vld [vmem:[%s1382 + $0x70] sm:$0xff]
      %v1391 = vmul.f32 %v1374, %v253
      %v1392 = vmul.f32 %v1375, %v253
      %v1393 = vmul.f32 %v1376, %v253
      %v1394 = vmul.f32 %v1377, %v253
      %v1395 = vmul.f32 %v1378, %v253
      %v1396 = vmul.f32 %v1379, %v253
      %v1397 = vmul.f32 %v1380, %v253
      %v1398 = vmul.f32 %v1381, %v253
      %v1399 = vadd.f32 %v1391, %v264
      %v1400 = vadd.f32 %v1392, %v264
      %v1401 = vadd.f32 %v1393, %v264
      %v1402 = vadd.f32 %v1394, %v264
      %v1403 = vadd.f32 %v1395, %v264
      %v1404 = vadd.f32 %v1396, %v264
      %v1405 = vadd.f32 %v1397, %v264
      %v1406 = vadd.f32 %v1398, %v264
      %v1407 = vmax.f32 %v1399, 0.0
      %v1408 = vmax.f32 %v1400, 0.0
      %v1409 = vmax.f32 %v1401, 0.0
      %v1410 = vmax.f32 %v1402, 0.0
      %v1411 = vmax.f32 %v1403, 0.0
      %v1412 = vmax.f32 %v1404, 0.0
      %v1413 = vmax.f32 %v1405, 0.0
      %v1414 = vmax.f32 %v1406, 0.0
      %1416 = vset.pattern.permute.xlu0 0
      %1417 = vperm.xlu0 %1416, %v1383
      %v1418 = vpop.permute.xlu0 %1417
      %1421 = vset.pattern.permute.xlu0 0
      %1422 = vperm.xlu0 %1421, %v1384
      %v1423 = vpop.permute.xlu0 %1422
      %1426 = vset.pattern.permute.xlu0 0
      %1427 = vperm.xlu0 %1426, %v1385
      %v1428 = vpop.permute.xlu0 %1427
      %1431 = vset.pattern.permute.xlu0 0
      %1432 = vperm.xlu0 %1431, %v1386
      %v1433 = vpop.permute.xlu0 %1432
      %1436 = vset.pattern.permute.xlu0 0
      %1437 = vperm.xlu0 %1436, %v1387
      %v1438 = vpop.permute.xlu0 %1437
      %1441 = vset.pattern.permute.xlu0 0
      %1442 = vperm.xlu0 %1441, %v1388
      %v1443 = vpop.permute.xlu0 %1442
      %1446 = vset.pattern.permute.xlu0 0
      %1447 = vperm.xlu0 %1446, %v1389
      %v1448 = vpop.permute.xlu0 %1447
      %1451 = vset.pattern.permute.xlu0 0
      %1452 = vperm.xlu0 %1451, %v1390
      %v1453 = vpop.permute.xlu0 %1452
      %v1455 = vmul.f32 %v1407, %v1418
      %v1456 = vmul.f32 %v1408, %v1423
      %v1457 = vmul.f32 %v1409, %v1428
      %v1458 = vmul.f32 %v1410, %v1433
      %v1459 = vmul.f32 %v1411, %v1438
      %v1460 = vmul.f32 %v1412, %v1443
      %v1461 = vmul.f32 %v1413, %v1448
      %v1462 = vmul.f32 %v1414, %v1453
      %v1463 = vpack.c.bf16 %v1456, %v1455
      %v1464 = vpack.c.bf16 %v1458, %v1457
      %v1465 = vpack.c.bf16 %v1460, %v1459
      %v1466 = vpack.c.bf16 %v1462, %v1461
      %v1467 = vld [vmem:[%s4 + $0xc] sm:$0x3]
      %v1469 = vsel %vm442, %v1463, 0
      %v1472 = vsel %vm442, %v1464, 0
      %v1475 = vsel %vm442, %v1465, 0
      %v1478 = vsel %vm442, %v1466, 0
      %v1481 = vsel %vm455, %v1467, 0
      %1483 = vmatpush.bf16.msra.mxu0 0
      %1484 = vmatpush.bf16.msra.mxu0 0
      %1485 = vmatpush.bf16.msra.mxu0 0
      %1486 = vmatpush.bf16.msra.mxu0 0
      %1487 = vmatpush.bf16.msra.mxu0 0
      %1488 = vmatpush.bf16.msra.mxu0 0
      %1489 = vmatpush.bf16.msra.mxu0 0
      %1490 = vmatpush.bf16.msra.mxu0 %v1481
      %1491 = vmatmul.bf16.gmra.mxu0 %v1469
      %v1492 = vpop.f32.mrf.mxu0
      %v1493 = vadd.f32 0.0, %v1492
      %v1494 = vpop.f32.mrf.mxu0
      %v1495 = vadd.f32 0.0, %v1494
      %1496 = vmatmul.bf16.gmra.mxu0 %v1472
      %v1497 = vpop.f32.mrf.mxu0
      %v1498 = vadd.f32 0.0, %v1497
      %v1499 = vpop.f32.mrf.mxu0
      %v1500 = vadd.f32 0.0, %v1499
      %1501 = vmatmul.bf16.gmra.mxu0 %v1475
      %v1502 = vpop.f32.mrf.mxu0
      %v1503 = vadd.f32 0.0, %v1502
      %v1504 = vpop.f32.mrf.mxu0
      %v1505 = vadd.f32 0.0, %v1504
      %1506 = vmatmul.bf16.gmra.mxu0 %v1478
      %v1507 = vpop.f32.mrf.mxu0
      %v1508 = vadd.f32 0.0, %v1507
      %v1509 = vpop.f32.mrf.mxu0
      %v1510 = vadd.f32 0.0, %v1509
      %1511 = vdwg.mxu0
      %v1512 = vadd.f32 %v1357, %v1493
      %v1513 = vadd.f32 %v1358, %v1495
      %v1514 = vadd.f32 %v1359, %v1498
      %v1515 = vadd.f32 %v1360, %v1500
      %v1516 = vadd.f32 %v1361, %v1503
      %v1517 = vadd.f32 %v1362, %v1505
      %v1518 = vadd.f32 %v1363, %v1508
      %v1519 = vadd.f32 %v1364, %v1510
      %s1520 = scalar_lea.vmem %s219, 80
      %v1521 = vld [vmem:[%s1520] sm:$0xf]
      %v1522 = vld [vmem:[%s1520 + $0x8] sm:$0xf]
      %v1523 = vld [vmem:[%s1520 + $0x10] sm:$0xf]
      %v1524 = vld [vmem:[%s1520 + $0x18] sm:$0xf]
      %v1525 = vld [vmem:[%s1520 + $0x20] sm:$0xf]
      %v1526 = vld [vmem:[%s1520 + $0x28] sm:$0xf]
      %v1527 = vld [vmem:[%s1520 + $0x30] sm:$0xf]
      %v1528 = vld [vmem:[%s1520 + $0x38] sm:$0xf]
      %v1529 = vunpack.c.l.bf16 %v1521
      %v1530 = vunpack.c.l.bf16 %v1522
      %v1531 = vunpack.c.l.bf16 %v1523
      %v1532 = vunpack.c.l.bf16 %v1524
      %v1533 = vunpack.c.l.bf16 %v1525
      %v1534 = vunpack.c.l.bf16 %v1526
      %v1535 = vunpack.c.l.bf16 %v1527
      %v1536 = vunpack.c.l.bf16 %v1528
      %s1537 = scalar_lea.vmem %s1, 160
      %v1538 = vld [vmem:[%s1537] sm:$0xff]
      %v1539 = vld [vmem:[%s1537 + $0x10] sm:$0xff]
      %v1540 = vld [vmem:[%s1537 + $0x20] sm:$0xff]
      %v1541 = vld [vmem:[%s1537 + $0x30] sm:$0xff]
      %v1542 = vld [vmem:[%s1537 + $0x40] sm:$0xff]
      %v1543 = vld [vmem:[%s1537 + $0x50] sm:$0xff]
      %v1544 = vld [vmem:[%s1537 + $0x60] sm:$0xff]
      %v1545 = vld [vmem:[%s1537 + $0x70] sm:$0xff]
      %v1546 = vmul.f32 %v1529, %v253
      %v1547 = vmul.f32 %v1530, %v253
      %v1548 = vmul.f32 %v1531, %v253
      %v1549 = vmul.f32 %v1532, %v253
      %v1550 = vmul.f32 %v1533, %v253
      %v1551 = vmul.f32 %v1534, %v253
      %v1552 = vmul.f32 %v1535, %v253
      %v1553 = vmul.f32 %v1536, %v253
      %v1554 = vadd.f32 %v1546, %v264
      %v1555 = vadd.f32 %v1547, %v264
      %v1556 = vadd.f32 %v1548, %v264
      %v1557 = vadd.f32 %v1549, %v264
      %v1558 = vadd.f32 %v1550, %v264
      %v1559 = vadd.f32 %v1551, %v264
      %v1560 = vadd.f32 %v1552, %v264
      %v1561 = vadd.f32 %v1553, %v264
      %v1562 = vmax.f32 %v1554, 0.0
      %v1563 = vmax.f32 %v1555, 0.0
      %v1564 = vmax.f32 %v1556, 0.0
      %v1565 = vmax.f32 %v1557, 0.0
      %v1566 = vmax.f32 %v1558, 0.0
      %v1567 = vmax.f32 %v1559, 0.0
      %v1568 = vmax.f32 %v1560, 0.0
      %v1569 = vmax.f32 %v1561, 0.0
      %1571 = vset.pattern.permute.xlu0 0
      %1572 = vperm.xlu0 %1571, %v1538
      %v1573 = vpop.permute.xlu0 %1572
      %1576 = vset.pattern.permute.xlu0 0
      %1577 = vperm.xlu0 %1576, %v1539
      %v1578 = vpop.permute.xlu0 %1577
      %1581 = vset.pattern.permute.xlu0 0
      %1582 = vperm.xlu0 %1581, %v1540
      %v1583 = vpop.permute.xlu0 %1582
      %1586 = vset.pattern.permute.xlu0 0
      %1587 = vperm.xlu0 %1586, %v1541
      %v1588 = vpop.permute.xlu0 %1587
      %1591 = vset.pattern.permute.xlu0 0
      %1592 = vperm.xlu0 %1591, %v1542
      %v1593 = vpop.permute.xlu0 %1592
      %1596 = vset.pattern.permute.xlu0 0
      %1597 = vperm.xlu0 %1596, %v1543
      %v1598 = vpop.permute.xlu0 %1597
      %1601 = vset.pattern.permute.xlu0 0
      %1602 = vperm.xlu0 %1601, %v1544
      %v1603 = vpop.permute.xlu0 %1602
      %1606 = vset.pattern.permute.xlu0 0
      %1607 = vperm.xlu0 %1606, %v1545
      %v1608 = vpop.permute.xlu0 %1607
      %v1610 = vmul.f32 %v1562, %v1573
      %v1611 = vmul.f32 %v1563, %v1578
      %v1612 = vmul.f32 %v1564, %v1583
      %v1613 = vmul.f32 %v1565, %v1588
      %v1614 = vmul.f32 %v1566, %v1593
      %v1615 = vmul.f32 %v1567, %v1598
      %v1616 = vmul.f32 %v1568, %v1603
      %v1617 = vmul.f32 %v1569, %v1608
      %v1618 = vpack.c.bf16 %v1611, %v1610
      %v1619 = vpack.c.bf16 %v1613, %v1612
      %v1620 = vpack.c.bf16 %v1615, %v1614
      %v1621 = vpack.c.bf16 %v1617, %v1616
      %v1622 = vld [vmem:[%s4 + $0xc] sm:$0xc]
      %v1624 = vunpack.c.l.b16 %v1622
      %v1625 = vpack.c.b16 %v1624, %v1624
      %v1626 = vrot.slane %v1625, 2
      %v1628 = vsel %vm442, %v1618, 0
      %v1631 = vsel %vm442, %v1619, 0
      %v1634 = vsel %vm442, %v1620, 0
      %v1637 = vsel %vm442, %v1621, 0
      %v1640 = vsel %vm455, %v1626, 0
      %1642 = vmatpush.bf16.msra.mxu0 0
      %1643 = vmatpush.bf16.msra.mxu0 0
      %1644 = vmatpush.bf16.msra.mxu0 0
      %1645 = vmatpush.bf16.msra.mxu0 0
      %1646 = vmatpush.bf16.msra.mxu0 0
      %1647 = vmatpush.bf16.msra.mxu0 0
      %1648 = vmatpush.bf16.msra.mxu0 0
      %1649 = vmatpush.bf16.msra.mxu0 %v1640
      %1650 = vmatmul.bf16.gmra.mxu0 %v1628
      %v1651 = vpop.f32.mrf.mxu0
      %v1652 = vadd.f32 0.0, %v1651
      %v1653 = vpop.f32.mrf.mxu0
      %v1654 = vadd.f32 0.0, %v1653
      %1655 = vmatmul.bf16.gmra.mxu0 %v1631
      %v1656 = vpop.f32.mrf.mxu0
      %v1657 = vadd.f32 0.0, %v1656
      %v1658 = vpop.f32.mrf.mxu0
      %v1659 = vadd.f32 0.0, %v1658
      %1660 = vmatmul.bf16.gmra.mxu0 %v1634
      %v1661 = vpop.f32.mrf.mxu0
      %v1662 = vadd.f32 0.0, %v1661
      %v1663 = vpop.f32.mrf.mxu0
      %v1664 = vadd.f32 0.0, %v1663
      %1665 = vmatmul.bf16.gmra.mxu0 %v1637
      %v1666 = vpop.f32.mrf.mxu0
      %v1667 = vadd.f32 0.0, %v1666
      %v1668 = vpop.f32.mrf.mxu0
      %v1669 = vadd.f32 0.0, %v1668
      %1670 = vdwg.mxu0
      %v1671 = vadd.f32 %v1512, %v1652
      %v1672 = vadd.f32 %v1513, %v1654
      %v1673 = vadd.f32 %v1514, %v1657
      %v1674 = vadd.f32 %v1515, %v1659
      %v1675 = vadd.f32 %v1516, %v1662
      %v1676 = vadd.f32 %v1517, %v1664
      %v1677 = vadd.f32 %v1518, %v1667
      %v1678 = vadd.f32 %v1519, %v1669
      %v1679 = vld [vmem:[%s1365] sm:$0xf]
      %v1680 = vld [vmem:[%s1365 + $0x4] sm:$0x1]
      %v1681 = vld [vmem:[%s1365 + $0x8] sm:$0xf]
      %v1682 = vld [vmem:[%s1365 + $0xc] sm:$0x1]
      %v1683 = vld [vmem:[%s1365 + $0x10] sm:$0xf]
      %v1684 = vld [vmem:[%s1365 + $0x14] sm:$0x1]
      %v1685 = vld [vmem:[%s1365 + $0x18] sm:$0xf]
      %v1686 = vld [vmem:[%s1365 + $0x1c] sm:$0x1]
      %v1687 = vld [vmem:[%s1365 + $0x20] sm:$0xf]
      %v1688 = vld [vmem:[%s1365 + $0x24] sm:$0x1]
      %v1689 = vld [vmem:[%s1365 + $0x28] sm:$0xf]
      %v1690 = vld [vmem:[%s1365 + $0x2c] sm:$0x1]
      %v1691 = vld [vmem:[%s1365 + $0x30] sm:$0xf]
      %v1692 = vld [vmem:[%s1365 + $0x34] sm:$0x1]
      %v1693 = vld [vmem:[%s1365 + $0x38] sm:$0xf]
      %v1694 = vld [vmem:[%s1365 + $0x3c] sm:$0x1]
      %v1695 = vunpack.c.l.bf16 %v1679
      %v1696 = vunpack.c.l.bf16 %v1680
      %v1697 = vunpack.c.l.bf16 %v1681
      %v1698 = vunpack.c.l.bf16 %v1682
      %v1699 = vunpack.c.l.bf16 %v1683
      %v1700 = vunpack.c.l.bf16 %v1684
      %v1701 = vunpack.c.l.bf16 %v1685
      %v1702 = vunpack.c.l.bf16 %v1686
      %v1703 = vunpack.c.l.bf16 %v1687
      %v1704 = vunpack.c.l.bf16 %v1688
      %v1705 = vunpack.c.l.bf16 %v1689
      %v1706 = vunpack.c.l.bf16 %v1690
      %v1707 = vunpack.c.l.bf16 %v1691
      %v1708 = vunpack.c.l.bf16 %v1692
      %v1709 = vunpack.c.l.bf16 %v1693
      %v1710 = vunpack.c.l.bf16 %v1694
      %v1711 = vld [vmem:[%s1382 + $0x1] sm:$0xff]
      %v1712 = vld [vmem:[%s1382 + $0x11] sm:$0xff]
      %v1713 = vld [vmem:[%s1382 + $0x21] sm:$0xff]
      %v1714 = vld [vmem:[%s1382 + $0x31] sm:$0xff]
      %v1715 = vld [vmem:[%s1382 + $0x41] sm:$0xff]
      %v1716 = vld [vmem:[%s1382 + $0x51] sm:$0xff]
      %v1717 = vld [vmem:[%s1382 + $0x61] sm:$0xff]
      %v1718 = vld [vmem:[%s1382 + $0x71] sm:$0xff]
      %v1719 = vmul.f32 %v1695, %v253
      %v1720 = vmul.f32 %v1696, %v253
      %v1721 = vmul.f32 %v1697, %v253
      %v1722 = vmul.f32 %v1698, %v253
      %v1723 = vmul.f32 %v1699, %v253
      %v1724 = vmul.f32 %v1700, %v253
      %v1725 = vmul.f32 %v1701, %v253
      %v1726 = vmul.f32 %v1702, %v253
      %v1727 = vmul.f32 %v1703, %v253
      %v1728 = vmul.f32 %v1704, %v253
      %v1729 = vmul.f32 %v1705, %v253
      %v1730 = vmul.f32 %v1706, %v253
      %v1731 = vmul.f32 %v1707, %v253
      %v1732 = vmul.f32 %v1708, %v253
      %v1733 = vmul.f32 %v1709, %v253
      %v1734 = vmul.f32 %v1710, %v253
      %v1735 = vadd.f32 %v1719, %v264
      %v1736 = vadd.f32 %v1720, %v264
      %v1737 = vadd.f32 %v1721, %v264
      %v1738 = vadd.f32 %v1722, %v264
      %v1739 = vadd.f32 %v1723, %v264
      %v1740 = vadd.f32 %v1724, %v264
      %v1741 = vadd.f32 %v1725, %v264
      %v1742 = vadd.f32 %v1726, %v264
      %v1743 = vadd.f32 %v1727, %v264
      %v1744 = vadd.f32 %v1728, %v264
      %v1745 = vadd.f32 %v1729, %v264
      %v1746 = vadd.f32 %v1730, %v264
      %v1747 = vadd.f32 %v1731, %v264
      %v1748 = vadd.f32 %v1732, %v264
      %v1749 = vadd.f32 %v1733, %v264
      %v1750 = vadd.f32 %v1734, %v264
      %v1751 = vmax.f32 %v1735, 0.0
      %v1752 = vmax.f32 %v1736, 0.0
      %v1753 = vmax.f32 %v1737, 0.0
      %v1754 = vmax.f32 %v1738, 0.0
      %v1755 = vmax.f32 %v1739, 0.0
      %v1756 = vmax.f32 %v1740, 0.0
      %v1757 = vmax.f32 %v1741, 0.0
      %v1758 = vmax.f32 %v1742, 0.0
      %v1759 = vmax.f32 %v1743, 0.0
      %v1760 = vmax.f32 %v1744, 0.0
      %v1761 = vmax.f32 %v1745, 0.0
      %v1762 = vmax.f32 %v1746, 0.0
      %v1763 = vmax.f32 %v1747, 0.0
      %v1764 = vmax.f32 %v1748, 0.0
      %v1765 = vmax.f32 %v1749, 0.0
      %v1766 = vmax.f32 %v1750, 0.0
      %1768 = vset.pattern.permute.xlu0 0
      %1769 = vperm.xlu0 %1768, %v1711
      %v1770 = vpop.permute.xlu0 %1769
      %1772 = vset.pattern.permute.xlu0 0
      %1773 = vperm.xlu0 %1772, %v1712
      %v1774 = vpop.permute.xlu0 %1773
      %1776 = vset.pattern.permute.xlu0 0
      %1777 = vperm.xlu0 %1776, %v1713
      %v1778 = vpop.permute.xlu0 %1777
      %1780 = vset.pattern.permute.xlu0 0
      %1781 = vperm.xlu0 %1780, %v1714
      %v1782 = vpop.permute.xlu0 %1781
      %1784 = vset.pattern.permute.xlu0 0
      %1785 = vperm.xlu0 %1784, %v1715
      %v1786 = vpop.permute.xlu0 %1785
      %1788 = vset.pattern.permute.xlu0 0
      %1789 = vperm.xlu0 %1788, %v1716
      %v1790 = vpop.permute.xlu0 %1789
      %1792 = vset.pattern.permute.xlu0 0
      %1793 = vperm.xlu0 %1792, %v1717
      %v1794 = vpop.permute.xlu0 %1793
      %1796 = vset.pattern.permute.xlu0 0
      %1797 = vperm.xlu0 %1796, %v1718
      %v1798 = vpop.permute.xlu0 %1797
      %v1799 = vrot.slane %v1770, 7
      %v1800 = vrot.slane %v1774, 7
      %v1801 = vrot.slane %v1778, 7
      %v1802 = vrot.slane %v1782, 7
      %v1803 = vrot.slane %v1786, 7
      %v1804 = vrot.slane %v1790, 7
      %v1805 = vrot.slane %v1794, 7
      %v1806 = vrot.slane %v1798, 7
      %v1815 = vmul.f32 %v1751, %v1799
      %v1816 = vmul.f32 %v1752, %v1799
      %v1817 = vmul.f32 %v1753, %v1800
      %v1818 = vmul.f32 %v1754, %v1800
      %v1819 = vmul.f32 %v1755, %v1801
      %v1820 = vmul.f32 %v1756, %v1801
      %v1821 = vmul.f32 %v1757, %v1802
      %v1822 = vmul.f32 %v1758, %v1802
      %v1823 = vmul.f32 %v1759, %v1803
      %v1824 = vmul.f32 %v1760, %v1803
      %v1825 = vmul.f32 %v1761, %v1804
      %v1826 = vmul.f32 %v1762, %v1804
      %v1827 = vmul.f32 %v1763, %v1805
      %v1828 = vmul.f32 %v1764, %v1805
      %v1829 = vmul.f32 %v1765, %v1806
      %v1830 = vmul.f32 %v1766, %v1806
      %v1847 = vrot.slane %v1815, 1
      %v1848 = vrot.slane %v1816, 1
      %v1849 = vsel %vm700, %v1847, %v1848
      %v1850 = vrot.slane %v1817, 1
      %v1851 = vrot.slane %v1818, 1
      %v1852 = vsel %vm700, %v1850, %v1851
      %v1853 = vrot.slane %v1819, 1
      %v1854 = vrot.slane %v1820, 1
      %v1855 = vsel %vm700, %v1853, %v1854
      %v1856 = vrot.slane %v1821, 1
      %v1857 = vrot.slane %v1822, 1
      %v1858 = vsel %vm700, %v1856, %v1857
      %v1859 = vrot.slane %v1823, 1
      %v1860 = vrot.slane %v1824, 1
      %v1861 = vsel %vm700, %v1859, %v1860
      %v1862 = vrot.slane %v1825, 1
      %v1863 = vrot.slane %v1826, 1
      %v1864 = vsel %vm700, %v1862, %v1863
      %v1865 = vrot.slane %v1827, 1
      %v1866 = vrot.slane %v1828, 1
      %v1867 = vsel %vm700, %v1865, %v1866
      %v1868 = vrot.slane %v1829, 1
      %v1869 = vrot.slane %v1830, 1
      %v1870 = vsel %vm700, %v1868, %v1869
      %v1879 = vpack.c.bf16 %v1852, %v1849
      %v1880 = vpack.c.bf16 %v1858, %v1855
      %v1881 = vpack.c.bf16 %v1864, %v1861
      %v1882 = vpack.c.bf16 %v1870, %v1867
      %v1883 = vld [vmem:[%s4 + $0x10] sm:$0x3]
      %v1885 = vsel %vm442, %v1879, 0
      %v1888 = vsel %vm442, %v1880, 0
      %v1891 = vsel %vm442, %v1881, 0
      %v1894 = vsel %vm442, %v1882, 0
      %v1897 = vsel %vm455, %v1883, 0
      %1899 = vmatpush.bf16.msra.mxu0 0
      %1900 = vmatpush.bf16.msra.mxu0 0
      %1901 = vmatpush.bf16.msra.mxu0 0
      %1902 = vmatpush.bf16.msra.mxu0 0
      %1903 = vmatpush.bf16.msra.mxu0 0
      %1904 = vmatpush.bf16.msra.mxu0 0
      %1905 = vmatpush.bf16.msra.mxu0 0
      %1906 = vmatpush.bf16.msra.mxu0 %v1897
      %1907 = vmatmul.bf16.gmra.mxu0 %v1885
      %v1908 = vpop.f32.mrf.mxu0
      %v1909 = vadd.f32 0.0, %v1908
      %v1910 = vpop.f32.mrf.mxu0
      %v1911 = vadd.f32 0.0, %v1910
      %1912 = vmatmul.bf16.gmra.mxu0 %v1888
      %v1913 = vpop.f32.mrf.mxu0
      %v1914 = vadd.f32 0.0, %v1913
      %v1915 = vpop.f32.mrf.mxu0
      %v1916 = vadd.f32 0.0, %v1915
      %1917 = vmatmul.bf16.gmra.mxu0 %v1891
      %v1918 = vpop.f32.mrf.mxu0
      %v1919 = vadd.f32 0.0, %v1918
      %v1920 = vpop.f32.mrf.mxu0
      %v1921 = vadd.f32 0.0, %v1920
      %1922 = vmatmul.bf16.gmra.mxu0 %v1894
      %v1923 = vpop.f32.mrf.mxu0
      %v1924 = vadd.f32 0.0, %v1923
      %v1925 = vpop.f32.mrf.mxu0
      %v1926 = vadd.f32 0.0, %v1925
      %1927 = vdwg.mxu0
      %v1928 = vadd.f32 %v1671, %v1909
      %v1929 = vadd.f32 %v1672, %v1911
      %v1930 = vadd.f32 %v1673, %v1914
      %v1931 = vadd.f32 %v1674, %v1916
      %v1932 = vadd.f32 %v1675, %v1919
      %v1933 = vadd.f32 %v1676, %v1921
      %v1934 = vadd.f32 %v1677, %v1924
      %v1935 = vadd.f32 %v1678, %v1926
      %v1936 = vpack.c.bf16 %v1928, %v1928
      %v1937 = vpack.c.bf16 %v1929, %v1929
      %v1938 = vpack.c.bf16 %v1930, %v1930
      %v1939 = vpack.c.bf16 %v1931, %v1931
      %v1940 = vpack.c.bf16 %v1932, %v1932
      %v1941 = vpack.c.bf16 %v1933, %v1933
      %v1942 = vpack.c.bf16 %v1934, %v1934
      %v1943 = vpack.c.bf16 %v1935, %v1935
      %vm1944 = vcmask 60416
      %1945 = vst.msk [vmem:[%s224] sm:$0xf] %vm1944, %v1936
      %1946 = vst.msk [vmem:[%s224 + $0x4] sm:$0xf] %vm1944, %v1937
      %1947 = vst.msk [vmem:[%s224 + $0x8] sm:$0xf] %vm1944, %v1938
      %1948 = vst.msk [vmem:[%s224 + $0xc] sm:$0xf] %vm1944, %v1939
      %1949 = vst.msk [vmem:[%s224 + $0x10] sm:$0xf] %vm1944, %v1940
      %1950 = vst.msk [vmem:[%s224 + $0x14] sm:$0xf] %vm1944, %v1941
      %1951 = vst.msk [vmem:[%s224 + $0x18] sm:$0xf] %vm1944, %v1942
      %1952 = vst.msk [vmem:[%s224 + $0x1c] sm:$0xf] %vm1944, %v1943
      %p1953 = scmp.lt.s32.totalorder %s16, 1
      %s1954 = scalar_select %p1953, %s16, 1
      %s1955 = smul.addr %s1954, 8
      %s1956 = smul.addr %s1955, 4
      %s1957 = scalar_lea.vmem %s5, %s1956
      // Predicated region
      $region41: #{_lambda_.10} parent=39 // pred_check
        %p1958 = pneg %p144
      $region42: #{_lambda_.10} parent=39 // pred_check_branch
        %1960 = sbr.rel (%p1958) target = $region44
      $region43: #{_lambda_.10} parent=39 // pred_region
        _
      $region44: #{_lambda_.10} parent=39 // pred_fallthru
        _
    $region40: #{_lambda_.10} parent=5 // pred_fallthru
      _
    %p1961 = scmp.le.s32.totalorder 2, %s11
    // Predicated region
    $region45: #{_lambda_.10} parent=5 // pred_check
      %p1962 = pneg %p1961
    $region46: #{_lambda_.10} parent=5 // pred_check_branch
      %1964 = sbr.rel (%p1962) target = $region48
    $region47: #{_lambda_.10} parent=5 // pred_region
      %s1965 = ssub.s32 %s11, 2
      // Predicated region
      $region49: #{_lambda_.10} parent=47 // pred_check
        %p1966 = pneg %p150
      $region50: #{_lambda_.10} parent=47 // pred_check_branch
        %1968 = sbr.rel (%p1966) target = $region52
      $region51: #{_lambda_.10} parent=47 // pred_region
        %p1969 = scmp.lt.s32.totalorder %s17, 1
        %s1970 = scalar_select %p1969, %s17, 1
        %s1971 = smul.addr %s1970, 8
        %s1972 = smul.addr %s1971, 4
        %s1973 = scalar_lea.vmem %s5, %s1972
      $region52: #{_lambda_.10} parent=47 // pred_fallthru
        _
    $region48: #{_lambda_.10} parent=5 // pred_fallthru
      _
  $region6: #{_lambda_.10} parent=0 // loop_footer
    %s15 = sadd.s32 1, %s11
  $region7: #{_lambda_.10} parent=0 // loop_footer_branch
    %10 = sbr.rel target = $region3
  $region8: #{_lambda_.10} parent=0 // loop_exit
    _

// kernel: _lambda_.13
$region0: #{_lambda_.13}
  #allocation0 [shape = 'u32[]', space=smem, size = 0x4, offset = 0x4, fixed_abs, tag = 'smem constant byte address 0x4 - core index']
  #allocation1 [shape = 'u32[72,128]{1,0:T(1,128)}', space=vmem, size = 0x9000, scoped, tag = 'internal scratch']
  %s0 = inlined_call_operand.vmem [shape: bf16[2,1,10,10,8], index: 0, kind: input, shape index: {}]
  %s1 = inlined_call_operand.vmem [shape: f32[1,10,10,1], index: 1, kind: input, shape index: {}]
  %s2 = inlined_call_operand.vmem [shape: f32[1,8], index: 2, kind: input, shape index: {}]
  %s3 = inlined_call_operand.vmem [shape: f32[1,8], index: 3, kind: input, shape index: {}]
  %s4 = inlined_call_operand.vmem [shape: bf16[72,8], index: 4, kind: input, shape index: {}]
  %s5 = inlined_call_operand.vmem [shape: bf16[2,64,8], index: 5, kind: input, shape index: {}]
  %s6 = inlined_call_operand.vmem [shape: bf16[2,64,8], index: 6, kind: output, shape index: {}]
  %s7 = sld [smem:[#allocation0]]
  $region57: #{_lambda_.13} parent=0
    _
  %s9 = ssub.s32 1, %s7
  %s10 = scalar_select 0, %s9, %s7
  loop: start=0, step=1, limit=4
  $region2: #{_lambda_.13} parent=0 // loop_pre_header
    _
  $region3: #{_lambda_.13} parent=0 // loop_header
    %s12 = sphi 0, %s16
    %p13 = scmp.ge.s32.totalorder %s12, 4
    %s22 = sphi 0, %s24
    %s25 = sphi 0, %s22
    %s26 = sphi 0, %s25
    %s42 = sphi 0, %s26
    %s46 = sphi 0, %s46
    %s48 = sphi 0, %s46
    %s49 = sphi 0, %s48
    %s63 = sphi 0, %s49
    %s67 = sphi 0, %s67
    %s69 = sphi 0, %s67
    %s70 = sphi 0, %s69
    %s84 = sphi 0, %s70
    %s88 = sphi 0, %s88
    %s90 = sphi 0, %s88
    %s91 = sphi 0, %s90
    %s105 = sphi 0, %s91
    %s109 = sphi 0, %s109
    %s111 = sphi 0, %s109
    %s112 = sphi 0, %s111
    %s126 = sphi 0, %s112
    %s132 = sphi 0, %s134
    %s135 = sphi 0, %s132
    %s136 = sphi 0, %s135
    %s152 = sphi 0, %s136
    %s158 = sphi 0, %s160
    %s161 = sphi 0, %s158
    %s162 = sphi 0, %s161
    %s178 = sphi 0, %s162
  $region4: #{_lambda_.13} parent=0 // loop_header_branch
    %15 = sbr.rel (%p13) target = $region8
  $region5: #{_lambda_.13} parent=0 // loop_body
    %s17 = ssub.s32 %s12, 1
    %s18 = ssub.s32 %s12, 2
    %s19 = sadd.s32 %s12, 1
    %s20 = ssub.s32 %s12, %s19
    %p21 = scmp.eq.s32.totalorder %s20, 0
    %s23 = sadd.s32 %s22, 1
    %s24 = scalar_select %p21, %s22, %s23
    %p27 = pneg %p21
    %p28 = scmp.eq.s32.totalorder %s12, 1
    %p29 = por %p27, %p28
    %p30 = scmp.ne.s32.totalorder %s22, %s25
    %p31 = scmp.eq.s32.totalorder %s12, 0
    %p32 = por %p30, %p31
    %p33 = scmp.ne.s32.totalorder %s22, %s25
    %p34 = scmp.eq.s32.totalorder %s17, 1
    %p35 = por %p33, %p34
    %p36 = scmp.ne.s32.totalorder %s25, %s26
    %p37 = scmp.eq.s32.totalorder %s17, 0
    %p38 = por %p36, %p37
    %p39 = scmp.ne.s32.totalorder %s25, %s26
    %p40 = scmp.eq.s32.totalorder %s18, 1
    %p41 = por %p39, %p40
    %p43 = scmp.ne.s32.totalorder %s26, %s42
    %p44 = scmp.eq.s32.totalorder %s18, 0
    %p45 = por %p43, %p44
    %s47 = sadd.s32 %s46, 1
    %p50 = scmp.eq.s32.totalorder %s12, 1
    %p51 = scmp.ne.s32.totalorder %s46, %s48
    %p52 = scmp.eq.s32.totalorder %s12, 0
    %p53 = por %p51, %p52
    %p54 = scmp.ne.s32.totalorder %s46, %s48
    %p55 = scmp.eq.s32.totalorder %s17, 1
    %p56 = por %p54, %p55
    %p57 = scmp.ne.s32.totalorder %s48, %s49
    %p58 = scmp.eq.s32.totalorder %s17, 0
    %p59 = por %p57, %p58
    %p60 = scmp.ne.s32.totalorder %s48, %s49
    %p61 = scmp.eq.s32.totalorder %s18, 1
    %p62 = por %p60, %p61
    %p64 = scmp.ne.s32.totalorder %s49, %s63
    %p65 = scmp.eq.s32.totalorder %s18, 0
    %p66 = por %p64, %p65
    %s68 = sadd.s32 %s67, 1
    %p71 = scmp.eq.s32.totalorder %s12, 1
    %p72 = scmp.ne.s32.totalorder %s67, %s69
    %p73 = scmp.eq.s32.totalorder %s12, 0
    %p74 = por %p72, %p73
    %p75 = scmp.ne.s32.totalorder %s67, %s69
    %p76 = scmp.eq.s32.totalorder %s17, 1
    %p77 = por %p75, %p76
    %p78 = scmp.ne.s32.totalorder %s69, %s70
    %p79 = scmp.eq.s32.totalorder %s17, 0
    %p80 = por %p78, %p79
    %p81 = scmp.ne.s32.totalorder %s69, %s70
    %p82 = scmp.eq.s32.totalorder %s18, 1
    %p83 = por %p81, %p82
    %p85 = scmp.ne.s32.totalorder %s70, %s84
    %p86 = scmp.eq.s32.totalorder %s18, 0
    %p87 = por %p85, %p86
    %s89 = sadd.s32 %s88, 1
    %p92 = scmp.eq.s32.totalorder %s12, 1
    %p93 = scmp.ne.s32.totalorder %s88, %s90
    %p94 = scmp.eq.s32.totalorder %s12, 0
    %p95 = por %p93, %p94
    %p96 = scmp.ne.s32.totalorder %s88, %s90
    %p97 = scmp.eq.s32.totalorder %s17, 1
    %p98 = por %p96, %p97
    %p99 = scmp.ne.s32.totalorder %s90, %s91
    %p100 = scmp.eq.s32.totalorder %s17, 0
    %p101 = por %p99, %p100
    %p102 = scmp.ne.s32.totalorder %s90, %s91
    %p103 = scmp.eq.s32.totalorder %s18, 1
    %p104 = por %p102, %p103
    %p106 = scmp.ne.s32.totalorder %s91, %s105
    %p107 = scmp.eq.s32.totalorder %s18, 0
    %p108 = por %p106, %p107
    %s110 = sadd.s32 %s109, 1
    %p113 = scmp.eq.s32.totalorder %s12, 1
    %p114 = scmp.ne.s32.totalorder %s109, %s111
    %p115 = scmp.eq.s32.totalorder %s12, 0
    %p116 = por %p114, %p115
    %p117 = scmp.ne.s32.totalorder %s109, %s111
    %p118 = scmp.eq.s32.totalorder %s17, 1
    %p119 = por %p117, %p118
    %p120 = scmp.ne.s32.totalorder %s111, %s112
    %p121 = scmp.eq.s32.totalorder %s17, 0
    %p122 = por %p120, %p121
    %p123 = scmp.ne.s32.totalorder %s111, %s112
    %p124 = scmp.eq.s32.totalorder %s18, 1
    %p125 = por %p123, %p124
    %p127 = scmp.ne.s32.totalorder %s112, %s126
    %p128 = scmp.eq.s32.totalorder %s18, 0
    %p129 = por %p127, %p128
    %s130 = ssub.s32 %s12, %s19
    %p131 = scmp.eq.s32.totalorder %s130, 0
    %s133 = sadd.s32 %s132, 1
    %s134 = scalar_select %p131, %s132, %s133
    %p137 = pneg %p131
    %p138 = scmp.eq.s32.totalorder %s12, 1
    %p139 = por %p137, %p138
    %p140 = scmp.ne.s32.totalorder %s132, %s135
    %p141 = scmp.eq.s32.totalorder %s12, 0
    %p142 = por %p140, %p141
    %p143 = scmp.ne.s32.totalorder %s132, %s135
    %p144 = scmp.eq.s32.totalorder %s17, 1
    %p145 = por %p143, %p144
    %p146 = scmp.ne.s32.totalorder %s135, %s136
    %p147 = scmp.eq.s32.totalorder %s17, 0
    %p148 = por %p146, %p147
    %p149 = scmp.ne.s32.totalorder %s135, %s136
    %p150 = scmp.eq.s32.totalorder %s18, 1
    %p151 = por %p149, %p150
    %p153 = scmp.ne.s32.totalorder %s136, %s152
    %p154 = scmp.eq.s32.totalorder %s18, 0
    %p155 = por %p153, %p154
    %s156 = ssub.s32 %s12, %s19
    %p157 = scmp.eq.s32.totalorder %s156, 0
    %s159 = sadd.s32 %s158, 1
    %s160 = scalar_select %p157, %s158, %s159
    %p163 = pneg %p157
    %p164 = scmp.eq.s32.totalorder %s12, 1
    %p165 = por %p163, %p164
    %p166 = scmp.ne.s32.totalorder %s158, %s161
    %p167 = scmp.eq.s32.totalorder %s12, 0
    %p168 = por %p166, %p167
    %p169 = scmp.ne.s32.totalorder %s158, %s161
    %p170 = scmp.eq.s32.totalorder %s17, 1
    %p171 = por %p169, %p170
    %p172 = scmp.ne.s32.totalorder %s161, %s162
    %p173 = scmp.eq.s32.totalorder %s17, 0
    %p174 = por %p172, %p173
    %p175 = scmp.ne.s32.totalorder %s161, %s162
    %p176 = scmp.eq.s32.totalorder %s18, 1
    %p177 = por %p175, %p176
    %p179 = scmp.ne.s32.totalorder %s162, %s178
    %p180 = scmp.eq.s32.totalorder %s18, 0
    %p181 = por %p179, %p180
    %p182 = scmp.le.s32.totalorder 1, %s12
    %p183 = scmp.lt.s32.totalorder %s12, 3
    %p184 = pnand %p182, %p183
    %p185 = pneg %p184
    // Predicated region
    $region9: #{_lambda_.13} parent=5 // pred_check
      _
    $region10: #{_lambda_.13} parent=5 // pred_check_branch
      %187 = sbr.rel (%p184) target = $region12
    $region11: #{_lambda_.13} parent=5 // pred_region
      %s188 = ssub.s32 %s12, 1
      // Predicated region
      $region13: #{_lambda_.13} parent=11 // pred_check
        %p189 = pneg %p59
      $region14: #{_lambda_.13} parent=11 // pred_check_branch
        %191 = sbr.rel (%p189) target = $region16
      $region15: #{_lambda_.13} parent=11 // pred_region
        _
      $region16: #{_lambda_.13} parent=11 // pred_fallthru
        _
      // Predicated region
      $region17: #{_lambda_.13} parent=11 // pred_check
        %p192 = pneg %p80
      $region18: #{_lambda_.13} parent=11 // pred_check_branch
        %194 = sbr.rel (%p192) target = $region20
      $region19: #{_lambda_.13} parent=11 // pred_region
        _
      $region20: #{_lambda_.13} parent=11 // pred_fallthru
        _
      // Predicated region
      $region21: #{_lambda_.13} parent=11 // pred_check
        %p195 = pneg %p101
      $region22: #{_lambda_.13} parent=11 // pred_check_branch
        %197 = sbr.rel (%p195) target = $region24
      $region23: #{_lambda_.13} parent=11 // pred_region
        _
      $region24: #{_lambda_.13} parent=11 // pred_fallthru
        _
      // Predicated region
      $region25: #{_lambda_.13} parent=11 // pred_check
        %p198 = pneg %p122
      $region26: #{_lambda_.13} parent=11 // pred_check_branch
        %200 = sbr.rel (%p198) target = $region28
      $region27: #{_lambda_.13} parent=11 // pred_region
        _
      $region28: #{_lambda_.13} parent=11 // pred_fallthru
        _
    $region12: #{_lambda_.13} parent=5 // pred_fallthru
      _
    %p201 = scmp.lt.s32.totalorder %s12, 2
    // Predicated region
    $region29: #{_lambda_.13} parent=5 // pred_check
      %p202 = pneg %p201
    $region30: #{_lambda_.13} parent=5 // pred_check_branch
      %204 = sbr.rel (%p202) target = $region32
    $region31: #{_lambda_.13} parent=5 // pred_region
      // Predicated region
      $region33: #{_lambda_.13} parent=31 // pred_check
        %p205 = pneg %p32
      $region34: #{_lambda_.13} parent=31 // pred_check_branch
        %207 = sbr.rel (%p205) target = $region36
      $region35: #{_lambda_.13} parent=31 // pred_region
        %p208 = scmp.lt.s32.totalorder %s12, 1
        %s209 = scalar_select %p208, %s12, 1
        %s210 = smul.addr %s209, 20
        %s211 = smul.addr %s210, 4
        %s212 = scalar_lea.vmem %s0, %s211
      $region36: #{_lambda_.13} parent=31 // pred_fallthru
        _
      // Predicated region
      $region37: #{_lambda_.13} parent=31 // pred_check
        %p213 = pneg %p142
      $region38: #{_lambda_.13} parent=31 // pred_check_branch
        %215 = sbr.rel (%p213) target = $region40
      $region39: #{_lambda_.13} parent=31 // pred_region
        %p216 = scmp.lt.s32.totalorder %s12, 1
        %s217 = scalar_select %p216, %s12, 1
        %s218 = smul.addr %s217, 8
        %s219 = smul.addr %s218, 4
        %s220 = scalar_lea.vmem %s5, %s219
      $region40: #{_lambda_.13} parent=31 // pred_fallthru
        _
    $region32: #{_lambda_.13} parent=5 // pred_fallthru
      _
    %p221 = scmp.le.s32.totalorder 1, %s12
    %p222 = scmp.lt.s32.totalorder %s12, 3
    %p223 = pnand %p221, %p222
    %p224 = pneg %p223
    // Predicated region
    $region41: #{_lambda_.13} parent=5 // pred_check
      _
    $region42: #{_lambda_.13} parent=5 // pred_check_branch
      %226 = sbr.rel (%p223) target = $region44
    $region43: #{_lambda_.13} parent=5 // pred_region
      %s227 = ssub.s32 %s12, 1
      %p228 = scmp.lt.s32.totalorder %s17, 1
      %s229 = scalar_select %p228, %s17, 1
      %s230 = smul.addr %s229, 20
      %s231 = smul.addr %s230, 4
      %s232 = scalar_lea.vmem %s0, %s231
      %p233 = pneg %p38
      %p234 = pneg %p35
      %p235 = pneg %p59
      %p236 = pneg %p56
      %p237 = pneg %p80
      %p238 = pneg %p77
      %p239 = pneg %p101
      %p240 = pneg %p98
      %p241 = pneg %p122
      %p242 = pneg %p119
      %p243 = scmp.lt.s32.totalorder %s17, 1
      %s244 = scalar_select %p243, %s17, 1
      %s245 = smul.addr %s244, 8
      %s246 = smul.addr %s245, 4
      %s247 = scalar_lea.vmem %s5, %s246
      %p248 = pneg %p148
      %p249 = pneg %p145
      %p250 = pneg %p174
      %p251 = pneg %p171
      %p252 = scmp.lt.s32.totalorder %s17, 1
      %s253 = scalar_select %p252, %s17, 1
      %s254 = smul.addr %s253, 8
      %s255 = smul.addr %s254, 4
      %s256 = scalar_lea.vmem %s6, %s255
      %p257 = scmp.lt.s32.totalorder %s17, 1
      %s258 = scalar_select %p257, %s17, 1
      %s259 = smul.addr %s258, 20
      %s260 = smul.addr %s259, 4
      %s261 = scalar_lea.vmem %s0, %s260
      %p262 = scmp.lt.s32.totalorder %s17, 1
      %s263 = scalar_select %p262, %s17, 1
      %s264 = smul.addr %s263, 8
      %s265 = smul.addr %s264, 4
      %s266 = scalar_lea.vmem %s5, %s265
      %p267 = scmp.lt.s32.totalorder %s17, 1
      %s268 = scalar_select %p267, %s17, 1
      %s269 = smul.addr %s268, 8
      %s270 = smul.addr %s269, 4
      %s271 = scalar_lea.vmem %s6, %s270
      %v273 = vld [vmem:[%s2] sm:$0x1]
      %v274 = vld [vmem:[%s3] sm:$0x1]
      %v275 = vld [vmem:[%s261] sm:$0xf]
      %v276 = vld [vmem:[%s261 + $0x8] sm:$0xf]
      %v277 = vld [vmem:[%s261 + $0x10] sm:$0xf]
      %v278 = vld [vmem:[%s261 + $0x18] sm:$0xf]
      %v279 = vld [vmem:[%s261 + $0x20] sm:$0xf]
      %v280 = vld [vmem:[%s261 + $0x28] sm:$0xf]
      %v281 = vld [vmem:[%s261 + $0x30] sm:$0xf]
      %v282 = vld [vmem:[%s261 + $0x38] sm:$0xf]
      %v283 = vunpack.c.l.bf16 %v275
      %v284 = vunpack.c.l.bf16 %v276
      %v285 = vunpack.c.l.bf16 %v277
      %v286 = vunpack.c.l.bf16 %v278
      %v287 = vunpack.c.l.bf16 %v279
      %v288 = vunpack.c.l.bf16 %v280
      %v289 = vunpack.c.l.bf16 %v281
      %v290 = vunpack.c.l.bf16 %v282
      %v291 = vld [vmem:[%s1] sm:$0xff]
      %v292 = vld [vmem:[%s1 + $0x10] sm:$0xff]
      %v293 = vld [vmem:[%s1 + $0x20] sm:$0xff]
      %v294 = vld [vmem:[%s1 + $0x30] sm:$0xff]
      %v295 = vld [vmem:[%s1 + $0x40] sm:$0xff]
      %v296 = vld [vmem:[%s1 + $0x50] sm:$0xff]
      %v297 = vld [vmem:[%s1 + $0x60] sm:$0xff]
      %v298 = vld [vmem:[%s1 + $0x70] sm:$0xff]
      %v300 = vperm.slane %v273, 0
      %v302 = vmul.f32 %v283, %v300
      %v303 = vmul.f32 %v284, %v300
      %v304 = vmul.f32 %v285, %v300
      %v305 = vmul.f32 %v286, %v300
      %v306 = vmul.f32 %v287, %v300
      %v307 = vmul.f32 %v288, %v300
      %v308 = vmul.f32 %v289, %v300
      %v309 = vmul.f32 %v290, %v300
      %v311 = vperm.slane %v274, 0
      %v313 = vadd.f32 %v302, %v311
      %v314 = vadd.f32 %v303, %v311
      %v315 = vadd.f32 %v304, %v311
      %v316 = vadd.f32 %v305, %v311
      %v317 = vadd.f32 %v306, %v311
      %v318 = vadd.f32 %v307, %v311
      %v319 = vadd.f32 %v308, %v311
      %v320 = vadd.f32 %v309, %v311
      %v321 = vmax.f32 %v313, 0.0
      %v322 = vmax.f32 %v314, 0.0
      %v323 = vmax.f32 %v315, 0.0
      %v324 = vmax.f32 %v316, 0.0
      %v325 = vmax.f32 %v317, 0.0
      %v326 = vmax.f32 %v318, 0.0
      %v327 = vmax.f32 %v319, 0.0
      %v328 = vmax.f32 %v320, 0.0
      %330 = vset.pattern.permute.xlu0 0
      %331 = vperm.xlu0 %330, %v291
      %v332 = vpop.permute.xlu0 %331
      %335 = vset.pattern.permute.xlu0 0
      %336 = vperm.xlu0 %335, %v292
      %v337 = vpop.permute.xlu0 %336
      %340 = vset.pattern.permute.xlu0 0
      %341 = vperm.xlu0 %340, %v293
      %v342 = vpop.permute.xlu0 %341
      %345 = vset.pattern.permute.xlu0 0
      %346 = vperm.xlu0 %345, %v294
      %v347 = vpop.permute.xlu0 %346
      %350 = vset.pattern.permute.xlu0 0
      %351 = vperm.xlu0 %350, %v295
      %v352 = vpop.permute.xlu0 %351
      %355 = vset.pattern.permute.xlu0 0
      %356 = vperm.xlu0 %355, %v296
      %v357 = vpop.permute.xlu0 %356
      %360 = vset.pattern.permute.xlu0 0
      %361 = vperm.xlu0 %360, %v297
      %v362 = vpop.permute.xlu0 %361
      %365 = vset.pattern.permute.xlu0 0
      %366 = vperm.xlu0 %365, %v298
      %v367 = vpop.permute.xlu0 %366
      %v369 = vmul.f32 %v321, %v332
      %v370 = vmul.f32 %v322, %v337
      %v371 = vmul.f32 %v323, %v342
      %v372 = vmul.f32 %v324, %v347
      %v373 = vmul.f32 %v325, %v352
      %v374 = vmul.f32 %v326, %v357
      %v375 = vmul.f32 %v327, %v362
      %v376 = vmul.f32 %v328, %v367
      %v377 = vpack.c.bf16 %v370, %v369
      %v378 = vpack.c.bf16 %v372, %v371
      %v379 = vpack.c.bf16 %v374, %v373
      %v380 = vpack.c.bf16 %v376, %v375
      %v381 = vld [vmem:[%s4] sm:$0xf]
      %v382 = vld [vmem:[%s261] sm:$0xf]
      %v383 = vld [vmem:[%s261 + $0x4] sm:$0x1]
      %v384 = vld [vmem:[%s261 + $0x8] sm:$0xf]
      %v385 = vld [vmem:[%s261 + $0xc] sm:$0x1]
      %v386 = vld [vmem:[%s261 + $0x10] sm:$0xf]
      %v387 = vld [vmem:[%s261 + $0x14] sm:$0x1]
      %v388 = vld [vmem:[%s261 + $0x18] sm:$0xf]
      %v389 = vld [vmem:[%s261 + $0x1c] sm:$0x1]
      %v390 = vld [vmem:[%s261 + $0x20] sm:$0xf]
      %v391 = vld [vmem:[%s261 + $0x24] sm:$0x1]
      %v392 = vld [vmem:[%s261 + $0x28] sm:$0xf]
      %v393 = vld [vmem:[%s261 + $0x2c] sm:$0x1]
      %v394 = vld [vmem:[%s261 + $0x30] sm:$0xf]
      %v395 = vld [vmem:[%s261 + $0x34] sm:$0x1]
      %v396 = vld [vmem:[%s261 + $0x38] sm:$0xf]
      %v397 = vld [vmem:[%s261 + $0x3c] sm:$0x1]
      %v398 = vunpack.c.l.bf16 %v382
      %v399 = vunpack.c.l.bf16 %v383
      %v400 = vunpack.c.l.bf16 %v384
      %v401 = vunpack.c.l.bf16 %v385
      %v402 = vunpack.c.l.bf16 %v386
      %v403 = vunpack.c.l.bf16 %v387
      %v404 = vunpack.c.l.bf16 %v388
      %v405 = vunpack.c.l.bf16 %v389
      %v406 = vunpack.c.l.bf16 %v390
      %v407 = vunpack.c.l.bf16 %v391
      %v408 = vunpack.c.l.bf16 %v392
      %v409 = vunpack.c.l.bf16 %v393
      %v410 = vunpack.c.l.bf16 %v394
      %v411 = vunpack.c.l.bf16 %v395
      %v412 = vunpack.c.l.bf16 %v396
      %v413 = vunpack.c.l.bf16 %v397
      %v414 = vld [vmem:[%s1 + $0x1] sm:$0xff]
      %v415 = vld [vmem:[%s1 + $0x11] sm:$0xff]
      %v416 = vld [vmem:[%s1 + $0x21] sm:$0xff]
      %v417 = vld [vmem:[%s1 + $0x31] sm:$0xff]
      %v418 = vld [vmem:[%s1 + $0x41] sm:$0xff]
      %v419 = vld [vmem:[%s1 + $0x51] sm:$0xff]
      %v420 = vld [vmem:[%s1 + $0x61] sm:$0xff]
      %v421 = vld [vmem:[%s1 + $0x71] sm:$0xff]
      %v422 = vmul.f32 %v398, %v300
      %v423 = vmul.f32 %v399, %v300
      %v424 = vmul.f32 %v400, %v300
      %v425 = vmul.f32 %v401, %v300
      %v426 = vmul.f32 %v402, %v300
      %v427 = vmul.f32 %v403, %v300
      %v428 = vmul.f32 %v404, %v300
      %v429 = vmul.f32 %v405, %v300
      %v430 = vmul.f32 %v406, %v300
      %v431 = vmul.f32 %v407, %v300
      %v432 = vmul.f32 %v408, %v300
      %v433 = vmul.f32 %v409, %v300
      %v434 = vmul.f32 %v410, %v300
      %v435 = vmul.f32 %v411, %v300
      %v436 = vmul.f32 %v412, %v300
      %v437 = vmul.f32 %v413, %v300
      %v438 = vadd.f32 %v422, %v311
      %v439 = vadd.f32 %v423, %v311
      %v440 = vadd.f32 %v424, %v311
      %v441 = vadd.f32 %v425, %v311
      %v442 = vadd.f32 %v426, %v311
      %v443 = vadd.f32 %v427, %v311
      %v444 = vadd.f32 %v428, %v311
      %v445 = vadd.f32 %v429, %v311
      %v446 = vadd.f32 %v430, %v311
      %v447 = vadd.f32 %v431, %v311
      %v448 = vadd.f32 %v432, %v311
      %v449 = vadd.f32 %v433, %v311
      %v450 = vadd.f32 %v434, %v311
      %v451 = vadd.f32 %v435, %v311
      %v452 = vadd.f32 %v436, %v311
      %v453 = vadd.f32 %v437, %v311
      %v454 = vmax.f32 %v438, 0.0
      %v455 = vmax.f32 %v439, 0.0
      %v456 = vmax.f32 %v440, 0.0
      %v457 = vmax.f32 %v441, 0.0
      %v458 = vmax.f32 %v442, 0.0
      %v459 = vmax.f32 %v443, 0.0
      %v460 = vmax.f32 %v444, 0.0
      %v461 = vmax.f32 %v445, 0.0
      %v462 = vmax.f32 %v446, 0.0
      %v463 = vmax.f32 %v447, 0.0
      %v464 = vmax.f32 %v448, 0.0
      %v465 = vmax.f32 %v449, 0.0
      %v466 = vmax.f32 %v450, 0.0
      %v467 = vmax.f32 %v451, 0.0
      %v468 = vmax.f32 %v452, 0.0
      %v469 = vmax.f32 %v453, 0.0
      %471 = vset.pattern.permute.xlu0 0
      %472 = vperm.xlu0 %471, %v414
      %v473 = vpop.permute.xlu0 %472
      %475 = vset.pattern.permute.xlu0 0
      %476 = vperm.xlu0 %475, %v415
      %v477 = vpop.permute.xlu0 %476
      %479 = vset.pattern.permute.xlu0 0
      %480 = vperm.xlu0 %479, %v416
      %v481 = vpop.permute.xlu0 %480
      %483 = vset.pattern.permute.xlu0 0
      %484 = vperm.xlu0 %483, %v417
      %v485 = vpop.permute.xlu0 %484
      %487 = vset.pattern.permute.xlu0 0
      %488 = vperm.xlu0 %487, %v418
      %v489 = vpop.permute.xlu0 %488
      %491 = vset.pattern.permute.xlu0 0
      %492 = vperm.xlu0 %491, %v419
      %v493 = vpop.permute.xlu0 %492
      %495 = vset.pattern.permute.xlu0 0
      %496 = vperm.xlu0 %495, %v420
      %v497 = vpop.permute.xlu0 %496
      %499 = vset.pattern.permute.xlu0 0
      %500 = vperm.xlu0 %499, %v421
      %v501 = vpop.permute.xlu0 %500
      %v502 = vrot.slane %v473, 7
      %v503 = vrot.slane %v477, 7
      %v504 = vrot.slane %v481, 7
      %v505 = vrot.slane %v485, 7
      %v506 = vrot.slane %v489, 7
      %v507 = vrot.slane %v493, 7
      %v508 = vrot.slane %v497, 7
      %v509 = vrot.slane %v501, 7
      %v518 = vmul.f32 %v454, %v502
      %v519 = vmul.f32 %v455, %v502
      %v520 = vmul.f32 %v456, %v503
      %v521 = vmul.f32 %v457, %v503
      %v522 = vmul.f32 %v458, %v504
      %v523 = vmul.f32 %v459, %v504
      %v524 = vmul.f32 %v460, %v505
      %v525 = vmul.f32 %v461, %v505
      %v526 = vmul.f32 %v462, %v506
      %v527 = vmul.f32 %v463, %v506
      %v528 = vmul.f32 %v464, %v507
      %v529 = vmul.f32 %v465, %v507
      %v530 = vmul.f32 %v466, %v508
      %v531 = vmul.f32 %v467, %v508
      %v532 = vmul.f32 %v468, %v509
      %v533 = vmul.f32 %v469, %v509
      %vm550 = vcmask 1046528
      %v551 = vrot.slane %v518, 1
      %v552 = vrot.slane %v519, 1
      %v553 = vsel %vm550, %v551, %v552
      %v554 = vrot.slane %v520, 1
      %v555 = vrot.slane %v521, 1
      %v556 = vsel %vm550, %v554, %v555
      %v557 = vrot.slane %v522, 1
      %v558 = vrot.slane %v523, 1
      %v559 = vsel %vm550, %v557, %v558
      %v560 = vrot.slane %v524, 1
      %v561 = vrot.slane %v525, 1
      %v562 = vsel %vm550, %v560, %v561
      %v563 = vrot.slane %v526, 1
      %v564 = vrot.slane %v527, 1
      %v565 = vsel %vm550, %v563, %v564
      %v566 = vrot.slane %v528, 1
      %v567 = vrot.slane %v529, 1
      %v568 = vsel %vm550, %v566, %v567
      %v569 = vrot.slane %v530, 1
      %v570 = vrot.slane %v531, 1
      %v571 = vsel %vm550, %v569, %v570
      %v572 = vrot.slane %v532, 1
      %v573 = vrot.slane %v533, 1
      %v574 = vsel %vm550, %v572, %v573
      %v583 = vpack.c.bf16 %v556, %v553
      %v584 = vpack.c.bf16 %v562, %v559
      %v585 = vpack.c.bf16 %v568, %v565
      %v586 = vpack.c.bf16 %v574, %v571
      %v587 = vld [vmem:[%s4 + $0x4] sm:$0xf]
      %vm588 = vcmask 64512
      %v590 = vsel %vm588, %v583, 0
      %v593 = vsel %vm588, %v584, 0
      %v596 = vsel %vm588, %v585, 0
      %v599 = vsel %vm588, %v586, 0
      %vm601 = vcmask 1043456
      %v603 = vsel %vm601, %v587, 0
      %605 = vmatpush.bf16.msra.mxu0 0
      %606 = vmatpush.bf16.msra.mxu0 0
      %607 = vmatpush.bf16.msra.mxu0 0
      %608 = vmatpush.bf16.msra.mxu0 0
      %609 = vmatpush.bf16.msra.mxu0 0
      %610 = vmatpush.bf16.msra.mxu0 0
      %611 = vmatpush.bf16.msra.mxu0 0
      %612 = vmatpush.bf16.msra.mxu0 %v603
      %613 = vmatmul.bf16.gmra.mxu0 %v590
      %v614 = vpop.f32.mrf.mxu0
      %v615 = vadd.f32 0.0, %v614
      %v616 = vpop.f32.mrf.mxu0
      %v617 = vadd.f32 0.0, %v616
      %618 = vmatmul.bf16.gmra.mxu0 %v593
      %v619 = vpop.f32.mrf.mxu0
      %v620 = vadd.f32 0.0, %v619
      %v621 = vpop.f32.mrf.mxu0
      %v622 = vadd.f32 0.0, %v621
      %623 = vmatmul.bf16.gmra.mxu0 %v596
      %v624 = vpop.f32.mrf.mxu0
      %v625 = vadd.f32 0.0, %v624
      %v626 = vpop.f32.mrf.mxu0
      %v627 = vadd.f32 0.0, %v626
      %628 = vmatmul.bf16.gmra.mxu0 %v599
      %v629 = vpop.f32.mrf.mxu0
      %v630 = vadd.f32 0.0, %v629
      %v631 = vpop.f32.mrf.mxu0
      %v632 = vadd.f32 0.0, %v631
      %633 = vdwg.mxu0
      %v635 = vsel %vm588, %v377, 0
      %v638 = vsel %vm588, %v378, 0
      %v641 = vsel %vm588, %v379, 0
      %v644 = vsel %vm588, %v380, 0
      %v647 = vsel %vm601, %v381, 0
      %649 = vmatpush.bf16.msra.mxu0 0
      %650 = vmatpush.bf16.msra.mxu0 0
      %651 = vmatpush.bf16.msra.mxu0 0
      %652 = vmatpush.bf16.msra.mxu0 0
      %653 = vmatpush.bf16.msra.mxu0 0
      %654 = vmatpush.bf16.msra.mxu0 0
      %655 = vmatpush.bf16.msra.mxu0 0
      %656 = vmatpush.bf16.msra.mxu0 %v647
      %657 = vmatmul.bf16.gmra.mxu0 %v635
      %v658 = vpop.f32.mrf.mxu0
      %v659 = vadd.f32 %v615, %v658
      %v660 = vpop.f32.mrf.mxu0
      %v661 = vadd.f32 %v617, %v660
      %662 = vmatmul.bf16.gmra.mxu0 %v638
      %v663 = vpop.f32.mrf.mxu0
      %v664 = vadd.f32 %v620, %v663
      %v665 = vpop.f32.mrf.mxu0
      %v666 = vadd.f32 %v622, %v665
      %667 = vmatmul.bf16.gmra.mxu0 %v641
      %v668 = vpop.f32.mrf.mxu0
      %v669 = vadd.f32 %v625, %v668
      %v670 = vpop.f32.mrf.mxu0
      %v671 = vadd.f32 %v627, %v670
      %672 = vmatmul.bf16.gmra.mxu0 %v644
      %v673 = vpop.f32.mrf.mxu0
      %v674 = vadd.f32 %v630, %v673
      %v675 = vpop.f32.mrf.mxu0
      %v676 = vadd.f32 %v632, %v675
      %677 = vdwg.mxu0
      %v678 = vld [vmem:[%s261] sm:$0xe]
      %v679 = vld [vmem:[%s261 + $0x8] sm:$0xe]
      %v680 = vld [vmem:[%s261 + $0x10] sm:$0xe]
      %v681 = vld [vmem:[%s261 + $0x18] sm:$0xe]
      %v682 = vld [vmem:[%s261 + $0x20] sm:$0xe]
      %v683 = vld [vmem:[%s261 + $0x28] sm:$0xe]
      %v684 = vld [vmem:[%s261 + $0x30] sm:$0xe]
      %v685 = vld [vmem:[%s261 + $0x38] sm:$0xe]
      %v686 = vunpack.c.l.bf16 %v678
      %v687 = vunpack.c.l.bf16 %v679
      %v688 = vunpack.c.l.bf16 %v680
      %v689 = vunpack.c.l.bf16 %v681
      %v690 = vunpack.c.l.bf16 %v682
      %v691 = vunpack.c.l.bf16 %v683
      %v692 = vunpack.c.l.bf16 %v684
      %v693 = vunpack.c.l.bf16 %v685
      %v694 = vld [vmem:[%s1 + $0x2] sm:$0xff]
      %v695 = vld [vmem:[%s1 + $0x12] sm:$0xff]
      %v696 = vld [vmem:[%s1 + $0x22] sm:$0xff]
      %v697 = vld [vmem:[%s1 + $0x32] sm:$0xff]
      %v698 = vld [vmem:[%s1 + $0x42] sm:$0xff]
      %v699 = vld [vmem:[%s1 + $0x52] sm:$0xff]
      %v700 = vld [vmem:[%s1 + $0x62] sm:$0xff]
      %v701 = vld [vmem:[%s1 + $0x72] sm:$0xff]
      %v702 = vmul.f32 %v686, %v300
      %v703 = vmul.f32 %v687, %v300
      %v704 = vmul.f32 %v688, %v300
      %v705 = vmul.f32 %v689, %v300
      %v706 = vmul.f32 %v690, %v300
      %v707 = vmul.f32 %v691, %v300
      %v708 = vmul.f32 %v692, %v300
      %v709 = vmul.f32 %v693, %v300
      %v710 = vadd.f32 %v702, %v311
      %v711 = vadd.f32 %v703, %v311
      %v712 = vadd.f32 %v704, %v311
      %v713 = vadd.f32 %v705, %v311
      %v714 = vadd.f32 %v706, %v311
      %v715 = vadd.f32 %v707, %v311
      %v716 = vadd.f32 %v708, %v311
      %v717 = vadd.f32 %v709, %v311
      %v718 = vmax.f32 %v710, 0.0
      %v719 = vmax.f32 %v711, 0.0
      %v720 = vmax.f32 %v712, 0.0
      %v721 = vmax.f32 %v713, 0.0
      %v722 = vmax.f32 %v714, 0.0
      %v723 = vmax.f32 %v715, 0.0
      %v724 = vmax.f32 %v716, 0.0
      %v725 = vmax.f32 %v717, 0.0
      %727 = vset.pattern.permute.xlu0 0
      %728 = vperm.xlu0 %727, %v694
      %v729 = vpop.permute.xlu0 %728
      %731 = vset.pattern.permute.xlu0 0
      %732 = vperm.xlu0 %731, %v695
      %v733 = vpop.permute.xlu0 %732
      %735 = vset.pattern.permute.xlu0 0
      %736 = vperm.xlu0 %735, %v696
      %v737 = vpop.permute.xlu0 %736
      %739 = vset.pattern.permute.xlu0 0
      %740 = vperm.xlu0 %739, %v697
      %v741 = vpop.permute.xlu0 %740
      %743 = vset.pattern.permute.xlu0 0
      %744 = vperm.xlu0 %743, %v698
      %v745 = vpop.permute.xlu0 %744
      %747 = vset.pattern.permute.xlu0 0
      %748 = vperm.xlu0 %747, %v699
      %v749 = vpop.permute.xlu0 %748
      %751 = vset.pattern.permute.xlu0 0
      %752 = vperm.xlu0 %751, %v700
      %v753 = vpop.permute.xlu0 %752
      %755 = vset.pattern.permute.xlu0 0
      %756 = vperm.xlu0 %755, %v701
      %v757 = vpop.permute.xlu0 %756
      %v758 = vrot.slane %v729, 6
      %v759 = vrot.slane %v733, 6
      %v760 = vrot.slane %v737, 6
      %v761 = vrot.slane %v741, 6
      %v762 = vrot.slane %v745, 6
      %v763 = vrot.slane %v749, 6
      %v764 = vrot.slane %v753, 6
      %v765 = vrot.slane %v757, 6
      %v774 = vmul.f32 %v718, %v758
      %v775 = vmul.f32 %v455, %v758
      %v776 = vmul.f32 %v719, %v759
      %v777 = vmul.f32 %v457, %v759
      %v778 = vmul.f32 %v720, %v760
      %v779 = vmul.f32 %v459, %v760
      %v780 = vmul.f32 %v721, %v761
      %v781 = vmul.f32 %v461, %v761
      %v782 = vmul.f32 %v722, %v762
      %v783 = vmul.f32 %v463, %v762
      %v784 = vmul.f32 %v723, %v763
      %v785 = vmul.f32 %v465, %v763
      %v786 = vmul.f32 %v724, %v764
      %v787 = vmul.f32 %v467, %v764
      %v788 = vmul.f32 %v725, %v765
      %v789 = vmul.f32 %v469, %v765
      %vm806 = vcmask 1045504
      %v807 = vrot.slane %v774, 2
      %v808 = vrot.slane %v775, 2
      %v809 = vsel %vm806, %v807, %v808
      %v810 = vrot.slane %v776, 2
      %v811 = vrot.slane %v777, 2
      %v812 = vsel %vm806, %v810, %v811
      %v813 = vrot.slane %v778, 2
      %v814 = vrot.slane %v779, 2
      %v815 = vsel %vm806, %v813, %v814
      %v816 = vrot.slane %v780, 2
      %v817 = vrot.slane %v781, 2
      %v818 = vsel %vm806, %v816, %v817
      %v819 = vrot.slane %v782, 2
      %v820 = vrot.slane %v783, 2
      %v821 = vsel %vm806, %v819, %v820
      %v822 = vrot.slane %v784, 2
      %v823 = vrot.slane %v785, 2
      %v824 = vsel %vm806, %v822, %v823
      %v825 = vrot.slane %v786, 2
      %v826 = vrot.slane %v787, 2
      %v827 = vsel %vm806, %v825, %v826
      %v828 = vrot.slane %v788, 2
      %v829 = vrot.slane %v789, 2
      %v830 = vsel %vm806, %v828, %v829
      %v839 = vpack.c.bf16 %v812, %v809
      %v840 = vpack.c.bf16 %v818, %v815
      %v841 = vpack.c.bf16 %v824, %v821
      %v842 = vpack.c.bf16 %v830, %v827
      %v843 = vld [vmem:[%s4 + $0x8] sm:$0xf]
      %v845 = vsel %vm588, %v839, 0
      %v848 = vsel %vm588, %v840, 0
      %v851 = vsel %vm588, %v841, 0
      %v854 = vsel %vm588, %v842, 0
      %v857 = vsel %vm601, %v843, 0
      %859 = vmatpush.bf16.msra.mxu0 0
      %860 = vmatpush.bf16.msra.mxu0 0
      %861 = vmatpush.bf16.msra.mxu0 0
      %862 = vmatpush.bf16.msra.mxu0 0
      %863 = vmatpush.bf16.msra.mxu0 0
      %864 = vmatpush.bf16.msra.mxu0 0
      %865 = vmatpush.bf16.msra.mxu0 0
      %866 = vmatpush.bf16.msra.mxu0 %v857
      %867 = vmatmul.bf16.gmra.mxu0 %v845
      %v868 = vpop.f32.mrf.mxu0
      %v869 = vadd.f32 0.0, %v868
      %v870 = vpop.f32.mrf.mxu0
      %v871 = vadd.f32 0.0, %v870
      %872 = vmatmul.bf16.gmra.mxu0 %v848
      %v873 = vpop.f32.mrf.mxu0
      %v874 = vadd.f32 0.0, %v873
      %v875 = vpop.f32.mrf.mxu0
      %v876 = vadd.f32 0.0, %v875
      %877 = vmatmul.bf16.gmra.mxu0 %v851
      %v878 = vpop.f32.mrf.mxu0
      %v879 = vadd.f32 0.0, %v878
      %v880 = vpop.f32.mrf.mxu0
      %v881 = vadd.f32 0.0, %v880
      %882 = vmatmul.bf16.gmra.mxu0 %v854
      %v883 = vpop.f32.mrf.mxu0
      %v884 = vadd.f32 0.0, %v883
      %v885 = vpop.f32.mrf.mxu0
      %v886 = vadd.f32 0.0, %v885
      %887 = vdwg.mxu0
      %v888 = vadd.f32 %v659, %v869
      %v889 = vadd.f32 %v661, %v871
      %v890 = vadd.f32 %v664, %v874
      %v891 = vadd.f32 %v666, %v876
      %v892 = vadd.f32 %v669, %v879
      %v893 = vadd.f32 %v671, %v881
      %v894 = vadd.f32 %v674, %v884
      %v895 = vadd.f32 %v676, %v886
      %s896 = scalar_lea.vmem %s261, 8
      %v897 = vld [vmem:[%s896] sm:$0xf]
      %v898 = vld [vmem:[%s896 + $0x8] sm:$0xf]
      %v899 = vld [vmem:[%s896 + $0x10] sm:$0xf]
      %v900 = vld [vmem:[%s896 + $0x18] sm:$0xf]
      %v901 = vld [vmem:[%s896 + $0x20] sm:$0xf]
      %v902 = vld [vmem:[%s896 + $0x28] sm:$0xf]
      %v903 = vld [vmem:[%s896 + $0x30] sm:$0xf]
      %v904 = vld [vmem:[%s896 + $0x38] sm:$0xf]
      %v905 = vunpack.c.l.bf16 %v897
      %v906 = vunpack.c.l.bf16 %v898
      %v907 = vunpack.c.l.bf16 %v899
      %v908 = vunpack.c.l.bf16 %v900
      %v909 = vunpack.c.l.bf16 %v901
      %v910 = vunpack.c.l.bf16 %v902
      %v911 = vunpack.c.l.bf16 %v903
      %v912 = vunpack.c.l.bf16 %v904
      %s913 = scalar_lea.vmem %s1, 16
      %v914 = vld [vmem:[%s913] sm:$0xff]
      %v915 = vld [vmem:[%s913 + $0x10] sm:$0xff]
      %v916 = vld [vmem:[%s913 + $0x20] sm:$0xff]
      %v917 = vld [vmem:[%s913 + $0x30] sm:$0xff]
      %v918 = vld [vmem:[%s913 + $0x40] sm:$0xff]
      %v919 = vld [vmem:[%s913 + $0x50] sm:$0xff]
      %v920 = vld [vmem:[%s913 + $0x60] sm:$0xff]
      %v921 = vld [vmem:[%s913 + $0x70] sm:$0xff]
      %v922 = vmul.f32 %v905, %v300
      %v923 = vmul.f32 %v906, %v300
      %v924 = vmul.f32 %v907, %v300
      %v925 = vmul.f32 %v908, %v300
      %v926 = vmul.f32 %v909, %v300
      %v927 = vmul.f32 %v910, %v300
      %v928 = vmul.f32 %v911, %v300
      %v929 = vmul.f32 %v912, %v300
      %v930 = vadd.f32 %v922, %v311
      %v931 = vadd.f32 %v923, %v311
      %v932 = vadd.f32 %v924, %v311
      %v933 = vadd.f32 %v925, %v311
      %v934 = vadd.f32 %v926, %v311
      %v935 = vadd.f32 %v927, %v311
      %v936 = vadd.f32 %v928, %v311
      %v937 = vadd.f32 %v929, %v311
      %v938 = vmax.f32 %v930, 0.0
      %v939 = vmax.f32 %v931, 0.0
      %v940 = vmax.f32 %v932, 0.0
      %v941 = vmax.f32 %v933, 0.0
      %v942 = vmax.f32 %v934, 0.0
      %v943 = vmax.f32 %v935, 0.0
      %v944 = vmax.f32 %v936, 0.0
      %v945 = vmax.f32 %v937, 0.0
      %947 = vset.pattern.permute.xlu0 0
      %948 = vperm.xlu0 %947, %v914
      %v949 = vpop.permute.xlu0 %948
      %952 = vset.pattern.permute.xlu0 0
      %953 = vperm.xlu0 %952, %v915
      %v954 = vpop.permute.xlu0 %953
      %957 = vset.pattern.permute.xlu0 0
      %958 = vperm.xlu0 %957, %v916
      %v959 = vpop.permute.xlu0 %958
      %962 = vset.pattern.permute.xlu0 0
      %963 = vperm.xlu0 %962, %v917
      %v964 = vpop.permute.xlu0 %963
      %967 = vset.pattern.permute.xlu0 0
      %968 = vperm.xlu0 %967, %v918
      %v969 = vpop.permute.xlu0 %968
      %972 = vset.pattern.permute.xlu0 0
      %973 = vperm.xlu0 %972, %v919
      %v974 = vpop.permute.xlu0 %973
      %977 = vset.pattern.permute.xlu0 0
      %978 = vperm.xlu0 %977, %v920
      %v979 = vpop.permute.xlu0 %978
      %982 = vset.pattern.permute.xlu0 0
      %983 = vperm.xlu0 %982, %v921
      %v984 = vpop.permute.xlu0 %983
      %v986 = vmul.f32 %v938, %v949
      %v987 = vmul.f32 %v939, %v954
      %v988 = vmul.f32 %v940, %v959
      %v989 = vmul.f32 %v941, %v964
      %v990 = vmul.f32 %v942, %v969
      %v991 = vmul.f32 %v943, %v974
      %v992 = vmul.f32 %v944, %v979
      %v993 = vmul.f32 %v945, %v984
      %v994 = vpack.c.bf16 %v987, %v986
      %v995 = vpack.c.bf16 %v989, %v988
      %v996 = vpack.c.bf16 %v991, %v990
      %v997 = vpack.c.bf16 %v993, %v992
      %v998 = vld [vmem:[%s4 + $0xc] sm:$0xf]
      %v1000 = vsel %vm588, %v994, 0
      %v1003 = vsel %vm588, %v995, 0
      %v1006 = vsel %vm588, %v996, 0
      %v1009 = vsel %vm588, %v997, 0
      %v1012 = vsel %vm601, %v998, 0
      %1014 = vmatpush.bf16.msra.mxu0 0
      %1015 = vmatpush.bf16.msra.mxu0 0
      %1016 = vmatpush.bf16.msra.mxu0 0
      %1017 = vmatpush.bf16.msra.mxu0 0
      %1018 = vmatpush.bf16.msra.mxu0 0
      %1019 = vmatpush.bf16.msra.mxu0 0
      %1020 = vmatpush.bf16.msra.mxu0 0
      %1021 = vmatpush.bf16.msra.mxu0 %v1012
      %1022 = vmatmul.bf16.gmra.mxu0 %v1000
      %v1023 = vpop.f32.mrf.mxu0
      %v1024 = vadd.f32 0.0, %v1023
      %v1025 = vpop.f32.mrf.mxu0
      %v1026 = vadd.f32 0.0, %v1025
      %1027 = vmatmul.bf16.gmra.mxu0 %v1003
      %v1028 = vpop.f32.mrf.mxu0
      %v1029 = vadd.f32 0.0, %v1028
      %v1030 = vpop.f32.mrf.mxu0
      %v1031 = vadd.f32 0.0, %v1030
      %1032 = vmatmul.bf16.gmra.mxu0 %v1006
      %v1033 = vpop.f32.mrf.mxu0
      %v1034 = vadd.f32 0.0, %v1033
      %v1035 = vpop.f32.mrf.mxu0
      %v1036 = vadd.f32 0.0, %v1035
      %1037 = vmatmul.bf16.gmra.mxu0 %v1009
      %v1038 = vpop.f32.mrf.mxu0
      %v1039 = vadd.f32 0.0, %v1038
      %v1040 = vpop.f32.mrf.mxu0
      %v1041 = vadd.f32 0.0, %v1040
      %1042 = vdwg.mxu0
      %v1043 = vadd.f32 %v888, %v1024
      %v1044 = vadd.f32 %v889, %v1026
      %v1045 = vadd.f32 %v890, %v1029
      %v1046 = vadd.f32 %v891, %v1031
      %v1047 = vadd.f32 %v892, %v1034
      %v1048 = vadd.f32 %v893, %v1036
      %v1049 = vadd.f32 %v894, %v1039
      %v1050 = vadd.f32 %v895, %v1041
      %v1051 = vld [vmem:[%s896] sm:$0xf]
      %v1052 = vld [vmem:[%s896 + $0x4] sm:$0x1]
      %v1053 = vld [vmem:[%s896 + $0x8] sm:$0xf]
      %v1054 = vld [vmem:[%s896 + $0xc] sm:$0x1]
      %v1055 = vld [vmem:[%s896 + $0x10] sm:$0xf]
      %v1056 = vld [vmem:[%s896 + $0x14] sm:$0x1]
      %v1057 = vld [vmem:[%s896 + $0x18] sm:$0xf]
      %v1058 = vld [vmem:[%s896 + $0x1c] sm:$0x1]
      %v1059 = vld [vmem:[%s896 + $0x20] sm:$0xf]
      %v1060 = vld [vmem:[%s896 + $0x24] sm:$0x1]
      %v1061 = vld [vmem:[%s896 + $0x28] sm:$0xf]
      %v1062 = vld [vmem:[%s896 + $0x2c] sm:$0x1]
      %v1063 = vld [vmem:[%s896 + $0x30] sm:$0xf]
      %v1064 = vld [vmem:[%s896 + $0x34] sm:$0x1]
      %v1065 = vld [vmem:[%s896 + $0x38] sm:$0xf]
      %v1066 = vld [vmem:[%s896 + $0x3c] sm:$0x1]
      %v1067 = vunpack.c.l.bf16 %v1051
      %v1068 = vunpack.c.l.bf16 %v1052
      %v1069 = vunpack.c.l.bf16 %v1053
      %v1070 = vunpack.c.l.bf16 %v1054
      %v1071 = vunpack.c.l.bf16 %v1055
      %v1072 = vunpack.c.l.bf16 %v1056
      %v1073 = vunpack.c.l.bf16 %v1057
      %v1074 = vunpack.c.l.bf16 %v1058
      %v1075 = vunpack.c.l.bf16 %v1059
      %v1076 = vunpack.c.l.bf16 %v1060
      %v1077 = vunpack.c.l.bf16 %v1061
      %v1078 = vunpack.c.l.bf16 %v1062
      %v1079 = vunpack.c.l.bf16 %v1063
      %v1080 = vunpack.c.l.bf16 %v1064
      %v1081 = vunpack.c.l.bf16 %v1065
      %v1082 = vunpack.c.l.bf16 %v1066
      %v1083 = vld [vmem:[%s913 + $0x1] sm:$0xff]
      %v1084 = vld [vmem:[%s913 + $0x11] sm:$0xff]
      %v1085 = vld [vmem:[%s913 + $0x21] sm:$0xff]
      %v1086 = vld [vmem:[%s913 + $0x31] sm:$0xff]
      %v1087 = vld [vmem:[%s913 + $0x41] sm:$0xff]
      %v1088 = vld [vmem:[%s913 + $0x51] sm:$0xff]
      %v1089 = vld [vmem:[%s913 + $0x61] sm:$0xff]
      %v1090 = vld [vmem:[%s913 + $0x71] sm:$0xff]
      %v1091 = vmul.f32 %v1067, %v300
      %v1092 = vmul.f32 %v1068, %v300
      %v1093 = vmul.f32 %v1069, %v300
      %v1094 = vmul.f32 %v1070, %v300
      %v1095 = vmul.f32 %v1071, %v300
      %v1096 = vmul.f32 %v1072, %v300
      %v1097 = vmul.f32 %v1073, %v300
      %v1098 = vmul.f32 %v1074, %v300
      %v1099 = vmul.f32 %v1075, %v300
      %v1100 = vmul.f32 %v1076, %v300
      %v1101 = vmul.f32 %v1077, %v300
      %v1102 = vmul.f32 %v1078, %v300
      %v1103 = vmul.f32 %v1079, %v300
      %v1104 = vmul.f32 %v1080, %v300
      %v1105 = vmul.f32 %v1081, %v300
      %v1106 = vmul.f32 %v1082, %v300
      %v1107 = vadd.f32 %v1091, %v311
      %v1108 = vadd.f32 %v1092, %v311
      %v1109 = vadd.f32 %v1093, %v311
      %v1110 = vadd.f32 %v1094, %v311
      %v1111 = vadd.f32 %v1095, %v311
      %v1112 = vadd.f32 %v1096, %v311
      %v1113 = vadd.f32 %v1097, %v311
      %v1114 = vadd.f32 %v1098, %v311
      %v1115 = vadd.f32 %v1099, %v311
      %v1116 = vadd.f32 %v1100, %v311
      %v1117 = vadd.f32 %v1101, %v311
      %v1118 = vadd.f32 %v1102, %v311
      %v1119 = vadd.f32 %v1103, %v311
      %v1120 = vadd.f32 %v1104, %v311
      %v1121 = vadd.f32 %v1105, %v311
      %v1122 = vadd.f32 %v1106, %v311
      %v1123 = vmax.f32 %v1107, 0.0
      %v1124 = vmax.f32 %v1108, 0.0
      %v1125 = vmax.f32 %v1109, 0.0
      %v1126 = vmax.f32 %v1110, 0.0
      %v1127 = vmax.f32 %v1111, 0.0
      %v1128 = vmax.f32 %v1112, 0.0
      %v1129 = vmax.f32 %v1113, 0.0
      %v1130 = vmax.f32 %v1114, 0.0
      %v1131 = vmax.f32 %v1115, 0.0
      %v1132 = vmax.f32 %v1116, 0.0
      %v1133 = vmax.f32 %v1117, 0.0
      %v1134 = vmax.f32 %v1118, 0.0
      %v1135 = vmax.f32 %v1119, 0.0
      %v1136 = vmax.f32 %v1120, 0.0
      %v1137 = vmax.f32 %v1121, 0.0
      %v1138 = vmax.f32 %v1122, 0.0
      %1140 = vset.pattern.permute.xlu0 0
      %1141 = vperm.xlu0 %1140, %v1083
      %v1142 = vpop.permute.xlu0 %1141
      %1144 = vset.pattern.permute.xlu0 0
      %1145 = vperm.xlu0 %1144, %v1084
      %v1146 = vpop.permute.xlu0 %1145
      %1148 = vset.pattern.permute.xlu0 0
      %1149 = vperm.xlu0 %1148, %v1085
      %v1150 = vpop.permute.xlu0 %1149
      %1152 = vset.pattern.permute.xlu0 0
      %1153 = vperm.xlu0 %1152, %v1086
      %v1154 = vpop.permute.xlu0 %1153
      %1156 = vset.pattern.permute.xlu0 0
      %1157 = vperm.xlu0 %1156, %v1087
      %v1158 = vpop.permute.xlu0 %1157
      %1160 = vset.pattern.permute.xlu0 0
      %1161 = vperm.xlu0 %1160, %v1088
      %v1162 = vpop.permute.xlu0 %1161
      %1164 = vset.pattern.permute.xlu0 0
      %1165 = vperm.xlu0 %1164, %v1089
      %v1166 = vpop.permute.xlu0 %1165
      %1168 = vset.pattern.permute.xlu0 0
      %1169 = vperm.xlu0 %1168, %v1090
      %v1170 = vpop.permute.xlu0 %1169
      %v1171 = vrot.slane %v1142, 7
      %v1172 = vrot.slane %v1146, 7
      %v1173 = vrot.slane %v1150, 7
      %v1174 = vrot.slane %v1154, 7
      %v1175 = vrot.slane %v1158, 7
      %v1176 = vrot.slane %v1162, 7
      %v1177 = vrot.slane %v1166, 7
      %v1178 = vrot.slane %v1170, 7
      %v1187 = vmul.f32 %v1123, %v1171
      %v1188 = vmul.f32 %v1124, %v1171
      %v1189 = vmul.f32 %v1125, %v1172
      %v1190 = vmul.f32 %v1126, %v1172
      %v1191 = vmul.f32 %v1127, %v1173
      %v1192 = vmul.f32 %v1128, %v1173
      %v1193 = vmul.f32 %v1129, %v1174
      %v1194 = vmul.f32 %v1130, %v1174
      %v1195 = vmul.f32 %v1131, %v1175
      %v1196 = vmul.f32 %v1132, %v1175
      %v1197 = vmul.f32 %v1133, %v1176
      %v1198 = vmul.f32 %v1134, %v1176
      %v1199 = vmul.f32 %v1135, %v1177
      %v1200 = vmul.f32 %v1136, %v1177
      %v1201 = vmul.f32 %v1137, %v1178
      %v1202 = vmul.f32 %v1138, %v1178
      %v1219 = vrot.slane %v1187, 1
      %v1220 = vrot.slane %v1188, 1
      %v1221 = vsel %vm550, %v1219, %v1220
      %v1222 = vrot.slane %v1189, 1
      %v1223 = vrot.slane %v1190, 1
      %v1224 = vsel %vm550, %v1222, %v1223
      %v1225 = vrot.slane %v1191, 1
      %v1226 = vrot.slane %v1192, 1
      %v1227 = vsel %vm550, %v1225, %v1226
      %v1228 = vrot.slane %v1193, 1
      %v1229 = vrot.slane %v1194, 1
      %v1230 = vsel %vm550, %v1228, %v1229
      %v1231 = vrot.slane %v1195, 1
      %v1232 = vrot.slane %v1196, 1
      %v1233 = vsel %vm550, %v1231, %v1232
      %v1234 = vrot.slane %v1197, 1
      %v1235 = vrot.slane %v1198, 1
      %v1236 = vsel %vm550, %v1234, %v1235
      %v1237 = vrot.slane %v1199, 1
      %v1238 = vrot.slane %v1200, 1
      %v1239 = vsel %vm550, %v1237, %v1238
      %v1240 = vrot.slane %v1201, 1
      %v1241 = vrot.slane %v1202, 1
      %v1242 = vsel %vm550, %v1240, %v1241
      %v1251 = vpack.c.bf16 %v1224, %v1221
      %v1252 = vpack.c.bf16 %v1230, %v1227
      %v1253 = vpack.c.bf16 %v1236, %v1233
      %v1254 = vpack.c.bf16 %v1242, %v1239
      %v1255 = vld [vmem:[%s4 + $0x10] sm:$0xf]
      %v1257 = vsel %vm588, %v1251, 0
      %v1260 = vsel %vm588, %v1252, 0
      %v1263 = vsel %vm588, %v1253, 0
      %v1266 = vsel %vm588, %v1254, 0
      %v1269 = vsel %vm601, %v1255, 0
      %1271 = vmatpush.bf16.msra.mxu0 0
      %1272 = vmatpush.bf16.msra.mxu0 0
      %1273 = vmatpush.bf16.msra.mxu0 0
      %1274 = vmatpush.bf16.msra.mxu0 0
      %1275 = vmatpush.bf16.msra.mxu0 0
      %1276 = vmatpush.bf16.msra.mxu0 0
      %1277 = vmatpush.bf16.msra.mxu0 0
      %1278 = vmatpush.bf16.msra.mxu0 %v1269
      %1279 = vmatmul.bf16.gmra.mxu0 %v1257
      %v1280 = vpop.f32.mrf.mxu0
      %v1281 = vadd.f32 0.0, %v1280
      %v1282 = vpop.f32.mrf.mxu0
      %v1283 = vadd.f32 0.0, %v1282
      %1284 = vmatmul.bf16.gmra.mxu0 %v1260
      %v1285 = vpop.f32.mrf.mxu0
      %v1286 = vadd.f32 0.0, %v1285
      %v1287 = vpop.f32.mrf.mxu0
      %v1288 = vadd.f32 0.0, %v1287
      %1289 = vmatmul.bf16.gmra.mxu0 %v1263
      %v1290 = vpop.f32.mrf.mxu0
      %v1291 = vadd.f32 0.0, %v1290
      %v1292 = vpop.f32.mrf.mxu0
      %v1293 = vadd.f32 0.0, %v1292
      %1294 = vmatmul.bf16.gmra.mxu0 %v1266
      %v1295 = vpop.f32.mrf.mxu0
      %v1296 = vadd.f32 0.0, %v1295
      %v1297 = vpop.f32.mrf.mxu0
      %v1298 = vadd.f32 0.0, %v1297
      %1299 = vdwg.mxu0
      %v1300 = vadd.f32 %v1043, %v1281
      %v1301 = vadd.f32 %v1044, %v1283
      %v1302 = vadd.f32 %v1045, %v1286
      %v1303 = vadd.f32 %v1046, %v1288
      %v1304 = vadd.f32 %v1047, %v1291
      %v1305 = vadd.f32 %v1048, %v1293
      %v1306 = vadd.f32 %v1049, %v1296
      %v1307 = vadd.f32 %v1050, %v1298
      %v1308 = vld [vmem:[%s896] sm:$0xe]
      %v1309 = vld [vmem:[%s896 + $0x8] sm:$0xe]
      %v1310 = vld [vmem:[%s896 + $0x10] sm:$0xe]
      %v1311 = vld [vmem:[%s896 + $0x18] sm:$0xe]
      %v1312 = vld [vmem:[%s896 + $0x20] sm:$0xe]
      %v1313 = vld [vmem:[%s896 + $0x28] sm:$0xe]
      %v1314 = vld [vmem:[%s896 + $0x30] sm:$0xe]
      %v1315 = vld [vmem:[%s896 + $0x38] sm:$0xe]
      %v1316 = vunpack.c.l.bf16 %v1308
      %v1317 = vunpack.c.l.bf16 %v1309
      %v1318 = vunpack.c.l.bf16 %v1310
      %v1319 = vunpack.c.l.bf16 %v1311
      %v1320 = vunpack.c.l.bf16 %v1312
      %v1321 = vunpack.c.l.bf16 %v1313
      %v1322 = vunpack.c.l.bf16 %v1314
      %v1323 = vunpack.c.l.bf16 %v1315
      %v1324 = vld [vmem:[%s913 + $0x2] sm:$0xff]
      %v1325 = vld [vmem:[%s913 + $0x12] sm:$0xff]
      %v1326 = vld [vmem:[%s913 + $0x22] sm:$0xff]
      %v1327 = vld [vmem:[%s913 + $0x32] sm:$0xff]
      %v1328 = vld [vmem:[%s913 + $0x42] sm:$0xff]
      %v1329 = vld [vmem:[%s913 + $0x52] sm:$0xff]
      %v1330 = vld [vmem:[%s913 + $0x62] sm:$0xff]
      %v1331 = vld [vmem:[%s913 + $0x72] sm:$0xff]
      %v1332 = vmul.f32 %v1316, %v300
      %v1333 = vmul.f32 %v1317, %v300
      %v1334 = vmul.f32 %v1318, %v300
      %v1335 = vmul.f32 %v1319, %v300
      %v1336 = vmul.f32 %v1320, %v300
      %v1337 = vmul.f32 %v1321, %v300
      %v1338 = vmul.f32 %v1322, %v300
      %v1339 = vmul.f32 %v1323, %v300
      %v1340 = vadd.f32 %v1332, %v311
      %v1341 = vadd.f32 %v1333, %v311
      %v1342 = vadd.f32 %v1334, %v311
      %v1343 = vadd.f32 %v1335, %v311
      %v1344 = vadd.f32 %v1336, %v311
      %v1345 = vadd.f32 %v1337, %v311
      %v1346 = vadd.f32 %v1338, %v311
      %v1347 = vadd.f32 %v1339, %v311
      %v1348 = vmax.f32 %v1340, 0.0
      %v1349 = vmax.f32 %v1341, 0.0
      %v1350 = vmax.f32 %v1342, 0.0
      %v1351 = vmax.f32 %v1343, 0.0
      %v1352 = vmax.f32 %v1344, 0.0
      %v1353 = vmax.f32 %v1345, 0.0
      %v1354 = vmax.f32 %v1346, 0.0
      %v1355 = vmax.f32 %v1347, 0.0
      %1357 = vset.pattern.permute.xlu0 0
      %1358 = vperm.xlu0 %1357, %v1324
      %v1359 = vpop.permute.xlu0 %1358
      %1361 = vset.pattern.permute.xlu0 0
      %1362 = vperm.xlu0 %1361, %v1325
      %v1363 = vpop.permute.xlu0 %1362
      %1365 = vset.pattern.permute.xlu0 0
      %1366 = vperm.xlu0 %1365, %v1326
      %v1367 = vpop.permute.xlu0 %1366
      %1369 = vset.pattern.permute.xlu0 0
      %1370 = vperm.xlu0 %1369, %v1327
      %v1371 = vpop.permute.xlu0 %1370
      %1373 = vset.pattern.permute.xlu0 0
      %1374 = vperm.xlu0 %1373, %v1328
      %v1375 = vpop.permute.xlu0 %1374
      %1377 = vset.pattern.permute.xlu0 0
      %1378 = vperm.xlu0 %1377, %v1329
      %v1379 = vpop.permute.xlu0 %1378
      %1381 = vset.pattern.permute.xlu0 0
      %1382 = vperm.xlu0 %1381, %v1330
      %v1383 = vpop.permute.xlu0 %1382
      %1385 = vset.pattern.permute.xlu0 0
      %1386 = vperm.xlu0 %1385, %v1331
      %v1387 = vpop.permute.xlu0 %1386
      %v1388 = vrot.slane %v1359, 6
      %v1389 = vrot.slane %v1363, 6
      %v1390 = vrot.slane %v1367, 6
      %v1391 = vrot.slane %v1371, 6
      %v1392 = vrot.slane %v1375, 6
      %v1393 = vrot.slane %v1379, 6
      %v1394 = vrot.slane %v1383, 6
      %v1395 = vrot.slane %v1387, 6
      %v1404 = vmul.f32 %v1348, %v1388
      %v1405 = vmul.f32 %v1124, %v1388
      %v1406 = vmul.f32 %v1349, %v1389
      %v1407 = vmul.f32 %v1126, %v1389
      %v1408 = vmul.f32 %v1350, %v1390
      %v1409 = vmul.f32 %v1128, %v1390
      %v1410 = vmul.f32 %v1351, %v1391
      %v1411 = vmul.f32 %v1130, %v1391
      %v1412 = vmul.f32 %v1352, %v1392
      %v1413 = vmul.f32 %v1132, %v1392
      %v1414 = vmul.f32 %v1353, %v1393
      %v1415 = vmul.f32 %v1134, %v1393
      %v1416 = vmul.f32 %v1354, %v1394
      %v1417 = vmul.f32 %v1136, %v1394
      %v1418 = vmul.f32 %v1355, %v1395
      %v1419 = vmul.f32 %v1138, %v1395
      %v1436 = vrot.slane %v1404, 2
      %v1437 = vrot.slane %v1405, 2
      %v1438 = vsel %vm806, %v1436, %v1437
      %v1439 = vrot.slane %v1406, 2
      %v1440 = vrot.slane %v1407, 2
      %v1441 = vsel %vm806, %v1439, %v1440
      %v1442 = vrot.slane %v1408, 2
      %v1443 = vrot.slane %v1409, 2
      %v1444 = vsel %vm806, %v1442, %v1443
      %v1445 = vrot.slane %v1410, 2
      %v1446 = vrot.slane %v1411, 2
      %v1447 = vsel %vm806, %v1445, %v1446
      %v1448 = vrot.slane %v1412, 2
      %v1449 = vrot.slane %v1413, 2
      %v1450 = vsel %vm806, %v1448, %v1449
      %v1451 = vrot.slane %v1414, 2
      %v1452 = vrot.slane %v1415, 2
      %v1453 = vsel %vm806, %v1451, %v1452
      %v1454 = vrot.slane %v1416, 2
      %v1455 = vrot.slane %v1417, 2
      %v1456 = vsel %vm806, %v1454, %v1455
      %v1457 = vrot.slane %v1418, 2
      %v1458 = vrot.slane %v1419, 2
      %v1459 = vsel %vm806, %v1457, %v1458
      %v1468 = vpack.c.bf16 %v1441, %v1438
      %v1469 = vpack.c.bf16 %v1447, %v1444
      %v1470 = vpack.c.bf16 %v1453, %v1450
      %v1471 = vpack.c.bf16 %v1459, %v1456
      %v1472 = vld [vmem:[%s4 + $0x14] sm:$0xf]
      %v1474 = vsel %vm588, %v1468, 0
      %v1477 = vsel %vm588, %v1469, 0
      %v1480 = vsel %vm588, %v1470, 0
      %v1483 = vsel %vm588, %v1471, 0
      %v1486 = vsel %vm601, %v1472, 0
      %1488 = vmatpush.bf16.msra.mxu0 0
      %1489 = vmatpush.bf16.msra.mxu0 0
      %1490 = vmatpush.bf16.msra.mxu0 0
      %1491 = vmatpush.bf16.msra.mxu0 0
      %1492 = vmatpush.bf16.msra.mxu0 0
      %1493 = vmatpush.bf16.msra.mxu0 0
      %1494 = vmatpush.bf16.msra.mxu0 0
      %1495 = vmatpush.bf16.msra.mxu0 %v1486
      %1496 = vmatmul.bf16.gmra.mxu0 %v1474
      %v1497 = vpop.f32.mrf.mxu0
      %v1498 = vadd.f32 0.0, %v1497
      %v1499 = vpop.f32.mrf.mxu0
      %v1500 = vadd.f32 0.0, %v1499
      %1501 = vmatmul.bf16.gmra.mxu0 %v1477
      %v1502 = vpop.f32.mrf.mxu0
      %v1503 = vadd.f32 0.0, %v1502
      %v1504 = vpop.f32.mrf.mxu0
      %v1505 = vadd.f32 0.0, %v1504
      %1506 = vmatmul.bf16.gmra.mxu0 %v1480
      %v1507 = vpop.f32.mrf.mxu0
      %v1508 = vadd.f32 0.0, %v1507
      %v1509 = vpop.f32.mrf.mxu0
      %v1510 = vadd.f32 0.0, %v1509
      %1511 = vmatmul.bf16.gmra.mxu0 %v1483
      %v1512 = vpop.f32.mrf.mxu0
      %v1513 = vadd.f32 0.0, %v1512
      %v1514 = vpop.f32.mrf.mxu0
      %v1515 = vadd.f32 0.0, %v1514
      %1516 = vdwg.mxu0
      %v1517 = vadd.f32 %v1300, %v1498
      %v1518 = vadd.f32 %v1301, %v1500
      %v1519 = vadd.f32 %v1302, %v1503
      %v1520 = vadd.f32 %v1303, %v1505
      %v1521 = vadd.f32 %v1304, %v1508
      %v1522 = vadd.f32 %v1305, %v1510
      %v1523 = vadd.f32 %v1306, %v1513
      %v1524 = vadd.f32 %v1307, %v1515
      %s1525 = scalar_lea.vmem %s261, 16
      %v1526 = vld [vmem:[%s1525] sm:$0xf]
      %v1527 = vld [vmem:[%s1525 + $0x8] sm:$0xf]
      %v1528 = vld [vmem:[%s1525 + $0x10] sm:$0xf]
      %v1529 = vld [vmem:[%s1525 + $0x18] sm:$0xf]
      %v1530 = vld [vmem:[%s1525 + $0x20] sm:$0xf]
      %v1531 = vld [vmem:[%s1525 + $0x28] sm:$0xf]
      %v1532 = vld [vmem:[%s1525 + $0x30] sm:$0xf]
      %v1533 = vld [vmem:[%s1525 + $0x38] sm:$0xf]
      %v1534 = vunpack.c.l.bf16 %v1526
      %v1535 = vunpack.c.l.bf16 %v1527
      %v1536 = vunpack.c.l.bf16 %v1528
      %v1537 = vunpack.c.l.bf16 %v1529
      %v1538 = vunpack.c.l.bf16 %v1530
      %v1539 = vunpack.c.l.bf16 %v1531
      %v1540 = vunpack.c.l.bf16 %v1532
      %v1541 = vunpack.c.l.bf16 %v1533
      %s1542 = scalar_lea.vmem %s1, 32
      %v1543 = vld [vmem:[%s1542] sm:$0xff]
      %v1544 = vld [vmem:[%s1542 + $0x10] sm:$0xff]
      %v1545 = vld [vmem:[%s1542 + $0x20] sm:$0xff]
      %v1546 = vld [vmem:[%s1542 + $0x30] sm:$0xff]
      %v1547 = vld [vmem:[%s1542 + $0x40] sm:$0xff]
      %v1548 = vld [vmem:[%s1542 + $0x50] sm:$0xff]
      %v1549 = vld [vmem:[%s1542 + $0x60] sm:$0xff]
      %v1550 = vld [vmem:[%s1542 + $0x70] sm:$0xff]
      %v1551 = vmul.f32 %v1534, %v300
      %v1552 = vmul.f32 %v1535, %v300
      %v1553 = vmul.f32 %v1536, %v300
      %v1554 = vmul.f32 %v1537, %v300
      %v1555 = vmul.f32 %v1538, %v300
      %v1556 = vmul.f32 %v1539, %v300
      %v1557 = vmul.f32 %v1540, %v300
      %v1558 = vmul.f32 %v1541, %v300
      %v1559 = vadd.f32 %v1551, %v311
      %v1560 = vadd.f32 %v1552, %v311
      %v1561 = vadd.f32 %v1553, %v311
      %v1562 = vadd.f32 %v1554, %v311
      %v1563 = vadd.f32 %v1555, %v311
      %v1564 = vadd.f32 %v1556, %v311
      %v1565 = vadd.f32 %v1557, %v311
      %v1566 = vadd.f32 %v1558, %v311
      %v1567 = vmax.f32 %v1559, 0.0
      %v1568 = vmax.f32 %v1560, 0.0
      %v1569 = vmax.f32 %v1561, 0.0
      %v1570 = vmax.f32 %v1562, 0.0
      %v1571 = vmax.f32 %v1563, 0.0
      %v1572 = vmax.f32 %v1564, 0.0
      %v1573 = vmax.f32 %v1565, 0.0
      %v1574 = vmax.f32 %v1566, 0.0
      %1576 = vset.pattern.permute.xlu0 0
      %1577 = vperm.xlu0 %1576, %v1543
      %v1578 = vpop.permute.xlu0 %1577
      %1581 = vset.pattern.permute.xlu0 0
      %1582 = vperm.xlu0 %1581, %v1544
      %v1583 = vpop.permute.xlu0 %1582
      %1586 = vset.pattern.permute.xlu0 0
      %1587 = vperm.xlu0 %1586, %v1545
      %v1588 = vpop.permute.xlu0 %1587
      %1591 = vset.pattern.permute.xlu0 0
      %1592 = vperm.xlu0 %1591, %v1546
      %v1593 = vpop.permute.xlu0 %1592
      %1596 = vset.pattern.permute.xlu0 0
      %1597 = vperm.xlu0 %1596, %v1547
      %v1598 = vpop.permute.xlu0 %1597
      %1601 = vset.pattern.permute.xlu0 0
      %1602 = vperm.xlu0 %1601, %v1548
      %v1603 = vpop.permute.xlu0 %1602
      %1606 = vset.pattern.permute.xlu0 0
      %1607 = vperm.xlu0 %1606, %v1549
      %v1608 = vpop.permute.xlu0 %1607
      %1611 = vset.pattern.permute.xlu0 0
      %1612 = vperm.xlu0 %1611, %v1550
      %v1613 = vpop.permute.xlu0 %1612
      %v1615 = vmul.f32 %v1567, %v1578
      %v1616 = vmul.f32 %v1568, %v1583
      %v1617 = vmul.f32 %v1569, %v1588
      %v1618 = vmul.f32 %v1570, %v1593
      %v1619 = vmul.f32 %v1571, %v1598
      %v1620 = vmul.f32 %v1572, %v1603
      %v1621 = vmul.f32 %v1573, %v1608
      %v1622 = vmul.f32 %v1574, %v1613
      %v1623 = vpack.c.bf16 %v1616, %v1615
      %v1624 = vpack.c.bf16 %v1618, %v1617
      %v1625 = vpack.c.bf16 %v1620, %v1619
      %v1626 = vpack.c.bf16 %v1622, %v1621
      %v1627 = vld [vmem:[%s4 + $0x18] sm:$0xf]
      %v1629 = vsel %vm588, %v1623, 0
      %v1632 = vsel %vm588, %v1624, 0
      %v1635 = vsel %vm588, %v1625, 0
      %v1638 = vsel %vm588, %v1626, 0
      %v1641 = vsel %vm601, %v1627, 0
      %1643 = vmatpush.bf16.msra.mxu0 0
      %1644 = vmatpush.bf16.msra.mxu0 0
      %1645 = vmatpush.bf16.msra.mxu0 0
      %1646 = vmatpush.bf16.msra.mxu0 0
      %1647 = vmatpush.bf16.msra.mxu0 0
      %1648 = vmatpush.bf16.msra.mxu0 0
      %1649 = vmatpush.bf16.msra.mxu0 0
      %1650 = vmatpush.bf16.msra.mxu0 %v1641
      %1651 = vmatmul.bf16.gmra.mxu0 %v1629
      %v1652 = vpop.f32.mrf.mxu0
      %v1653 = vadd.f32 0.0, %v1652
      %v1654 = vpop.f32.mrf.mxu0
      %v1655 = vadd.f32 0.0, %v1654
      %1656 = vmatmul.bf16.gmra.mxu0 %v1632
      %v1657 = vpop.f32.mrf.mxu0
      %v1658 = vadd.f32 0.0, %v1657
      %v1659 = vpop.f32.mrf.mxu0
      %v1660 = vadd.f32 0.0, %v1659
      %1661 = vmatmul.bf16.gmra.mxu0 %v1635
      %v1662 = vpop.f32.mrf.mxu0
      %v1663 = vadd.f32 0.0, %v1662
      %v1664 = vpop.f32.mrf.mxu0
      %v1665 = vadd.f32 0.0, %v1664
      %1666 = vmatmul.bf16.gmra.mxu0 %v1638
      %v1667 = vpop.f32.mrf.mxu0
      %v1668 = vadd.f32 0.0, %v1667
      %v1669 = vpop.f32.mrf.mxu0
      %v1670 = vadd.f32 0.0, %v1669
      %1671 = vdwg.mxu0
      %v1672 = vadd.f32 %v1517, %v1653
      %v1673 = vadd.f32 %v1518, %v1655
      %v1674 = vadd.f32 %v1519, %v1658
      %v1675 = vadd.f32 %v1520, %v1660
      %v1676 = vadd.f32 %v1521, %v1663
      %v1677 = vadd.f32 %v1522, %v1665
      %v1678 = vadd.f32 %v1523, %v1668
      %v1679 = vadd.f32 %v1524, %v1670
      %v1680 = vld [vmem:[%s1525] sm:$0xf]
      %v1681 = vld [vmem:[%s1525 + $0x4] sm:$0x1]
      %v1682 = vld [vmem:[%s1525 + $0x8] sm:$0xf]
      %v1683 = vld [vmem:[%s1525 + $0xc] sm:$0x1]
      %v1684 = vld [vmem:[%s1525 + $0x10] sm:$0xf]
      %v1685 = vld [vmem:[%s1525 + $0x14] sm:$0x1]
      %v1686 = vld [vmem:[%s1525 + $0x18] sm:$0xf]
      %v1687 = vld [vmem:[%s1525 + $0x1c] sm:$0x1]
      %v1688 = vld [vmem:[%s1525 + $0x20] sm:$0xf]
      %v1689 = vld [vmem:[%s1525 + $0x24] sm:$0x1]
      %v1690 = vld [vmem:[%s1525 + $0x28] sm:$0xf]
      %v1691 = vld [vmem:[%s1525 + $0x2c] sm:$0x1]
      %v1692 = vld [vmem:[%s1525 + $0x30] sm:$0xf]
      %v1693 = vld [vmem:[%s1525 + $0x34] sm:$0x1]
      %v1694 = vld [vmem:[%s1525 + $0x38] sm:$0xf]
      %v1695 = vld [vmem:[%s1525 + $0x3c] sm:$0x1]
      %v1696 = vunpack.c.l.bf16 %v1680
      %v1697 = vunpack.c.l.bf16 %v1681
      %v1698 = vunpack.c.l.bf16 %v1682
      %v1699 = vunpack.c.l.bf16 %v1683
      %v1700 = vunpack.c.l.bf16 %v1684
      %v1701 = vunpack.c.l.bf16 %v1685
      %v1702 = vunpack.c.l.bf16 %v1686
      %v1703 = vunpack.c.l.bf16 %v1687
      %v1704 = vunpack.c.l.bf16 %v1688
      %v1705 = vunpack.c.l.bf16 %v1689
      %v1706 = vunpack.c.l.bf16 %v1690
      %v1707 = vunpack.c.l.bf16 %v1691
      %v1708 = vunpack.c.l.bf16 %v1692
      %v1709 = vunpack.c.l.bf16 %v1693
      %v1710 = vunpack.c.l.bf16 %v1694
      %v1711 = vunpack.c.l.bf16 %v1695
      %v1712 = vld [vmem:[%s1542 + $0x1] sm:$0xff]
      %v1713 = vld [vmem:[%s1542 + $0x11] sm:$0xff]
      %v1714 = vld [vmem:[%s1542 + $0x21] sm:$0xff]
      %v1715 = vld [vmem:[%s1542 + $0x31] sm:$0xff]
      %v1716 = vld [vmem:[%s1542 + $0x41] sm:$0xff]
      %v1717 = vld [vmem:[%s1542 + $0x51] sm:$0xff]
      %v1718 = vld [vmem:[%s1542 + $0x61] sm:$0xff]
      %v1719 = vld [vmem:[%s1542 + $0x71] sm:$0xff]
      %v1720 = vmul.f32 %v1696, %v300
      %v1721 = vmul.f32 %v1697, %v300
      %v1722 = vmul.f32 %v1698, %v300
      %v1723 = vmul.f32 %v1699, %v300
      %v1724 = vmul.f32 %v1700, %v300
      %v1725 = vmul.f32 %v1701, %v300
      %v1726 = vmul.f32 %v1702, %v300
      %v1727 = vmul.f32 %v1703, %v300
      %v1728 = vmul.f32 %v1704, %v300
      %v1729 = vmul.f32 %v1705, %v300
      %v1730 = vmul.f32 %v1706, %v300
      %v1731 = vmul.f32 %v1707, %v300
      %v1732 = vmul.f32 %v1708, %v300
      %v1733 = vmul.f32 %v1709, %v300
      %v1734 = vmul.f32 %v1710, %v300
      %v1735 = vmul.f32 %v1711, %v300
      %v1736 = vadd.f32 %v1720, %v311
      %v1737 = vadd.f32 %v1721, %v311
      %v1738 = vadd.f32 %v1722, %v311
      %v1739 = vadd.f32 %v1723, %v311
      %v1740 = vadd.f32 %v1724, %v311
      %v1741 = vadd.f32 %v1725, %v311
      %v1742 = vadd.f32 %v1726, %v311
      %v1743 = vadd.f32 %v1727, %v311
      %v1744 = vadd.f32 %v1728, %v311
      %v1745 = vadd.f32 %v1729, %v311
      %v1746 = vadd.f32 %v1730, %v311
      %v1747 = vadd.f32 %v1731, %v311
      %v1748 = vadd.f32 %v1732, %v311
      %v1749 = vadd.f32 %v1733, %v311
      %v1750 = vadd.f32 %v1734, %v311
      %v1751 = vadd.f32 %v1735, %v311
      %v1752 = vmax.f32 %v1736, 0.0
      %v1753 = vmax.f32 %v1737, 0.0
      %v1754 = vmax.f32 %v1738, 0.0
      %v1755 = vmax.f32 %v1739, 0.0
      %v1756 = vmax.f32 %v1740, 0.0
      %v1757 = vmax.f32 %v1741, 0.0
      %v1758 = vmax.f32 %v1742, 0.0
      %v1759 = vmax.f32 %v1743, 0.0
      %v1760 = vmax.f32 %v1744, 0.0
      %v1761 = vmax.f32 %v1745, 0.0
      %v1762 = vmax.f32 %v1746, 0.0
      %v1763 = vmax.f32 %v1747, 0.0
      %v1764 = vmax.f32 %v1748, 0.0
      %v1765 = vmax.f32 %v1749, 0.0
      %v1766 = vmax.f32 %v1750, 0.0
      %v1767 = vmax.f32 %v1751, 0.0
      %1769 = vset.pattern.permute.xlu0 0
      %1770 = vperm.xlu0 %1769, %v1712
      %v1771 = vpop.permute.xlu0 %1770
      %1773 = vset.pattern.permute.xlu0 0
      %1774 = vperm.xlu0 %1773, %v1713
      %v1775 = vpop.permute.xlu0 %1774
      %1777 = vset.pattern.permute.xlu0 0
      %1778 = vperm.xlu0 %1777, %v1714
      %v1779 = vpop.permute.xlu0 %1778
      %1781 = vset.pattern.permute.xlu0 0
      %1782 = vperm.xlu0 %1781, %v1715
      %v1783 = vpop.permute.xlu0 %1782
      %1785 = vset.pattern.permute.xlu0 0
      %1786 = vperm.xlu0 %1785, %v1716
      %v1787 = vpop.permute.xlu0 %1786
      %1789 = vset.pattern.permute.xlu0 0
      %1790 = vperm.xlu0 %1789, %v1717
      %v1791 = vpop.permute.xlu0 %1790
      %1793 = vset.pattern.permute.xlu0 0
      %1794 = vperm.xlu0 %1793, %v1718
      %v1795 = vpop.permute.xlu0 %1794
      %1797 = vset.pattern.permute.xlu0 0
      %1798 = vperm.xlu0 %1797, %v1719
      %v1799 = vpop.permute.xlu0 %1798
      %v1800 = vrot.slane %v1771, 7
      %v1801 = vrot.slane %v1775, 7
      %v1802 = vrot.slane %v1779, 7
      %v1803 = vrot.slane %v1783, 7
      %v1804 = vrot.slane %v1787, 7
      %v1805 = vrot.slane %v1791, 7
      %v1806 = vrot.slane %v1795, 7
      %v1807 = vrot.slane %v1799, 7
      %v1816 = vmul.f32 %v1752, %v1800
      %v1817 = vmul.f32 %v1753, %v1800
      %v1818 = vmul.f32 %v1754, %v1801
      %v1819 = vmul.f32 %v1755, %v1801
      %v1820 = vmul.f32 %v1756, %v1802
      %v1821 = vmul.f32 %v1757, %v1802
      %v1822 = vmul.f32 %v1758, %v1803
      %v1823 = vmul.f32 %v1759, %v1803
      %v1824 = vmul.f32 %v1760, %v1804
      %v1825 = vmul.f32 %v1761, %v1804
      %v1826 = vmul.f32 %v1762, %v1805
      %v1827 = vmul.f32 %v1763, %v1805
      %v1828 = vmul.f32 %v1764, %v1806
      %v1829 = vmul.f32 %v1765, %v1806
      %v1830 = vmul.f32 %v1766, %v1807
      %v1831 = vmul.f32 %v1767, %v1807
      %v1848 = vrot.slane %v1816, 1
      %v1849 = vrot.slane %v1817, 1
      %v1850 = vsel %vm550, %v1848, %v1849
      %v1851 = vrot.slane %v1818, 1
      %v1852 = vrot.slane %v1819, 1
      %v1853 = vsel %vm550, %v1851, %v1852
      %v1854 = vrot.slane %v1820, 1
      %v1855 = vrot.slane %v1821, 1
      %v1856 = vsel %vm550, %v1854, %v1855
      %v1857 = vrot.slane %v1822, 1
      %v1858 = vrot.slane %v1823, 1
      %v1859 = vsel %vm550, %v1857, %v1858
      %v1860 = vrot.slane %v1824, 1
      %v1861 = vrot.slane %v1825, 1
      %v1862 = vsel %vm550, %v1860, %v1861
      %v1863 = vrot.slane %v1826, 1
      %v1864 = vrot.slane %v1827, 1
      %v1865 = vsel %vm550, %v1863, %v1864
      %v1866 = vrot.slane %v1828, 1
      %v1867 = vrot.slane %v1829, 1
      %v1868 = vsel %vm550, %v1866, %v1867
      %v1869 = vrot.slane %v1830, 1
      %v1870 = vrot.slane %v1831, 1
      %v1871 = vsel %vm550, %v1869, %v1870
      %v1880 = vpack.c.bf16 %v1853, %v1850
      %v1881 = vpack.c.bf16 %v1859, %v1856
      %v1882 = vpack.c.bf16 %v1865, %v1862
      %v1883 = vpack.c.bf16 %v1871, %v1868
      %v1884 = vld [vmem:[%s4 + $0x1c] sm:$0xf]
      %v1886 = vsel %vm588, %v1880, 0
      %v1889 = vsel %vm588, %v1881, 0
      %v1892 = vsel %vm588, %v1882, 0
      %v1895 = vsel %vm588, %v1883, 0
      %v1898 = vsel %vm601, %v1884, 0
      %1900 = vmatpush.bf16.msra.mxu0 0
      %1901 = vmatpush.bf16.msra.mxu0 0
      %1902 = vmatpush.bf16.msra.mxu0 0
      %1903 = vmatpush.bf16.msra.mxu0 0
      %1904 = vmatpush.bf16.msra.mxu0 0
      %1905 = vmatpush.bf16.msra.mxu0 0
      %1906 = vmatpush.bf16.msra.mxu0 0
      %1907 = vmatpush.bf16.msra.mxu0 %v1898
      %1908 = vmatmul.bf16.gmra.mxu0 %v1886
      %v1909 = vpop.f32.mrf.mxu0
      %v1910 = vadd.f32 0.0, %v1909
      %v1911 = vpop.f32.mrf.mxu0
      %v1912 = vadd.f32 0.0, %v1911
      %1913 = vmatmul.bf16.gmra.mxu0 %v1889
      %v1914 = vpop.f32.mrf.mxu0
      %v1915 = vadd.f32 0.0, %v1914
      %v1916 = vpop.f32.mrf.mxu0
      %v1917 = vadd.f32 0.0, %v1916
      %1918 = vmatmul.bf16.gmra.mxu0 %v1892
      %v1919 = vpop.f32.mrf.mxu0
      %v1920 = vadd.f32 0.0, %v1919
      %v1921 = vpop.f32.mrf.mxu0
      %v1922 = vadd.f32 0.0, %v1921
      %1923 = vmatmul.bf16.gmra.mxu0 %v1895
      %v1924 = vpop.f32.mrf.mxu0
      %v1925 = vadd.f32 0.0, %v1924
      %v1926 = vpop.f32.mrf.mxu0
      %v1927 = vadd.f32 0.0, %v1926
      %1928 = vdwg.mxu0
      %v1929 = vadd.f32 %v1672, %v1910
      %v1930 = vadd.f32 %v1673, %v1912
      %v1931 = vadd.f32 %v1674, %v1915
      %v1932 = vadd.f32 %v1675, %v1917
      %v1933 = vadd.f32 %v1676, %v1920
      %v1934 = vadd.f32 %v1677, %v1922
      %v1935 = vadd.f32 %v1678, %v1925
      %v1936 = vadd.f32 %v1679, %v1927
      %v1937 = vld [vmem:[%s1525] sm:$0xe]
      %v1938 = vld [vmem:[%s1525 + $0x8] sm:$0xe]
      %v1939 = vld [vmem:[%s1525 + $0x10] sm:$0xe]
      %v1940 = vld [vmem:[%s1525 + $0x18] sm:$0xe]
      %v1941 = vld [vmem:[%s1525 + $0x20] sm:$0xe]
      %v1942 = vld [vmem:[%s1525 + $0x28] sm:$0xe]
      %v1943 = vld [vmem:[%s1525 + $0x30] sm:$0xe]
      %v1944 = vld [vmem:[%s1525 + $0x38] sm:$0xe]
      %v1945 = vunpack.c.l.bf16 %v1937
      %v1946 = vunpack.c.l.bf16 %v1938
      %v1947 = vunpack.c.l.bf16 %v1939
      %v1948 = vunpack.c.l.bf16 %v1940
      %v1949 = vunpack.c.l.bf16 %v1941
      %v1950 = vunpack.c.l.bf16 %v1942
      %v1951 = vunpack.c.l.bf16 %v1943
      %v1952 = vunpack.c.l.bf16 %v1944
      %v1953 = vld [vmem:[%s1542 + $0x2] sm:$0xff]
      %v1954 = vld [vmem:[%s1542 + $0x12] sm:$0xff]
      %v1955 = vld [vmem:[%s1542 + $0x22] sm:$0xff]
      %v1956 = vld [vmem:[%s1542 + $0x32] sm:$0xff]
      %v1957 = vld [vmem:[%s1542 + $0x42] sm:$0xff]
      %v1958 = vld [vmem:[%s1542 + $0x52] sm:$0xff]
      %v1959 = vld [vmem:[%s1542 + $0x62] sm:$0xff]
      %v1960 = vld [vmem:[%s1542 + $0x72] sm:$0xff]
      %v1961 = vmul.f32 %v1945, %v300
      %v1962 = vmul.f32 %v1946, %v300
      %v1963 = vmul.f32 %v1947, %v300
      %v1964 = vmul.f32 %v1948, %v300
      %v1965 = vmul.f32 %v1949, %v300
      %v1966 = vmul.f32 %v1950, %v300
      %v1967 = vmul.f32 %v1951, %v300
      %v1968 = vmul.f32 %v1952, %v300
      %v1969 = vadd.f32 %v1961, %v311
      %v1970 = vadd.f32 %v1962, %v311
      %v1971 = vadd.f32 %v1963, %v311
      %v1972 = vadd.f32 %v1964, %v311
      %v1973 = vadd.f32 %v1965, %v311
      %v1974 = vadd.f32 %v1966, %v311
      %v1975 = vadd.f32 %v1967, %v311
      %v1976 = vadd.f32 %v1968, %v311
      %v1977 = vmax.f32 %v1969, 0.0
      %v1978 = vmax.f32 %v1970, 0.0
      %v1979 = vmax.f32 %v1971, 0.0
      %v1980 = vmax.f32 %v1972, 0.0
      %v1981 = vmax.f32 %v1973, 0.0
      %v1982 = vmax.f32 %v1974, 0.0
      %v1983 = vmax.f32 %v1975, 0.0
      %v1984 = vmax.f32 %v1976, 0.0
      %1986 = vset.pattern.permute.xlu0 0
      %1987 = vperm.xlu0 %1986, %v1953
      %v1988 = vpop.permute.xlu0 %1987
      %1990 = vset.pattern.permute.xlu0 0
      %1991 = vperm.xlu0 %1990, %v1954
      %v1992 = vpop.permute.xlu0 %1991
      %1994 = vset.pattern.permute.xlu0 0
      %1995 = vperm.xlu0 %1994, %v1955
      %v1996 = vpop.permute.xlu0 %1995
      %1998 = vset.pattern.permute.xlu0 0
      %1999 = vperm.xlu0 %1998, %v1956
      %v2000 = vpop.permute.xlu0 %1999
      %2002 = vset.pattern.permute.xlu0 0
      %2003 = vperm.xlu0 %2002, %v1957
      %v2004 = vpop.permute.xlu0 %2003
      %2006 = vset.pattern.permute.xlu0 0
      %2007 = vperm.xlu0 %2006, %v1958
      %v2008 = vpop.permute.xlu0 %2007
      %2010 = vset.pattern.permute.xlu0 0
      %2011 = vperm.xlu0 %2010, %v1959
      %v2012 = vpop.permute.xlu0 %2011
      %2014 = vset.pattern.permute.xlu0 0
      %2015 = vperm.xlu0 %2014, %v1960
      %v2016 = vpop.permute.xlu0 %2015
      %v2017 = vrot.slane %v1988, 6
      %v2018 = vrot.slane %v1992, 6
      %v2019 = vrot.slane %v1996, 6
      %v2020 = vrot.slane %v2000, 6
      %v2021 = vrot.slane %v2004, 6
      %v2022 = vrot.slane %v2008, 6
      %v2023 = vrot.slane %v2012, 6
      %v2024 = vrot.slane %v2016, 6
      %v2033 = vmul.f32 %v1977, %v2017
      %v2034 = vmul.f32 %v1753, %v2017
      %v2035 = vmul.f32 %v1978, %v2018
      %v2036 = vmul.f32 %v1755, %v2018
      %v2037 = vmul.f32 %v1979, %v2019
      %v2038 = vmul.f32 %v1757, %v2019
      %v2039 = vmul.f32 %v1980, %v2020
      %v2040 = vmul.f32 %v1759, %v2020
      %v2041 = vmul.f32 %v1981, %v2021
      %v2042 = vmul.f32 %v1761, %v2021
      %v2043 = vmul.f32 %v1982, %v2022
      %v2044 = vmul.f32 %v1763, %v2022
      %v2045 = vmul.f32 %v1983, %v2023
      %v2046 = vmul.f32 %v1765, %v2023
      %v2047 = vmul.f32 %v1984, %v2024
      %v2048 = vmul.f32 %v1767, %v2024
      %v2065 = vrot.slane %v2033, 2
      %v2066 = vrot.slane %v2034, 2
      %v2067 = vsel %vm806, %v2065, %v2066
      %v2068 = vrot.slane %v2035, 2
      %v2069 = vrot.slane %v2036, 2
      %v2070 = vsel %vm806, %v2068, %v2069
      %v2071 = vrot.slane %v2037, 2
      %v2072 = vrot.slane %v2038, 2
      %v2073 = vsel %vm806, %v2071, %v2072
      %v2074 = vrot.slane %v2039, 2
      %v2075 = vrot.slane %v2040, 2
      %v2076 = vsel %vm806, %v2074, %v2075
      %v2077 = vrot.slane %v2041, 2
      %v2078 = vrot.slane %v2042, 2
      %v2079 = vsel %vm806, %v2077, %v2078
      %v2080 = vrot.slane %v2043, 2
      %v2081 = vrot.slane %v2044, 2
      %v2082 = vsel %vm806, %v2080, %v2081
      %v2083 = vrot.slane %v2045, 2
      %v2084 = vrot.slane %v2046, 2
      %v2085 = vsel %vm806, %v2083, %v2084
      %v2086 = vrot.slane %v2047, 2
      %v2087 = vrot.slane %v2048, 2
      %v2088 = vsel %vm806, %v2086, %v2087
      %v2097 = vpack.c.bf16 %v2070, %v2067
      %v2098 = vpack.c.bf16 %v2076, %v2073
      %v2099 = vpack.c.bf16 %v2082, %v2079
      %v2100 = vpack.c.bf16 %v2088, %v2085
      %v2101 = vld [vmem:[%s4 + $0x20] sm:$0xf]
      %v2103 = vsel %vm588, %v2097, 0
      %v2106 = vsel %vm588, %v2098, 0
      %v2109 = vsel %vm588, %v2099, 0
      %v2112 = vsel %vm588, %v2100, 0
      %v2115 = vsel %vm601, %v2101, 0
      %2117 = vmatpush.bf16.msra.mxu0 0
      %2118 = vmatpush.bf16.msra.mxu0 0
      %2119 = vmatpush.bf16.msra.mxu0 0
      %2120 = vmatpush.bf16.msra.mxu0 0
      %2121 = vmatpush.bf16.msra.mxu0 0
      %2122 = vmatpush.bf16.msra.mxu0 0
      %2123 = vmatpush.bf16.msra.mxu0 0
      %2124 = vmatpush.bf16.msra.mxu0 %v2115
      %2125 = vmatmul.bf16.gmra.mxu0 %v2103
      %v2126 = vpop.f32.mrf.mxu0
      %v2127 = vadd.f32 0.0, %v2126
      %v2128 = vpop.f32.mrf.mxu0
      %v2129 = vadd.f32 0.0, %v2128
      %2130 = vmatmul.bf16.gmra.mxu0 %v2106
      %v2131 = vpop.f32.mrf.mxu0
      %v2132 = vadd.f32 0.0, %v2131
      %v2133 = vpop.f32.mrf.mxu0
      %v2134 = vadd.f32 0.0, %v2133
      %2135 = vmatmul.bf16.gmra.mxu0 %v2109
      %v2136 = vpop.f32.mrf.mxu0
      %v2137 = vadd.f32 0.0, %v2136
      %v2138 = vpop.f32.mrf.mxu0
      %v2139 = vadd.f32 0.0, %v2138
      %2140 = vmatmul.bf16.gmra.mxu0 %v2112
      %v2141 = vpop.f32.mrf.mxu0
      %v2142 = vadd.f32 0.0, %v2141
      %v2143 = vpop.f32.mrf.mxu0
      %v2144 = vadd.f32 0.0, %v2143
      %2145 = vdwg.mxu0
      %v2146 = vadd.f32 %v1929, %v2127
      %v2147 = vadd.f32 %v1930, %v2129
      %v2148 = vadd.f32 %v1931, %v2132
      %v2149 = vadd.f32 %v1932, %v2134
      %v2150 = vadd.f32 %v1933, %v2137
      %v2151 = vadd.f32 %v1934, %v2139
      %v2152 = vadd.f32 %v1935, %v2142
      %v2153 = vadd.f32 %v1936, %v2144
      %v2154 = vld [vmem:[%s266] sm:$0xf]
      %v2155 = vld [vmem:[%s266 + $0x4] sm:$0xf]
      %v2156 = vld [vmem:[%s266 + $0x8] sm:$0xf]
      %v2157 = vld [vmem:[%s266 + $0xc] sm:$0xf]
      %v2158 = vld [vmem:[%s266 + $0x10] sm:$0xf]
      %v2159 = vld [vmem:[%s266 + $0x14] sm:$0xf]
      %v2160 = vld [vmem:[%s266 + $0x18] sm:$0xf]
      %v2161 = vld [vmem:[%s266 + $0x1c] sm:$0xf]
      %v2162 = vunpack.c.l.bf16 %v2154
      %v2163 = vunpack.c.l.bf16 %v2155
      %v2164 = vunpack.c.l.bf16 %v2156
      %v2165 = vunpack.c.l.bf16 %v2157
      %v2166 = vunpack.c.l.bf16 %v2158
      %v2167 = vunpack.c.l.bf16 %v2159
      %v2168 = vunpack.c.l.bf16 %v2160
      %v2169 = vunpack.c.l.bf16 %v2161
      %v2170 = vadd.f32 %v2146, %v2162
      %v2171 = vadd.f32 %v2147, %v2163
      %v2172 = vadd.f32 %v2148, %v2164
      %v2173 = vadd.f32 %v2149, %v2165
      %v2174 = vadd.f32 %v2150, %v2166
      %v2175 = vadd.f32 %v2151, %v2167
      %v2176 = vadd.f32 %v2152, %v2168
      %v2177 = vadd.f32 %v2153, %v2169
      %v2178 = vpack.c.bf16 %v2170, %v2170
      %v2179 = vpack.c.bf16 %v2171, %v2171
      %v2180 = vpack.c.bf16 %v2172, %v2172
      %v2181 = vpack.c.bf16 %v2173, %v2173
      %v2182 = vpack.c.bf16 %v2174, %v2174
      %v2183 = vpack.c.bf16 %v2175, %v2175
      %v2184 = vpack.c.bf16 %v2176, %v2176
      %v2185 = vpack.c.bf16 %v2177, %v2177
      %vm2186 = vcmask 60416
      %2187 = vst.msk [vmem:[%s271] sm:$0xf] %vm2186, %v2178
      %2188 = vst.msk [vmem:[%s271 + $0x4] sm:$0xf] %vm2186, %v2179
      %2189 = vst.msk [vmem:[%s271 + $0x8] sm:$0xf] %vm2186, %v2180
      %2190 = vst.msk [vmem:[%s271 + $0xc] sm:$0xf] %vm2186, %v2181
      %2191 = vst.msk [vmem:[%s271 + $0x10] sm:$0xf] %vm2186, %v2182
      %2192 = vst.msk [vmem:[%s271 + $0x14] sm:$0xf] %vm2186, %v2183
      %2193 = vst.msk [vmem:[%s271 + $0x18] sm:$0xf] %vm2186, %v2184
      %2194 = vst.msk [vmem:[%s271 + $0x1c] sm:$0xf] %vm2186, %v2185
      %p2195 = scmp.lt.s32.totalorder %s17, 1
      %s2196 = scalar_select %p2195, %s17, 1
      %s2197 = smul.addr %s2196, 8
      %s2198 = smul.addr %s2197, 4
      %s2199 = scalar_lea.vmem %s6, %s2198
      // Predicated region
      $region45: #{_lambda_.13} parent=43 // pred_check
        %p2200 = pneg %p171
      $region46: #{_lambda_.13} parent=43 // pred_check_branch
        %2202 = sbr.rel (%p2200) target = $region48
      $region47: #{_lambda_.13} parent=43 // pred_region
        _
      $region48: #{_lambda_.13} parent=43 // pred_fallthru
        _
    $region44: #{_lambda_.13} parent=5 // pred_fallthru
      _
    %p2203 = scmp.le.s32.totalorder 2, %s12
    // Predicated region
    $region49: #{_lambda_.13} parent=5 // pred_check
      %p2204 = pneg %p2203
    $region50: #{_lambda_.13} parent=5 // pred_check_branch
      %2206 = sbr.rel (%p2204) target = $region52
    $region51: #{_lambda_.13} parent=5 // pred_region
      %s2207 = ssub.s32 %s12, 2
      // Predicated region
      $region53: #{_lambda_.13} parent=51 // pred_check
        %p2208 = pneg %p177
      $region54: #{_lambda_.13} parent=51 // pred_check_branch
        %2210 = sbr.rel (%p2208) target = $region56
      $region55: #{_lambda_.13} parent=51 // pred_region
        %p2211 = scmp.lt.s32.totalorder %s18, 1
        %s2212 = scalar_select %p2211, %s18, 1
        %s2213 = smul.addr %s2212, 8
        %s2214 = smul.addr %s2213, 4
        %s2215 = scalar_lea.vmem %s6, %s2214
      $region56: #{_lambda_.13} parent=51 // pred_fallthru
        _
    $region52: #{_lambda_.13} parent=5 // pred_fallthru
      _
  $region6: #{_lambda_.13} parent=0 // loop_footer
    %s16 = sadd.s32 1, %s12
  $region7: #{_lambda_.13} parent=0 // loop_footer_branch
    %11 = sbr.rel target = $region3
  $region8: #{_lambda_.13} parent=0 // loop_exit
    _

// kernel: _lambda_.15
$region0: #{_lambda_.15}
  #allocation0 [shape = 'u32[]', space=smem, size = 0x4, offset = 0x4, fixed_abs, tag = 'smem constant byte address 0x4 - core index']
  #allocation1 [shape = 'u32[72,128]{1,0:T(1,128)}', space=vmem, size = 0x9000, scoped, tag = 'internal scratch']
  %s0 = inlined_call_operand.vmem [shape: bf16[2,1,10,10,8], index: 0, kind: input, shape index: {}]
  %s1 = inlined_call_operand.vmem [shape: f32[1,10,10,1], index: 1, kind: input, shape index: {}]
  %s2 = inlined_call_operand.vmem [shape: f32[1,8], index: 2, kind: input, shape index: {}]
  %s3 = inlined_call_operand.vmem [shape: f32[1,8], index: 3, kind: input, shape index: {}]
  %s4 = inlined_call_operand.vmem [shape: bf16[72,8], index: 4, kind: input, shape index: {}]
  %s5 = inlined_call_operand.vmem [shape: bf16[2,64,8], index: 5, kind: output, shape index: {}]
  %s6 = sld [smem:[#allocation0]]
  $region53: #{_lambda_.15} parent=0
    _
  %s8 = ssub.s32 1, %s6
  %s9 = scalar_select 0, %s8, %s6
  loop: start=0, step=1, limit=4
  $region2: #{_lambda_.15} parent=0 // loop_pre_header
    _
  $region3: #{_lambda_.15} parent=0 // loop_header
    %s11 = sphi 0, %s15
    %p12 = scmp.ge.s32.totalorder %s11, 4
    %s21 = sphi 0, %s23
    %s24 = sphi 0, %s21
    %s25 = sphi 0, %s24
    %s41 = sphi 0, %s25
    %s45 = sphi 0, %s45
    %s47 = sphi 0, %s45
    %s48 = sphi 0, %s47
    %s62 = sphi 0, %s48
    %s66 = sphi 0, %s66
    %s68 = sphi 0, %s66
    %s69 = sphi 0, %s68
    %s83 = sphi 0, %s69
    %s87 = sphi 0, %s87
    %s89 = sphi 0, %s87
    %s90 = sphi 0, %s89
    %s104 = sphi 0, %s90
    %s108 = sphi 0, %s108
    %s110 = sphi 0, %s108
    %s111 = sphi 0, %s110
    %s125 = sphi 0, %s111
    %s131 = sphi 0, %s133
    %s134 = sphi 0, %s131
    %s135 = sphi 0, %s134
    %s151 = sphi 0, %s135
  $region4: #{_lambda_.15} parent=0 // loop_header_branch
    %14 = sbr.rel (%p12) target = $region8
  $region5: #{_lambda_.15} parent=0 // loop_body
    %s16 = ssub.s32 %s11, 1
    %s17 = ssub.s32 %s11, 2
    %s18 = sadd.s32 %s11, 1
    %s19 = ssub.s32 %s11, %s18
    %p20 = scmp.eq.s32.totalorder %s19, 0
    %s22 = sadd.s32 %s21, 1
    %s23 = scalar_select %p20, %s21, %s22
    %p26 = pneg %p20
    %p27 = scmp.eq.s32.totalorder %s11, 1
    %p28 = por %p26, %p27
    %p29 = scmp.ne.s32.totalorder %s21, %s24
    %p30 = scmp.eq.s32.totalorder %s11, 0
    %p31 = por %p29, %p30
    %p32 = scmp.ne.s32.totalorder %s21, %s24
    %p33 = scmp.eq.s32.totalorder %s16, 1
    %p34 = por %p32, %p33
    %p35 = scmp.ne.s32.totalorder %s24, %s25
    %p36 = scmp.eq.s32.totalorder %s16, 0
    %p37 = por %p35, %p36
    %p38 = scmp.ne.s32.totalorder %s24, %s25
    %p39 = scmp.eq.s32.totalorder %s17, 1
    %p40 = por %p38, %p39
    %p42 = scmp.ne.s32.totalorder %s25, %s41
    %p43 = scmp.eq.s32.totalorder %s17, 0
    %p44 = por %p42, %p43
    %s46 = sadd.s32 %s45, 1
    %p49 = scmp.eq.s32.totalorder %s11, 1
    %p50 = scmp.ne.s32.totalorder %s45, %s47
    %p51 = scmp.eq.s32.totalorder %s11, 0
    %p52 = por %p50, %p51
    %p53 = scmp.ne.s32.totalorder %s45, %s47
    %p54 = scmp.eq.s32.totalorder %s16, 1
    %p55 = por %p53, %p54
    %p56 = scmp.ne.s32.totalorder %s47, %s48
    %p57 = scmp.eq.s32.totalorder %s16, 0
    %p58 = por %p56, %p57
    %p59 = scmp.ne.s32.totalorder %s47, %s48
    %p60 = scmp.eq.s32.totalorder %s17, 1
    %p61 = por %p59, %p60
    %p63 = scmp.ne.s32.totalorder %s48, %s62
    %p64 = scmp.eq.s32.totalorder %s17, 0
    %p65 = por %p63, %p64
    %s67 = sadd.s32 %s66, 1
    %p70 = scmp.eq.s32.totalorder %s11, 1
    %p71 = scmp.ne.s32.totalorder %s66, %s68
    %p72 = scmp.eq.s32.totalorder %s11, 0
    %p73 = por %p71, %p72
    %p74 = scmp.ne.s32.totalorder %s66, %s68
    %p75 = scmp.eq.s32.totalorder %s16, 1
    %p76 = por %p74, %p75
    %p77 = scmp.ne.s32.totalorder %s68, %s69
    %p78 = scmp.eq.s32.totalorder %s16, 0
    %p79 = por %p77, %p78
    %p80 = scmp.ne.s32.totalorder %s68, %s69
    %p81 = scmp.eq.s32.totalorder %s17, 1
    %p82 = por %p80, %p81
    %p84 = scmp.ne.s32.totalorder %s69, %s83
    %p85 = scmp.eq.s32.totalorder %s17, 0
    %p86 = por %p84, %p85
    %s88 = sadd.s32 %s87, 1
    %p91 = scmp.eq.s32.totalorder %s11, 1
    %p92 = scmp.ne.s32.totalorder %s87, %s89
    %p93 = scmp.eq.s32.totalorder %s11, 0
    %p94 = por %p92, %p93
    %p95 = scmp.ne.s32.totalorder %s87, %s89
    %p96 = scmp.eq.s32.totalorder %s16, 1
    %p97 = por %p95, %p96
    %p98 = scmp.ne.s32.totalorder %s89, %s90
    %p99 = scmp.eq.s32.totalorder %s16, 0
    %p100 = por %p98, %p99
    %p101 = scmp.ne.s32.totalorder %s89, %s90
    %p102 = scmp.eq.s32.totalorder %s17, 1
    %p103 = por %p101, %p102
    %p105 = scmp.ne.s32.totalorder %s90, %s104
    %p106 = scmp.eq.s32.totalorder %s17, 0
    %p107 = por %p105, %p106
    %s109 = sadd.s32 %s108, 1
    %p112 = scmp.eq.s32.totalorder %s11, 1
    %p113 = scmp.ne.s32.totalorder %s108, %s110
    %p114 = scmp.eq.s32.totalorder %s11, 0
    %p115 = por %p113, %p114
    %p116 = scmp.ne.s32.totalorder %s108, %s110
    %p117 = scmp.eq.s32.totalorder %s16, 1
    %p118 = por %p116, %p117
    %p119 = scmp.ne.s32.totalorder %s110, %s111
    %p120 = scmp.eq.s32.totalorder %s16, 0
    %p121 = por %p119, %p120
    %p122 = scmp.ne.s32.totalorder %s110, %s111
    %p123 = scmp.eq.s32.totalorder %s17, 1
    %p124 = por %p122, %p123
    %p126 = scmp.ne.s32.totalorder %s111, %s125
    %p127 = scmp.eq.s32.totalorder %s17, 0
    %p128 = por %p126, %p127
    %s129 = ssub.s32 %s11, %s18
    %p130 = scmp.eq.s32.totalorder %s129, 0
    %s132 = sadd.s32 %s131, 1
    %s133 = scalar_select %p130, %s131, %s132
    %p136 = pneg %p130
    %p137 = scmp.eq.s32.totalorder %s11, 1
    %p138 = por %p136, %p137
    %p139 = scmp.ne.s32.totalorder %s131, %s134
    %p140 = scmp.eq.s32.totalorder %s11, 0
    %p141 = por %p139, %p140
    %p142 = scmp.ne.s32.totalorder %s131, %s134
    %p143 = scmp.eq.s32.totalorder %s16, 1
    %p144 = por %p142, %p143
    %p145 = scmp.ne.s32.totalorder %s134, %s135
    %p146 = scmp.eq.s32.totalorder %s16, 0
    %p147 = por %p145, %p146
    %p148 = scmp.ne.s32.totalorder %s134, %s135
    %p149 = scmp.eq.s32.totalorder %s17, 1
    %p150 = por %p148, %p149
    %p152 = scmp.ne.s32.totalorder %s135, %s151
    %p153 = scmp.eq.s32.totalorder %s17, 0
    %p154 = por %p152, %p153
    %p155 = scmp.le.s32.totalorder 1, %s11
    %p156 = scmp.lt.s32.totalorder %s11, 3
    %p157 = pnand %p155, %p156
    %p158 = pneg %p157
    // Predicated region
    $region9: #{_lambda_.15} parent=5 // pred_check
      _
    $region10: #{_lambda_.15} parent=5 // pred_check_branch
      %160 = sbr.rel (%p157) target = $region12
    $region11: #{_lambda_.15} parent=5 // pred_region
      %s161 = ssub.s32 %s11, 1
      // Predicated region
      $region13: #{_lambda_.15} parent=11 // pred_check
        %p162 = pneg %p58
      $region14: #{_lambda_.15} parent=11 // pred_check_branch
        %164 = sbr.rel (%p162) target = $region16
      $region15: #{_lambda_.15} parent=11 // pred_region
        _
      $region16: #{_lambda_.15} parent=11 // pred_fallthru
        _
      // Predicated region
      $region17: #{_lambda_.15} parent=11 // pred_check
        %p165 = pneg %p79
      $region18: #{_lambda_.15} parent=11 // pred_check_branch
        %167 = sbr.rel (%p165) target = $region20
      $region19: #{_lambda_.15} parent=11 // pred_region
        _
      $region20: #{_lambda_.15} parent=11 // pred_fallthru
        _
      // Predicated region
      $region21: #{_lambda_.15} parent=11 // pred_check
        %p168 = pneg %p100
      $region22: #{_lambda_.15} parent=11 // pred_check_branch
        %170 = sbr.rel (%p168) target = $region24
      $region23: #{_lambda_.15} parent=11 // pred_region
        _
      $region24: #{_lambda_.15} parent=11 // pred_fallthru
        _
      // Predicated region
      $region25: #{_lambda_.15} parent=11 // pred_check
        %p171 = pneg %p121
      $region26: #{_lambda_.15} parent=11 // pred_check_branch
        %173 = sbr.rel (%p171) target = $region28
      $region27: #{_lambda_.15} parent=11 // pred_region
        _
      $region28: #{_lambda_.15} parent=11 // pred_fallthru
        _
    $region12: #{_lambda_.15} parent=5 // pred_fallthru
      _
    %p174 = scmp.lt.s32.totalorder %s11, 2
    // Predicated region
    $region29: #{_lambda_.15} parent=5 // pred_check
      %p175 = pneg %p174
    $region30: #{_lambda_.15} parent=5 // pred_check_branch
      %177 = sbr.rel (%p175) target = $region32
    $region31: #{_lambda_.15} parent=5 // pred_region
      // Predicated region
      $region33: #{_lambda_.15} parent=31 // pred_check
        %p178 = pneg %p31
      $region34: #{_lambda_.15} parent=31 // pred_check_branch
        %180 = sbr.rel (%p178) target = $region36
      $region35: #{_lambda_.15} parent=31 // pred_region
        %p181 = scmp.lt.s32.totalorder %s11, 1
        %s182 = scalar_select %p181, %s11, 1
        %s183 = smul.addr %s182, 20
        %s184 = smul.addr %s183, 4
        %s185 = scalar_lea.vmem %s0, %s184
      $region36: #{_lambda_.15} parent=31 // pred_fallthru
        _
    $region32: #{_lambda_.15} parent=5 // pred_fallthru
      _
    %p186 = scmp.le.s32.totalorder 1, %s11
    %p187 = scmp.lt.s32.totalorder %s11, 3
    %p188 = pnand %p186, %p187
    %p189 = pneg %p188
    // Predicated region
    $region37: #{_lambda_.15} parent=5 // pred_check
      _
    $region38: #{_lambda_.15} parent=5 // pred_check_branch
      %191 = sbr.rel (%p188) target = $region40
    $region39: #{_lambda_.15} parent=5 // pred_region
      %s192 = ssub.s32 %s11, 1
      %p193 = scmp.lt.s32.totalorder %s16, 1
      %s194 = scalar_select %p193, %s16, 1
      %s195 = smul.addr %s194, 20
      %s196 = smul.addr %s195, 4
      %s197 = scalar_lea.vmem %s0, %s196
      %p198 = pneg %p37
      %p199 = pneg %p34
      %p200 = pneg %p58
      %p201 = pneg %p55
      %p202 = pneg %p79
      %p203 = pneg %p76
      %p204 = pneg %p100
      %p205 = pneg %p97
      %p206 = pneg %p121
      %p207 = pneg %p118
      %p208 = pneg %p147
      %p209 = pneg %p144
      %p210 = scmp.lt.s32.totalorder %s16, 1
      %s211 = scalar_select %p210, %s16, 1
      %s212 = smul.addr %s211, 8
      %s213 = smul.addr %s212, 4
      %s214 = scalar_lea.vmem %s5, %s213
      %p215 = scmp.lt.s32.totalorder %s16, 1
      %s216 = scalar_select %p215, %s16, 1
      %s217 = smul.addr %s216, 20
      %s218 = smul.addr %s217, 4
      %s219 = scalar_lea.vmem %s0, %s218
      %p220 = scmp.lt.s32.totalorder %s16, 1
      %s221 = scalar_select %p220, %s16, 1
      %s222 = smul.addr %s221, 8
      %s223 = smul.addr %s222, 4
      %s224 = scalar_lea.vmem %s5, %s223
      %v226 = vld [vmem:[%s2] sm:$0x1]
      %v227 = vld [vmem:[%s3] sm:$0x1]
      %v228 = vld [vmem:[%s219] sm:$0xf]
      %v229 = vld [vmem:[%s219 + $0x8] sm:$0xf]
      %v230 = vld [vmem:[%s219 + $0x10] sm:$0xf]
      %v231 = vld [vmem:[%s219 + $0x18] sm:$0xf]
      %v232 = vld [vmem:[%s219 + $0x20] sm:$0xf]
      %v233 = vld [vmem:[%s219 + $0x28] sm:$0xf]
      %v234 = vld [vmem:[%s219 + $0x30] sm:$0xf]
      %v235 = vld [vmem:[%s219 + $0x38] sm:$0xf]
      %v236 = vunpack.c.l.bf16 %v228
      %v237 = vunpack.c.l.bf16 %v229
      %v238 = vunpack.c.l.bf16 %v230
      %v239 = vunpack.c.l.bf16 %v231
      %v240 = vunpack.c.l.bf16 %v232
      %v241 = vunpack.c.l.bf16 %v233
      %v242 = vunpack.c.l.bf16 %v234
      %v243 = vunpack.c.l.bf16 %v235
      %v244 = vld [vmem:[%s1] sm:$0xff]
      %v245 = vld [vmem:[%s1 + $0x10] sm:$0xff]
      %v246 = vld [vmem:[%s1 + $0x20] sm:$0xff]
      %v247 = vld [vmem:[%s1 + $0x30] sm:$0xff]
      %v248 = vld [vmem:[%s1 + $0x40] sm:$0xff]
      %v249 = vld [vmem:[%s1 + $0x50] sm:$0xff]
      %v250 = vld [vmem:[%s1 + $0x60] sm:$0xff]
      %v251 = vld [vmem:[%s1 + $0x70] sm:$0xff]
      %v253 = vperm.slane %v226, 0
      %v255 = vmul.f32 %v236, %v253
      %v256 = vmul.f32 %v237, %v253
      %v257 = vmul.f32 %v238, %v253
      %v258 = vmul.f32 %v239, %v253
      %v259 = vmul.f32 %v240, %v253
      %v260 = vmul.f32 %v241, %v253
      %v261 = vmul.f32 %v242, %v253
      %v262 = vmul.f32 %v243, %v253
      %v264 = vperm.slane %v227, 0
      %v266 = vadd.f32 %v255, %v264
      %v267 = vadd.f32 %v256, %v264
      %v268 = vadd.f32 %v257, %v264
      %v269 = vadd.f32 %v258, %v264
      %v270 = vadd.f32 %v259, %v264
      %v271 = vadd.f32 %v260, %v264
      %v272 = vadd.f32 %v261, %v264
      %v273 = vadd.f32 %v262, %v264
      %v274 = vmax.f32 %v266, 0.0
      %v275 = vmax.f32 %v267, 0.0
      %v276 = vmax.f32 %v268, 0.0
      %v277 = vmax.f32 %v269, 0.0
      %v278 = vmax.f32 %v270, 0.0
      %v279 = vmax.f32 %v271, 0.0
      %v280 = vmax.f32 %v272, 0.0
      %v281 = vmax.f32 %v273, 0.0
      %283 = vset.pattern.permute.xlu0 0
      %284 = vperm.xlu0 %283, %v244
      %v285 = vpop.permute.xlu0 %284
      %288 = vset.pattern.permute.xlu0 0
      %289 = vperm.xlu0 %288, %v245
      %v290 = vpop.permute.xlu0 %289
      %293 = vset.pattern.permute.xlu0 0
      %294 = vperm.xlu0 %293, %v246
      %v295 = vpop.permute.xlu0 %294
      %298 = vset.pattern.permute.xlu0 0
      %299 = vperm.xlu0 %298, %v247
      %v300 = vpop.permute.xlu0 %299
      %303 = vset.pattern.permute.xlu0 0
      %304 = vperm.xlu0 %303, %v248
      %v305 = vpop.permute.xlu0 %304
      %308 = vset.pattern.permute.xlu0 0
      %309 = vperm.xlu0 %308, %v249
      %v310 = vpop.permute.xlu0 %309
      %313 = vset.pattern.permute.xlu0 0
      %314 = vperm.xlu0 %313, %v250
      %v315 = vpop.permute.xlu0 %314
      %318 = vset.pattern.permute.xlu0 0
      %319 = vperm.xlu0 %318, %v251
      %v320 = vpop.permute.xlu0 %319
      %v322 = vmul.f32 %v274, %v285
      %v323 = vmul.f32 %v275, %v290
      %v324 = vmul.f32 %v276, %v295
      %v325 = vmul.f32 %v277, %v300
      %v326 = vmul.f32 %v278, %v305
      %v327 = vmul.f32 %v279, %v310
      %v328 = vmul.f32 %v280, %v315
      %v329 = vmul.f32 %v281, %v320
      %v330 = vpack.c.bf16 %v323, %v322
      %v331 = vpack.c.bf16 %v325, %v324
      %v332 = vpack.c.bf16 %v327, %v326
      %v333 = vpack.c.bf16 %v329, %v328
      %v334 = vld [vmem:[%s4] sm:$0xf]
      %v335 = vld [vmem:[%s219] sm:$0xf]
      %v336 = vld [vmem:[%s219 + $0x4] sm:$0x1]
      %v337 = vld [vmem:[%s219 + $0x8] sm:$0xf]
      %v338 = vld [vmem:[%s219 + $0xc] sm:$0x1]
      %v339 = vld [vmem:[%s219 + $0x10] sm:$0xf]
      %v340 = vld [vmem:[%s219 + $0x14] sm:$0x1]
      %v341 = vld [vmem:[%s219 + $0x18] sm:$0xf]
      %v342 = vld [vmem:[%s219 + $0x1c] sm:$0x1]
      %v343 = vld [vmem:[%s219 + $0x20] sm:$0xf]
      %v344 = vld [vmem:[%s219 + $0x24] sm:$0x1]
      %v345 = vld [vmem:[%s219 + $0x28] sm:$0xf]
      %v346 = vld [vmem:[%s219 + $0x2c] sm:$0x1]
      %v347 = vld [vmem:[%s219 + $0x30] sm:$0xf]
      %v348 = vld [vmem:[%s219 + $0x34] sm:$0x1]
      %v349 = vld [vmem:[%s219 + $0x38] sm:$0xf]
      %v350 = vld [vmem:[%s219 + $0x3c] sm:$0x1]
      %v351 = vunpack.c.l.bf16 %v335
      %v352 = vunpack.c.l.bf16 %v336
      %v353 = vunpack.c.l.bf16 %v337
      %v354 = vunpack.c.l.bf16 %v338
      %v355 = vunpack.c.l.bf16 %v339
      %v356 = vunpack.c.l.bf16 %v340
      %v357 = vunpack.c.l.bf16 %v341
      %v358 = vunpack.c.l.bf16 %v342
      %v359 = vunpack.c.l.bf16 %v343
      %v360 = vunpack.c.l.bf16 %v344
      %v361 = vunpack.c.l.bf16 %v345
      %v362 = vunpack.c.l.bf16 %v346
      %v363 = vunpack.c.l.bf16 %v347
      %v364 = vunpack.c.l.bf16 %v348
      %v365 = vunpack.c.l.bf16 %v349
      %v366 = vunpack.c.l.bf16 %v350
      %v367 = vld [vmem:[%s1 + $0x1] sm:$0xff]
      %v368 = vld [vmem:[%s1 + $0x11] sm:$0xff]
      %v369 = vld [vmem:[%s1 + $0x21] sm:$0xff]
      %v370 = vld [vmem:[%s1 + $0x31] sm:$0xff]
      %v371 = vld [vmem:[%s1 + $0x41] sm:$0xff]
      %v372 = vld [vmem:[%s1 + $0x51] sm:$0xff]
      %v373 = vld [vmem:[%s1 + $0x61] sm:$0xff]
      %v374 = vld [vmem:[%s1 + $0x71] sm:$0xff]
      %v375 = vmul.f32 %v351, %v253
      %v376 = vmul.f32 %v352, %v253
      %v377 = vmul.f32 %v353, %v253
      %v378 = vmul.f32 %v354, %v253
      %v379 = vmul.f32 %v355, %v253
      %v380 = vmul.f32 %v356, %v253
      %v381 = vmul.f32 %v357, %v253
      %v382 = vmul.f32 %v358, %v253
      %v383 = vmul.f32 %v359, %v253
      %v384 = vmul.f32 %v360, %v253
      %v385 = vmul.f32 %v361, %v253
      %v386 = vmul.f32 %v362, %v253
      %v387 = vmul.f32 %v363, %v253
      %v388 = vmul.f32 %v364, %v253
      %v389 = vmul.f32 %v365, %v253
      %v390 = vmul.f32 %v366, %v253
      %v391 = vadd.f32 %v375, %v264
      %v392 = vadd.f32 %v376, %v264
      %v393 = vadd.f32 %v377, %v264
      %v394 = vadd.f32 %v378, %v264
      %v395 = vadd.f32 %v379, %v264
      %v396 = vadd.f32 %v380, %v264
      %v397 = vadd.f32 %v381, %v264
      %v398 = vadd.f32 %v382, %v264
      %v399 = vadd.f32 %v383, %v264
      %v400 = vadd.f32 %v384, %v264
      %v401 = vadd.f32 %v385, %v264
      %v402 = vadd.f32 %v386, %v264
      %v403 = vadd.f32 %v387, %v264
      %v404 = vadd.f32 %v388, %v264
      %v405 = vadd.f32 %v389, %v264
      %v406 = vadd.f32 %v390, %v264
      %v407 = vmax.f32 %v391, 0.0
      %v408 = vmax.f32 %v392, 0.0
      %v409 = vmax.f32 %v393, 0.0
      %v410 = vmax.f32 %v394, 0.0
      %v411 = vmax.f32 %v395, 0.0
      %v412 = vmax.f32 %v396, 0.0
      %v413 = vmax.f32 %v397, 0.0
      %v414 = vmax.f32 %v398, 0.0
      %v415 = vmax.f32 %v399, 0.0
      %v416 = vmax.f32 %v400, 0.0
      %v417 = vmax.f32 %v401, 0.0
      %v418 = vmax.f32 %v402, 0.0
      %v419 = vmax.f32 %v403, 0.0
      %v420 = vmax.f32 %v404, 0.0
      %v421 = vmax.f32 %v405, 0.0
      %v422 = vmax.f32 %v406, 0.0
      %424 = vset.pattern.permute.xlu0 0
      %425 = vperm.xlu0 %424, %v367
      %v426 = vpop.permute.xlu0 %425
      %428 = vset.pattern.permute.xlu0 0
      %429 = vperm.xlu0 %428, %v368
      %v430 = vpop.permute.xlu0 %429
      %432 = vset.pattern.permute.xlu0 0
      %433 = vperm.xlu0 %432, %v369
      %v434 = vpop.permute.xlu0 %433
      %436 = vset.pattern.permute.xlu0 0
      %437 = vperm.xlu0 %436, %v370
      %v438 = vpop.permute.xlu0 %437
      %440 = vset.pattern.permute.xlu0 0
      %441 = vperm.xlu0 %440, %v371
      %v442 = vpop.permute.xlu0 %441
      %444 = vset.pattern.permute.xlu0 0
      %445 = vperm.xlu0 %444, %v372
      %v446 = vpop.permute.xlu0 %445
      %448 = vset.pattern.permute.xlu0 0
      %449 = vperm.xlu0 %448, %v373
      %v450 = vpop.permute.xlu0 %449
      %452 = vset.pattern.permute.xlu0 0
      %453 = vperm.xlu0 %452, %v374
      %v454 = vpop.permute.xlu0 %453
      %v455 = vrot.slane %v426, 7
      %v456 = vrot.slane %v430, 7
      %v457 = vrot.slane %v434, 7
      %v458 = vrot.slane %v438, 7
      %v459 = vrot.slane %v442, 7
      %v460 = vrot.slane %v446, 7
      %v461 = vrot.slane %v450, 7
      %v462 = vrot.slane %v454, 7
      %v471 = vmul.f32 %v407, %v455
      %v472 = vmul.f32 %v408, %v455
      %v473 = vmul.f32 %v409, %v456
      %v474 = vmul.f32 %v410, %v456
      %v475 = vmul.f32 %v411, %v457
      %v476 = vmul.f32 %v412, %v457
      %v477 = vmul.f32 %v413, %v458
      %v478 = vmul.f32 %v414, %v458
      %v479 = vmul.f32 %v415, %v459
      %v480 = vmul.f32 %v416, %v459
      %v481 = vmul.f32 %v417, %v460
      %v482 = vmul.f32 %v418, %v460
      %v483 = vmul.f32 %v419, %v461
      %v484 = vmul.f32 %v420, %v461
      %v485 = vmul.f32 %v421, %v462
      %v486 = vmul.f32 %v422, %v462
      %vm503 = vcmask 1046528
      %v504 = vrot.slane %v471, 1
      %v505 = vrot.slane %v472, 1
      %v506 = vsel %vm503, %v504, %v505
      %v507 = vrot.slane %v473, 1
      %v508 = vrot.slane %v474, 1
      %v509 = vsel %vm503, %v507, %v508
      %v510 = vrot.slane %v475, 1
      %v511 = vrot.slane %v476, 1
      %v512 = vsel %vm503, %v510, %v511
      %v513 = vrot.slane %v477, 1
      %v514 = vrot.slane %v478, 1
      %v515 = vsel %vm503, %v513, %v514
      %v516 = vrot.slane %v479, 1
      %v517 = vrot.slane %v480, 1
      %v518 = vsel %vm503, %v516, %v517
      %v519 = vrot.slane %v481, 1
      %v520 = vrot.slane %v482, 1
      %v521 = vsel %vm503, %v519, %v520
      %v522 = vrot.slane %v483, 1
      %v523 = vrot.slane %v484, 1
      %v524 = vsel %vm503, %v522, %v523
      %v525 = vrot.slane %v485, 1
      %v526 = vrot.slane %v486, 1
      %v527 = vsel %vm503, %v525, %v526
      %v536 = vpack.c.bf16 %v509, %v506
      %v537 = vpack.c.bf16 %v515, %v512
      %v538 = vpack.c.bf16 %v521, %v518
      %v539 = vpack.c.bf16 %v527, %v524
      %v540 = vld [vmem:[%s4 + $0x4] sm:$0xf]
      %vm541 = vcmask 64512
      %v543 = vsel %vm541, %v536, 0
      %v546 = vsel %vm541, %v537, 0
      %v549 = vsel %vm541, %v538, 0
      %v552 = vsel %vm541, %v539, 0
      %vm554 = vcmask 1043456
      %v556 = vsel %vm554, %v540, 0
      %558 = vmatpush.bf16.msra.mxu0 0
      %559 = vmatpush.bf16.msra.mxu0 0
      %560 = vmatpush.bf16.msra.mxu0 0
      %561 = vmatpush.bf16.msra.mxu0 0
      %562 = vmatpush.bf16.msra.mxu0 0
      %563 = vmatpush.bf16.msra.mxu0 0
      %564 = vmatpush.bf16.msra.mxu0 0
      %565 = vmatpush.bf16.msra.mxu0 %v556
      %566 = vmatmul.bf16.gmra.mxu0 %v543
      %v567 = vpop.f32.mrf.mxu0
      %v568 = vadd.f32 0.0, %v567
      %v569 = vpop.f32.mrf.mxu0
      %v570 = vadd.f32 0.0, %v569
      %571 = vmatmul.bf16.gmra.mxu0 %v546
      %v572 = vpop.f32.mrf.mxu0
      %v573 = vadd.f32 0.0, %v572
      %v574 = vpop.f32.mrf.mxu0
      %v575 = vadd.f32 0.0, %v574
      %576 = vmatmul.bf16.gmra.mxu0 %v549
      %v577 = vpop.f32.mrf.mxu0
      %v578 = vadd.f32 0.0, %v577
      %v579 = vpop.f32.mrf.mxu0
      %v580 = vadd.f32 0.0, %v579
      %581 = vmatmul.bf16.gmra.mxu0 %v552
      %v582 = vpop.f32.mrf.mxu0
      %v583 = vadd.f32 0.0, %v582
      %v584 = vpop.f32.mrf.mxu0
      %v585 = vadd.f32 0.0, %v584
      %586 = vdwg.mxu0
      %v588 = vsel %vm541, %v330, 0
      %v591 = vsel %vm541, %v331, 0
      %v594 = vsel %vm541, %v332, 0
      %v597 = vsel %vm541, %v333, 0
      %v600 = vsel %vm554, %v334, 0
      %602 = vmatpush.bf16.msra.mxu0 0
      %603 = vmatpush.bf16.msra.mxu0 0
      %604 = vmatpush.bf16.msra.mxu0 0
      %605 = vmatpush.bf16.msra.mxu0 0
      %606 = vmatpush.bf16.msra.mxu0 0
      %607 = vmatpush.bf16.msra.mxu0 0
      %608 = vmatpush.bf16.msra.mxu0 0
      %609 = vmatpush.bf16.msra.mxu0 %v600
      %610 = vmatmul.bf16.gmra.mxu0 %v588
      %v611 = vpop.f32.mrf.mxu0
      %v612 = vadd.f32 %v568, %v611
      %v613 = vpop.f32.mrf.mxu0
      %v614 = vadd.f32 %v570, %v613
      %615 = vmatmul.bf16.gmra.mxu0 %v591
      %v616 = vpop.f32.mrf.mxu0
      %v617 = vadd.f32 %v573, %v616
      %v618 = vpop.f32.mrf.mxu0
      %v619 = vadd.f32 %v575, %v618
      %620 = vmatmul.bf16.gmra.mxu0 %v594
      %v621 = vpop.f32.mrf.mxu0
      %v622 = vadd.f32 %v578, %v621
      %v623 = vpop.f32.mrf.mxu0
      %v624 = vadd.f32 %v580, %v623
      %625 = vmatmul.bf16.gmra.mxu0 %v597
      %v626 = vpop.f32.mrf.mxu0
      %v627 = vadd.f32 %v583, %v626
      %v628 = vpop.f32.mrf.mxu0
      %v629 = vadd.f32 %v585, %v628
      %630 = vdwg.mxu0
      %v631 = vld [vmem:[%s219] sm:$0xe]
      %v632 = vld [vmem:[%s219 + $0x8] sm:$0xe]
      %v633 = vld [vmem:[%s219 + $0x10] sm:$0xe]
      %v634 = vld [vmem:[%s219 + $0x18] sm:$0xe]
      %v635 = vld [vmem:[%s219 + $0x20] sm:$0xe]
      %v636 = vld [vmem:[%s219 + $0x28] sm:$0xe]
      %v637 = vld [vmem:[%s219 + $0x30] sm:$0xe]
      %v638 = vld [vmem:[%s219 + $0x38] sm:$0xe]
      %v639 = vunpack.c.l.bf16 %v631
      %v640 = vunpack.c.l.bf16 %v632
      %v641 = vunpack.c.l.bf16 %v633
      %v642 = vunpack.c.l.bf16 %v634
      %v643 = vunpack.c.l.bf16 %v635
      %v644 = vunpack.c.l.bf16 %v636
      %v645 = vunpack.c.l.bf16 %v637
      %v646 = vunpack.c.l.bf16 %v638
      %v647 = vld [vmem:[%s1 + $0x2] sm:$0xff]
      %v648 = vld [vmem:[%s1 + $0x12] sm:$0xff]
      %v649 = vld [vmem:[%s1 + $0x22] sm:$0xff]
      %v650 = vld [vmem:[%s1 + $0x32] sm:$0xff]
      %v651 = vld [vmem:[%s1 + $0x42] sm:$0xff]
      %v652 = vld [vmem:[%s1 + $0x52] sm:$0xff]
      %v653 = vld [vmem:[%s1 + $0x62] sm:$0xff]
      %v654 = vld [vmem:[%s1 + $0x72] sm:$0xff]
      %v655 = vmul.f32 %v639, %v253
      %v656 = vmul.f32 %v640, %v253
      %v657 = vmul.f32 %v641, %v253
      %v658 = vmul.f32 %v642, %v253
      %v659 = vmul.f32 %v643, %v253
      %v660 = vmul.f32 %v644, %v253
      %v661 = vmul.f32 %v645, %v253
      %v662 = vmul.f32 %v646, %v253
      %v663 = vadd.f32 %v655, %v264
      %v664 = vadd.f32 %v656, %v264
      %v665 = vadd.f32 %v657, %v264
      %v666 = vadd.f32 %v658, %v264
      %v667 = vadd.f32 %v659, %v264
      %v668 = vadd.f32 %v660, %v264
      %v669 = vadd.f32 %v661, %v264
      %v670 = vadd.f32 %v662, %v264
      %v671 = vmax.f32 %v663, 0.0
      %v672 = vmax.f32 %v664, 0.0
      %v673 = vmax.f32 %v665, 0.0
      %v674 = vmax.f32 %v666, 0.0
      %v675 = vmax.f32 %v667, 0.0
      %v676 = vmax.f32 %v668, 0.0
      %v677 = vmax.f32 %v669, 0.0
      %v678 = vmax.f32 %v670, 0.0
      %680 = vset.pattern.permute.xlu0 0
      %681 = vperm.xlu0 %680, %v647
      %v682 = vpop.permute.xlu0 %681
      %684 = vset.pattern.permute.xlu0 0
      %685 = vperm.xlu0 %684, %v648
      %v686 = vpop.permute.xlu0 %685
      %688 = vset.pattern.permute.xlu0 0
      %689 = vperm.xlu0 %688, %v649
      %v690 = vpop.permute.xlu0 %689
      %692 = vset.pattern.permute.xlu0 0
      %693 = vperm.xlu0 %692, %v650
      %v694 = vpop.permute.xlu0 %693
      %696 = vset.pattern.permute.xlu0 0
      %697 = vperm.xlu0 %696, %v651
      %v698 = vpop.permute.xlu0 %697
      %700 = vset.pattern.permute.xlu0 0
      %701 = vperm.xlu0 %700, %v652
      %v702 = vpop.permute.xlu0 %701
      %704 = vset.pattern.permute.xlu0 0
      %705 = vperm.xlu0 %704, %v653
      %v706 = vpop.permute.xlu0 %705
      %708 = vset.pattern.permute.xlu0 0
      %709 = vperm.xlu0 %708, %v654
      %v710 = vpop.permute.xlu0 %709
      %v711 = vrot.slane %v682, 6
      %v712 = vrot.slane %v686, 6
      %v713 = vrot.slane %v690, 6
      %v714 = vrot.slane %v694, 6
      %v715 = vrot.slane %v698, 6
      %v716 = vrot.slane %v702, 6
      %v717 = vrot.slane %v706, 6
      %v718 = vrot.slane %v710, 6
      %v727 = vmul.f32 %v671, %v711
      %v728 = vmul.f32 %v408, %v711
      %v729 = vmul.f32 %v672, %v712
      %v730 = vmul.f32 %v410, %v712
      %v731 = vmul.f32 %v673, %v713
      %v732 = vmul.f32 %v412, %v713
      %v733 = vmul.f32 %v674, %v714
      %v734 = vmul.f32 %v414, %v714
      %v735 = vmul.f32 %v675, %v715
      %v736 = vmul.f32 %v416, %v715
      %v737 = vmul.f32 %v676, %v716
      %v738 = vmul.f32 %v418, %v716
      %v739 = vmul.f32 %v677, %v717
      %v740 = vmul.f32 %v420, %v717
      %v741 = vmul.f32 %v678, %v718
      %v742 = vmul.f32 %v422, %v718
      %vm759 = vcmask 1045504
      %v760 = vrot.slane %v727, 2
      %v761 = vrot.slane %v728, 2
      %v762 = vsel %vm759, %v760, %v761
      %v763 = vrot.slane %v729, 2
      %v764 = vrot.slane %v730, 2
      %v765 = vsel %vm759, %v763, %v764
      %v766 = vrot.slane %v731, 2
      %v767 = vrot.slane %v732, 2
      %v768 = vsel %vm759, %v766, %v767
      %v769 = vrot.slane %v733, 2
      %v770 = vrot.slane %v734, 2
      %v771 = vsel %vm759, %v769, %v770
      %v772 = vrot.slane %v735, 2
      %v773 = vrot.slane %v736, 2
      %v774 = vsel %vm759, %v772, %v773
      %v775 = vrot.slane %v737, 2
      %v776 = vrot.slane %v738, 2
      %v777 = vsel %vm759, %v775, %v776
      %v778 = vrot.slane %v739, 2
      %v779 = vrot.slane %v740, 2
      %v780 = vsel %vm759, %v778, %v779
      %v781 = vrot.slane %v741, 2
      %v782 = vrot.slane %v742, 2
      %v783 = vsel %vm759, %v781, %v782
      %v792 = vpack.c.bf16 %v765, %v762
      %v793 = vpack.c.bf16 %v771, %v768
      %v794 = vpack.c.bf16 %v777, %v774
      %v795 = vpack.c.bf16 %v783, %v780
      %v796 = vld [vmem:[%s4 + $0x8] sm:$0xf]
      %v798 = vsel %vm541, %v792, 0
      %v801 = vsel %vm541, %v793, 0
      %v804 = vsel %vm541, %v794, 0
      %v807 = vsel %vm541, %v795, 0
      %v810 = vsel %vm554, %v796, 0
      %812 = vmatpush.bf16.msra.mxu0 0
      %813 = vmatpush.bf16.msra.mxu0 0
      %814 = vmatpush.bf16.msra.mxu0 0
      %815 = vmatpush.bf16.msra.mxu0 0
      %816 = vmatpush.bf16.msra.mxu0 0
      %817 = vmatpush.bf16.msra.mxu0 0
      %818 = vmatpush.bf16.msra.mxu0 0
      %819 = vmatpush.bf16.msra.mxu0 %v810
      %820 = vmatmul.bf16.gmra.mxu0 %v798
      %v821 = vpop.f32.mrf.mxu0
      %v822 = vadd.f32 0.0, %v821
      %v823 = vpop.f32.mrf.mxu0
      %v824 = vadd.f32 0.0, %v823
      %825 = vmatmul.bf16.gmra.mxu0 %v801
      %v826 = vpop.f32.mrf.mxu0
      %v827 = vadd.f32 0.0, %v826
      %v828 = vpop.f32.mrf.mxu0
      %v829 = vadd.f32 0.0, %v828
      %830 = vmatmul.bf16.gmra.mxu0 %v804
      %v831 = vpop.f32.mrf.mxu0
      %v832 = vadd.f32 0.0, %v831
      %v833 = vpop.f32.mrf.mxu0
      %v834 = vadd.f32 0.0, %v833
      %835 = vmatmul.bf16.gmra.mxu0 %v807
      %v836 = vpop.f32.mrf.mxu0
      %v837 = vadd.f32 0.0, %v836
      %v838 = vpop.f32.mrf.mxu0
      %v839 = vadd.f32 0.0, %v838
      %840 = vdwg.mxu0
      %v841 = vadd.f32 %v612, %v822
      %v842 = vadd.f32 %v614, %v824
      %v843 = vadd.f32 %v617, %v827
      %v844 = vadd.f32 %v619, %v829
      %v845 = vadd.f32 %v622, %v832
      %v846 = vadd.f32 %v624, %v834
      %v847 = vadd.f32 %v627, %v837
      %v848 = vadd.f32 %v629, %v839
      %s849 = scalar_lea.vmem %s219, 8
      %v850 = vld [vmem:[%s849] sm:$0xf]
      %v851 = vld [vmem:[%s849 + $0x8] sm:$0xf]
      %v852 = vld [vmem:[%s849 + $0x10] sm:$0xf]
      %v853 = vld [vmem:[%s849 + $0x18] sm:$0xf]
      %v854 = vld [vmem:[%s849 + $0x20] sm:$0xf]
      %v855 = vld [vmem:[%s849 + $0x28] sm:$0xf]
      %v856 = vld [vmem:[%s849 + $0x30] sm:$0xf]
      %v857 = vld [vmem:[%s849 + $0x38] sm:$0xf]
      %v858 = vunpack.c.l.bf16 %v850
      %v859 = vunpack.c.l.bf16 %v851
      %v860 = vunpack.c.l.bf16 %v852
      %v861 = vunpack.c.l.bf16 %v853
      %v862 = vunpack.c.l.bf16 %v854
      %v863 = vunpack.c.l.bf16 %v855
      %v864 = vunpack.c.l.bf16 %v856
      %v865 = vunpack.c.l.bf16 %v857
      %s866 = scalar_lea.vmem %s1, 16
      %v867 = vld [vmem:[%s866] sm:$0xff]
      %v868 = vld [vmem:[%s866 + $0x10] sm:$0xff]
      %v869 = vld [vmem:[%s866 + $0x20] sm:$0xff]
      %v870 = vld [vmem:[%s866 + $0x30] sm:$0xff]
      %v871 = vld [vmem:[%s866 + $0x40] sm:$0xff]
      %v872 = vld [vmem:[%s866 + $0x50] sm:$0xff]
      %v873 = vld [vmem:[%s866 + $0x60] sm:$0xff]
      %v874 = vld [vmem:[%s866 + $0x70] sm:$0xff]
      %v875 = vmul.f32 %v858, %v253
      %v876 = vmul.f32 %v859, %v253
      %v877 = vmul.f32 %v860, %v253
      %v878 = vmul.f32 %v861, %v253
      %v879 = vmul.f32 %v862, %v253
      %v880 = vmul.f32 %v863, %v253
      %v881 = vmul.f32 %v864, %v253
      %v882 = vmul.f32 %v865, %v253
      %v883 = vadd.f32 %v875, %v264
      %v884 = vadd.f32 %v876, %v264
      %v885 = vadd.f32 %v877, %v264
      %v886 = vadd.f32 %v878, %v264
      %v887 = vadd.f32 %v879, %v264
      %v888 = vadd.f32 %v880, %v264
      %v889 = vadd.f32 %v881, %v264
      %v890 = vadd.f32 %v882, %v264
      %v891 = vmax.f32 %v883, 0.0
      %v892 = vmax.f32 %v884, 0.0
      %v893 = vmax.f32 %v885, 0.0
      %v894 = vmax.f32 %v886, 0.0
      %v895 = vmax.f32 %v887, 0.0
      %v896 = vmax.f32 %v888, 0.0
      %v897 = vmax.f32 %v889, 0.0
      %v898 = vmax.f32 %v890, 0.0
      %900 = vset.pattern.permute.xlu0 0
      %901 = vperm.xlu0 %900, %v867
      %v902 = vpop.permute.xlu0 %901
      %905 = vset.pattern.permute.xlu0 0
      %906 = vperm.xlu0 %905, %v868
      %v907 = vpop.permute.xlu0 %906
      %910 = vset.pattern.permute.xlu0 0
      %911 = vperm.xlu0 %910, %v869
      %v912 = vpop.permute.xlu0 %911
      %915 = vset.pattern.permute.xlu0 0
      %916 = vperm.xlu0 %915, %v870
      %v917 = vpop.permute.xlu0 %916
      %920 = vset.pattern.permute.xlu0 0
      %921 = vperm.xlu0 %920, %v871
      %v922 = vpop.permute.xlu0 %921
      %925 = vset.pattern.permute.xlu0 0
      %926 = vperm.xlu0 %925, %v872
      %v927 = vpop.permute.xlu0 %926
      %930 = vset.pattern.permute.xlu0 0
      %931 = vperm.xlu0 %930, %v873
      %v932 = vpop.permute.xlu0 %931
      %935 = vset.pattern.permute.xlu0 0
      %936 = vperm.xlu0 %935, %v874
      %v937 = vpop.permute.xlu0 %936
      %v939 = vmul.f32 %v891, %v902
      %v940 = vmul.f32 %v892, %v907
      %v941 = vmul.f32 %v893, %v912
      %v942 = vmul.f32 %v894, %v917
      %v943 = vmul.f32 %v895, %v922
      %v944 = vmul.f32 %v896, %v927
      %v945 = vmul.f32 %v897, %v932
      %v946 = vmul.f32 %v898, %v937
      %v947 = vpack.c.bf16 %v940, %v939
      %v948 = vpack.c.bf16 %v942, %v941
      %v949 = vpack.c.bf16 %v944, %v943
      %v950 = vpack.c.bf16 %v946, %v945
      %v951 = vld [vmem:[%s4 + $0xc] sm:$0xf]
      %v953 = vsel %vm541, %v947, 0
      %v956 = vsel %vm541, %v948, 0
      %v959 = vsel %vm541, %v949, 0
      %v962 = vsel %vm541, %v950, 0
      %v965 = vsel %vm554, %v951, 0
      %967 = vmatpush.bf16.msra.mxu0 0
      %968 = vmatpush.bf16.msra.mxu0 0
      %969 = vmatpush.bf16.msra.mxu0 0
      %970 = vmatpush.bf16.msra.mxu0 0
      %971 = vmatpush.bf16.msra.mxu0 0
      %972 = vmatpush.bf16.msra.mxu0 0
      %973 = vmatpush.bf16.msra.mxu0 0
      %974 = vmatpush.bf16.msra.mxu0 %v965
      %975 = vmatmul.bf16.gmra.mxu0 %v953
      %v976 = vpop.f32.mrf.mxu0
      %v977 = vadd.f32 0.0, %v976
      %v978 = vpop.f32.mrf.mxu0
      %v979 = vadd.f32 0.0, %v978
      %980 = vmatmul.bf16.gmra.mxu0 %v956
      %v981 = vpop.f32.mrf.mxu0
      %v982 = vadd.f32 0.0, %v981
      %v983 = vpop.f32.mrf.mxu0
      %v984 = vadd.f32 0.0, %v983
      %985 = vmatmul.bf16.gmra.mxu0 %v959
      %v986 = vpop.f32.mrf.mxu0
      %v987 = vadd.f32 0.0, %v986
      %v988 = vpop.f32.mrf.mxu0
      %v989 = vadd.f32 0.0, %v988
      %990 = vmatmul.bf16.gmra.mxu0 %v962
      %v991 = vpop.f32.mrf.mxu0
      %v992 = vadd.f32 0.0, %v991
      %v993 = vpop.f32.mrf.mxu0
      %v994 = vadd.f32 0.0, %v993
      %995 = vdwg.mxu0
      %v996 = vadd.f32 %v841, %v977
      %v997 = vadd.f32 %v842, %v979
      %v998 = vadd.f32 %v843, %v982
      %v999 = vadd.f32 %v844, %v984
      %v1000 = vadd.f32 %v845, %v987
      %v1001 = vadd.f32 %v846, %v989
      %v1002 = vadd.f32 %v847, %v992
      %v1003 = vadd.f32 %v848, %v994
      %v1004 = vld [vmem:[%s849] sm:$0xf]
      %v1005 = vld [vmem:[%s849 + $0x4] sm:$0x1]
      %v1006 = vld [vmem:[%s849 + $0x8] sm:$0xf]
      %v1007 = vld [vmem:[%s849 + $0xc] sm:$0x1]
      %v1008 = vld [vmem:[%s849 + $0x10] sm:$0xf]
      %v1009 = vld [vmem:[%s849 + $0x14] sm:$0x1]
      %v1010 = vld [vmem:[%s849 + $0x18] sm:$0xf]
      %v1011 = vld [vmem:[%s849 + $0x1c] sm:$0x1]
      %v1012 = vld [vmem:[%s849 + $0x20] sm:$0xf]
      %v1013 = vld [vmem:[%s849 + $0x24] sm:$0x1]
      %v1014 = vld [vmem:[%s849 + $0x28] sm:$0xf]
      %v1015 = vld [vmem:[%s849 + $0x2c] sm:$0x1]
      %v1016 = vld [vmem:[%s849 + $0x30] sm:$0xf]
      %v1017 = vld [vmem:[%s849 + $0x34] sm:$0x1]
      %v1018 = vld [vmem:[%s849 + $0x38] sm:$0xf]
      %v1019 = vld [vmem:[%s849 + $0x3c] sm:$0x1]
      %v1020 = vunpack.c.l.bf16 %v1004
      %v1021 = vunpack.c.l.bf16 %v1005
      %v1022 = vunpack.c.l.bf16 %v1006
      %v1023 = vunpack.c.l.bf16 %v1007
      %v1024 = vunpack.c.l.bf16 %v1008
      %v1025 = vunpack.c.l.bf16 %v1009
      %v1026 = vunpack.c.l.bf16 %v1010
      %v1027 = vunpack.c.l.bf16 %v1011
      %v1028 = vunpack.c.l.bf16 %v1012
      %v1029 = vunpack.c.l.bf16 %v1013
      %v1030 = vunpack.c.l.bf16 %v1014
      %v1031 = vunpack.c.l.bf16 %v1015
      %v1032 = vunpack.c.l.bf16 %v1016
      %v1033 = vunpack.c.l.bf16 %v1017
      %v1034 = vunpack.c.l.bf16 %v1018
      %v1035 = vunpack.c.l.bf16 %v1019
      %v1036 = vld [vmem:[%s866 + $0x1] sm:$0xff]
      %v1037 = vld [vmem:[%s866 + $0x11] sm:$0xff]
      %v1038 = vld [vmem:[%s866 + $0x21] sm:$0xff]
      %v1039 = vld [vmem:[%s866 + $0x31] sm:$0xff]
      %v1040 = vld [vmem:[%s866 + $0x41] sm:$0xff]
      %v1041 = vld [vmem:[%s866 + $0x51] sm:$0xff]
      %v1042 = vld [vmem:[%s866 + $0x61] sm:$0xff]
      %v1043 = vld [vmem:[%s866 + $0x71] sm:$0xff]
      %v1044 = vmul.f32 %v1020, %v253
      %v1045 = vmul.f32 %v1021, %v253
      %v1046 = vmul.f32 %v1022, %v253
      %v1047 = vmul.f32 %v1023, %v253
      %v1048 = vmul.f32 %v1024, %v253
      %v1049 = vmul.f32 %v1025, %v253
      %v1050 = vmul.f32 %v1026, %v253
      %v1051 = vmul.f32 %v1027, %v253
      %v1052 = vmul.f32 %v1028, %v253
      %v1053 = vmul.f32 %v1029, %v253
      %v1054 = vmul.f32 %v1030, %v253
      %v1055 = vmul.f32 %v1031, %v253
      %v1056 = vmul.f32 %v1032, %v253
      %v1057 = vmul.f32 %v1033, %v253
      %v1058 = vmul.f32 %v1034, %v253
      %v1059 = vmul.f32 %v1035, %v253
      %v1060 = vadd.f32 %v1044, %v264
      %v1061 = vadd.f32 %v1045, %v264
      %v1062 = vadd.f32 %v1046, %v264
      %v1063 = vadd.f32 %v1047, %v264
      %v1064 = vadd.f32 %v1048, %v264
      %v1065 = vadd.f32 %v1049, %v264
      %v1066 = vadd.f32 %v1050, %v264
      %v1067 = vadd.f32 %v1051, %v264
      %v1068 = vadd.f32 %v1052, %v264
      %v1069 = vadd.f32 %v1053, %v264
      %v1070 = vadd.f32 %v1054, %v264
      %v1071 = vadd.f32 %v1055, %v264
      %v1072 = vadd.f32 %v1056, %v264
      %v1073 = vadd.f32 %v1057, %v264
      %v1074 = vadd.f32 %v1058, %v264
      %v1075 = vadd.f32 %v1059, %v264
      %v1076 = vmax.f32 %v1060, 0.0
      %v1077 = vmax.f32 %v1061, 0.0
      %v1078 = vmax.f32 %v1062, 0.0
      %v1079 = vmax.f32 %v1063, 0.0
      %v1080 = vmax.f32 %v1064, 0.0
      %v1081 = vmax.f32 %v1065, 0.0
      %v1082 = vmax.f32 %v1066, 0.0
      %v1083 = vmax.f32 %v1067, 0.0
      %v1084 = vmax.f32 %v1068, 0.0
      %v1085 = vmax.f32 %v1069, 0.0
      %v1086 = vmax.f32 %v1070, 0.0
      %v1087 = vmax.f32 %v1071, 0.0
      %v1088 = vmax.f32 %v1072, 0.0
      %v1089 = vmax.f32 %v1073, 0.0
      %v1090 = vmax.f32 %v1074, 0.0
      %v1091 = vmax.f32 %v1075, 0.0
      %1093 = vset.pattern.permute.xlu0 0
      %1094 = vperm.xlu0 %1093, %v1036
      %v1095 = vpop.permute.xlu0 %1094
      %1097 = vset.pattern.permute.xlu0 0
      %1098 = vperm.xlu0 %1097, %v1037
      %v1099 = vpop.permute.xlu0 %1098
      %1101 = vset.pattern.permute.xlu0 0
      %1102 = vperm.xlu0 %1101, %v1038
      %v1103 = vpop.permute.xlu0 %1102
      %1105 = vset.pattern.permute.xlu0 0
      %1106 = vperm.xlu0 %1105, %v1039
      %v1107 = vpop.permute.xlu0 %1106
      %1109 = vset.pattern.permute.xlu0 0
      %1110 = vperm.xlu0 %1109, %v1040
      %v1111 = vpop.permute.xlu0 %1110
      %1113 = vset.pattern.permute.xlu0 0
      %1114 = vperm.xlu0 %1113, %v1041
      %v1115 = vpop.permute.xlu0 %1114
      %1117 = vset.pattern.permute.xlu0 0
      %1118 = vperm.xlu0 %1117, %v1042
      %v1119 = vpop.permute.xlu0 %1118
      %1121 = vset.pattern.permute.xlu0 0
      %1122 = vperm.xlu0 %1121, %v1043
      %v1123 = vpop.permute.xlu0 %1122
      %v1124 = vrot.slane %v1095, 7
      %v1125 = vrot.slane %v1099, 7
      %v1126 = vrot.slane %v1103, 7
      %v1127 = vrot.slane %v1107, 7
      %v1128 = vrot.slane %v1111, 7
      %v1129 = vrot.slane %v1115, 7
      %v1130 = vrot.slane %v1119, 7
      %v1131 = vrot.slane %v1123, 7
      %v1140 = vmul.f32 %v1076, %v1124
      %v1141 = vmul.f32 %v1077, %v1124
      %v1142 = vmul.f32 %v1078, %v1125
      %v1143 = vmul.f32 %v1079, %v1125
      %v1144 = vmul.f32 %v1080, %v1126
      %v1145 = vmul.f32 %v1081, %v1126
      %v1146 = vmul.f32 %v1082, %v1127
      %v1147 = vmul.f32 %v1083, %v1127
      %v1148 = vmul.f32 %v1084, %v1128
      %v1149 = vmul.f32 %v1085, %v1128
      %v1150 = vmul.f32 %v1086, %v1129
      %v1151 = vmul.f32 %v1087, %v1129
      %v1152 = vmul.f32 %v1088, %v1130
      %v1153 = vmul.f32 %v1089, %v1130
      %v1154 = vmul.f32 %v1090, %v1131
      %v1155 = vmul.f32 %v1091, %v1131
      %v1172 = vrot.slane %v1140, 1
      %v1173 = vrot.slane %v1141, 1
      %v1174 = vsel %vm503, %v1172, %v1173
      %v1175 = vrot.slane %v1142, 1
      %v1176 = vrot.slane %v1143, 1
      %v1177 = vsel %vm503, %v1175, %v1176
      %v1178 = vrot.slane %v1144, 1
      %v1179 = vrot.slane %v1145, 1
      %v1180 = vsel %vm503, %v1178, %v1179
      %v1181 = vrot.slane %v1146, 1
      %v1182 = vrot.slane %v1147, 1
      %v1183 = vsel %vm503, %v1181, %v1182
      %v1184 = vrot.slane %v1148, 1
      %v1185 = vrot.slane %v1149, 1
      %v1186 = vsel %vm503, %v1184, %v1185
      %v1187 = vrot.slane %v1150, 1
      %v1188 = vrot.slane %v1151, 1
      %v1189 = vsel %vm503, %v1187, %v1188
      %v1190 = vrot.slane %v1152, 1
      %v1191 = vrot.slane %v1153, 1
      %v1192 = vsel %vm503, %v1190, %v1191
      %v1193 = vrot.slane %v1154, 1
      %v1194 = vrot.slane %v1155, 1
      %v1195 = vsel %vm503, %v1193, %v1194
      %v1204 = vpack.c.bf16 %v1177, %v1174
      %v1205 = vpack.c.bf16 %v1183, %v1180
      %v1206 = vpack.c.bf16 %v1189, %v1186
      %v1207 = vpack.c.bf16 %v1195, %v1192
      %v1208 = vld [vmem:[%s4 + $0x10] sm:$0xf]
      %v1210 = vsel %vm541, %v1204, 0
      %v1213 = vsel %vm541, %v1205, 0
      %v1216 = vsel %vm541, %v1206, 0
      %v1219 = vsel %vm541, %v1207, 0
      %v1222 = vsel %vm554, %v1208, 0
      %1224 = vmatpush.bf16.msra.mxu0 0
      %1225 = vmatpush.bf16.msra.mxu0 0
      %1226 = vmatpush.bf16.msra.mxu0 0
      %1227 = vmatpush.bf16.msra.mxu0 0
      %1228 = vmatpush.bf16.msra.mxu0 0
      %1229 = vmatpush.bf16.msra.mxu0 0
      %1230 = vmatpush.bf16.msra.mxu0 0
      %1231 = vmatpush.bf16.msra.mxu0 %v1222
      %1232 = vmatmul.bf16.gmra.mxu0 %v1210
      %v1233 = vpop.f32.mrf.mxu0
      %v1234 = vadd.f32 0.0, %v1233
      %v1235 = vpop.f32.mrf.mxu0
      %v1236 = vadd.f32 0.0, %v1235
      %1237 = vmatmul.bf16.gmra.mxu0 %v1213
      %v1238 = vpop.f32.mrf.mxu0
      %v1239 = vadd.f32 0.0, %v1238
      %v1240 = vpop.f32.mrf.mxu0
      %v1241 = vadd.f32 0.0, %v1240
      %1242 = vmatmul.bf16.gmra.mxu0 %v1216
      %v1243 = vpop.f32.mrf.mxu0
      %v1244 = vadd.f32 0.0, %v1243
      %v1245 = vpop.f32.mrf.mxu0
      %v1246 = vadd.f32 0.0, %v1245
      %1247 = vmatmul.bf16.gmra.mxu0 %v1219
      %v1248 = vpop.f32.mrf.mxu0
      %v1249 = vadd.f32 0.0, %v1248
      %v1250 = vpop.f32.mrf.mxu0
      %v1251 = vadd.f32 0.0, %v1250
      %1252 = vdwg.mxu0
      %v1253 = vadd.f32 %v996, %v1234
      %v1254 = vadd.f32 %v997, %v1236
      %v1255 = vadd.f32 %v998, %v1239
      %v1256 = vadd.f32 %v999, %v1241
      %v1257 = vadd.f32 %v1000, %v1244
      %v1258 = vadd.f32 %v1001, %v1246
      %v1259 = vadd.f32 %v1002, %v1249
      %v1260 = vadd.f32 %v1003, %v1251
      %v1261 = vld [vmem:[%s849] sm:$0xe]
      %v1262 = vld [vmem:[%s849 + $0x8] sm:$0xe]
      %v1263 = vld [vmem:[%s849 + $0x10] sm:$0xe]
      %v1264 = vld [vmem:[%s849 + $0x18] sm:$0xe]
      %v1265 = vld [vmem:[%s849 + $0x20] sm:$0xe]
      %v1266 = vld [vmem:[%s849 + $0x28] sm:$0xe]
      %v1267 = vld [vmem:[%s849 + $0x30] sm:$0xe]
      %v1268 = vld [vmem:[%s849 + $0x38] sm:$0xe]
      %v1269 = vunpack.c.l.bf16 %v1261
      %v1270 = vunpack.c.l.bf16 %v1262
      %v1271 = vunpack.c.l.bf16 %v1263
      %v1272 = vunpack.c.l.bf16 %v1264
      %v1273 = vunpack.c.l.bf16 %v1265
      %v1274 = vunpack.c.l.bf16 %v1266
      %v1275 = vunpack.c.l.bf16 %v1267
      %v1276 = vunpack.c.l.bf16 %v1268
      %v1277 = vld [vmem:[%s866 + $0x2] sm:$0xff]
      %v1278 = vld [vmem:[%s866 + $0x12] sm:$0xff]
      %v1279 = vld [vmem:[%s866 + $0x22] sm:$0xff]
      %v1280 = vld [vmem:[%s866 + $0x32] sm:$0xff]
      %v1281 = vld [vmem:[%s866 + $0x42] sm:$0xff]
      %v1282 = vld [vmem:[%s866 + $0x52] sm:$0xff]
      %v1283 = vld [vmem:[%s866 + $0x62] sm:$0xff]
      %v1284 = vld [vmem:[%s866 + $0x72] sm:$0xff]
      %v1285 = vmul.f32 %v1269, %v253
      %v1286 = vmul.f32 %v1270, %v253
      %v1287 = vmul.f32 %v1271, %v253
      %v1288 = vmul.f32 %v1272, %v253
      %v1289 = vmul.f32 %v1273, %v253
      %v1290 = vmul.f32 %v1274, %v253
      %v1291 = vmul.f32 %v1275, %v253
      %v1292 = vmul.f32 %v1276, %v253
      %v1293 = vadd.f32 %v1285, %v264
      %v1294 = vadd.f32 %v1286, %v264
      %v1295 = vadd.f32 %v1287, %v264
      %v1296 = vadd.f32 %v1288, %v264
      %v1297 = vadd.f32 %v1289, %v264
      %v1298 = vadd.f32 %v1290, %v264
      %v1299 = vadd.f32 %v1291, %v264
      %v1300 = vadd.f32 %v1292, %v264
      %v1301 = vmax.f32 %v1293, 0.0
      %v1302 = vmax.f32 %v1294, 0.0
      %v1303 = vmax.f32 %v1295, 0.0
      %v1304 = vmax.f32 %v1296, 0.0
      %v1305 = vmax.f32 %v1297, 0.0
      %v1306 = vmax.f32 %v1298, 0.0
      %v1307 = vmax.f32 %v1299, 0.0
      %v1308 = vmax.f32 %v1300, 0.0
      %1310 = vset.pattern.permute.xlu0 0
      %1311 = vperm.xlu0 %1310, %v1277
      %v1312 = vpop.permute.xlu0 %1311
      %1314 = vset.pattern.permute.xlu0 0
      %1315 = vperm.xlu0 %1314, %v1278
      %v1316 = vpop.permute.xlu0 %1315
      %1318 = vset.pattern.permute.xlu0 0
      %1319 = vperm.xlu0 %1318, %v1279
      %v1320 = vpop.permute.xlu0 %1319
      %1322 = vset.pattern.permute.xlu0 0
      %1323 = vperm.xlu0 %1322, %v1280
      %v1324 = vpop.permute.xlu0 %1323
      %1326 = vset.pattern.permute.xlu0 0
      %1327 = vperm.xlu0 %1326, %v1281
      %v1328 = vpop.permute.xlu0 %1327
      %1330 = vset.pattern.permute.xlu0 0
      %1331 = vperm.xlu0 %1330, %v1282
      %v1332 = vpop.permute.xlu0 %1331
      %1334 = vset.pattern.permute.xlu0 0
      %1335 = vperm.xlu0 %1334, %v1283
      %v1336 = vpop.permute.xlu0 %1335
      %1338 = vset.pattern.permute.xlu0 0
      %1339 = vperm.xlu0 %1338, %v1284
      %v1340 = vpop.permute.xlu0 %1339
      %v1341 = vrot.slane %v1312, 6
      %v1342 = vrot.slane %v1316, 6
      %v1343 = vrot.slane %v1320, 6
      %v1344 = vrot.slane %v1324, 6
      %v1345 = vrot.slane %v1328, 6
      %v1346 = vrot.slane %v1332, 6
      %v1347 = vrot.slane %v1336, 6
      %v1348 = vrot.slane %v1340, 6
      %v1357 = vmul.f32 %v1301, %v1341
      %v1358 = vmul.f32 %v1077, %v1341
      %v1359 = vmul.f32 %v1302, %v1342
      %v1360 = vmul.f32 %v1079, %v1342
      %v1361 = vmul.f32 %v1303, %v1343
      %v1362 = vmul.f32 %v1081, %v1343
      %v1363 = vmul.f32 %v1304, %v1344
      %v1364 = vmul.f32 %v1083, %v1344
      %v1365 = vmul.f32 %v1305, %v1345
      %v1366 = vmul.f32 %v1085, %v1345
      %v1367 = vmul.f32 %v1306, %v1346
      %v1368 = vmul.f32 %v1087, %v1346
      %v1369 = vmul.f32 %v1307, %v1347
      %v1370 = vmul.f32 %v1089, %v1347
      %v1371 = vmul.f32 %v1308, %v1348
      %v1372 = vmul.f32 %v1091, %v1348
      %v1389 = vrot.slane %v1357, 2
      %v1390 = vrot.slane %v1358, 2
      %v1391 = vsel %vm759, %v1389, %v1390
      %v1392 = vrot.slane %v1359, 2
      %v1393 = vrot.slane %v1360, 2
      %v1394 = vsel %vm759, %v1392, %v1393
      %v1395 = vrot.slane %v1361, 2
      %v1396 = vrot.slane %v1362, 2
      %v1397 = vsel %vm759, %v1395, %v1396
      %v1398 = vrot.slane %v1363, 2
      %v1399 = vrot.slane %v1364, 2
      %v1400 = vsel %vm759, %v1398, %v1399
      %v1401 = vrot.slane %v1365, 2
      %v1402 = vrot.slane %v1366, 2
      %v1403 = vsel %vm759, %v1401, %v1402
      %v1404 = vrot.slane %v1367, 2
      %v1405 = vrot.slane %v1368, 2
      %v1406 = vsel %vm759, %v1404, %v1405
      %v1407 = vrot.slane %v1369, 2
      %v1408 = vrot.slane %v1370, 2
      %v1409 = vsel %vm759, %v1407, %v1408
      %v1410 = vrot.slane %v1371, 2
      %v1411 = vrot.slane %v1372, 2
      %v1412 = vsel %vm759, %v1410, %v1411
      %v1421 = vpack.c.bf16 %v1394, %v1391
      %v1422 = vpack.c.bf16 %v1400, %v1397
      %v1423 = vpack.c.bf16 %v1406, %v1403
      %v1424 = vpack.c.bf16 %v1412, %v1409
      %v1425 = vld [vmem:[%s4 + $0x14] sm:$0xf]
      %v1427 = vsel %vm541, %v1421, 0
      %v1430 = vsel %vm541, %v1422, 0
      %v1433 = vsel %vm541, %v1423, 0
      %v1436 = vsel %vm541, %v1424, 0
      %v1439 = vsel %vm554, %v1425, 0
      %1441 = vmatpush.bf16.msra.mxu0 0
      %1442 = vmatpush.bf16.msra.mxu0 0
      %1443 = vmatpush.bf16.msra.mxu0 0
      %1444 = vmatpush.bf16.msra.mxu0 0
      %1445 = vmatpush.bf16.msra.mxu0 0
      %1446 = vmatpush.bf16.msra.mxu0 0
      %1447 = vmatpush.bf16.msra.mxu0 0
      %1448 = vmatpush.bf16.msra.mxu0 %v1439
      %1449 = vmatmul.bf16.gmra.mxu0 %v1427
      %v1450 = vpop.f32.mrf.mxu0
      %v1451 = vadd.f32 0.0, %v1450
      %v1452 = vpop.f32.mrf.mxu0
      %v1453 = vadd.f32 0.0, %v1452
      %1454 = vmatmul.bf16.gmra.mxu0 %v1430
      %v1455 = vpop.f32.mrf.mxu0
      %v1456 = vadd.f32 0.0, %v1455
      %v1457 = vpop.f32.mrf.mxu0
      %v1458 = vadd.f32 0.0, %v1457
      %1459 = vmatmul.bf16.gmra.mxu0 %v1433
      %v1460 = vpop.f32.mrf.mxu0
      %v1461 = vadd.f32 0.0, %v1460
      %v1462 = vpop.f32.mrf.mxu0
      %v1463 = vadd.f32 0.0, %v1462
      %1464 = vmatmul.bf16.gmra.mxu0 %v1436
      %v1465 = vpop.f32.mrf.mxu0
      %v1466 = vadd.f32 0.0, %v1465
      %v1467 = vpop.f32.mrf.mxu0
      %v1468 = vadd.f32 0.0, %v1467
      %1469 = vdwg.mxu0
      %v1470 = vadd.f32 %v1253, %v1451
      %v1471 = vadd.f32 %v1254, %v1453
      %v1472 = vadd.f32 %v1255, %v1456
      %v1473 = vadd.f32 %v1256, %v1458
      %v1474 = vadd.f32 %v1257, %v1461
      %v1475 = vadd.f32 %v1258, %v1463
      %v1476 = vadd.f32 %v1259, %v1466
      %v1477 = vadd.f32 %v1260, %v1468
      %s1478 = scalar_lea.vmem %s219, 16
      %v1479 = vld [vmem:[%s1478] sm:$0xf]
      %v1480 = vld [vmem:[%s1478 + $0x8] sm:$0xf]
      %v1481 = vld [vmem:[%s1478 + $0x10] sm:$0xf]
      %v1482 = vld [vmem:[%s1478 + $0x18] sm:$0xf]
      %v1483 = vld [vmem:[%s1478 + $0x20] sm:$0xf]
      %v1484 = vld [vmem:[%s1478 + $0x28] sm:$0xf]
      %v1485 = vld [vmem:[%s1478 + $0x30] sm:$0xf]
      %v1486 = vld [vmem:[%s1478 + $0x38] sm:$0xf]
      %v1487 = vunpack.c.l.bf16 %v1479
      %v1488 = vunpack.c.l.bf16 %v1480
      %v1489 = vunpack.c.l.bf16 %v1481
      %v1490 = vunpack.c.l.bf16 %v1482
      %v1491 = vunpack.c.l.bf16 %v1483
      %v1492 = vunpack.c.l.bf16 %v1484
      %v1493 = vunpack.c.l.bf16 %v1485
      %v1494 = vunpack.c.l.bf16 %v1486
      %s1495 = scalar_lea.vmem %s1, 32
      %v1496 = vld [vmem:[%s1495] sm:$0xff]
      %v1497 = vld [vmem:[%s1495 + $0x10] sm:$0xff]
      %v1498 = vld [vmem:[%s1495 + $0x20] sm:$0xff]
      %v1499 = vld [vmem:[%s1495 + $0x30] sm:$0xff]
      %v1500 = vld [vmem:[%s1495 + $0x40] sm:$0xff]
      %v1501 = vld [vmem:[%s1495 + $0x50] sm:$0xff]
      %v1502 = vld [vmem:[%s1495 + $0x60] sm:$0xff]
      %v1503 = vld [vmem:[%s1495 + $0x70] sm:$0xff]
      %v1504 = vmul.f32 %v1487, %v253
      %v1505 = vmul.f32 %v1488, %v253
      %v1506 = vmul.f32 %v1489, %v253
      %v1507 = vmul.f32 %v1490, %v253
      %v1508 = vmul.f32 %v1491, %v253
      %v1509 = vmul.f32 %v1492, %v253
      %v1510 = vmul.f32 %v1493, %v253
      %v1511 = vmul.f32 %v1494, %v253
      %v1512 = vadd.f32 %v1504, %v264
      %v1513 = vadd.f32 %v1505, %v264
      %v1514 = vadd.f32 %v1506, %v264
      %v1515 = vadd.f32 %v1507, %v264
      %v1516 = vadd.f32 %v1508, %v264
      %v1517 = vadd.f32 %v1509, %v264
      %v1518 = vadd.f32 %v1510, %v264
      %v1519 = vadd.f32 %v1511, %v264
      %v1520 = vmax.f32 %v1512, 0.0
      %v1521 = vmax.f32 %v1513, 0.0
      %v1522 = vmax.f32 %v1514, 0.0
      %v1523 = vmax.f32 %v1515, 0.0
      %v1524 = vmax.f32 %v1516, 0.0
      %v1525 = vmax.f32 %v1517, 0.0
      %v1526 = vmax.f32 %v1518, 0.0
      %v1527 = vmax.f32 %v1519, 0.0
      %1529 = vset.pattern.permute.xlu0 0
      %1530 = vperm.xlu0 %1529, %v1496
      %v1531 = vpop.permute.xlu0 %1530
      %1534 = vset.pattern.permute.xlu0 0
      %1535 = vperm.xlu0 %1534, %v1497
      %v1536 = vpop.permute.xlu0 %1535
      %1539 = vset.pattern.permute.xlu0 0
      %1540 = vperm.xlu0 %1539, %v1498
      %v1541 = vpop.permute.xlu0 %1540
      %1544 = vset.pattern.permute.xlu0 0
      %1545 = vperm.xlu0 %1544, %v1499
      %v1546 = vpop.permute.xlu0 %1545
      %1549 = vset.pattern.permute.xlu0 0
      %1550 = vperm.xlu0 %1549, %v1500
      %v1551 = vpop.permute.xlu0 %1550
      %1554 = vset.pattern.permute.xlu0 0
      %1555 = vperm.xlu0 %1554, %v1501
      %v1556 = vpop.permute.xlu0 %1555
      %1559 = vset.pattern.permute.xlu0 0
      %1560 = vperm.xlu0 %1559, %v1502
      %v1561 = vpop.permute.xlu0 %1560
      %1564 = vset.pattern.permute.xlu0 0
      %1565 = vperm.xlu0 %1564, %v1503
      %v1566 = vpop.permute.xlu0 %1565
      %v1568 = vmul.f32 %v1520, %v1531
      %v1569 = vmul.f32 %v1521, %v1536
      %v1570 = vmul.f32 %v1522, %v1541
      %v1571 = vmul.f32 %v1523, %v1546
      %v1572 = vmul.f32 %v1524, %v1551
      %v1573 = vmul.f32 %v1525, %v1556
      %v1574 = vmul.f32 %v1526, %v1561
      %v1575 = vmul.f32 %v1527, %v1566
      %v1576 = vpack.c.bf16 %v1569, %v1568
      %v1577 = vpack.c.bf16 %v1571, %v1570
      %v1578 = vpack.c.bf16 %v1573, %v1572
      %v1579 = vpack.c.bf16 %v1575, %v1574
      %v1580 = vld [vmem:[%s4 + $0x18] sm:$0xf]
      %v1582 = vsel %vm541, %v1576, 0
      %v1585 = vsel %vm541, %v1577, 0
      %v1588 = vsel %vm541, %v1578, 0
      %v1591 = vsel %vm541, %v1579, 0
      %v1594 = vsel %vm554, %v1580, 0
      %1596 = vmatpush.bf16.msra.mxu0 0
      %1597 = vmatpush.bf16.msra.mxu0 0
      %1598 = vmatpush.bf16.msra.mxu0 0
      %1599 = vmatpush.bf16.msra.mxu0 0
      %1600 = vmatpush.bf16.msra.mxu0 0
      %1601 = vmatpush.bf16.msra.mxu0 0
      %1602 = vmatpush.bf16.msra.mxu0 0
      %1603 = vmatpush.bf16.msra.mxu0 %v1594
      %1604 = vmatmul.bf16.gmra.mxu0 %v1582
      %v1605 = vpop.f32.mrf.mxu0
      %v1606 = vadd.f32 0.0, %v1605
      %v1607 = vpop.f32.mrf.mxu0
      %v1608 = vadd.f32 0.0, %v1607
      %1609 = vmatmul.bf16.gmra.mxu0 %v1585
      %v1610 = vpop.f32.mrf.mxu0
      %v1611 = vadd.f32 0.0, %v1610
      %v1612 = vpop.f32.mrf.mxu0
      %v1613 = vadd.f32 0.0, %v1612
      %1614 = vmatmul.bf16.gmra.mxu0 %v1588
      %v1615 = vpop.f32.mrf.mxu0
      %v1616 = vadd.f32 0.0, %v1615
      %v1617 = vpop.f32.mrf.mxu0
      %v1618 = vadd.f32 0.0, %v1617
      %1619 = vmatmul.bf16.gmra.mxu0 %v1591
      %v1620 = vpop.f32.mrf.mxu0
      %v1621 = vadd.f32 0.0, %v1620
      %v1622 = vpop.f32.mrf.mxu0
      %v1623 = vadd.f32 0.0, %v1622
      %1624 = vdwg.mxu0
      %v1625 = vadd.f32 %v1470, %v1606
      %v1626 = vadd.f32 %v1471, %v1608
      %v1627 = vadd.f32 %v1472, %v1611
      %v1628 = vadd.f32 %v1473, %v1613
      %v1629 = vadd.f32 %v1474, %v1616
      %v1630 = vadd.f32 %v1475, %v1618
      %v1631 = vadd.f32 %v1476, %v1621
      %v1632 = vadd.f32 %v1477, %v1623
      %v1633 = vld [vmem:[%s1478] sm:$0xf]
      %v1634 = vld [vmem:[%s1478 + $0x4] sm:$0x1]
      %v1635 = vld [vmem:[%s1478 + $0x8] sm:$0xf]
      %v1636 = vld [vmem:[%s1478 + $0xc] sm:$0x1]
      %v1637 = vld [vmem:[%s1478 + $0x10] sm:$0xf]
      %v1638 = vld [vmem:[%s1478 + $0x14] sm:$0x1]
      %v1639 = vld [vmem:[%s1478 + $0x18] sm:$0xf]
      %v1640 = vld [vmem:[%s1478 + $0x1c] sm:$0x1]
      %v1641 = vld [vmem:[%s1478 + $0x20] sm:$0xf]
      %v1642 = vld [vmem:[%s1478 + $0x24] sm:$0x1]
      %v1643 = vld [vmem:[%s1478 + $0x28] sm:$0xf]
      %v1644 = vld [vmem:[%s1478 + $0x2c] sm:$0x1]
      %v1645 = vld [vmem:[%s1478 + $0x30] sm:$0xf]
      %v1646 = vld [vmem:[%s1478 + $0x34] sm:$0x1]
      %v1647 = vld [vmem:[%s1478 + $0x38] sm:$0xf]
      %v1648 = vld [vmem:[%s1478 + $0x3c] sm:$0x1]
      %v1649 = vunpack.c.l.bf16 %v1633
      %v1650 = vunpack.c.l.bf16 %v1634
      %v1651 = vunpack.c.l.bf16 %v1635
      %v1652 = vunpack.c.l.bf16 %v1636
      %v1653 = vunpack.c.l.bf16 %v1637
      %v1654 = vunpack.c.l.bf16 %v1638
      %v1655 = vunpack.c.l.bf16 %v1639
      %v1656 = vunpack.c.l.bf16 %v1640
      %v1657 = vunpack.c.l.bf16 %v1641
      %v1658 = vunpack.c.l.bf16 %v1642
      %v1659 = vunpack.c.l.bf16 %v1643
      %v1660 = vunpack.c.l.bf16 %v1644
      %v1661 = vunpack.c.l.bf16 %v1645
      %v1662 = vunpack.c.l.bf16 %v1646
      %v1663 = vunpack.c.l.bf16 %v1647
      %v1664 = vunpack.c.l.bf16 %v1648
      %v1665 = vld [vmem:[%s1495 + $0x1] sm:$0xff]
      %v1666 = vld [vmem:[%s1495 + $0x11] sm:$0xff]
      %v1667 = vld [vmem:[%s1495 + $0x21] sm:$0xff]
      %v1668 = vld [vmem:[%s1495 + $0x31] sm:$0xff]
      %v1669 = vld [vmem:[%s1495 + $0x41] sm:$0xff]
      %v1670 = vld [vmem:[%s1495 + $0x51] sm:$0xff]
      %v1671 = vld [vmem:[%s1495 + $0x61] sm:$0xff]
      %v1672 = vld [vmem:[%s1495 + $0x71] sm:$0xff]
      %v1673 = vmul.f32 %v1649, %v253
      %v1674 = vmul.f32 %v1650, %v253
      %v1675 = vmul.f32 %v1651, %v253
      %v1676 = vmul.f32 %v1652, %v253
      %v1677 = vmul.f32 %v1653, %v253
      %v1678 = vmul.f32 %v1654, %v253
      %v1679 = vmul.f32 %v1655, %v253
      %v1680 = vmul.f32 %v1656, %v253
      %v1681 = vmul.f32 %v1657, %v253
      %v1682 = vmul.f32 %v1658, %v253
      %v1683 = vmul.f32 %v1659, %v253
      %v1684 = vmul.f32 %v1660, %v253
      %v1685 = vmul.f32 %v1661, %v253
      %v1686 = vmul.f32 %v1662, %v253
      %v1687 = vmul.f32 %v1663, %v253
      %v1688 = vmul.f32 %v1664, %v253
      %v1689 = vadd.f32 %v1673, %v264
      %v1690 = vadd.f32 %v1674, %v264
      %v1691 = vadd.f32 %v1675, %v264
      %v1692 = vadd.f32 %v1676, %v264
      %v1693 = vadd.f32 %v1677, %v264
      %v1694 = vadd.f32 %v1678, %v264
      %v1695 = vadd.f32 %v1679, %v264
      %v1696 = vadd.f32 %v1680, %v264
      %v1697 = vadd.f32 %v1681, %v264
      %v1698 = vadd.f32 %v1682, %v264
      %v1699 = vadd.f32 %v1683, %v264
      %v1700 = vadd.f32 %v1684, %v264
      %v1701 = vadd.f32 %v1685, %v264
      %v1702 = vadd.f32 %v1686, %v264
      %v1703 = vadd.f32 %v1687, %v264
      %v1704 = vadd.f32 %v1688, %v264
      %v1705 = vmax.f32 %v1689, 0.0
      %v1706 = vmax.f32 %v1690, 0.0
      %v1707 = vmax.f32 %v1691, 0.0
      %v1708 = vmax.f32 %v1692, 0.0
      %v1709 = vmax.f32 %v1693, 0.0
      %v1710 = vmax.f32 %v1694, 0.0
      %v1711 = vmax.f32 %v1695, 0.0
      %v1712 = vmax.f32 %v1696, 0.0
      %v1713 = vmax.f32 %v1697, 0.0
      %v1714 = vmax.f32 %v1698, 0.0
      %v1715 = vmax.f32 %v1699, 0.0
      %v1716 = vmax.f32 %v1700, 0.0
      %v1717 = vmax.f32 %v1701, 0.0
      %v1718 = vmax.f32 %v1702, 0.0
      %v1719 = vmax.f32 %v1703, 0.0
      %v1720 = vmax.f32 %v1704, 0.0
      %1722 = vset.pattern.permute.xlu0 0
      %1723 = vperm.xlu0 %1722, %v1665
      %v1724 = vpop.permute.xlu0 %1723
      %1726 = vset.pattern.permute.xlu0 0
      %1727 = vperm.xlu0 %1726, %v1666
      %v1728 = vpop.permute.xlu0 %1727
      %1730 = vset.pattern.permute.xlu0 0
      %1731 = vperm.xlu0 %1730, %v1667
      %v1732 = vpop.permute.xlu0 %1731
      %1734 = vset.pattern.permute.xlu0 0
      %1735 = vperm.xlu0 %1734, %v1668
      %v1736 = vpop.permute.xlu0 %1735
      %1738 = vset.pattern.permute.xlu0 0
      %1739 = vperm.xlu0 %1738, %v1669
      %v1740 = vpop.permute.xlu0 %1739
      %1742 = vset.pattern.permute.xlu0 0
      %1743 = vperm.xlu0 %1742, %v1670
      %v1744 = vpop.permute.xlu0 %1743
      %1746 = vset.pattern.permute.xlu0 0
      %1747 = vperm.xlu0 %1746, %v1671
      %v1748 = vpop.permute.xlu0 %1747
      %1750 = vset.pattern.permute.xlu0 0
      %1751 = vperm.xlu0 %1750, %v1672
      %v1752 = vpop.permute.xlu0 %1751
      %v1753 = vrot.slane %v1724, 7
      %v1754 = vrot.slane %v1728, 7
      %v1755 = vrot.slane %v1732, 7
      %v1756 = vrot.slane %v1736, 7
      %v1757 = vrot.slane %v1740, 7
      %v1758 = vrot.slane %v1744, 7
      %v1759 = vrot.slane %v1748, 7
      %v1760 = vrot.slane %v1752, 7
      %v1769 = vmul.f32 %v1705, %v1753
      %v1770 = vmul.f32 %v1706, %v1753
      %v1771 = vmul.f32 %v1707, %v1754
      %v1772 = vmul.f32 %v1708, %v1754
      %v1773 = vmul.f32 %v1709, %v1755
      %v1774 = vmul.f32 %v1710, %v1755
      %v1775 = vmul.f32 %v1711, %v1756
      %v1776 = vmul.f32 %v1712, %v1756
      %v1777 = vmul.f32 %v1713, %v1757
      %v1778 = vmul.f32 %v1714, %v1757
      %v1779 = vmul.f32 %v1715, %v1758
      %v1780 = vmul.f32 %v1716, %v1758
      %v1781 = vmul.f32 %v1717, %v1759
      %v1782 = vmul.f32 %v1718, %v1759
      %v1783 = vmul.f32 %v1719, %v1760
      %v1784 = vmul.f32 %v1720, %v1760
      %v1801 = vrot.slane %v1769, 1
      %v1802 = vrot.slane %v1770, 1
      %v1803 = vsel %vm503, %v1801, %v1802
      %v1804 = vrot.slane %v1771, 1
      %v1805 = vrot.slane %v1772, 1
      %v1806 = vsel %vm503, %v1804, %v1805
      %v1807 = vrot.slane %v1773, 1
      %v1808 = vrot.slane %v1774, 1
      %v1809 = vsel %vm503, %v1807, %v1808
      %v1810 = vrot.slane %v1775, 1
      %v1811 = vrot.slane %v1776, 1
      %v1812 = vsel %vm503, %v1810, %v1811
      %v1813 = vrot.slane %v1777, 1
      %v1814 = vrot.slane %v1778, 1
      %v1815 = vsel %vm503, %v1813, %v1814
      %v1816 = vrot.slane %v1779, 1
      %v1817 = vrot.slane %v1780, 1
      %v1818 = vsel %vm503, %v1816, %v1817
      %v1819 = vrot.slane %v1781, 1
      %v1820 = vrot.slane %v1782, 1
      %v1821 = vsel %vm503, %v1819, %v1820
      %v1822 = vrot.slane %v1783, 1
      %v1823 = vrot.slane %v1784, 1
      %v1824 = vsel %vm503, %v1822, %v1823
      %v1833 = vpack.c.bf16 %v1806, %v1803
      %v1834 = vpack.c.bf16 %v1812, %v1809
      %v1835 = vpack.c.bf16 %v1818, %v1815
      %v1836 = vpack.c.bf16 %v1824, %v1821
      %v1837 = vld [vmem:[%s4 + $0x1c] sm:$0xf]
      %v1839 = vsel %vm541, %v1833, 0
      %v1842 = vsel %vm541, %v1834, 0
      %v1845 = vsel %vm541, %v1835, 0
      %v1848 = vsel %vm541, %v1836, 0
      %v1851 = vsel %vm554, %v1837, 0
      %1853 = vmatpush.bf16.msra.mxu0 0
      %1854 = vmatpush.bf16.msra.mxu0 0
      %1855 = vmatpush.bf16.msra.mxu0 0
      %1856 = vmatpush.bf16.msra.mxu0 0
      %1857 = vmatpush.bf16.msra.mxu0 0
      %1858 = vmatpush.bf16.msra.mxu0 0
      %1859 = vmatpush.bf16.msra.mxu0 0
      %1860 = vmatpush.bf16.msra.mxu0 %v1851
      %1861 = vmatmul.bf16.gmra.mxu0 %v1839
      %v1862 = vpop.f32.mrf.mxu0
      %v1863 = vadd.f32 0.0, %v1862
      %v1864 = vpop.f32.mrf.mxu0
      %v1865 = vadd.f32 0.0, %v1864
      %1866 = vmatmul.bf16.gmra.mxu0 %v1842
      %v1867 = vpop.f32.mrf.mxu0
      %v1868 = vadd.f32 0.0, %v1867
      %v1869 = vpop.f32.mrf.mxu0
      %v1870 = vadd.f32 0.0, %v1869
      %1871 = vmatmul.bf16.gmra.mxu0 %v1845
      %v1872 = vpop.f32.mrf.mxu0
      %v1873 = vadd.f32 0.0, %v1872
      %v1874 = vpop.f32.mrf.mxu0
      %v1875 = vadd.f32 0.0, %v1874
      %1876 = vmatmul.bf16.gmra.mxu0 %v1848
      %v1877 = vpop.f32.mrf.mxu0
      %v1878 = vadd.f32 0.0, %v1877
      %v1879 = vpop.f32.mrf.mxu0
      %v1880 = vadd.f32 0.0, %v1879
      %1881 = vdwg.mxu0
      %v1882 = vadd.f32 %v1625, %v1863
      %v1883 = vadd.f32 %v1626, %v1865
      %v1884 = vadd.f32 %v1627, %v1868
      %v1885 = vadd.f32 %v1628, %v1870
      %v1886 = vadd.f32 %v1629, %v1873
      %v1887 = vadd.f32 %v1630, %v1875
      %v1888 = vadd.f32 %v1631, %v1878
      %v1889 = vadd.f32 %v1632, %v1880
      %v1890 = vld [vmem:[%s1478] sm:$0xe]
      %v1891 = vld [vmem:[%s1478 + $0x8] sm:$0xe]
      %v1892 = vld [vmem:[%s1478 + $0x10] sm:$0xe]
      %v1893 = vld [vmem:[%s1478 + $0x18] sm:$0xe]
      %v1894 = vld [vmem:[%s1478 + $0x20] sm:$0xe]
      %v1895 = vld [vmem:[%s1478 + $0x28] sm:$0xe]
      %v1896 = vld [vmem:[%s1478 + $0x30] sm:$0xe]
      %v1897 = vld [vmem:[%s1478 + $0x38] sm:$0xe]
      %v1898 = vunpack.c.l.bf16 %v1890
      %v1899 = vunpack.c.l.bf16 %v1891
      %v1900 = vunpack.c.l.bf16 %v1892
      %v1901 = vunpack.c.l.bf16 %v1893
      %v1902 = vunpack.c.l.bf16 %v1894
      %v1903 = vunpack.c.l.bf16 %v1895
      %v1904 = vunpack.c.l.bf16 %v1896
      %v1905 = vunpack.c.l.bf16 %v1897
      %v1906 = vld [vmem:[%s1495 + $0x2] sm:$0xff]
      %v1907 = vld [vmem:[%s1495 + $0x12] sm:$0xff]
      %v1908 = vld [vmem:[%s1495 + $0x22] sm:$0xff]
      %v1909 = vld [vmem:[%s1495 + $0x32] sm:$0xff]
      %v1910 = vld [vmem:[%s1495 + $0x42] sm:$0xff]
      %v1911 = vld [vmem:[%s1495 + $0x52] sm:$0xff]
      %v1912 = vld [vmem:[%s1495 + $0x62] sm:$0xff]
      %v1913 = vld [vmem:[%s1495 + $0x72] sm:$0xff]
      %v1914 = vmul.f32 %v1898, %v253
      %v1915 = vmul.f32 %v1899, %v253
      %v1916 = vmul.f32 %v1900, %v253
      %v1917 = vmul.f32 %v1901, %v253
      %v1918 = vmul.f32 %v1902, %v253
      %v1919 = vmul.f32 %v1903, %v253
      %v1920 = vmul.f32 %v1904, %v253
      %v1921 = vmul.f32 %v1905, %v253
      %v1922 = vadd.f32 %v1914, %v264
      %v1923 = vadd.f32 %v1915, %v264
      %v1924 = vadd.f32 %v1916, %v264
      %v1925 = vadd.f32 %v1917, %v264
      %v1926 = vadd.f32 %v1918, %v264
      %v1927 = vadd.f32 %v1919, %v264
      %v1928 = vadd.f32 %v1920, %v264
      %v1929 = vadd.f32 %v1921, %v264
      %v1930 = vmax.f32 %v1922, 0.0
      %v1931 = vmax.f32 %v1923, 0.0
      %v1932 = vmax.f32 %v1924, 0.0
      %v1933 = vmax.f32 %v1925, 0.0
      %v1934 = vmax.f32 %v1926, 0.0
      %v1935 = vmax.f32 %v1927, 0.0
      %v1936 = vmax.f32 %v1928, 0.0
      %v1937 = vmax.f32 %v1929, 0.0
      %1939 = vset.pattern.permute.xlu0 0
      %1940 = vperm.xlu0 %1939, %v1906
      %v1941 = vpop.permute.xlu0 %1940
      %1943 = vset.pattern.permute.xlu0 0
      %1944 = vperm.xlu0 %1943, %v1907
      %v1945 = vpop.permute.xlu0 %1944
      %1947 = vset.pattern.permute.xlu0 0
      %1948 = vperm.xlu0 %1947, %v1908
      %v1949 = vpop.permute.xlu0 %1948
      %1951 = vset.pattern.permute.xlu0 0
      %1952 = vperm.xlu0 %1951, %v1909
      %v1953 = vpop.permute.xlu0 %1952
      %1955 = vset.pattern.permute.xlu0 0
      %1956 = vperm.xlu0 %1955, %v1910
      %v1957 = vpop.permute.xlu0 %1956
      %1959 = vset.pattern.permute.xlu0 0
      %1960 = vperm.xlu0 %1959, %v1911
      %v1961 = vpop.permute.xlu0 %1960
      %1963 = vset.pattern.permute.xlu0 0
      %1964 = vperm.xlu0 %1963, %v1912
      %v1965 = vpop.permute.xlu0 %1964
      %1967 = vset.pattern.permute.xlu0 0
      %1968 = vperm.xlu0 %1967, %v1913
      %v1969 = vpop.permute.xlu0 %1968
      %v1970 = vrot.slane %v1941, 6
      %v1971 = vrot.slane %v1945, 6
      %v1972 = vrot.slane %v1949, 6
      %v1973 = vrot.slane %v1953, 6
      %v1974 = vrot.slane %v1957, 6
      %v1975 = vrot.slane %v1961, 6
      %v1976 = vrot.slane %v1965, 6
      %v1977 = vrot.slane %v1969, 6
      %v1986 = vmul.f32 %v1930, %v1970
      %v1987 = vmul.f32 %v1706, %v1970
      %v1988 = vmul.f32 %v1931, %v1971
      %v1989 = vmul.f32 %v1708, %v1971
      %v1990 = vmul.f32 %v1932, %v1972
      %v1991 = vmul.f32 %v1710, %v1972
      %v1992 = vmul.f32 %v1933, %v1973
      %v1993 = vmul.f32 %v1712, %v1973
      %v1994 = vmul.f32 %v1934, %v1974
      %v1995 = vmul.f32 %v1714, %v1974
      %v1996 = vmul.f32 %v1935, %v1975
      %v1997 = vmul.f32 %v1716, %v1975
      %v1998 = vmul.f32 %v1936, %v1976
      %v1999 = vmul.f32 %v1718, %v1976
      %v2000 = vmul.f32 %v1937, %v1977
      %v2001 = vmul.f32 %v1720, %v1977
      %v2018 = vrot.slane %v1986, 2
      %v2019 = vrot.slane %v1987, 2
      %v2020 = vsel %vm759, %v2018, %v2019
      %v2021 = vrot.slane %v1988, 2
      %v2022 = vrot.slane %v1989, 2
      %v2023 = vsel %vm759, %v2021, %v2022
      %v2024 = vrot.slane %v1990, 2
      %v2025 = vrot.slane %v1991, 2
      %v2026 = vsel %vm759, %v2024, %v2025
      %v2027 = vrot.slane %v1992, 2
      %v2028 = vrot.slane %v1993, 2
      %v2029 = vsel %vm759, %v2027, %v2028
      %v2030 = vrot.slane %v1994, 2
      %v2031 = vrot.slane %v1995, 2
      %v2032 = vsel %vm759, %v2030, %v2031
      %v2033 = vrot.slane %v1996, 2
      %v2034 = vrot.slane %v1997, 2
      %v2035 = vsel %vm759, %v2033, %v2034
      %v2036 = vrot.slane %v1998, 2
      %v2037 = vrot.slane %v1999, 2
      %v2038 = vsel %vm759, %v2036, %v2037
      %v2039 = vrot.slane %v2000, 2
      %v2040 = vrot.slane %v2001, 2
      %v2041 = vsel %vm759, %v2039, %v2040
      %v2050 = vpack.c.bf16 %v2023, %v2020
      %v2051 = vpack.c.bf16 %v2029, %v2026
      %v2052 = vpack.c.bf16 %v2035, %v2032
      %v2053 = vpack.c.bf16 %v2041, %v2038
      %v2054 = vld [vmem:[%s4 + $0x20] sm:$0xf]
      %v2056 = vsel %vm541, %v2050, 0
      %v2059 = vsel %vm541, %v2051, 0
      %v2062 = vsel %vm541, %v2052, 0
      %v2065 = vsel %vm541, %v2053, 0
      %v2068 = vsel %vm554, %v2054, 0
      %2070 = vmatpush.bf16.msra.mxu0 0
      %2071 = vmatpush.bf16.msra.mxu0 0
      %2072 = vmatpush.bf16.msra.mxu0 0
      %2073 = vmatpush.bf16.msra.mxu0 0
      %2074 = vmatpush.bf16.msra.mxu0 0
      %2075 = vmatpush.bf16.msra.mxu0 0
      %2076 = vmatpush.bf16.msra.mxu0 0
      %2077 = vmatpush.bf16.msra.mxu0 %v2068
      %2078 = vmatmul.bf16.gmra.mxu0 %v2056
      %v2079 = vpop.f32.mrf.mxu0
      %v2080 = vadd.f32 0.0, %v2079
      %v2081 = vpop.f32.mrf.mxu0
      %v2082 = vadd.f32 0.0, %v2081
      %2083 = vmatmul.bf16.gmra.mxu0 %v2059
      %v2084 = vpop.f32.mrf.mxu0
      %v2085 = vadd.f32 0.0, %v2084
      %v2086 = vpop.f32.mrf.mxu0
      %v2087 = vadd.f32 0.0, %v2086
      %2088 = vmatmul.bf16.gmra.mxu0 %v2062
      %v2089 = vpop.f32.mrf.mxu0
      %v2090 = vadd.f32 0.0, %v2089
      %v2091 = vpop.f32.mrf.mxu0
      %v2092 = vadd.f32 0.0, %v2091
      %2093 = vmatmul.bf16.gmra.mxu0 %v2065
      %v2094 = vpop.f32.mrf.mxu0
      %v2095 = vadd.f32 0.0, %v2094
      %v2096 = vpop.f32.mrf.mxu0
      %v2097 = vadd.f32 0.0, %v2096
      %2098 = vdwg.mxu0
      %v2099 = vadd.f32 %v1882, %v2080
      %v2100 = vadd.f32 %v1883, %v2082
      %v2101 = vadd.f32 %v1884, %v2085
      %v2102 = vadd.f32 %v1885, %v2087
      %v2103 = vadd.f32 %v1886, %v2090
      %v2104 = vadd.f32 %v1887, %v2092
      %v2105 = vadd.f32 %v1888, %v2095
      %v2106 = vadd.f32 %v1889, %v2097
      %v2107 = vpack.c.bf16 %v2099, %v2099
      %v2108 = vpack.c.bf16 %v2100, %v2100
      %v2109 = vpack.c.bf16 %v2101, %v2101
      %v2110 = vpack.c.bf16 %v2102, %v2102
      %v2111 = vpack.c.bf16 %v2103, %v2103
      %v2112 = vpack.c.bf16 %v2104, %v2104
      %v2113 = vpack.c.bf16 %v2105, %v2105
      %v2114 = vpack.c.bf16 %v2106, %v2106
      %vm2115 = vcmask 60416
      %2116 = vst.msk [vmem:[%s224] sm:$0xf] %vm2115, %v2107
      %2117 = vst.msk [vmem:[%s224 + $0x4] sm:$0xf] %vm2115, %v2108
      %2118 = vst.msk [vmem:[%s224 + $0x8] sm:$0xf] %vm2115, %v2109
      %2119 = vst.msk [vmem:[%s224 + $0xc] sm:$0xf] %vm2115, %v2110
      %2120 = vst.msk [vmem:[%s224 + $0x10] sm:$0xf] %vm2115, %v2111
      %2121 = vst.msk [vmem:[%s224 + $0x14] sm:$0xf] %vm2115, %v2112
      %2122 = vst.msk [vmem:[%s224 + $0x18] sm:$0xf] %vm2115, %v2113
      %2123 = vst.msk [vmem:[%s224 + $0x1c] sm:$0xf] %vm2115, %v2114
      %p2124 = scmp.lt.s32.totalorder %s16, 1
      %s2125 = scalar_select %p2124, %s16, 1
      %s2126 = smul.addr %s2125, 8
      %s2127 = smul.addr %s2126, 4
      %s2128 = scalar_lea.vmem %s5, %s2127
      // Predicated region
      $region41: #{_lambda_.15} parent=39 // pred_check
        %p2129 = pneg %p144
      $region42: #{_lambda_.15} parent=39 // pred_check_branch
        %2131 = sbr.rel (%p2129) target = $region44
      $region43: #{_lambda_.15} parent=39 // pred_region
        _
      $region44: #{_lambda_.15} parent=39 // pred_fallthru
        _
    $region40: #{_lambda_.15} parent=5 // pred_fallthru
      _
    %p2132 = scmp.le.s32.totalorder 2, %s11
    // Predicated region
    $region45: #{_lambda_.15} parent=5 // pred_check
      %p2133 = pneg %p2132
    $region46: #{_lambda_.15} parent=5 // pred_check_branch
      %2135 = sbr.rel (%p2133) target = $region48
    $region47: #{_lambda_.15} parent=5 // pred_region
      %s2136 = ssub.s32 %s11, 2
      // Predicated region
      $region49: #{_lambda_.15} parent=47 // pred_check
        %p2137 = pneg %p150
      $region50: #{_lambda_.15} parent=47 // pred_check_branch
        %2139 = sbr.rel (%p2137) target = $region52
      $region51: #{_lambda_.15} parent=47 // pred_region
        %p2140 = scmp.lt.s32.totalorder %s17, 1
        %s2141 = scalar_select %p2140, %s17, 1
        %s2142 = smul.addr %s2141, 8
        %s2143 = smul.addr %s2142, 4
        %s2144 = scalar_lea.vmem %s5, %s2143
      $region52: #{_lambda_.15} parent=47 // pred_fallthru
        _
    $region48: #{_lambda_.15} parent=5 // pred_fallthru
      _
  $region6: #{_lambda_.15} parent=0 // loop_footer
    %s15 = sadd.s32 1, %s11
  $region7: #{_lambda_.15} parent=0 // loop_footer_branch
    %10 = sbr.rel target = $region3
  $region8: #{_lambda_.15} parent=0 // loop_exit
    _

</llo_original>
